<compile_context>
chip_gen: v7x
topology: tpu7x:2x2x1
jax: 0.10.0
libtpu: 0.0.40
codegen_flags: <defaults>
</compile_context>

<pallas_src>
import numpy as np

import jax
import jax.numpy as jnp
from jax.experimental import pallas as pl
from jax.experimental.pallas import tpu as pltpu

_BN_EPS = 1e-5
TB = 32  # batch tile per grid step (keep grid = Bp//TB even on v7x for its 2 TCs)


# ----------------------------------------------------------------------------
# Fused forward kernel (one grid step = TB images)
# ----------------------------------------------------------------------------
def _fused_cnn_kernel(x_ref, m1_ref, n2_ref, w1d_ref, w2d_ref, w3d_ref,
                      aff1_ref, aff2_ref, affd1_ref, affd2_ref, bout_ref,
                      out_ref):
    f32 = jnp.float32
    bf16 = jnp.bfloat16

    def mm(a, b_ref):
        # bf16 MXU operands, f32 accumulation.
        return jnp.dot(a, b_ref[...], preferred_element_type=f32)

    def bn_relu(v, aff_ref):
        # folded inference BatchNorm affine + ReLU in f32, single cast to bf16.
        return jnp.maximum(v * aff_ref[0:1, :] + aff_ref[1:2, :], 0.0).astype(bf16)

    x = x_ref[...]                                            # [30*TB, 32] bf16, rows (hp, b)

    # ---- conv1 (3x3, pad 1, 1->16) + BN + ReLU -------------------------------
    # The 3 h-taps are contiguous TB-aligned row slices of the padded image slab,
    # lane-concatenated into one K=96 GEMM.  Output rows (h, b); lanes (w-parity, j, c).
    xcat = jnp.concatenate([x[0:28 * TB], x[TB:29 * TB], x[2 * TB:30 * TB]], axis=1)
    a1 = bn_relu(mm(xcat, m1_ref), aff1_ref)                  # [28*TB, 512]

    # ---- maxpool1, w direction: aligned 256-lane parity halves ---------------
    a1w = jnp.maximum(a1[:, 0:256], a1[:, 256:512])           # [28*TB, 256] lanes (j, c)

    # ---- maxpool1, h direction (+ conv2 zero h-padding rows) -----------------
    zpad = jnp.zeros((TB, 256), bf16)
    p1 = jnp.concatenate(
        [zpad]
        + [jnp.maximum(a1w[2 * g * TB:(2 * g + 1) * TB],
                       a1w[(2 * g + 1) * TB:(2 * g + 2) * TB]) for g in range(14)]
        + [zpad],
        axis=0)                                               # [16*TB, 256], rows (g+1, b)

    # ---- conv2 (3x3, pad 1, 16->32) + BN + ReLU ------------------------------
    # 3 h-taps again contiguous row slices, folded into one K=768 GEMM.
    c2in = jnp.concatenate([p1[0:14 * TB], p1[TB:15 * TB], p1[2 * TB:16 * TB]], axis=1)
    a2 = bn_relu(mm(c2in, n2_ref), aff2_ref)                  # [14*TB, 512] lanes (p2, u, d)

    # ---- maxpool2, w direction ------------------------------------------------
    a2w = jnp.maximum(a2[:, 0:256], a2[:, 256:512])           # [14*TB, 256] lanes (u, d)

    # ---- maxpool2, h direction + flatten: one lane-dense dense1 operand ------
    d1in = jnp.concatenate(
        [jnp.maximum(a2w[2 * g2 * TB:(2 * g2 + 1) * TB],
                     a2w[(2 * g2 + 1) * TB:(2 * g2 + 2) * TB]) for g2 in range(7)],
        axis=1)                                               # [TB, 1792] lanes (g2, u, d)

    # ---- dense1 + BN + ReLU (single GEMM) -------------------------------------
    d1 = bn_relu(mm(d1in, w1d_ref), affd1_ref)                # [TB, 512]

    # Dropout(0.2): inference no-op.
    # TODO(synk): train-mode BatchNorm (batch stats) / stochastic Dropout not implemented.

    # ---- dense2 + BN + ReLU ----------------------------------------------------
    d2 = bn_relu(mm(d1, w2d_ref), affd2_ref)                  # [TB, 128]

    # ---- output layer (lane-dense: logits live in lanes 0..9) -----------------
    out_ref[...] = mm(d2, w3d_ref) + bout_ref[...]            # [TB, 128] f32


# ----------------------------------------------------------------------------
# One-time parameter preparation (BN folding + structured conv/dense matrices)
# ----------------------------------------------------------------------------
def prepare_params(params):
    f32 = np.float32

    def fold(bias, bn):
        gamma, beta, mean, var = [np.asarray(t, f32) for t in bn]
        s = gamma / np.sqrt(var + _BN_EPS)
        t = beta + (np.asarray(bias, f32) - mean) * s
        return s, t

    w1 = np.asarray(params["conv1_w"], f32)        # [16, 1, 3, 3]
    w2 = np.asarray(params["conv2_w"], f32)        # [32, 16, 3, 3]

    # conv1 block-Toeplitz: rows = dh*32 + wp (wp = padded w index), cols = p*256 + j*16 + c
    # (output w = 2j + p).
    m1 = np.zeros((96, 512), f32)
    for dh in range(3):
        for p in range(2):
            for j in range(14):
                w_out = 2 * j + p
                for dw in range(3):
                    wp = w_out + dw                 # wp = w_in + 1 (zero-padded image cols)
                    m1[dh * 32 + wp, p * 256 + j * 16: p * 256 + j * 16 + 16] = w1[:, 0, dh, dw]

    # conv2 block-Toeplitz: rows = dh*256 + j*16 + c (pooled1 lanes), cols = p2*256 + u*32 + d
    # (output w2 = 2u + p2).
    n2 = np.zeros((768, 512), f32)
    for dh in range(3):
        for p2 in range(2):
            for u in range(7):
                w2out = 2 * u + p2
                for dw in range(3):
                    jin = w2out + dw - 1            # pooled1 w index (zero-pad outside)
                    if 0 <= jin < 14:
                        n2[dh * 256 + jin * 16: dh * 256 + jin * 16 + 16,
                           p2 * 256 + u * 32: p2 * 256 + u * 32 + 32] = w2[:, :, dh, dw].T

    # dense1 weight: rows ordered (g2, u, d) to match the kernel's pooled2 lane layout
    # (PyTorch flattens NCHW as (d, g2, u)); pad lanes (u >= 7 slots) stay zero.
    d1w = np.asarray(params["dense1_w"], f32).reshape(512, 32, 7, 7)   # [o, d, g2, u]
    w1d = np.zeros((1792, 512), f32)
    for g2 in range(7):
        for u in range(7):
            w1d[g2 * 256 + u * 32: g2 * 256 + (u + 1) * 32, :] = d1w[:, :, g2, u].T

    w2d = np.asarray(params["dense2_w"], f32).T                        # [512, 128]
    w3d = np.zeros((128, 128), f32)
    w3d[:, :10] = np.asarray(params["output_w"], f32).T                # logits in lanes 0..9

    s1, t1 = fold(params["conv1_b"], params["bn2d1"])
    s2, t2 = fold(params["conv2_b"], params["bn2d2"])
    sd1, td1 = fold(params["dense1_b"], params["bn1"])
    sd2, td2 = fold(params["dense2_b"], params["bn2"])

    aff1 = np.zeros((2, 512), f32)                  # per-lane (p, j, c); pad lanes stay 0
    for p in range(2):
        for j in range(14):
            aff1[0, p * 256 + j * 16: p * 256 + (j + 1) * 16] = s1
            aff1[1, p * 256 + j * 16: p * 256 + (j + 1) * 16] = t1
    aff2 = np.zeros((2, 512), f32)                  # per-lane (p2, u, d); pad lanes stay 0
    for p2 in range(2):
        for u in range(7):
            aff2[0, p2 * 256 + u * 32: p2 * 256 + (u + 1) * 32] = s2
            aff2[1, p2 * 256 + u * 32: p2 * 256 + (u + 1) * 32] = t2
    affd1 = np.stack([sd1, td1])                    # [2, 512]
    affd2 = np.stack([sd2, td2])                    # [2, 128]
    bout = np.zeros((1, 128), f32)
    bout[0, :10] = np.asarray(params["output_b"], f32)

    bf = lambda a: jnp.asarray(a, jnp.bfloat16)
    return {
        "m1": bf(m1), "n2": bf(n2), "w1d": bf(w1d), "w2d": bf(w2d), "w3d": bf(w3d),
        "aff1": jnp.asarray(aff1), "aff2": jnp.asarray(aff2),
        "affd1": jnp.asarray(affd1), "affd2": jnp.asarray(affd2),
        "bout": jnp.asarray(bout),
    }


# ----------------------------------------------------------------------------
# Forward pass wrapper
# ----------------------------------------------------------------------------
def conv_neural_network_forward(x, prep):
    """x: [B, 1, 28, 28] float32 -> logits [B, 10] (inference semantics)."""
    B = x.shape[0]
    nT = -(-B // TB)
    Bp = nT * TB
    x = x.reshape(B, 28, 28)
    if Bp != B:
        x = jnp.pad(x, ((0, Bp - B), (0, 0), (0, 0)))
    # zero-padded image: rows hp = h+1 in [0,30), lanes wp = w+1 in [0,32)
    xp = jnp.pad(x, ((0, 0), (1, 1), (1, 3)))                          # [Bp, 30, 32]
    # per-tile row order (hp, b): contiguous TB-aligned row slices give the conv h-taps
    xt = (xp.reshape(nT, TB, 30, 32).transpose(0, 2, 1, 3)
            .reshape(nT * 30 * TB, 32).astype(jnp.bfloat16))

    const = lambda i: (0, 0)
    logits = pl.pallas_call(
        _fused_cnn_kernel,
        out_shape=jax.ShapeDtypeStruct((Bp, 128), jnp.float32),
        grid=(nT,),
        in_specs=[
            pl.BlockSpec((30 * TB, 32), lambda i: (i, 0)),   # padded image slab (batch tiled)
            pl.BlockSpec((96, 512), const),                  # m1   (conv1 Toeplitz)
            pl.BlockSpec((768, 512), const),                 # n2   (conv2 Toeplitz)
            pl.BlockSpec((1792, 512), const),                # w1d
            pl.BlockSpec((512, 128), const),                 # w2d
            pl.BlockSpec((128, 128), const),                 # w3d
            pl.BlockSpec((2, 512), const),                   # aff1
            pl.BlockSpec((2, 512), const),                   # aff2
            pl.BlockSpec((2, 512), const),                   # affd1
            pl.BlockSpec((2, 128), const),                   # affd2
            pl.BlockSpec((1, 128), const),                   # bout
        ],
        out_specs=pl.BlockSpec((TB, 128), lambda i: (i, 0)),
        compiler_params=pltpu.CompilerParams(
            dimension_semantics=("parallel",),               # shard batch tiles across TCs
            vmem_limit_bytes=48 * 1024 * 1024,               # safe on v5e/v6e/v7x
        ),
    )(xt, prep["m1"], prep["n2"], prep["w1d"], prep["w2d"], prep["w3d"],
      prep["aff1"], prep["aff2"], prep["affd1"], prep["affd2"], prep["bout"])
    return logits[:B, :10]


# ----------------------------------------------------------------------------
# Deterministic parameter initialization (mirrors _init_weights shapes/spirit)
# ----------------------------------------------------------------------------
def init_params(key):
    ks = jax.random.split(key, 8)

    def kaiming_normal(k, shape, fan_in):
        return jax.random.normal(k, shape, jnp.float32) * jnp.sqrt(2.0 / fan_in)

    def kaiming_uniform(k, shape, fan_in):
        bound = jnp.sqrt(6.0 / fan_in)
        return jax.random.uniform(k, shape, jnp.float32, -bound, bound)

    def xavier_normal(k, shape):
        fan_out, fan_in = shape
        return jax.random.normal(k, shape, jnp.float32) * jnp.sqrt(2.0 / (fan_in + fan_out))

    def bn_params(c):
        # (gamma=1, beta=0, running_mean=0, running_var=1) — inference mode.
        return (jnp.ones((c,), jnp.float32), jnp.zeros((c,), jnp.float32),
                jnp.zeros((c,), jnp.float32), jnp.ones((c,), jnp.float32))

    return {
        "conv1_w": kaiming_normal(ks[0], (16, 1, 3, 3), fan_in=1 * 9),
        "conv1_b": jnp.zeros((16,), jnp.float32),
        "bn2d1": bn_params(16),
        "conv2_w": kaiming_normal(ks[1], (32, 16, 3, 3), fan_in=16 * 9),
        "conv2_b": jnp.zeros((32,), jnp.float32),
        "bn2d2": bn_params(32),
        "dense1_w": kaiming_uniform(ks[2], (512, 32 * 7 * 7), fan_in=32 * 7 * 7),
        "dense1_b": jnp.zeros((512,), jnp.float32),
        "bn1": bn_params(512),
        "dense2_w": kaiming_uniform(ks[3], (128, 512), fan_in=512),
        "dense2_b": jnp.zeros((128,), jnp.float32),
        "bn2": bn_params(128),
        "output_w": xavier_normal(ks[4], (10, 128)),
        "output_b": jnp.zeros((10,), jnp.float32),
    }


if __name__ == "__main__":
    key = jax.random.PRNGKey(0)
    pkey, xkey = jax.random.split(key)
    params = init_params(pkey)
    prep = prepare_params(params)   # one-time: BN fold, Toeplitz packing, bf16 cast

    # dense1 (32*7*7) fixes the spatial size at 28x28, in_channels=1.
    x = jax.random.normal(xkey, (16, 1, 28, 28), jnp.float32)

    fwd = jax.jit(conv_neural_network_forward)
    logits = jax.block_until_ready(fwd(x, prep))

    assert logits.shape == (16, 10), logits.shape
    assert bool(jnp.all(jnp.isfinite(logits)))
    print("KERNEL_OK")
</pallas_src>

<mosaic_0001>
module attributes {stable_mosaic.version = 11 : i64} {
  func.func @_fused_cnn_kernel(%arg0: i32, %arg1: memref<960x32xbf16, #tpu.memory_space<vmem>>, %arg2: memref<96x512xbf16, #tpu.memory_space<vmem>>, %arg3: memref<768x512xbf16, #tpu.memory_space<vmem>>, %arg4: memref<1792x512xbf16, #tpu.memory_space<vmem>>, %arg5: memref<512x128xbf16, #tpu.memory_space<vmem>>, %arg6: memref<128x128xbf16, #tpu.memory_space<vmem>>, %arg7: memref<2x512xf32, #tpu.memory_space<vmem>>, %arg8: memref<2x512xf32, #tpu.memory_space<vmem>>, %arg9: memref<2x512xf32, #tpu.memory_space<vmem>>, %arg10: memref<2x128xf32, #tpu.memory_space<vmem>>, %arg11: memref<1x128xf32, #tpu.memory_space<vmem>>, %arg12: memref<32x128xf32, #tpu.memory_space<vmem>>) attributes {dimension_semantics = [#tpu.dimension_semantics<parallel>], iteration_bounds = array<i64: 1>, scalar_prefetch = 0 : i64, scratch_operands = 0 : i64, tpu.core_type = #tpu.core_type<tc>, window_params = [{transform_indices = @transform_0, window_bounds = array<i64: 960, 32>}, {pipeline_mode = #tpu.pipeline_mode<synchronous>, transform_indices = @transform_1, window_bounds = array<i64: 96, 512>}, {pipeline_mode = #tpu.pipeline_mode<synchronous>, transform_indices = @transform_2, window_bounds = array<i64: 768, 512>}, {pipeline_mode = #tpu.pipeline_mode<synchronous>, transform_indices = @transform_3, window_bounds = array<i64: 1792, 512>}, {pipeline_mode = #tpu.pipeline_mode<synchronous>, transform_indices = @transform_4, window_bounds = array<i64: 512, 128>}, {pipeline_mode = #tpu.pipeline_mode<synchronous>, transform_indices = @transform_5, window_bounds = array<i64: 128, 128>}, {pipeline_mode = #tpu.pipeline_mode<synchronous>, transform_indices = @transform_6, window_bounds = array<i64: 2, 512>}, {pipeline_mode = #tpu.pipeline_mode<synchronous>, transform_indices = @transform_7, window_bounds = array<i64: 2, 512>}, {pipeline_mode = #tpu.pipeline_mode<synchronous>, transform_indices = @transform_8, window_bounds = array<i64: 2, 512>}, {pipeline_mode = #tpu.pipeline_mode<synchronous>, transform_indices = @transform_9, window_bounds = array<i64: 2, 128>}, {pipeline_mode = #tpu.pipeline_mode<synchronous>, transform_indices = @transform_10, window_bounds = array<i64: 1, 128>}, {transform_indices = @transform_11, window_bounds = array<i64: 32, 128>}]} {
    %c0 = arith.constant 0 : index
    %c0_0 = arith.constant 0 : index
    %0 = vector.load %arg1[%c0, %c0_0] : memref<960x32xbf16, #tpu.memory_space<vmem>>, vector<960x32xbf16>
    %1 = vector.extract_strided_slice %0 {offsets = [0, 0], sizes = [896, 32], strides = [1, 1]} : vector<960x32xbf16> to vector<896x32xbf16>
    %2 = vector.extract_strided_slice %0 {offsets = [32, 0], sizes = [896, 32], strides = [1, 1]} : vector<960x32xbf16> to vector<896x32xbf16>
    %3 = vector.extract_strided_slice %0 {offsets = [64, 0], sizes = [896, 32], strides = [1, 1]} : vector<960x32xbf16> to vector<896x32xbf16>
    %4 = tpu.concatenate %1, %2, %3 in 1 : vector<896x32xbf16>, vector<896x32xbf16>, vector<896x32xbf16> -> vector<896x96xbf16>
    %c0_1 = arith.constant 0 : index
    %c0_2 = arith.constant 0 : index
    %5 = vector.load %arg2[%c0_1, %c0_2] : memref<96x512xbf16, #tpu.memory_space<vmem>>, vector<96x512xbf16>
    %cst = arith.constant dense<0.000000e+00> : vector<896x512xf32>
    %6 = tpu.matmul %4, %5, %cst {dimension_numbers = #tpu.dot_dimension_numbers<[1], [0], [0], [1], [0, 0, 1, 1], [], []>} : vector<896x96xbf16>, vector<96x512xbf16>, vector<896x512xf32> -> vector<896x512xf32>
    %c0_3 = arith.constant 0 : index
    %c0_4 = arith.constant 0 : index
    %7 = vector.load %arg7[%c0_3, %c0_4] : memref<2x512xf32, #tpu.memory_space<vmem>>, vector<1x512xf32>
    %8 = vector.broadcast %7 : vector<1x512xf32> to vector<896x512xf32>
    %9 = arith.mulf %6, %8 : vector<896x512xf32>
    %c1 = arith.constant 1 : index
    %c0_5 = arith.constant 0 : index
    %10 = vector.load %arg7[%c1, %c0_5] : memref<2x512xf32, #tpu.memory_space<vmem>>, vector<1x512xf32>
    %11 = vector.broadcast %10 : vector<1x512xf32> to vector<896x512xf32>
    %12 = arith.addf %9, %11 : vector<896x512xf32>
    %cst_6 = arith.constant 0.000000e+00 : f32
    %13 = vector.broadcast %cst_6 : f32 to vector<896x512xf32>
    %14 = arith.maximumf %12, %13 : vector<896x512xf32>
    %15 = arith.truncf %14 : vector<896x512xf32> to vector<896x512xbf16>
    %16 = vector.extract_strided_slice %15 {offsets = [0, 0], sizes = [896, 256], strides = [1, 1]} : vector<896x512xbf16> to vector<896x256xbf16>
    %17 = vector.extract_strided_slice %15 {offsets = [0, 256], sizes = [896, 256], strides = [1, 1]} : vector<896x512xbf16> to vector<896x256xbf16>
    %18 = arith.maximumf %16, %17 : vector<896x256xbf16>
    %cst_7 = arith.constant 0.000000e+00 : bf16
    %19 = vector.broadcast %cst_7 : bf16 to vector<32x256xbf16>
    %20 = vector.extract_strided_slice %18 {offsets = [0, 0], sizes = [32, 256], strides = [1, 1]} : vector<896x256xbf16> to vector<32x256xbf16>
    %21 = vector.extract_strided_slice %18 {offsets = [32, 0], sizes = [32, 256], strides = [1, 1]} : vector<896x256xbf16> to vector<32x256xbf16>
    %22 = arith.maximumf %20, %21 : vector<32x256xbf16>
    %23 = vector.extract_strided_slice %18 {offsets = [64, 0], sizes = [32, 256], strides = [1, 1]} : vector<896x256xbf16> to vector<32x256xbf16>
    %24 = vector.extract_strided_slice %18 {offsets = [96, 0], sizes = [32, 256], strides = [1, 1]} : vector<896x256xbf16> to vector<32x256xbf16>
    %25 = arith.maximumf %23, %24 : vector<32x256xbf16>
    %26 = vector.extract_strided_slice %18 {offsets = [128, 0], sizes = [32, 256], strides = [1, 1]} : vector<896x256xbf16> to vector<32x256xbf16>
    %27 = vector.extract_strided_slice %18 {offsets = [160, 0], sizes = [32, 256], strides = [1, 1]} : vector<896x256xbf16> to vector<32x256xbf16>
    %28 = arith.maximumf %26, %27 : vector<32x256xbf16>
    %29 = vector.extract_strided_slice %18 {offsets = [192, 0], sizes = [32, 256], strides = [1, 1]} : vector<896x256xbf16> to vector<32x256xbf16>
    %30 = vector.extract_strided_slice %18 {offsets = [224, 0], sizes = [32, 256], strides = [1, 1]} : vector<896x256xbf16> to vector<32x256xbf16>
    %31 = arith.maximumf %29, %30 : vector<32x256xbf16>
    %32 = vector.extract_strided_slice %18 {offsets = [256, 0], sizes = [32, 256], strides = [1, 1]} : vector<896x256xbf16> to vector<32x256xbf16>
    %33 = vector.extract_strided_slice %18 {offsets = [288, 0], sizes = [32, 256], strides = [1, 1]} : vector<896x256xbf16> to vector<32x256xbf16>
    %34 = arith.maximumf %32, %33 : vector<32x256xbf16>
    %35 = vector.extract_strided_slice %18 {offsets = [320, 0], sizes = [32, 256], strides = [1, 1]} : vector<896x256xbf16> to vector<32x256xbf16>
    %36 = vector.extract_strided_slice %18 {offsets = [352, 0], sizes = [32, 256], strides = [1, 1]} : vector<896x256xbf16> to vector<32x256xbf16>
    %37 = arith.maximumf %35, %36 : vector<32x256xbf16>
    %38 = vector.extract_strided_slice %18 {offsets = [384, 0], sizes = [32, 256], strides = [1, 1]} : vector<896x256xbf16> to vector<32x256xbf16>
    %39 = vector.extract_strided_slice %18 {offsets = [416, 0], sizes = [32, 256], strides = [1, 1]} : vector<896x256xbf16> to vector<32x256xbf16>
    %40 = arith.maximumf %38, %39 : vector<32x256xbf16>
    %41 = vector.extract_strided_slice %18 {offsets = [448, 0], sizes = [32, 256], strides = [1, 1]} : vector<896x256xbf16> to vector<32x256xbf16>
    %42 = vector.extract_strided_slice %18 {offsets = [480, 0], sizes = [32, 256], strides = [1, 1]} : vector<896x256xbf16> to vector<32x256xbf16>
    %43 = arith.maximumf %41, %42 : vector<32x256xbf16>
    %44 = vector.extract_strided_slice %18 {offsets = [512, 0], sizes = [32, 256], strides = [1, 1]} : vector<896x256xbf16> to vector<32x256xbf16>
    %45 = vector.extract_strided_slice %18 {offsets = [544, 0], sizes = [32, 256], strides = [1, 1]} : vector<896x256xbf16> to vector<32x256xbf16>
    %46 = arith.maximumf %44, %45 : vector<32x256xbf16>
    %47 = vector.extract_strided_slice %18 {offsets = [576, 0], sizes = [32, 256], strides = [1, 1]} : vector<896x256xbf16> to vector<32x256xbf16>
    %48 = vector.extract_strided_slice %18 {offsets = [608, 0], sizes = [32, 256], strides = [1, 1]} : vector<896x256xbf16> to vector<32x256xbf16>
    %49 = arith.maximumf %47, %48 : vector<32x256xbf16>
    %50 = vector.extract_strided_slice %18 {offsets = [640, 0], sizes = [32, 256], strides = [1, 1]} : vector<896x256xbf16> to vector<32x256xbf16>
    %51 = vector.extract_strided_slice %18 {offsets = [672, 0], sizes = [32, 256], strides = [1, 1]} : vector<896x256xbf16> to vector<32x256xbf16>
    %52 = arith.maximumf %50, %51 : vector<32x256xbf16>
    %53 = vector.extract_strided_slice %18 {offsets = [704, 0], sizes = [32, 256], strides = [1, 1]} : vector<896x256xbf16> to vector<32x256xbf16>
    %54 = vector.extract_strided_slice %18 {offsets = [736, 0], sizes = [32, 256], strides = [1, 1]} : vector<896x256xbf16> to vector<32x256xbf16>
    %55 = arith.maximumf %53, %54 : vector<32x256xbf16>
    %56 = vector.extract_strided_slice %18 {offsets = [768, 0], sizes = [32, 256], strides = [1, 1]} : vector<896x256xbf16> to vector<32x256xbf16>
    %57 = vector.extract_strided_slice %18 {offsets = [800, 0], sizes = [32, 256], strides = [1, 1]} : vector<896x256xbf16> to vector<32x256xbf16>
    %58 = arith.maximumf %56, %57 : vector<32x256xbf16>
    %59 = vector.extract_strided_slice %18 {offsets = [832, 0], sizes = [32, 256], strides = [1, 1]} : vector<896x256xbf16> to vector<32x256xbf16>
    %60 = vector.extract_strided_slice %18 {offsets = [864, 0], sizes = [32, 256], strides = [1, 1]} : vector<896x256xbf16> to vector<32x256xbf16>
    %61 = arith.maximumf %59, %60 : vector<32x256xbf16>
    %62 = tpu.concatenate %19, %22, %25, %28, %31, %34, %37, %40, %43, %46, %49, %52, %55, %58, %61, %19 in 0 : vector<32x256xbf16>, vector<32x256xbf16>, vector<32x256xbf16>, vector<32x256xbf16>, vector<32x256xbf16>, vector<32x256xbf16>, vector<32x256xbf16>, vector<32x256xbf16>, vector<32x256xbf16>, vector<32x256xbf16>, vector<32x256xbf16>, vector<32x256xbf16>, vector<32x256xbf16>, vector<32x256xbf16>, vector<32x256xbf16>, vector<32x256xbf16> -> vector<512x256xbf16>
    %63 = vector.extract_strided_slice %62 {offsets = [0, 0], sizes = [448, 256], strides = [1, 1]} : vector<512x256xbf16> to vector<448x256xbf16>
    %64 = vector.extract_strided_slice %62 {offsets = [32, 0], sizes = [448, 256], strides = [1, 1]} : vector<512x256xbf16> to vector<448x256xbf16>
    %65 = vector.extract_strided_slice %62 {offsets = [64, 0], sizes = [448, 256], strides = [1, 1]} : vector<512x256xbf16> to vector<448x256xbf16>
    %66 = tpu.concatenate %63, %64, %65 in 1 : vector<448x256xbf16>, vector<448x256xbf16>, vector<448x256xbf16> -> vector<448x768xbf16>
    %c0_8 = arith.constant 0 : index
    %c0_9 = arith.constant 0 : index
    %67 = vector.load %arg3[%c0_8, %c0_9] : memref<768x512xbf16, #tpu.memory_space<vmem>>, vector<768x512xbf16>
    %cst_10 = arith.constant dense<0.000000e+00> : vector<448x512xf32>
    %68 = tpu.matmul %66, %67, %cst_10 {dimension_numbers = #tpu.dot_dimension_numbers<[1], [0], [0], [1], [0, 0, 1, 1], [], []>} : vector<448x768xbf16>, vector<768x512xbf16>, vector<448x512xf32> -> vector<448x512xf32>
    %c0_11 = arith.constant 0 : index
    %c0_12 = arith.constant 0 : index
    %69 = vector.load %arg8[%c0_11, %c0_12] : memref<2x512xf32, #tpu.memory_space<vmem>>, vector<1x512xf32>
    %70 = vector.broadcast %69 : vector<1x512xf32> to vector<448x512xf32>
    %71 = arith.mulf %68, %70 : vector<448x512xf32>
    %c1_13 = arith.constant 1 : index
    %c0_14 = arith.constant 0 : index
    %72 = vector.load %arg8[%c1_13, %c0_14] : memref<2x512xf32, #tpu.memory_space<vmem>>, vector<1x512xf32>
    %73 = vector.broadcast %72 : vector<1x512xf32> to vector<448x512xf32>
    %74 = arith.addf %71, %73 : vector<448x512xf32>
    %cst_15 = arith.constant 0.000000e+00 : f32
    %75 = vector.broadcast %cst_15 : f32 to vector<448x512xf32>
    %76 = arith.maximumf %74, %75 : vector<448x512xf32>
    %77 = arith.truncf %76 : vector<448x512xf32> to vector<448x512xbf16>
    %78 = vector.extract_strided_slice %77 {offsets = [0, 0], sizes = [448, 256], strides = [1, 1]} : vector<448x512xbf16> to vector<448x256xbf16>
    %79 = vector.extract_strided_slice %77 {offsets = [0, 256], sizes = [448, 256], strides = [1, 1]} : vector<448x512xbf16> to vector<448x256xbf16>
    %80 = arith.maximumf %78, %79 : vector<448x256xbf16>
    %81 = vector.extract_strided_slice %80 {offsets = [0, 0], sizes = [32, 256], strides = [1, 1]} : vector<448x256xbf16> to vector<32x256xbf16>
    %82 = vector.extract_strided_slice %80 {offsets = [32, 0], sizes = [32, 256], strides = [1, 1]} : vector<448x256xbf16> to vector<32x256xbf16>
    %83 = arith.maximumf %81, %82 : vector<32x256xbf16>
    %84 = vector.extract_strided_slice %80 {offsets = [64, 0], sizes = [32, 256], strides = [1, 1]} : vector<448x256xbf16> to vector<32x256xbf16>
    %85 = vector.extract_strided_slice %80 {offsets = [96, 0], sizes = [32, 256], strides = [1, 1]} : vector<448x256xbf16> to vector<32x256xbf16>
    %86 = arith.maximumf %84, %85 : vector<32x256xbf16>
    %87 = vector.extract_strided_slice %80 {offsets = [128, 0], sizes = [32, 256], strides = [1, 1]} : vector<448x256xbf16> to vector<32x256xbf16>
    %88 = vector.extract_strided_slice %80 {offsets = [160, 0], sizes = [32, 256], strides = [1, 1]} : vector<448x256xbf16> to vector<32x256xbf16>
    %89 = arith.maximumf %87, %88 : vector<32x256xbf16>
    %90 = vector.extract_strided_slice %80 {offsets = [192, 0], sizes = [32, 256], strides = [1, 1]} : vector<448x256xbf16> to vector<32x256xbf16>
    %91 = vector.extract_strided_slice %80 {offsets = [224, 0], sizes = [32, 256], strides = [1, 1]} : vector<448x256xbf16> to vector<32x256xbf16>
    %92 = arith.maximumf %90, %91 : vector<32x256xbf16>
    %93 = vector.extract_strided_slice %80 {offsets = [256, 0], sizes = [32, 256], strides = [1, 1]} : vector<448x256xbf16> to vector<32x256xbf16>
    %94 = vector.extract_strided_slice %80 {offsets = [288, 0], sizes = [32, 256], strides = [1, 1]} : vector<448x256xbf16> to vector<32x256xbf16>
    %95 = arith.maximumf %93, %94 : vector<32x256xbf16>
    %96 = vector.extract_strided_slice %80 {offsets = [320, 0], sizes = [32, 256], strides = [1, 1]} : vector<448x256xbf16> to vector<32x256xbf16>
    %97 = vector.extract_strided_slice %80 {offsets = [352, 0], sizes = [32, 256], strides = [1, 1]} : vector<448x256xbf16> to vector<32x256xbf16>
    %98 = arith.maximumf %96, %97 : vector<32x256xbf16>
    %99 = vector.extract_strided_slice %80 {offsets = [384, 0], sizes = [32, 256], strides = [1, 1]} : vector<448x256xbf16> to vector<32x256xbf16>
    %100 = vector.extract_strided_slice %80 {offsets = [416, 0], sizes = [32, 256], strides = [1, 1]} : vector<448x256xbf16> to vector<32x256xbf16>
    %101 = arith.maximumf %99, %100 : vector<32x256xbf16>
    %102 = tpu.concatenate %83, %86, %89, %92, %95, %98, %101 in 1 : vector<32x256xbf16>, vector<32x256xbf16>, vector<32x256xbf16>, vector<32x256xbf16>, vector<32x256xbf16>, vector<32x256xbf16>, vector<32x256xbf16> -> vector<32x1792xbf16>
    %c0_16 = arith.constant 0 : index
    %c0_17 = arith.constant 0 : index
    %103 = vector.load %arg4[%c0_16, %c0_17] : memref<1792x512xbf16, #tpu.memory_space<vmem>>, vector<1792x512xbf16>
    %cst_18 = arith.constant dense<0.000000e+00> : vector<32x512xf32>
    %104 = tpu.matmul %102, %103, %cst_18 {dimension_numbers = #tpu.dot_dimension_numbers<[1], [0], [0], [1], [0, 0, 1, 1], [], []>} : vector<32x1792xbf16>, vector<1792x512xbf16>, vector<32x512xf32> -> vector<32x512xf32>
    %c0_19 = arith.constant 0 : index
    %c0_20 = arith.constant 0 : index
    %105 = vector.load %arg9[%c0_19, %c0_20] : memref<2x512xf32, #tpu.memory_space<vmem>>, vector<1x512xf32>
    %106 = vector.broadcast %105 : vector<1x512xf32> to vector<32x512xf32>
    %107 = arith.mulf %104, %106 : vector<32x512xf32>
    %c1_21 = arith.constant 1 : index
    %c0_22 = arith.constant 0 : index
    %108 = vector.load %arg9[%c1_21, %c0_22] : memref<2x512xf32, #tpu.memory_space<vmem>>, vector<1x512xf32>
    %109 = vector.broadcast %108 : vector<1x512xf32> to vector<32x512xf32>
    %110 = arith.addf %107, %109 : vector<32x512xf32>
    %cst_23 = arith.constant 0.000000e+00 : f32
    %111 = vector.broadcast %cst_23 : f32 to vector<32x512xf32>
    %112 = arith.maximumf %110, %111 : vector<32x512xf32>
    %113 = arith.truncf %112 : vector<32x512xf32> to vector<32x512xbf16>
    %c0_24 = arith.constant 0 : index
    %c0_25 = arith.constant 0 : index
    %114 = vector.load %arg5[%c0_24, %c0_25] : memref<512x128xbf16, #tpu.memory_space<vmem>>, vector<512x128xbf16>
    %cst_26 = arith.constant dense<0.000000e+00> : vector<32x128xf32>
    %115 = tpu.matmul %113, %114, %cst_26 {dimension_numbers = #tpu.dot_dimension_numbers<[1], [0], [0], [1], [0, 0, 1, 1], [], []>} : vector<32x512xbf16>, vector<512x128xbf16>, vector<32x128xf32> -> vector<32x128xf32>
    %c0_27 = arith.constant 0 : index
    %c0_28 = arith.constant 0 : index
    %116 = vector.load %arg10[%c0_27, %c0_28] : memref<2x128xf32, #tpu.memory_space<vmem>>, vector<1x128xf32>
    %117 = vector.broadcast %116 : vector<1x128xf32> to vector<32x128xf32>
    %118 = arith.mulf %115, %117 : vector<32x128xf32>
    %c1_29 = arith.constant 1 : index
    %c0_30 = arith.constant 0 : index
    %119 = vector.load %arg10[%c1_29, %c0_30] : memref<2x128xf32, #tpu.memory_space<vmem>>, vector<1x128xf32>
    %120 = vector.broadcast %119 : vector<1x128xf32> to vector<32x128xf32>
    %121 = arith.addf %118, %120 : vector<32x128xf32>
    %cst_31 = arith.constant 0.000000e+00 : f32
    %122 = vector.broadcast %cst_31 : f32 to vector<32x128xf32>
    %123 = arith.maximumf %121, %122 : vector<32x128xf32>
    %124 = arith.truncf %123 : vector<32x128xf32> to vector<32x128xbf16>
    %c0_32 = arith.constant 0 : index
    %c0_33 = arith.constant 0 : index
    %125 = vector.load %arg6[%c0_32, %c0_33] : memref<128x128xbf16, #tpu.memory_space<vmem>>, vector<128x128xbf16>
    %cst_34 = arith.constant dense<0.000000e+00> : vector<32x128xf32>
    %126 = tpu.matmul %124, %125, %cst_34 {dimension_numbers = #tpu.dot_dimension_numbers<[1], [0], [0], [1], [0, 0, 1, 1], [], []>} : vector<32x128xbf16>, vector<128x128xbf16>, vector<32x128xf32> -> vector<32x128xf32>
    %c0_35 = arith.constant 0 : index
    %c0_36 = arith.constant 0 : index
    %127 = vector.load %arg11[%c0_35, %c0_36] : memref<1x128xf32, #tpu.memory_space<vmem>>, vector<1x128xf32>
    %128 = vector.broadcast %127 : vector<1x128xf32> to vector<32x128xf32>
    %129 = arith.addf %126, %128 : vector<32x128xf32>
    %c0_37 = arith.constant 0 : index
    %c0_38 = arith.constant 0 : index
    %130 = vector.load %arg12[%c0_37, %c0_38] : memref<32x128xf32, #tpu.memory_space<vmem>>, vector<32x128xf32>
    tpu.vector_store %arg12[%c0_37, %c0_38], %129 {strides = array<i32>} : memref<32x128xf32, #tpu.memory_space<vmem>>, vector<32x128xf32>,
    return
  }
  func.func @transform_0(%arg0: i32) -> (i32, i32) {
    %c0_i32 = arith.constant 0 : i32
    %c0_i32_0 = arith.constant 0 : i32
    return %arg0, %c0_i32 : i32, i32
  }
  func.func @transform_1(%arg0: i32) -> (i32, i32) {
    %c0_i32 = arith.constant 0 : i32
    %c0_i32_0 = arith.constant 0 : i32
    %c0_i32_1 = arith.constant 0 : i32
    return %c0_i32, %c0_i32_0 : i32, i32
  }
  func.func @transform_2(%arg0: i32) -> (i32, i32) {
    %c0_i32 = arith.constant 0 : i32
    %c0_i32_0 = arith.constant 0 : i32
    %c0_i32_1 = arith.constant 0 : i32
    return %c0_i32, %c0_i32_0 : i32, i32
  }
  func.func @transform_3(%arg0: i32) -> (i32, i32) {
    %c0_i32 = arith.constant 0 : i32
    %c0_i32_0 = arith.constant 0 : i32
    %c0_i32_1 = arith.constant 0 : i32
    return %c0_i32, %c0_i32_0 : i32, i32
  }
  func.func @transform_4(%arg0: i32) -> (i32, i32) {
    %c0_i32 = arith.constant 0 : i32
    %c0_i32_0 = arith.constant 0 : i32
    %c0_i32_1 = arith.constant 0 : i32
    return %c0_i32, %c0_i32_0 : i32, i32
  }
  func.func @transform_5(%arg0: i32) -> (i32, i32) {
    %c0_i32 = arith.constant 0 : i32
    %c0_i32_0 = arith.constant 0 : i32
    %c0_i32_1 = arith.constant 0 : i32
    return %c0_i32, %c0_i32_0 : i32, i32
  }
  func.func @transform_6(%arg0: i32) -> (i32, i32) {
    %c0_i32 = arith.constant 0 : i32
    %c0_i32_0 = arith.constant 0 : i32
    %c0_i32_1 = arith.constant 0 : i32
    return %c0_i32, %c0_i32_0 : i32, i32
  }
  func.func @transform_7(%arg0: i32) -> (i32, i32) {
    %c0_i32 = arith.constant 0 : i32
    %c0_i32_0 = arith.constant 0 : i32
    %c0_i32_1 = arith.constant 0 : i32
    return %c0_i32, %c0_i32_0 : i32, i32
  }
  func.func @transform_8(%arg0: i32) -> (i32, i32) {
    %c0_i32 = arith.constant 0 : i32
    %c0_i32_0 = arith.constant 0 : i32
    %c0_i32_1 = arith.constant 0 : i32
    return %c0_i32, %c0_i32_0 : i32, i32
  }
  func.func @transform_9(%arg0: i32) -> (i32, i32) {
    %c0_i32 = arith.constant 0 : i32
    %c0_i32_0 = arith.constant 0 : i32
    %c0_i32_1 = arith.constant 0 : i32
    return %c0_i32, %c0_i32_0 : i32, i32
  }
  func.func @transform_10(%arg0: i32) -> (i32, i32) {
    %c0_i32 = arith.constant 0 : i32
    %c0_i32_0 = arith.constant 0 : i32
    %c0_i32_1 = arith.constant 0 : i32
    return %c0_i32, %c0_i32_0 : i32, i32
  }
  func.func @transform_11(%arg0: i32) -> (i32, i32) {
    %c0_i32 = arith.constant 0 : i32
    %c0_i32_0 = arith.constant 0 : i32
    return %arg0, %c0_i32 : i32, i32
  }
}

</mosaic_0001>

<llo_original>
// kernel: conv_neural_network_forward.1
$region0: #{conv_neural_network_forward.1}
  #allocation0 [shape = 'u32[]', space=smem, size = 0x4, offset = 0x4, fixed_abs, tag = 'smem constant byte address 0x4 - core index']
  #allocation1 [shape = 'u32[144,128]{1,0:T(1,128)}', space=vmem, size = 0x12000, scoped, tag = 'internal scratch']
  %s0 = inlined_call_operand.vmem [shape: bf16[960,32], index: 0, kind: input, shape index: {}]
  %s1 = inlined_call_operand.hbm [shape: bf16[96,512], index: 1, kind: input, shape index: {}]
  %s2 = inlined_call_operand.hbm [shape: bf16[768,512], index: 2, kind: input, shape index: {}]
  %s3 = inlined_call_operand.hbm [shape: bf16[1792,512], index: 3, kind: input, shape index: {}]
  %s4 = inlined_call_operand.hbm [shape: bf16[512,128], index: 4, kind: input, shape index: {}]
  %s5 = inlined_call_operand.hbm [shape: bf16[128,128], index: 5, kind: input, shape index: {}]
  %s6 = inlined_call_operand.hbm [shape: f32[2,512], index: 6, kind: input, shape index: {}]
  %s7 = inlined_call_operand.hbm [shape: f32[2,512], index: 7, kind: input, shape index: {}]
  %s8 = inlined_call_operand.hbm [shape: f32[2,512], index: 8, kind: input, shape index: {}]
  %s9 = inlined_call_operand.hbm [shape: f32[2,128], index: 9, kind: input, shape index: {}]
  %s10 = inlined_call_operand.hbm [shape: f32[1,128], index: 10, kind: input, shape index: {}]
  %s11 = inlined_call_operand.vmem [shape: f32[32,128], index: 11, kind: output, shape index: {}]
  %s12 = sld [smem:[#allocation0]]
  $region94: #{conv_neural_network_forward.1} parent=0
    _
  %s14 = ssub.s32 1, %s12
  %s15 = scalar_select 0, %s14, %s12
  $region1: #{conv_neural_network_forward.1} parent=0
    #allocation2 [shape = 'u8[98304]{0}', space=vmem, size = 0x18000, scoped, tag = 'input window, operand 1, single buffered']
    #allocation3 [shape = 's32[1]{0}', space=sflag, size = 0x4, scoped, tag = 'scoped memory for conv_neural_network_forward.1']
    #allocation4 [shape = 'u8[786432]{0}', space=vmem, size = 0xc0000, scoped, tag = 'input window, operand 2, single buffered']
    #allocation5 [shape = 's32[1]{0}', space=sflag, size = 0x4, scoped, tag = 'scoped memory for conv_neural_network_forward.1']
    #allocation6 [shape = 'u8[1835008]{0}', space=vmem, size = 0x1c0000, scoped, tag = 'input window, operand 3, single buffered']
    #allocation7 [shape = 'u8[131072]{0}', space=vmem, size = 0x20000, scoped, tag = 'input window, operand 4, single buffered']
    #allocation8 [shape = 's32[1]{0}', space=sflag, size = 0x4, scoped, tag = 'scoped memory for conv_neural_network_forward.1']
    #allocation9 [shape = 'u8[32768]{0}', space=vmem, size = 0x8000, scoped, tag = 'input window, operand 5, single buffered']
    #allocation10 [shape = 'u8[4096]{0}', space=vmem, size = 0x1000, scoped, tag = 'input window, operand 6, single buffered']
    #allocation11 [shape = 's32[1]{0}', space=sflag, size = 0x4, scoped, tag = 'scoped memory for conv_neural_network_forward.1']
    #allocation12 [shape = 'u8[4096]{0}', space=vmem, size = 0x1000, scoped, tag = 'input window, operand 7, single buffered']
    #allocation13 [shape = 'u8[4096]{0}', space=vmem, size = 0x1000, scoped, tag = 'input window, operand 8, single buffered']
    #allocation14 [shape = 's32[1]{0}', space=sflag, size = 0x4, scoped, tag = 'scoped memory for conv_neural_network_forward.1']
    #allocation15 [shape = 'u8[1024]{0}', space=vmem, size = 0x400, scoped, tag = 'input window, operand 9, single buffered']
    #allocation16 [shape = 'u8[512]{0}', space=vmem, size = 0x400, scoped, tag = 'input window, operand 10, single buffered']
    #allocation17 [shape = 's32[1]{0}', space=sflag, size = 0x4, scoped, tag = 'scoped memory for conv_neural_network_forward.1']
    %16 = vsyncpa [#allocation3], 0
    %17 = vsyncpa [#allocation5], 0
    %18 = vsyncpa [#allocation8], 0
    %19 = vsyncpa [#allocation11], 0
    %20 = vsyncpa [#allocation14], 0
    %21 = vsyncpa [#allocation17], 0
    // Predicated region
    $region2: #{conv_neural_network_forward.1} parent=1 // pred_check
      _
    $region3: #{conv_neural_network_forward.1} parent=1 // pred_check_branch
      %23 = sbr.rel (0) target = $region5
    $region4: #{conv_neural_network_forward.1} parent=1 // pred_region
      _
    $region5: #{conv_neural_network_forward.1} parent=1 // pred_fallthru
      _
    // Predicated region
    $region6: #{conv_neural_network_forward.1} parent=1 // pred_check
      _
    $region7: #{conv_neural_network_forward.1} parent=1 // pred_check_branch
      %25 = sbr.rel (0) target = $region9
    $region8: #{conv_neural_network_forward.1} parent=1 // pred_region
      %s27 = ssub.s32 3072, 3072
      %28 = vsyncadd [#allocation3], %s27
      %s29 = sshll.u32 [#allocation2], 4
      %s30 = int_to_ptr.vmem [resolvable:$true] %s29
      %35 = dma.hbm_to_vmem [thread:$0]  %s1, 3072, %s30, [#allocation3], 256, 256, 16
    $region9: #{conv_neural_network_forward.1} parent=1 // pred_fallthru
      _
    // Predicated region
    $region10: #{conv_neural_network_forward.1} parent=1 // pred_check
      _
    $region11: #{conv_neural_network_forward.1} parent=1 // pred_check_branch
      %37 = sbr.rel (0) target = $region13
    $region12: #{conv_neural_network_forward.1} parent=1 // pred_region
      %s39 = ssub.s32 24576, 24576
      %40 = vsyncadd [#allocation5], %s39
      %s41 = sshll.u32 [#allocation4], 4
      %s42 = int_to_ptr.vmem [resolvable:$true] %s41
      %47 = dma.hbm_to_vmem [thread:$0]  %s2, 24576, %s42, [#allocation5], 256, 256, 16
    $region13: #{conv_neural_network_forward.1} parent=1 // pred_fallthru
      _
    // Predicated region
    $region14: #{conv_neural_network_forward.1} parent=1 // pred_check
      _
    $region15: #{conv_neural_network_forward.1} parent=1 // pred_check_branch
      %49 = sbr.rel (0) target = $region17
    $region16: #{conv_neural_network_forward.1} parent=1 // pred_region
      %s51 = ssub.s32 57344, 57344
      %52 = vsyncadd [#allocation5], %s51
      %s53 = sshll.u32 [#allocation6], 4
      %s54 = int_to_ptr.vmem [resolvable:$true] %s53
      %59 = dma.hbm_to_vmem [thread:$0]  %s3, 57344, %s54, [#allocation5], 256, 256, 16
    $region17: #{conv_neural_network_forward.1} parent=1 // pred_fallthru
      _
    // Predicated region
    $region18: #{conv_neural_network_forward.1} parent=1 // pred_check
      _
    $region19: #{conv_neural_network_forward.1} parent=1 // pred_check_branch
      %61 = sbr.rel (0) target = $region21
    $region20: #{conv_neural_network_forward.1} parent=1 // pred_region
      %s63 = ssub.s32 4096, 4096
      %64 = vsyncadd [#allocation8], %s63
      %s65 = sshll.u32 [#allocation7], 4
      %s66 = int_to_ptr.vmem [resolvable:$true] %s65
      %71 = dma.hbm_to_vmem [thread:$0]  %s4, 4096, %s66, [#allocation8], 64, 64, 4
    $region21: #{conv_neural_network_forward.1} parent=1 // pred_fallthru
      _
    // Predicated region
    $region22: #{conv_neural_network_forward.1} parent=1 // pred_check
      _
    $region23: #{conv_neural_network_forward.1} parent=1 // pred_check_branch
      %73 = sbr.rel (0) target = $region25
    $region24: #{conv_neural_network_forward.1} parent=1 // pred_region
      %s75 = ssub.s32 1024, 1024
      %76 = vsyncadd [#allocation8], %s75
      %s77 = sshll.u32 [#allocation9], 4
      %s78 = int_to_ptr.vmem [resolvable:$true] %s77
      %83 = dma.hbm_to_vmem [thread:$0]  %s5, 1024, %s78, [#allocation8], 64, 64, 4
    $region25: #{conv_neural_network_forward.1} parent=1 // pred_fallthru
      _
    // Predicated region
    $region26: #{conv_neural_network_forward.1} parent=1 // pred_check
      _
    $region27: #{conv_neural_network_forward.1} parent=1 // pred_check_branch
      %85 = sbr.rel (0) target = $region29
    $region28: #{conv_neural_network_forward.1} parent=1 // pred_region
      %s87 = ssub.s32 128, 128
      %88 = vsyncadd [#allocation11], %s87
      %s90 = sshll.u32 [#allocation10], 4
      %s91 = int_to_ptr.vmem [resolvable:$true] %s90
      %93 = dma.hbm_to_vmem [thread:$0]  %s6, 128, %s91, [#allocation11]
    $region29: #{conv_neural_network_forward.1} parent=1 // pred_fallthru
      _
    // Predicated region
    $region30: #{conv_neural_network_forward.1} parent=1 // pred_check
      _
    $region31: #{conv_neural_network_forward.1} parent=1 // pred_check_branch
      %95 = sbr.rel (0) target = $region33
    $region32: #{conv_neural_network_forward.1} parent=1 // pred_region
      %s97 = ssub.s32 128, 128
      %98 = vsyncadd [#allocation11], %s97
      %s100 = sshll.u32 [#allocation12], 4
      %s101 = int_to_ptr.vmem [resolvable:$true] %s100
      %103 = dma.hbm_to_vmem [thread:$0]  %s7, 128, %s101, [#allocation11]
    $region33: #{conv_neural_network_forward.1} parent=1 // pred_fallthru
      _
    // Predicated region
    $region34: #{conv_neural_network_forward.1} parent=1 // pred_check
      _
    $region35: #{conv_neural_network_forward.1} parent=1 // pred_check_branch
      %105 = sbr.rel (0) target = $region37
    $region36: #{conv_neural_network_forward.1} parent=1 // pred_region
      %s107 = ssub.s32 128, 128
      %108 = vsyncadd [#allocation14], %s107
      %s110 = sshll.u32 [#allocation13], 4
      %s111 = int_to_ptr.vmem [resolvable:$true] %s110
      %113 = dma.hbm_to_vmem [thread:$0]  %s8, 128, %s111, [#allocation14]
    $region37: #{conv_neural_network_forward.1} parent=1 // pred_fallthru
      _
    // Predicated region
    $region38: #{conv_neural_network_forward.1} parent=1 // pred_check
      _
    $region39: #{conv_neural_network_forward.1} parent=1 // pred_check_branch
      %115 = sbr.rel (0) target = $region41
    $region40: #{conv_neural_network_forward.1} parent=1 // pred_region
      %s117 = ssub.s32 32, 32
      %118 = vsyncadd [#allocation14], %s117
      %s120 = sshll.u32 [#allocation15], 4
      %s121 = int_to_ptr.vmem [resolvable:$true] %s120
      %123 = dma.hbm_to_vmem [thread:$0]  %s9, 32, %s121, [#allocation14]
    $region41: #{conv_neural_network_forward.1} parent=1 // pred_fallthru
      _
    // Predicated region
    $region42: #{conv_neural_network_forward.1} parent=1 // pred_check
      _
    $region43: #{conv_neural_network_forward.1} parent=1 // pred_check_branch
      %125 = sbr.rel (0) target = $region45
    $region44: #{conv_neural_network_forward.1} parent=1 // pred_region
      %s127 = ssub.s32 16, 16
      %128 = vsyncadd [#allocation17], %s127
      %s130 = sshll.u32 [#allocation16], 4
      %s131 = int_to_ptr.vmem [resolvable:$true] %s130
      %133 = dma.hbm_to_vmem [thread:$0]  %s10, 16, %s131, [#allocation17]
    $region45: #{conv_neural_network_forward.1} parent=1 // pred_fallthru
      _
    // Predicated region
    $region46: #{conv_neural_network_forward.1} parent=1 // pred_check
      _
    $region47: #{conv_neural_network_forward.1} parent=1 // pred_check_branch
      %135 = sbr.rel (0) target = $region49
    $region48: #{conv_neural_network_forward.1} parent=1 // pred_region
      %136 = dma.done [#allocation3], 3072
    $region49: #{conv_neural_network_forward.1} parent=1 // pred_fallthru
      _
    // Predicated region
    $region50: #{conv_neural_network_forward.1} parent=1 // pred_check
      _
    $region51: #{conv_neural_network_forward.1} parent=1 // pred_check_branch
      %138 = sbr.rel (0) target = $region53
    $region52: #{conv_neural_network_forward.1} parent=1 // pred_region
      %139 = dma.done [#allocation5], 24576
    $region53: #{conv_neural_network_forward.1} parent=1 // pred_fallthru
      _
    // Predicated region
    $region54: #{conv_neural_network_forward.1} parent=1 // pred_check
      _
    $region55: #{conv_neural_network_forward.1} parent=1 // pred_check_branch
      %141 = sbr.rel (0) target = $region57
    $region56: #{conv_neural_network_forward.1} parent=1 // pred_region
      %142 = dma.done [#allocation5], 57344
    $region57: #{conv_neural_network_forward.1} parent=1 // pred_fallthru
      _
    // Predicated region
    $region58: #{conv_neural_network_forward.1} parent=1 // pred_check
      _
    $region59: #{conv_neural_network_forward.1} parent=1 // pred_check_branch
      %144 = sbr.rel (0) target = $region61
    $region60: #{conv_neural_network_forward.1} parent=1 // pred_region
      %145 = dma.done [#allocation8], 4096
    $region61: #{conv_neural_network_forward.1} parent=1 // pred_fallthru
      _
    // Predicated region
    $region62: #{conv_neural_network_forward.1} parent=1 // pred_check
      _
    $region63: #{conv_neural_network_forward.1} parent=1 // pred_check_branch
      %147 = sbr.rel (0) target = $region65
    $region64: #{conv_neural_network_forward.1} parent=1 // pred_region
      %148 = dma.done [#allocation8], 1024
    $region65: #{conv_neural_network_forward.1} parent=1 // pred_fallthru
      _
    // Predicated region
    $region66: #{conv_neural_network_forward.1} parent=1 // pred_check
      _
    $region67: #{conv_neural_network_forward.1} parent=1 // pred_check_branch
      %150 = sbr.rel (0) target = $region69
    $region68: #{conv_neural_network_forward.1} parent=1 // pred_region
      %151 = dma.done [#allocation11], 128
    $region69: #{conv_neural_network_forward.1} parent=1 // pred_fallthru
      _
    // Predicated region
    $region70: #{conv_neural_network_forward.1} parent=1 // pred_check
      _
    $region71: #{conv_neural_network_forward.1} parent=1 // pred_check_branch
      %153 = sbr.rel (0) target = $region73
    $region72: #{conv_neural_network_forward.1} parent=1 // pred_region
      %154 = dma.done [#allocation11], 128
    $region73: #{conv_neural_network_forward.1} parent=1 // pred_fallthru
      _
    // Predicated region
    $region74: #{conv_neural_network_forward.1} parent=1 // pred_check
      _
    $region75: #{conv_neural_network_forward.1} parent=1 // pred_check_branch
      %156 = sbr.rel (0) target = $region77
    $region76: #{conv_neural_network_forward.1} parent=1 // pred_region
      %157 = dma.done [#allocation14], 128
    $region77: #{conv_neural_network_forward.1} parent=1 // pred_fallthru
      _
    // Predicated region
    $region78: #{conv_neural_network_forward.1} parent=1 // pred_check
      _
    $region79: #{conv_neural_network_forward.1} parent=1 // pred_check_branch
      %159 = sbr.rel (0) target = $region81
    $region80: #{conv_neural_network_forward.1} parent=1 // pred_region
      %160 = dma.done [#allocation14], 32
    $region81: #{conv_neural_network_forward.1} parent=1 // pred_fallthru
      _
    // Predicated region
    $region82: #{conv_neural_network_forward.1} parent=1 // pred_check
      _
    $region83: #{conv_neural_network_forward.1} parent=1 // pred_check_branch
      %162 = sbr.rel (0) target = $region85
    $region84: #{conv_neural_network_forward.1} parent=1 // pred_region
      %163 = dma.done [#allocation17], 16
    $region85: #{conv_neural_network_forward.1} parent=1 // pred_fallthru
      _
    %v165 = vld [vmem:[%s0] sm:$0xf]
    %v166 = vld [vmem:[%s0 + $0x4] sm:$0xf]
    %v167 = vld [vmem:[%s0 + $0x8] sm:$0xf]
    %v168 = vld [vmem:[%s0 + $0xc] sm:$0xf]
    %v169 = vld [vmem:[%s0 + $0x10] sm:$0xf]
    %v170 = vld [vmem:[%s0 + $0x14] sm:$0xf]
    %v171 = vld [vmem:[%s0 + $0x18] sm:$0xf]
    %v172 = vld [vmem:[%s0 + $0x1c] sm:$0xf]
    %v173 = vld [vmem:[%s0 + $0x20] sm:$0xf]
    %v174 = vld [vmem:[%s0 + $0x24] sm:$0xf]
    %v175 = vld [vmem:[%s0 + $0x28] sm:$0xf]
    %v176 = vld [vmem:[%s0 + $0x2c] sm:$0xf]
    %v177 = vld [vmem:[%s0 + $0x30] sm:$0xf]
    %v178 = vld [vmem:[%s0 + $0x34] sm:$0xf]
    %v179 = vld [vmem:[%s0 + $0x38] sm:$0xf]
    %v180 = vld [vmem:[%s0 + $0x3c] sm:$0xf]
    %v181 = vld [vmem:[%s0 + $0x40] sm:$0xf]
    %v182 = vld [vmem:[%s0 + $0x44] sm:$0xf]
    %v183 = vld [vmem:[%s0 + $0x48] sm:$0xf]
    %v184 = vld [vmem:[%s0 + $0x4c] sm:$0xf]
    %v185 = vld [vmem:[%s0 + $0x50] sm:$0xf]
    %v186 = vld [vmem:[%s0 + $0x54] sm:$0xf]
    %v187 = vld [vmem:[%s0 + $0x58] sm:$0xf]
    %v188 = vld [vmem:[%s0 + $0x5c] sm:$0xf]
    %v189 = vld [vmem:[%s0 + $0x60] sm:$0xf]
    %v190 = vld [vmem:[%s0 + $0x64] sm:$0xf]
    %v191 = vld [vmem:[%s0 + $0x68] sm:$0xf]
    %v192 = vld [vmem:[%s0 + $0x6c] sm:$0xf]
    %v193 = vld [vmem:[%s0 + $0x70] sm:$0xf]
    %v194 = vld [vmem:[%s0 + $0x74] sm:$0xf]
    %v195 = vld [vmem:[%s0 + $0x78] sm:$0xf]
    %v196 = vld [vmem:[%s0 + $0x7c] sm:$0xf]
    %v197 = vld [vmem:[%s0 + $0x80] sm:$0xf]
    %v198 = vld [vmem:[%s0 + $0x84] sm:$0xf]
    %v199 = vld [vmem:[%s0 + $0x88] sm:$0xf]
    %v200 = vld [vmem:[%s0 + $0x8c] sm:$0xf]
    %v201 = vld [vmem:[%s0 + $0x90] sm:$0xf]
    %v202 = vld [vmem:[%s0 + $0x94] sm:$0xf]
    %v203 = vld [vmem:[%s0 + $0x98] sm:$0xf]
    %v204 = vld [vmem:[%s0 + $0x9c] sm:$0xf]
    %v205 = vld [vmem:[%s0 + $0xa0] sm:$0xf]
    %v206 = vld [vmem:[%s0 + $0xa4] sm:$0xf]
    %v207 = vld [vmem:[%s0 + $0xa8] sm:$0xf]
    %v208 = vld [vmem:[%s0 + $0xac] sm:$0xf]
    %v209 = vld [vmem:[%s0 + $0xb0] sm:$0xf]
    %v210 = vld [vmem:[%s0 + $0xb4] sm:$0xf]
    %v211 = vld [vmem:[%s0 + $0xb8] sm:$0xf]
    %v212 = vld [vmem:[%s0 + $0xbc] sm:$0xf]
    %v213 = vld [vmem:[%s0 + $0xc0] sm:$0xf]
    %v214 = vld [vmem:[%s0 + $0xc4] sm:$0xf]
    %v215 = vld [vmem:[%s0 + $0xc8] sm:$0xf]
    %v216 = vld [vmem:[%s0 + $0xcc] sm:$0xf]
    %v217 = vld [vmem:[%s0 + $0xd0] sm:$0xf]
    %v218 = vld [vmem:[%s0 + $0xd4] sm:$0xf]
    %v219 = vld [vmem:[%s0 + $0xd8] sm:$0xf]
    %v220 = vld [vmem:[%s0 + $0xdc] sm:$0xf]
    %v221 = vld [vmem:[%s0 + $0xe0] sm:$0xf]
    %v222 = vld [vmem:[%s0 + $0xe4] sm:$0xf]
    %v223 = vld [vmem:[%s0 + $0xe8] sm:$0xf]
    %v224 = vld [vmem:[%s0 + $0xec] sm:$0xf]
    %v225 = vld [vmem:[%s0 + $0xf0] sm:$0xf]
    %v226 = vld [vmem:[%s0 + $0xf4] sm:$0xf]
    %v227 = vld [vmem:[%s0 + $0xf8] sm:$0xf]
    %v228 = vld [vmem:[%s0 + $0xfc] sm:$0xf]
    %v229 = vld [vmem:[%s0 + $0x100] sm:$0xf]
    %v230 = vld [vmem:[%s0 + $0x104] sm:$0xf]
    %v231 = vld [vmem:[%s0 + $0x108] sm:$0xf]
    %v232 = vld [vmem:[%s0 + $0x10c] sm:$0xf]
    %v233 = vld [vmem:[%s0 + $0x110] sm:$0xf]
    %v234 = vld [vmem:[%s0 + $0x114] sm:$0xf]
    %v235 = vld [vmem:[%s0 + $0x118] sm:$0xf]
    %v236 = vld [vmem:[%s0 + $0x11c] sm:$0xf]
    %v237 = vld [vmem:[%s0 + $0x120] sm:$0xf]
    %v238 = vld [vmem:[%s0 + $0x124] sm:$0xf]
    %v239 = vld [vmem:[%s0 + $0x128] sm:$0xf]
    %v240 = vld [vmem:[%s0 + $0x12c] sm:$0xf]
    %v241 = vld [vmem:[%s0 + $0x130] sm:$0xf]
    %v242 = vld [vmem:[%s0 + $0x134] sm:$0xf]
    %v243 = vld [vmem:[%s0 + $0x138] sm:$0xf]
    %v244 = vld [vmem:[%s0 + $0x13c] sm:$0xf]
    %v245 = vld [vmem:[%s0 + $0x140] sm:$0xf]
    %v246 = vld [vmem:[%s0 + $0x144] sm:$0xf]
    %v247 = vld [vmem:[%s0 + $0x148] sm:$0xf]
    %v248 = vld [vmem:[%s0 + $0x14c] sm:$0xf]
    %v249 = vld [vmem:[%s0 + $0x150] sm:$0xf]
    %v250 = vld [vmem:[%s0 + $0x154] sm:$0xf]
    %v251 = vld [vmem:[%s0 + $0x158] sm:$0xf]
    %v252 = vld [vmem:[%s0 + $0x15c] sm:$0xf]
    %v253 = vld [vmem:[%s0 + $0x160] sm:$0xf]
    %v254 = vld [vmem:[%s0 + $0x164] sm:$0xf]
    %v255 = vld [vmem:[%s0 + $0x168] sm:$0xf]
    %v256 = vld [vmem:[%s0 + $0x16c] sm:$0xf]
    %v257 = vld [vmem:[%s0 + $0x170] sm:$0xf]
    %v258 = vld [vmem:[%s0 + $0x174] sm:$0xf]
    %v259 = vld [vmem:[%s0 + $0x178] sm:$0xf]
    %v260 = vld [vmem:[%s0 + $0x17c] sm:$0xf]
    %v261 = vld [vmem:[%s0 + $0x180] sm:$0xf]
    %v262 = vld [vmem:[%s0 + $0x184] sm:$0xf]
    %v263 = vld [vmem:[%s0 + $0x188] sm:$0xf]
    %v264 = vld [vmem:[%s0 + $0x18c] sm:$0xf]
    %v265 = vld [vmem:[%s0 + $0x190] sm:$0xf]
    %v266 = vld [vmem:[%s0 + $0x194] sm:$0xf]
    %v267 = vld [vmem:[%s0 + $0x198] sm:$0xf]
    %v268 = vld [vmem:[%s0 + $0x19c] sm:$0xf]
    %v269 = vld [vmem:[%s0 + $0x1a0] sm:$0xf]
    %v270 = vld [vmem:[%s0 + $0x1a4] sm:$0xf]
    %v271 = vld [vmem:[%s0 + $0x1a8] sm:$0xf]
    %v272 = vld [vmem:[%s0 + $0x1ac] sm:$0xf]
    %v273 = vld [vmem:[%s0 + $0x1b0] sm:$0xf]
    %v274 = vld [vmem:[%s0 + $0x1b4] sm:$0xf]
    %v275 = vld [vmem:[%s0 + $0x1b8] sm:$0xf]
    %v276 = vld [vmem:[%s0 + $0x1bc] sm:$0xf]
    %v277 = vld [vmem:[%s0 + $0x1c0] sm:$0xf]
    %v278 = vld [vmem:[%s0 + $0x1c4] sm:$0xf]
    %v279 = vld [vmem:[%s0 + $0x1c8] sm:$0xf]
    %v280 = vld [vmem:[%s0 + $0x1cc] sm:$0xf]
    %v281 = vld [vmem:[%s0 + $0x1d0] sm:$0xf]
    %v282 = vld [vmem:[%s0 + $0x1d4] sm:$0xf]
    %v283 = vld [vmem:[%s0 + $0x1d8] sm:$0xf]
    %v284 = vld [vmem:[%s0 + $0x1dc] sm:$0xf]
    %v397 = vunpack.c.l.b16 %v165
    %v398 = vunpack.c.l.b16 %v166
    %v399 = vunpack.c.l.b16 %v167
    %v400 = vunpack.c.l.b16 %v168
    %v401 = vunpack.c.l.b16 %v169
    %v402 = vunpack.c.l.b16 %v170
    %v403 = vunpack.c.l.b16 %v171
    %v404 = vunpack.c.l.b16 %v172
    %v405 = vunpack.c.l.b16 %v173
    %v406 = vunpack.c.l.b16 %v174
    %v407 = vunpack.c.l.b16 %v175
    %v408 = vunpack.c.l.b16 %v176
    %v409 = vunpack.c.l.b16 %v177
    %v410 = vunpack.c.l.b16 %v178
    %v411 = vunpack.c.l.b16 %v179
    %v412 = vunpack.c.l.b16 %v180
    %v413 = vunpack.c.l.b16 %v181
    %v414 = vunpack.c.l.b16 %v182
    %v415 = vunpack.c.l.b16 %v183
    %v416 = vunpack.c.l.b16 %v184
    %v417 = vunpack.c.l.b16 %v185
    %v418 = vunpack.c.l.b16 %v186
    %v419 = vunpack.c.l.b16 %v187
    %v420 = vunpack.c.l.b16 %v188
    %v421 = vunpack.c.l.b16 %v189
    %v422 = vunpack.c.l.b16 %v190
    %v423 = vunpack.c.l.b16 %v191
    %v424 = vunpack.c.l.b16 %v192
    %v425 = vunpack.c.l.b16 %v193
    %v426 = vunpack.c.l.b16 %v194
    %v427 = vunpack.c.l.b16 %v195
    %v428 = vunpack.c.l.b16 %v196
    %v429 = vunpack.c.l.b16 %v197
    %v430 = vunpack.c.l.b16 %v198
    %v431 = vunpack.c.l.b16 %v199
    %v432 = vunpack.c.l.b16 %v200
    %v433 = vunpack.c.l.b16 %v201
    %v434 = vunpack.c.l.b16 %v202
    %v435 = vunpack.c.l.b16 %v203
    %v436 = vunpack.c.l.b16 %v204
    %v437 = vunpack.c.l.b16 %v205
    %v438 = vunpack.c.l.b16 %v206
    %v439 = vunpack.c.l.b16 %v207
    %v440 = vunpack.c.l.b16 %v208
    %v441 = vunpack.c.l.b16 %v209
    %v442 = vunpack.c.l.b16 %v210
    %v443 = vunpack.c.l.b16 %v211
    %v444 = vunpack.c.l.b16 %v212
    %v445 = vunpack.c.l.b16 %v213
    %v446 = vunpack.c.l.b16 %v214
    %v447 = vunpack.c.l.b16 %v215
    %v448 = vunpack.c.l.b16 %v216
    %v449 = vunpack.c.l.b16 %v217
    %v450 = vunpack.c.l.b16 %v218
    %v451 = vunpack.c.l.b16 %v219
    %v452 = vunpack.c.l.b16 %v220
    %v453 = vunpack.c.l.b16 %v221
    %v454 = vunpack.c.l.b16 %v222
    %v455 = vunpack.c.l.b16 %v223
    %v456 = vunpack.c.l.b16 %v224
    %v457 = vunpack.c.l.b16 %v225
    %v458 = vunpack.c.l.b16 %v226
    %v459 = vunpack.c.l.b16 %v227
    %v460 = vunpack.c.l.b16 %v228
    %v461 = vunpack.c.l.b16 %v229
    %v462 = vunpack.c.l.b16 %v230
    %v463 = vunpack.c.l.b16 %v231
    %v464 = vunpack.c.l.b16 %v232
    %v465 = vunpack.c.l.b16 %v233
    %v466 = vunpack.c.l.b16 %v234
    %v467 = vunpack.c.l.b16 %v235
    %v468 = vunpack.c.l.b16 %v236
    %v469 = vunpack.c.l.b16 %v237
    %v470 = vunpack.c.l.b16 %v238
    %v471 = vunpack.c.l.b16 %v239
    %v472 = vunpack.c.l.b16 %v240
    %v473 = vunpack.c.l.b16 %v241
    %v474 = vunpack.c.l.b16 %v242
    %v475 = vunpack.c.l.b16 %v243
    %v476 = vunpack.c.l.b16 %v244
    %v477 = vunpack.c.l.b16 %v245
    %v478 = vunpack.c.l.b16 %v246
    %v479 = vunpack.c.l.b16 %v247
    %v480 = vunpack.c.l.b16 %v248
    %v481 = vunpack.c.l.b16 %v249
    %v482 = vunpack.c.l.b16 %v250
    %v483 = vunpack.c.l.b16 %v251
    %v484 = vunpack.c.l.b16 %v252
    %v485 = vunpack.c.l.b16 %v253
    %v486 = vunpack.c.l.b16 %v254
    %v487 = vunpack.c.l.b16 %v255
    %v488 = vunpack.c.l.b16 %v256
    %v489 = vunpack.c.l.b16 %v257
    %v490 = vunpack.c.l.b16 %v258
    %v491 = vunpack.c.l.b16 %v259
    %v492 = vunpack.c.l.b16 %v260
    %v493 = vunpack.c.l.b16 %v261
    %v494 = vunpack.c.l.b16 %v262
    %v495 = vunpack.c.l.b16 %v263
    %v496 = vunpack.c.l.b16 %v264
    %v497 = vunpack.c.l.b16 %v265
    %v498 = vunpack.c.l.b16 %v266
    %v499 = vunpack.c.l.b16 %v267
    %v500 = vunpack.c.l.b16 %v268
    %v501 = vunpack.c.l.b16 %v269
    %v502 = vunpack.c.l.b16 %v270
    %v503 = vunpack.c.l.b16 %v271
    %v504 = vunpack.c.l.b16 %v272
    %v505 = vunpack.c.l.b16 %v273
    %v506 = vunpack.c.l.b16 %v274
    %v507 = vunpack.c.l.b16 %v275
    %v508 = vunpack.c.l.b16 %v276
    %v509 = vpack.c.b16 %v398, %v397
    %v510 = vpack.c.b16 %v400, %v399
    %v511 = vpack.c.b16 %v402, %v401
    %v512 = vpack.c.b16 %v404, %v403
    %v513 = vpack.c.b16 %v406, %v405
    %v514 = vpack.c.b16 %v408, %v407
    %v515 = vpack.c.b16 %v410, %v409
    %v516 = vpack.c.b16 %v412, %v411
    %v517 = vpack.c.b16 %v414, %v413
    %v518 = vpack.c.b16 %v416, %v415
    %v519 = vpack.c.b16 %v418, %v417
    %v520 = vpack.c.b16 %v420, %v419
    %v521 = vpack.c.b16 %v422, %v421
    %v522 = vpack.c.b16 %v424, %v423
    %v523 = vpack.c.b16 %v426, %v425
    %v524 = vpack.c.b16 %v428, %v427
    %v525 = vpack.c.b16 %v430, %v429
    %v526 = vpack.c.b16 %v432, %v431
    %v527 = vpack.c.b16 %v434, %v433
    %v528 = vpack.c.b16 %v436, %v435
    %v529 = vpack.c.b16 %v438, %v437
    %v530 = vpack.c.b16 %v440, %v439
    %v531 = vpack.c.b16 %v442, %v441
    %v532 = vpack.c.b16 %v444, %v443
    %v533 = vpack.c.b16 %v446, %v445
    %v534 = vpack.c.b16 %v448, %v447
    %v535 = vpack.c.b16 %v450, %v449
    %v536 = vpack.c.b16 %v452, %v451
    %v537 = vpack.c.b16 %v454, %v453
    %v538 = vpack.c.b16 %v456, %v455
    %v539 = vpack.c.b16 %v458, %v457
    %v540 = vpack.c.b16 %v460, %v459
    %v541 = vpack.c.b16 %v462, %v461
    %v542 = vpack.c.b16 %v464, %v463
    %v543 = vpack.c.b16 %v466, %v465
    %v544 = vpack.c.b16 %v468, %v467
    %v545 = vpack.c.b16 %v470, %v469
    %v546 = vpack.c.b16 %v472, %v471
    %v547 = vpack.c.b16 %v474, %v473
    %v548 = vpack.c.b16 %v476, %v475
    %v549 = vpack.c.b16 %v478, %v477
    %v550 = vpack.c.b16 %v480, %v479
    %v551 = vpack.c.b16 %v482, %v481
    %v552 = vpack.c.b16 %v484, %v483
    %v553 = vpack.c.b16 %v486, %v485
    %v554 = vpack.c.b16 %v488, %v487
    %v555 = vpack.c.b16 %v490, %v489
    %v556 = vpack.c.b16 %v492, %v491
    %v557 = vpack.c.b16 %v494, %v493
    %v558 = vpack.c.b16 %v496, %v495
    %v559 = vpack.c.b16 %v498, %v497
    %v560 = vpack.c.b16 %v500, %v499
    %v561 = vpack.c.b16 %v502, %v501
    %v562 = vpack.c.b16 %v504, %v503
    %v563 = vpack.c.b16 %v506, %v505
    %v564 = vpack.c.b16 %v508, %v507
    %v569 = vunpack.c.l.b16 %v277
    %v570 = vunpack.c.l.b16 %v278
    %v571 = vunpack.c.l.b16 %v279
    %v572 = vunpack.c.l.b16 %v280
    %v573 = vpack.c.b16 %v570, %v569
    %v574 = vpack.c.b16 %v572, %v571
    %575 = vrot.lane.b32.xlu0 %v511, 32
    %v576 = vpop.permute.xlu0 %575
    %577 = vrot.lane.b32.xlu0 %v512, 32
    %v578 = vpop.permute.xlu0 %577
    %579 = vrot.lane.b32.xlu0 %v513, 32
    %v580 = vpop.permute.xlu0 %579
    %581 = vrot.lane.b32.xlu0 %v514, 32
    %v582 = vpop.permute.xlu0 %581
    %583 = vrot.lane.b32.xlu0 %v515, 32
    %v584 = vpop.permute.xlu0 %583
    %585 = vrot.lane.b32.xlu0 %v516, 32
    %v586 = vpop.permute.xlu0 %585
    %587 = vrot.lane.b32.xlu0 %v517, 32
    %v588 = vpop.permute.xlu0 %587
    %589 = vrot.lane.b32.xlu0 %v518, 32
    %v590 = vpop.permute.xlu0 %589
    %591 = vrot.lane.b32.xlu0 %v519, 32
    %v592 = vpop.permute.xlu0 %591
    %593 = vrot.lane.b32.xlu0 %v520, 32
    %v594 = vpop.permute.xlu0 %593
    %595 = vrot.lane.b32.xlu0 %v521, 32
    %v596 = vpop.permute.xlu0 %595
    %597 = vrot.lane.b32.xlu0 %v522, 32
    %v598 = vpop.permute.xlu0 %597
    %599 = vrot.lane.b32.xlu0 %v523, 32
    %v600 = vpop.permute.xlu0 %599
    %601 = vrot.lane.b32.xlu0 %v524, 32
    %v602 = vpop.permute.xlu0 %601
    %603 = vrot.lane.b32.xlu0 %v525, 32
    %v604 = vpop.permute.xlu0 %603
    %605 = vrot.lane.b32.xlu0 %v526, 32
    %v606 = vpop.permute.xlu0 %605
    %607 = vrot.lane.b32.xlu0 %v527, 32
    %v608 = vpop.permute.xlu0 %607
    %609 = vrot.lane.b32.xlu0 %v528, 32
    %v610 = vpop.permute.xlu0 %609
    %611 = vrot.lane.b32.xlu0 %v529, 32
    %v612 = vpop.permute.xlu0 %611
    %613 = vrot.lane.b32.xlu0 %v530, 32
    %v614 = vpop.permute.xlu0 %613
    %615 = vrot.lane.b32.xlu0 %v531, 32
    %v616 = vpop.permute.xlu0 %615
    %617 = vrot.lane.b32.xlu0 %v532, 32
    %v618 = vpop.permute.xlu0 %617
    %619 = vrot.lane.b32.xlu0 %v533, 32
    %v620 = vpop.permute.xlu0 %619
    %621 = vrot.lane.b32.xlu0 %v534, 32
    %v622 = vpop.permute.xlu0 %621
    %623 = vrot.lane.b32.xlu0 %v535, 32
    %v624 = vpop.permute.xlu0 %623
    %625 = vrot.lane.b32.xlu0 %v536, 32
    %v626 = vpop.permute.xlu0 %625
    %627 = vrot.lane.b32.xlu0 %v537, 32
    %v628 = vpop.permute.xlu0 %627
    %629 = vrot.lane.b32.xlu0 %v538, 32
    %v630 = vpop.permute.xlu0 %629
    %631 = vrot.lane.b32.xlu0 %v539, 32
    %v632 = vpop.permute.xlu0 %631
    %633 = vrot.lane.b32.xlu0 %v540, 32
    %v634 = vpop.permute.xlu0 %633
    %635 = vrot.lane.b32.xlu0 %v541, 32
    %v636 = vpop.permute.xlu0 %635
    %637 = vrot.lane.b32.xlu0 %v542, 32
    %v638 = vpop.permute.xlu0 %637
    %639 = vrot.lane.b32.xlu0 %v543, 32
    %v640 = vpop.permute.xlu0 %639
    %641 = vrot.lane.b32.xlu0 %v544, 32
    %v642 = vpop.permute.xlu0 %641
    %643 = vrot.lane.b32.xlu0 %v545, 32
    %v644 = vpop.permute.xlu0 %643
    %645 = vrot.lane.b32.xlu0 %v546, 32
    %v646 = vpop.permute.xlu0 %645
    %647 = vrot.lane.b32.xlu0 %v547, 32
    %v648 = vpop.permute.xlu0 %647
    %649 = vrot.lane.b32.xlu0 %v548, 32
    %v650 = vpop.permute.xlu0 %649
    %651 = vrot.lane.b32.xlu0 %v549, 32
    %v652 = vpop.permute.xlu0 %651
    %653 = vrot.lane.b32.xlu0 %v550, 32
    %v654 = vpop.permute.xlu0 %653
    %655 = vrot.lane.b32.xlu0 %v551, 32
    %v656 = vpop.permute.xlu0 %655
    %657 = vrot.lane.b32.xlu0 %v552, 32
    %v658 = vpop.permute.xlu0 %657
    %659 = vrot.lane.b32.xlu0 %v553, 32
    %v660 = vpop.permute.xlu0 %659
    %661 = vrot.lane.b32.xlu0 %v554, 32
    %v662 = vpop.permute.xlu0 %661
    %663 = vrot.lane.b32.xlu0 %v555, 32
    %v664 = vpop.permute.xlu0 %663
    %665 = vrot.lane.b32.xlu0 %v556, 32
    %v666 = vpop.permute.xlu0 %665
    %667 = vrot.lane.b32.xlu0 %v557, 32
    %v668 = vpop.permute.xlu0 %667
    %669 = vrot.lane.b32.xlu0 %v558, 32
    %v670 = vpop.permute.xlu0 %669
    %671 = vrot.lane.b32.xlu0 %v559, 32
    %v672 = vpop.permute.xlu0 %671
    %673 = vrot.lane.b32.xlu0 %v560, 32
    %v674 = vpop.permute.xlu0 %673
    %675 = vrot.lane.b32.xlu0 %v561, 32
    %v676 = vpop.permute.xlu0 %675
    %677 = vrot.lane.b32.xlu0 %v562, 32
    %v678 = vpop.permute.xlu0 %677
    %679 = vrot.lane.b32.xlu0 %v563, 32
    %v680 = vpop.permute.xlu0 %679
    %681 = vrot.lane.b32.xlu0 %v564, 32
    %v682 = vpop.permute.xlu0 %681
    %683 = vrot.lane.b32.xlu0 %v573, 32
    %v684 = vpop.permute.xlu0 %683
    %685 = vrot.lane.b32.xlu0 %v574, 32
    %v686 = vpop.permute.xlu0 %685
    %v691 = vunpack.c.l.b16 %v281
    %v692 = vunpack.c.l.b16 %v282
    %v693 = vunpack.c.l.b16 %v283
    %v694 = vunpack.c.l.b16 %v284
    %v695 = vpack.c.b16 %v692, %v691
    %v696 = vpack.c.b16 %v694, %v693
    %697 = vrot.lane.b32.xlu0 %v513, 64
    %v698 = vpop.permute.xlu0 %697
    %699 = vrot.lane.b32.xlu0 %v514, 64
    %v700 = vpop.permute.xlu0 %699
    %701 = vrot.lane.b32.xlu0 %v515, 64
    %v702 = vpop.permute.xlu0 %701
    %703 = vrot.lane.b32.xlu0 %v516, 64
    %v704 = vpop.permute.xlu0 %703
    %705 = vrot.lane.b32.xlu0 %v517, 64
    %v706 = vpop.permute.xlu0 %705
    %707 = vrot.lane.b32.xlu0 %v518, 64
    %v708 = vpop.permute.xlu0 %707
    %709 = vrot.lane.b32.xlu0 %v519, 64
    %v710 = vpop.permute.xlu0 %709
    %711 = vrot.lane.b32.xlu0 %v520, 64
    %v712 = vpop.permute.xlu0 %711
    %713 = vrot.lane.b32.xlu0 %v521, 64
    %v714 = vpop.permute.xlu0 %713
    %715 = vrot.lane.b32.xlu0 %v522, 64
    %v716 = vpop.permute.xlu0 %715
    %717 = vrot.lane.b32.xlu0 %v523, 64
    %v718 = vpop.permute.xlu0 %717
    %719 = vrot.lane.b32.xlu0 %v524, 64
    %v720 = vpop.permute.xlu0 %719
    %721 = vrot.lane.b32.xlu0 %v525, 64
    %v722 = vpop.permute.xlu0 %721
    %723 = vrot.lane.b32.xlu0 %v526, 64
    %v724 = vpop.permute.xlu0 %723
    %725 = vrot.lane.b32.xlu0 %v527, 64
    %v726 = vpop.permute.xlu0 %725
    %727 = vrot.lane.b32.xlu0 %v528, 64
    %v728 = vpop.permute.xlu0 %727
    %729 = vrot.lane.b32.xlu0 %v529, 64
    %v730 = vpop.permute.xlu0 %729
    %731 = vrot.lane.b32.xlu0 %v530, 64
    %v732 = vpop.permute.xlu0 %731
    %733 = vrot.lane.b32.xlu0 %v531, 64
    %v734 = vpop.permute.xlu0 %733
    %735 = vrot.lane.b32.xlu0 %v532, 64
    %v736 = vpop.permute.xlu0 %735
    %737 = vrot.lane.b32.xlu0 %v533, 64
    %v738 = vpop.permute.xlu0 %737
    %739 = vrot.lane.b32.xlu0 %v534, 64
    %v740 = vpop.permute.xlu0 %739
    %741 = vrot.lane.b32.xlu0 %v535, 64
    %v742 = vpop.permute.xlu0 %741
    %743 = vrot.lane.b32.xlu0 %v536, 64
    %v744 = vpop.permute.xlu0 %743
    %745 = vrot.lane.b32.xlu0 %v537, 64
    %v746 = vpop.permute.xlu0 %745
    %747 = vrot.lane.b32.xlu0 %v538, 64
    %v748 = vpop.permute.xlu0 %747
    %749 = vrot.lane.b32.xlu0 %v539, 64
    %v750 = vpop.permute.xlu0 %749
    %751 = vrot.lane.b32.xlu0 %v540, 64
    %v752 = vpop.permute.xlu0 %751
    %753 = vrot.lane.b32.xlu0 %v541, 64
    %v754 = vpop.permute.xlu0 %753
    %755 = vrot.lane.b32.xlu0 %v542, 64
    %v756 = vpop.permute.xlu0 %755
    %757 = vrot.lane.b32.xlu0 %v543, 64
    %v758 = vpop.permute.xlu0 %757
    %759 = vrot.lane.b32.xlu0 %v544, 64
    %v760 = vpop.permute.xlu0 %759
    %761 = vrot.lane.b32.xlu0 %v545, 64
    %v762 = vpop.permute.xlu0 %761
    %763 = vrot.lane.b32.xlu0 %v546, 64
    %v764 = vpop.permute.xlu0 %763
    %765 = vrot.lane.b32.xlu0 %v547, 64
    %v766 = vpop.permute.xlu0 %765
    %767 = vrot.lane.b32.xlu0 %v548, 64
    %v768 = vpop.permute.xlu0 %767
    %769 = vrot.lane.b32.xlu0 %v549, 64
    %v770 = vpop.permute.xlu0 %769
    %771 = vrot.lane.b32.xlu0 %v550, 64
    %v772 = vpop.permute.xlu0 %771
    %773 = vrot.lane.b32.xlu0 %v551, 64
    %v774 = vpop.permute.xlu0 %773
    %775 = vrot.lane.b32.xlu0 %v552, 64
    %v776 = vpop.permute.xlu0 %775
    %777 = vrot.lane.b32.xlu0 %v553, 64
    %v778 = vpop.permute.xlu0 %777
    %779 = vrot.lane.b32.xlu0 %v554, 64
    %v780 = vpop.permute.xlu0 %779
    %781 = vrot.lane.b32.xlu0 %v555, 64
    %v782 = vpop.permute.xlu0 %781
    %783 = vrot.lane.b32.xlu0 %v556, 64
    %v784 = vpop.permute.xlu0 %783
    %785 = vrot.lane.b32.xlu0 %v557, 64
    %v786 = vpop.permute.xlu0 %785
    %787 = vrot.lane.b32.xlu0 %v558, 64
    %v788 = vpop.permute.xlu0 %787
    %789 = vrot.lane.b32.xlu0 %v559, 64
    %v790 = vpop.permute.xlu0 %789
    %791 = vrot.lane.b32.xlu0 %v560, 64
    %v792 = vpop.permute.xlu0 %791
    %793 = vrot.lane.b32.xlu0 %v561, 64
    %v794 = vpop.permute.xlu0 %793
    %795 = vrot.lane.b32.xlu0 %v562, 64
    %v796 = vpop.permute.xlu0 %795
    %797 = vrot.lane.b32.xlu0 %v563, 64
    %v798 = vpop.permute.xlu0 %797
    %799 = vrot.lane.b32.xlu0 %v564, 64
    %v800 = vpop.permute.xlu0 %799
    %801 = vrot.lane.b32.xlu0 %v573, 64
    %v802 = vpop.permute.xlu0 %801
    %803 = vrot.lane.b32.xlu0 %v574, 64
    %v804 = vpop.permute.xlu0 %803
    %805 = vrot.lane.b32.xlu0 %v695, 64
    %v806 = vpop.permute.xlu0 %805
    %807 = vrot.lane.b32.xlu0 %v696, 64
    %v808 = vpop.permute.xlu0 %807
    %vm809 = vcmask 261120
    %v812 = vsel %vm809, %v509, %v576
    %v815 = vsel %vm809, %v510, %v578
    %v818 = vsel %vm809, %v511, %v580
    %v821 = vsel %vm809, %v512, %v582
    %v824 = vsel %vm809, %v513, %v584
    %v827 = vsel %vm809, %v514, %v586
    %v830 = vsel %vm809, %v515, %v588
    %v833 = vsel %vm809, %v516, %v590
    %v836 = vsel %vm809, %v517, %v592
    %v839 = vsel %vm809, %v518, %v594
    %v842 = vsel %vm809, %v519, %v596
    %v845 = vsel %vm809, %v520, %v598
    %v848 = vsel %vm809, %v521, %v600
    %v851 = vsel %vm809, %v522, %v602
    %v854 = vsel %vm809, %v523, %v604
    %v857 = vsel %vm809, %v524, %v606
    %v860 = vsel %vm809, %v525, %v608
    %v863 = vsel %vm809, %v526, %v610
    %v866 = vsel %vm809, %v527, %v612
    %v869 = vsel %vm809, %v528, %v614
    %v872 = vsel %vm809, %v529, %v616
    %v875 = vsel %vm809, %v530, %v618
    %v878 = vsel %vm809, %v531, %v620
    %v881 = vsel %vm809, %v532, %v622
    %v884 = vsel %vm809, %v533, %v624
    %v887 = vsel %vm809, %v534, %v626
    %v890 = vsel %vm809, %v535, %v628
    %v893 = vsel %vm809, %v536, %v630
    %v896 = vsel %vm809, %v537, %v632
    %v899 = vsel %vm809, %v538, %v634
    %v902 = vsel %vm809, %v539, %v636
    %v905 = vsel %vm809, %v540, %v638
    %v908 = vsel %vm809, %v541, %v640
    %v911 = vsel %vm809, %v542, %v642
    %v914 = vsel %vm809, %v543, %v644
    %v917 = vsel %vm809, %v544, %v646
    %v920 = vsel %vm809, %v545, %v648
    %v923 = vsel %vm809, %v546, %v650
    %v926 = vsel %vm809, %v547, %v652
    %v929 = vsel %vm809, %v548, %v654
    %v932 = vsel %vm809, %v549, %v656
    %v935 = vsel %vm809, %v550, %v658
    %v938 = vsel %vm809, %v551, %v660
    %v941 = vsel %vm809, %v552, %v662
    %v944 = vsel %vm809, %v553, %v664
    %v947 = vsel %vm809, %v554, %v666
    %v950 = vsel %vm809, %v555, %v668
    %v953 = vsel %vm809, %v556, %v670
    %v956 = vsel %vm809, %v557, %v672
    %v959 = vsel %vm809, %v558, %v674
    %v962 = vsel %vm809, %v559, %v676
    %v965 = vsel %vm809, %v560, %v678
    %v968 = vsel %vm809, %v561, %v680
    %v971 = vsel %vm809, %v562, %v682
    %v974 = vsel %vm809, %v563, %v684
    %v977 = vsel %vm809, %v564, %v686
    %vm978 = vcmask 523264
    %v980 = vsel %vm978, %v812, %v698
    %v982 = vsel %vm978, %v815, %v700
    %v984 = vsel %vm978, %v818, %v702
    %v986 = vsel %vm978, %v821, %v704
    %v988 = vsel %vm978, %v824, %v706
    %v990 = vsel %vm978, %v827, %v708
    %v992 = vsel %vm978, %v830, %v710
    %v994 = vsel %vm978, %v833, %v712
    %v996 = vsel %vm978, %v836, %v714
    %v998 = vsel %vm978, %v839, %v716
    %v1000 = vsel %vm978, %v842, %v718
    %v1002 = vsel %vm978, %v845, %v720
    %v1004 = vsel %vm978, %v848, %v722
    %v1006 = vsel %vm978, %v851, %v724
    %v1008 = vsel %vm978, %v854, %v726
    %v1010 = vsel %vm978, %v857, %v728
    %v1012 = vsel %vm978, %v860, %v730
    %v1014 = vsel %vm978, %v863, %v732
    %v1016 = vsel %vm978, %v866, %v734
    %v1018 = vsel %vm978, %v869, %v736
    %v1020 = vsel %vm978, %v872, %v738
    %v1022 = vsel %vm978, %v875, %v740
    %v1024 = vsel %vm978, %v878, %v742
    %v1026 = vsel %vm978, %v881, %v744
    %v1028 = vsel %vm978, %v884, %v746
    %v1030 = vsel %vm978, %v887, %v748
    %v1032 = vsel %vm978, %v890, %v750
    %v1034 = vsel %vm978, %v893, %v752
    %v1036 = vsel %vm978, %v896, %v754
    %v1038 = vsel %vm978, %v899, %v756
    %v1040 = vsel %vm978, %v902, %v758
    %v1042 = vsel %vm978, %v905, %v760
    %v1044 = vsel %vm978, %v908, %v762
    %v1046 = vsel %vm978, %v911, %v764
    %v1048 = vsel %vm978, %v914, %v766
    %v1050 = vsel %vm978, %v917, %v768
    %v1052 = vsel %vm978, %v920, %v770
    %v1054 = vsel %vm978, %v923, %v772
    %v1056 = vsel %vm978, %v926, %v774
    %v1058 = vsel %vm978, %v929, %v776
    %v1060 = vsel %vm978, %v932, %v778
    %v1062 = vsel %vm978, %v935, %v780
    %v1064 = vsel %vm978, %v938, %v782
    %v1066 = vsel %vm978, %v941, %v784
    %v1068 = vsel %vm978, %v944, %v786
    %v1070 = vsel %vm978, %v947, %v788
    %v1072 = vsel %vm978, %v950, %v790
    %v1074 = vsel %vm978, %v953, %v792
    %v1076 = vsel %vm978, %v956, %v794
    %v1078 = vsel %vm978, %v959, %v796
    %v1080 = vsel %vm978, %v962, %v798
    %v1082 = vsel %vm978, %v965, %v800
    %v1084 = vsel %vm978, %v968, %v802
    %v1086 = vsel %vm978, %v971, %v804
    %v1088 = vsel %vm978, %v974, %v806
    %v1090 = vsel %vm978, %v977, %v808
    %v1091 = vld [vmem:[#allocation2] sm:$0xff]
    %v1092 = vld [vmem:[#allocation2 + $0x8] sm:$0xff]
    %v1093 = vld [vmem:[#allocation2 + $0x10] sm:$0xff]
    %v1094 = vld [vmem:[#allocation2 + $0x18] sm:$0xff]
    %v1095 = vld [vmem:[#allocation2 + $0x20] sm:$0xff]
    %v1096 = vld [vmem:[#allocation2 + $0x28] sm:$0xff]
    %v1097 = vld [vmem:[#allocation2 + $0x30] sm:$0xff]
    %v1098 = vld [vmem:[#allocation2 + $0x38] sm:$0xff]
    %v1099 = vld [vmem:[#allocation2 + $0x40] sm:$0xff]
    %v1100 = vld [vmem:[#allocation2 + $0x48] sm:$0xff]
    %v1101 = vld [vmem:[#allocation2 + $0x50] sm:$0xff]
    %v1102 = vld [vmem:[#allocation2 + $0x58] sm:$0xff]
    %v1103 = vld [vmem:[#allocation2 + $0x60] sm:$0xff]
    %v1104 = vld [vmem:[#allocation2 + $0x68] sm:$0xff]
    %v1105 = vld [vmem:[#allocation2 + $0x70] sm:$0xff]
    %v1106 = vld [vmem:[#allocation2 + $0x78] sm:$0xff]
    %v1107 = vld [vmem:[#allocation2 + $0x80] sm:$0xff]
    %v1108 = vld [vmem:[#allocation2 + $0x88] sm:$0xff]
    %v1109 = vld [vmem:[#allocation2 + $0x90] sm:$0xff]
    %v1110 = vld [vmem:[#allocation2 + $0x98] sm:$0xff]
    %v1111 = vld [vmem:[#allocation2 + $0xa0] sm:$0xff]
    %v1112 = vld [vmem:[#allocation2 + $0xa8] sm:$0xff]
    %v1113 = vld [vmem:[#allocation2 + $0xb0] sm:$0xff]
    %v1114 = vld [vmem:[#allocation2 + $0xb8] sm:$0xff]
    %v1139 = vunpack.c.l.b16 %v1091
    %v1140 = vunpack.c.h.b16 %v1091
    %v1141 = vunpack.c.l.b16 %v1092
    %v1142 = vunpack.c.h.b16 %v1092
    %v1143 = vunpack.c.l.b16 %v1093
    %v1144 = vunpack.c.h.b16 %v1093
    %v1145 = vunpack.c.l.b16 %v1094
    %v1146 = vunpack.c.h.b16 %v1094
    %v1147 = vunpack.c.l.b16 %v1095
    %v1148 = vunpack.c.h.b16 %v1095
    %v1149 = vunpack.c.l.b16 %v1096
    %v1150 = vunpack.c.h.b16 %v1096
    %v1151 = vunpack.c.l.b16 %v1097
    %v1152 = vunpack.c.h.b16 %v1097
    %v1153 = vunpack.c.l.b16 %v1098
    %v1154 = vunpack.c.h.b16 %v1098
    %v1155 = vunpack.c.l.b16 %v1099
    %v1156 = vunpack.c.h.b16 %v1099
    %v1157 = vunpack.c.l.b16 %v1100
    %v1158 = vunpack.c.h.b16 %v1100
    %v1159 = vunpack.c.l.b16 %v1101
    %v1160 = vunpack.c.h.b16 %v1101
    %v1161 = vunpack.c.l.b16 %v1102
    %v1162 = vunpack.c.h.b16 %v1102
    %v1163 = vunpack.c.l.b16 %v1103
    %v1164 = vunpack.c.h.b16 %v1103
    %v1165 = vunpack.c.l.b16 %v1104
    %v1166 = vunpack.c.h.b16 %v1104
    %v1167 = vunpack.c.l.b16 %v1105
    %v1168 = vunpack.c.h.b16 %v1105
    %v1169 = vunpack.c.l.b16 %v1106
    %v1170 = vunpack.c.h.b16 %v1106
    %v1171 = vunpack.c.l.b16 %v1107
    %v1172 = vunpack.c.h.b16 %v1107
    %v1173 = vunpack.c.l.b16 %v1108
    %v1174 = vunpack.c.h.b16 %v1108
    %v1175 = vunpack.c.l.b16 %v1109
    %v1176 = vunpack.c.h.b16 %v1109
    %v1177 = vunpack.c.l.b16 %v1110
    %v1178 = vunpack.c.h.b16 %v1110
    %v1179 = vunpack.c.l.b16 %v1111
    %v1180 = vunpack.c.h.b16 %v1111
    %v1181 = vunpack.c.l.b16 %v1112
    %v1182 = vunpack.c.h.b16 %v1112
    %v1183 = vunpack.c.l.b16 %v1113
    %v1184 = vunpack.c.h.b16 %v1113
    %v1185 = vunpack.c.l.b16 %v1114
    %v1186 = vunpack.c.h.b16 %v1114
    %v1187 = vpack.c.b16 %v1143, %v1139
    %v1188 = vpack.c.b16 %v1144, %v1140
    %v1189 = vpack.c.b16 %v1145, %v1141
    %v1190 = vpack.c.b16 %v1146, %v1142
    %v1191 = vpack.c.b16 %v1151, %v1147
    %v1192 = vpack.c.b16 %v1152, %v1148
    %v1193 = vpack.c.b16 %v1153, %v1149
    %v1194 = vpack.c.b16 %v1154, %v1150
    %v1195 = vpack.c.b16 %v1159, %v1155
    %v1196 = vpack.c.b16 %v1160, %v1156
    %v1197 = vpack.c.b16 %v1161, %v1157
    %v1198 = vpack.c.b16 %v1162, %v1158
    %v1199 = vpack.c.b16 %v1167, %v1163
    %v1200 = vpack.c.b16 %v1168, %v1164
    %v1201 = vpack.c.b16 %v1169, %v1165
    %v1202 = vpack.c.b16 %v1170, %v1166
    %v1203 = vpack.c.b16 %v1175, %v1171
    %v1204 = vpack.c.b16 %v1176, %v1172
    %v1205 = vpack.c.b16 %v1177, %v1173
    %v1206 = vpack.c.b16 %v1178, %v1174
    %v1207 = vpack.c.b16 %v1183, %v1179
    %v1208 = vpack.c.b16 %v1184, %v1180
    %v1209 = vpack.c.b16 %v1185, %v1181
    %v1210 = vpack.c.b16 %v1186, %v1182
    %vm1235 = vcmask 785408
    %v1236 = vsel %vm1235, %v980, 0
    %v1238 = vsel %vm1235, %v982, 0
    %v1240 = vsel %vm1235, %v984, 0
    %v1242 = vsel %vm1235, %v986, 0
    %v1244 = vsel %vm1235, %v988, 0
    %v1246 = vsel %vm1235, %v990, 0
    %v1248 = vsel %vm1235, %v992, 0
    %v1250 = vsel %vm1235, %v994, 0
    %v1252 = vsel %vm1235, %v996, 0
    %v1254 = vsel %vm1235, %v998, 0
    %v1256 = vsel %vm1235, %v1000, 0
    %v1258 = vsel %vm1235, %v1002, 0
    %v1260 = vsel %vm1235, %v1004, 0
    %v1262 = vsel %vm1235, %v1006, 0
    %v1264 = vsel %vm1235, %v1008, 0
    %v1266 = vsel %vm1235, %v1010, 0
    %v1268 = vsel %vm1235, %v1012, 0
    %v1270 = vsel %vm1235, %v1014, 0
    %v1272 = vsel %vm1235, %v1016, 0
    %v1274 = vsel %vm1235, %v1018, 0
    %v1276 = vsel %vm1235, %v1020, 0
    %v1278 = vsel %vm1235, %v1022, 0
    %v1280 = vsel %vm1235, %v1024, 0
    %v1282 = vsel %vm1235, %v1026, 0
    %v1284 = vsel %vm1235, %v1028, 0
    %v1286 = vsel %vm1235, %v1030, 0
    %v1288 = vsel %vm1235, %v1032, 0
    %v1290 = vsel %vm1235, %v1034, 0
    %v1292 = vsel %vm1235, %v1036, 0
    %v1294 = vsel %vm1235, %v1038, 0
    %v1296 = vsel %vm1235, %v1040, 0
    %v1298 = vsel %vm1235, %v1042, 0
    %v1300 = vsel %vm1235, %v1044, 0
    %v1302 = vsel %vm1235, %v1046, 0
    %v1304 = vsel %vm1235, %v1048, 0
    %v1306 = vsel %vm1235, %v1050, 0
    %v1308 = vsel %vm1235, %v1052, 0
    %v1310 = vsel %vm1235, %v1054, 0
    %v1312 = vsel %vm1235, %v1056, 0
    %v1314 = vsel %vm1235, %v1058, 0
    %v1316 = vsel %vm1235, %v1060, 0
    %v1318 = vsel %vm1235, %v1062, 0
    %v1320 = vsel %vm1235, %v1064, 0
    %v1322 = vsel %vm1235, %v1066, 0
    %v1324 = vsel %vm1235, %v1068, 0
    %v1326 = vsel %vm1235, %v1070, 0
    %v1328 = vsel %vm1235, %v1072, 0
    %v1330 = vsel %vm1235, %v1074, 0
    %v1332 = vsel %vm1235, %v1076, 0
    %v1334 = vsel %vm1235, %v1078, 0
    %v1336 = vsel %vm1235, %v1080, 0
    %v1338 = vsel %vm1235, %v1082, 0
    %v1340 = vsel %vm1235, %v1084, 0
    %v1342 = vsel %vm1235, %v1086, 0
    %v1344 = vsel %vm1235, %v1088, 0
    %v1346 = vsel %vm1235, %v1090, 0
    %1348 = vmatprep.subr.bf16.mxu0 %v1188
    %1349 = vmatpush1.bf16.msra.mxu0 %v1187
    %1350 = vmatprep.subr.bf16.mxu0 %v1192
    %1351 = vmatpush1.bf16.msra.mxu0 %v1191
    %1352 = vmatprep.subr.bf16.mxu0 %v1196
    %1353 = vmatpush1.bf16.msra.mxu0 %v1195
    %1354 = vmatprep.subr.bf16.mxu0 %v1200
    %1355 = vmatpush1.bf16.msra.mxu0 %v1199
    %1356 = vmatprep.subr.bf16.mxu0 %v1204
    %1357 = vmatpush1.bf16.msra.mxu0 %v1203
    %1358 = vmatprep.subr.bf16.mxu0 %v1208
    %1359 = vmatpush1.bf16.msra.mxu0 %v1207
    %1360 = vmatprep.subr.bf16.mxu0 0
    %1361 = vmatpush1.bf16.msra.mxu0 0
    %1362 = vmatprep.subr.bf16.mxu0 0
    %1363 = vmatpush1.bf16.msra.mxu0 0
    %1364 = vmatprep.subr.bf16.mxu0 0
    %1365 = vmatpush1.bf16.msra.mxu0 0
    %1366 = vmatprep.subr.bf16.mxu0 0
    %1367 = vmatpush1.bf16.msra.mxu0 0
    %1368 = vmatprep.subr.bf16.mxu0 0
    %1369 = vmatpush1.bf16.msra.mxu0 0
    %1370 = vmatprep.subr.bf16.mxu0 0
    %1371 = vmatpush1.bf16.msra.mxu0 0
    %1372 = vmatprep.subr.bf16.mxu0 0
    %1373 = vmatpush1.bf16.msra.mxu0 0
    %1374 = vmatprep.subr.bf16.mxu0 0
    %1375 = vmatpush1.bf16.msra.mxu0 0
    %1376 = vmatprep.subr.bf16.mxu0 0
    %1377 = vmatpush1.bf16.msra.mxu0 0
    %1378 = vmatprep.subr.bf16.mxu0 0
    %1379 = vmatpush1.bf16.msra.mxu0 0
    %1380 = vmatprep.mubr.bf16.mxu0 0
    %1381 = vmatmul.mubr.bf16.gmra.mrb[0].mxu0 %v1236
    %v1382 = vpop.f32.mrb[0].mxu0
    %v1383 = vadd.f32 0.0, %v1382
    %v1384 = vpop.f32.mrb[0].mxu0
    %v1385 = vadd.f32 0.0, %v1384
    %v1386 = vpop.f32.mrb[0].mxu0
    %v1387 = vadd.f32 0.0, %v1386
    %v1388 = vpop.f32.mrb[0].mxu0
    %v1389 = vadd.f32 0.0, %v1388
    %1390 = vmatprep.mubr.bf16.mxu0 0
    %1391 = vmatmul.mubr.bf16.gmra.mrb[0].mxu0 %v1238
    %v1392 = vpop.f32.mrb[0].mxu0
    %v1393 = vadd.f32 0.0, %v1392
    %v1394 = vpop.f32.mrb[0].mxu0
    %v1395 = vadd.f32 0.0, %v1394
    %v1396 = vpop.f32.mrb[0].mxu0
    %v1397 = vadd.f32 0.0, %v1396
    %v1398 = vpop.f32.mrb[0].mxu0
    %v1399 = vadd.f32 0.0, %v1398
    %1400 = vmatprep.mubr.bf16.mxu0 0
    %1401 = vmatmul.mubr.bf16.gmra.mrb[0].mxu0 %v1240
    %v1402 = vpop.f32.mrb[0].mxu0
    %v1403 = vadd.f32 0.0, %v1402
    %v1404 = vpop.f32.mrb[0].mxu0
    %v1405 = vadd.f32 0.0, %v1404
    %v1406 = vpop.f32.mrb[0].mxu0
    %v1407 = vadd.f32 0.0, %v1406
    %v1408 = vpop.f32.mrb[0].mxu0
    %v1409 = vadd.f32 0.0, %v1408
    %1410 = vmatprep.mubr.bf16.mxu0 0
    %1411 = vmatmul.mubr.bf16.gmra.mrb[0].mxu0 %v1242
    %v1412 = vpop.f32.mrb[0].mxu0
    %v1413 = vadd.f32 0.0, %v1412
    %v1414 = vpop.f32.mrb[0].mxu0
    %v1415 = vadd.f32 0.0, %v1414
    %v1416 = vpop.f32.mrb[0].mxu0
    %v1417 = vadd.f32 0.0, %v1416
    %v1418 = vpop.f32.mrb[0].mxu0
    %v1419 = vadd.f32 0.0, %v1418
    %1420 = vmatprep.mubr.bf16.mxu0 0
    %1421 = vmatmul.mubr.bf16.gmra.mrb[0].mxu0 %v1244
    %v1422 = vpop.f32.mrb[0].mxu0
    %v1423 = vadd.f32 0.0, %v1422
    %v1424 = vpop.f32.mrb[0].mxu0
    %v1425 = vadd.f32 0.0, %v1424
    %v1426 = vpop.f32.mrb[0].mxu0
    %v1427 = vadd.f32 0.0, %v1426
    %v1428 = vpop.f32.mrb[0].mxu0
    %v1429 = vadd.f32 0.0, %v1428
    %1430 = vmatprep.mubr.bf16.mxu0 0
    %1431 = vmatmul.mubr.bf16.gmra.mrb[0].mxu0 %v1246
    %v1432 = vpop.f32.mrb[0].mxu0
    %v1433 = vadd.f32 0.0, %v1432
    %v1434 = vpop.f32.mrb[0].mxu0
    %v1435 = vadd.f32 0.0, %v1434
    %v1436 = vpop.f32.mrb[0].mxu0
    %v1437 = vadd.f32 0.0, %v1436
    %v1438 = vpop.f32.mrb[0].mxu0
    %v1439 = vadd.f32 0.0, %v1438
    %1440 = vmatprep.mubr.bf16.mxu0 0
    %1441 = vmatmul.mubr.bf16.gmra.mrb[0].mxu0 %v1248
    %v1442 = vpop.f32.mrb[0].mxu0
    %v1443 = vadd.f32 0.0, %v1442
    %v1444 = vpop.f32.mrb[0].mxu0
    %v1445 = vadd.f32 0.0, %v1444
    %v1446 = vpop.f32.mrb[0].mxu0
    %v1447 = vadd.f32 0.0, %v1446
    %v1448 = vpop.f32.mrb[0].mxu0
    %v1449 = vadd.f32 0.0, %v1448
    %1450 = vmatprep.mubr.bf16.mxu0 0
    %1451 = vmatmul.mubr.bf16.gmra.mrb[0].mxu0 %v1250
    %v1452 = vpop.f32.mrb[0].mxu0
    %v1453 = vadd.f32 0.0, %v1452
    %v1454 = vpop.f32.mrb[0].mxu0
    %v1455 = vadd.f32 0.0, %v1454
    %v1456 = vpop.f32.mrb[0].mxu0
    %v1457 = vadd.f32 0.0, %v1456
    %v1458 = vpop.f32.mrb[0].mxu0
    %v1459 = vadd.f32 0.0, %v1458
    %1460 = vmatprep.mubr.bf16.mxu0 0
    %1461 = vmatmul.mubr.bf16.gmra.mrb[0].mxu0 %v1252
    %v1462 = vpop.f32.mrb[0].mxu0
    %v1463 = vadd.f32 0.0, %v1462
    %v1464 = vpop.f32.mrb[0].mxu0
    %v1465 = vadd.f32 0.0, %v1464
    %v1466 = vpop.f32.mrb[0].mxu0
    %v1467 = vadd.f32 0.0, %v1466
    %v1468 = vpop.f32.mrb[0].mxu0
    %v1469 = vadd.f32 0.0, %v1468
    %1470 = vmatprep.mubr.bf16.mxu0 0
    %1471 = vmatmul.mubr.bf16.gmra.mrb[0].mxu0 %v1254
    %v1472 = vpop.f32.mrb[0].mxu0
    %v1473 = vadd.f32 0.0, %v1472
    %v1474 = vpop.f32.mrb[0].mxu0
    %v1475 = vadd.f32 0.0, %v1474
    %v1476 = vpop.f32.mrb[0].mxu0
    %v1477 = vadd.f32 0.0, %v1476
    %v1478 = vpop.f32.mrb[0].mxu0
    %v1479 = vadd.f32 0.0, %v1478
    %1480 = vmatprep.mubr.bf16.mxu0 0
    %1481 = vmatmul.mubr.bf16.gmra.mrb[0].mxu0 %v1256
    %v1482 = vpop.f32.mrb[0].mxu0
    %v1483 = vadd.f32 0.0, %v1482
    %v1484 = vpop.f32.mrb[0].mxu0
    %v1485 = vadd.f32 0.0, %v1484
    %v1486 = vpop.f32.mrb[0].mxu0
    %v1487 = vadd.f32 0.0, %v1486
    %v1488 = vpop.f32.mrb[0].mxu0
    %v1489 = vadd.f32 0.0, %v1488
    %1490 = vmatprep.mubr.bf16.mxu0 0
    %1491 = vmatmul.mubr.bf16.gmra.mrb[0].mxu0 %v1258
    %v1492 = vpop.f32.mrb[0].mxu0
    %v1493 = vadd.f32 0.0, %v1492
    %v1494 = vpop.f32.mrb[0].mxu0
    %v1495 = vadd.f32 0.0, %v1494
    %v1496 = vpop.f32.mrb[0].mxu0
    %v1497 = vadd.f32 0.0, %v1496
    %v1498 = vpop.f32.mrb[0].mxu0
    %v1499 = vadd.f32 0.0, %v1498
    %1500 = vmatprep.mubr.bf16.mxu0 0
    %1501 = vmatmul.mubr.bf16.gmra.mrb[0].mxu0 %v1260
    %v1502 = vpop.f32.mrb[0].mxu0
    %v1503 = vadd.f32 0.0, %v1502
    %v1504 = vpop.f32.mrb[0].mxu0
    %v1505 = vadd.f32 0.0, %v1504
    %v1506 = vpop.f32.mrb[0].mxu0
    %v1507 = vadd.f32 0.0, %v1506
    %v1508 = vpop.f32.mrb[0].mxu0
    %v1509 = vadd.f32 0.0, %v1508
    %1510 = vmatprep.mubr.bf16.mxu0 0
    %1511 = vmatmul.mubr.bf16.gmra.mrb[0].mxu0 %v1262
    %v1512 = vpop.f32.mrb[0].mxu0
    %v1513 = vadd.f32 0.0, %v1512
    %v1514 = vpop.f32.mrb[0].mxu0
    %v1515 = vadd.f32 0.0, %v1514
    %v1516 = vpop.f32.mrb[0].mxu0
    %v1517 = vadd.f32 0.0, %v1516
    %v1518 = vpop.f32.mrb[0].mxu0
    %v1519 = vadd.f32 0.0, %v1518
    %1520 = vmatprep.mubr.bf16.mxu0 0
    %1521 = vmatmul.mubr.bf16.gmra.mrb[0].mxu0 %v1264
    %v1522 = vpop.f32.mrb[0].mxu0
    %v1523 = vadd.f32 0.0, %v1522
    %v1524 = vpop.f32.mrb[0].mxu0
    %v1525 = vadd.f32 0.0, %v1524
    %v1526 = vpop.f32.mrb[0].mxu0
    %v1527 = vadd.f32 0.0, %v1526
    %v1528 = vpop.f32.mrb[0].mxu0
    %v1529 = vadd.f32 0.0, %v1528
    %1530 = vmatprep.mubr.bf16.mxu0 0
    %1531 = vmatmul.mubr.bf16.gmra.mrb[0].mxu0 %v1266
    %v1532 = vpop.f32.mrb[0].mxu0
    %v1533 = vadd.f32 0.0, %v1532
    %v1534 = vpop.f32.mrb[0].mxu0
    %v1535 = vadd.f32 0.0, %v1534
    %v1536 = vpop.f32.mrb[0].mxu0
    %v1537 = vadd.f32 0.0, %v1536
    %v1538 = vpop.f32.mrb[0].mxu0
    %v1539 = vadd.f32 0.0, %v1538
    %1540 = vmatprep.mubr.bf16.mxu0 0
    %1541 = vmatmul.mubr.bf16.gmra.mrb[0].mxu0 %v1268
    %v1542 = vpop.f32.mrb[0].mxu0
    %v1543 = vadd.f32 0.0, %v1542
    %v1544 = vpop.f32.mrb[0].mxu0
    %v1545 = vadd.f32 0.0, %v1544
    %v1546 = vpop.f32.mrb[0].mxu0
    %v1547 = vadd.f32 0.0, %v1546
    %v1548 = vpop.f32.mrb[0].mxu0
    %v1549 = vadd.f32 0.0, %v1548
    %1550 = vmatprep.mubr.bf16.mxu0 0
    %1551 = vmatmul.mubr.bf16.gmra.mrb[0].mxu0 %v1270
    %v1552 = vpop.f32.mrb[0].mxu0
    %v1553 = vadd.f32 0.0, %v1552
    %v1554 = vpop.f32.mrb[0].mxu0
    %v1555 = vadd.f32 0.0, %v1554
    %v1556 = vpop.f32.mrb[0].mxu0
    %v1557 = vadd.f32 0.0, %v1556
    %v1558 = vpop.f32.mrb[0].mxu0
    %v1559 = vadd.f32 0.0, %v1558
    %1560 = vmatprep.mubr.bf16.mxu0 0
    %1561 = vmatmul.mubr.bf16.gmra.mrb[0].mxu0 %v1272
    %v1562 = vpop.f32.mrb[0].mxu0
    %v1563 = vadd.f32 0.0, %v1562
    %v1564 = vpop.f32.mrb[0].mxu0
    %v1565 = vadd.f32 0.0, %v1564
    %v1566 = vpop.f32.mrb[0].mxu0
    %v1567 = vadd.f32 0.0, %v1566
    %v1568 = vpop.f32.mrb[0].mxu0
    %v1569 = vadd.f32 0.0, %v1568
    %1570 = vmatprep.mubr.bf16.mxu0 0
    %1571 = vmatmul.mubr.bf16.gmra.mrb[0].mxu0 %v1274
    %v1572 = vpop.f32.mrb[0].mxu0
    %v1573 = vadd.f32 0.0, %v1572
    %v1574 = vpop.f32.mrb[0].mxu0
    %v1575 = vadd.f32 0.0, %v1574
    %v1576 = vpop.f32.mrb[0].mxu0
    %v1577 = vadd.f32 0.0, %v1576
    %v1578 = vpop.f32.mrb[0].mxu0
    %v1579 = vadd.f32 0.0, %v1578
    %1580 = vmatprep.mubr.bf16.mxu0 0
    %1581 = vmatmul.mubr.bf16.gmra.mrb[0].mxu0 %v1276
    %v1582 = vpop.f32.mrb[0].mxu0
    %v1583 = vadd.f32 0.0, %v1582
    %v1584 = vpop.f32.mrb[0].mxu0
    %v1585 = vadd.f32 0.0, %v1584
    %v1586 = vpop.f32.mrb[0].mxu0
    %v1587 = vadd.f32 0.0, %v1586
    %v1588 = vpop.f32.mrb[0].mxu0
    %v1589 = vadd.f32 0.0, %v1588
    %1590 = vmatprep.mubr.bf16.mxu0 0
    %1591 = vmatmul.mubr.bf16.gmra.mrb[0].mxu0 %v1278
    %v1592 = vpop.f32.mrb[0].mxu0
    %v1593 = vadd.f32 0.0, %v1592
    %v1594 = vpop.f32.mrb[0].mxu0
    %v1595 = vadd.f32 0.0, %v1594
    %v1596 = vpop.f32.mrb[0].mxu0
    %v1597 = vadd.f32 0.0, %v1596
    %v1598 = vpop.f32.mrb[0].mxu0
    %v1599 = vadd.f32 0.0, %v1598
    %1600 = vmatprep.mubr.bf16.mxu0 0
    %1601 = vmatmul.mubr.bf16.gmra.mrb[0].mxu0 %v1280
    %v1602 = vpop.f32.mrb[0].mxu0
    %v1603 = vadd.f32 0.0, %v1602
    %v1604 = vpop.f32.mrb[0].mxu0
    %v1605 = vadd.f32 0.0, %v1604
    %v1606 = vpop.f32.mrb[0].mxu0
    %v1607 = vadd.f32 0.0, %v1606
    %v1608 = vpop.f32.mrb[0].mxu0
    %v1609 = vadd.f32 0.0, %v1608
    %1610 = vmatprep.mubr.bf16.mxu0 0
    %1611 = vmatmul.mubr.bf16.gmra.mrb[0].mxu0 %v1282
    %v1612 = vpop.f32.mrb[0].mxu0
    %v1613 = vadd.f32 0.0, %v1612
    %v1614 = vpop.f32.mrb[0].mxu0
    %v1615 = vadd.f32 0.0, %v1614
    %v1616 = vpop.f32.mrb[0].mxu0
    %v1617 = vadd.f32 0.0, %v1616
    %v1618 = vpop.f32.mrb[0].mxu0
    %v1619 = vadd.f32 0.0, %v1618
    %1620 = vmatprep.mubr.bf16.mxu0 0
    %1621 = vmatmul.mubr.bf16.gmra.mrb[0].mxu0 %v1284
    %v1622 = vpop.f32.mrb[0].mxu0
    %v1623 = vadd.f32 0.0, %v1622
    %v1624 = vpop.f32.mrb[0].mxu0
    %v1625 = vadd.f32 0.0, %v1624
    %v1626 = vpop.f32.mrb[0].mxu0
    %v1627 = vadd.f32 0.0, %v1626
    %v1628 = vpop.f32.mrb[0].mxu0
    %v1629 = vadd.f32 0.0, %v1628
    %1630 = vmatprep.mubr.bf16.mxu0 0
    %1631 = vmatmul.mubr.bf16.gmra.mrb[0].mxu0 %v1286
    %v1632 = vpop.f32.mrb[0].mxu0
    %v1633 = vadd.f32 0.0, %v1632
    %v1634 = vpop.f32.mrb[0].mxu0
    %v1635 = vadd.f32 0.0, %v1634
    %v1636 = vpop.f32.mrb[0].mxu0
    %v1637 = vadd.f32 0.0, %v1636
    %v1638 = vpop.f32.mrb[0].mxu0
    %v1639 = vadd.f32 0.0, %v1638
    %1640 = vmatprep.mubr.bf16.mxu0 0
    %1641 = vmatmul.mubr.bf16.gmra.mrb[0].mxu0 %v1288
    %v1642 = vpop.f32.mrb[0].mxu0
    %v1643 = vadd.f32 0.0, %v1642
    %v1644 = vpop.f32.mrb[0].mxu0
    %v1645 = vadd.f32 0.0, %v1644
    %v1646 = vpop.f32.mrb[0].mxu0
    %v1647 = vadd.f32 0.0, %v1646
    %v1648 = vpop.f32.mrb[0].mxu0
    %v1649 = vadd.f32 0.0, %v1648
    %1650 = vmatprep.mubr.bf16.mxu0 0
    %1651 = vmatmul.mubr.bf16.gmra.mrb[0].mxu0 %v1290
    %v1652 = vpop.f32.mrb[0].mxu0
    %v1653 = vadd.f32 0.0, %v1652
    %v1654 = vpop.f32.mrb[0].mxu0
    %v1655 = vadd.f32 0.0, %v1654
    %v1656 = vpop.f32.mrb[0].mxu0
    %v1657 = vadd.f32 0.0, %v1656
    %v1658 = vpop.f32.mrb[0].mxu0
    %v1659 = vadd.f32 0.0, %v1658
    %1660 = vmatprep.mubr.bf16.mxu0 0
    %1661 = vmatmul.mubr.bf16.gmra.mrb[0].mxu0 %v1292
    %v1662 = vpop.f32.mrb[0].mxu0
    %v1663 = vadd.f32 0.0, %v1662
    %v1664 = vpop.f32.mrb[0].mxu0
    %v1665 = vadd.f32 0.0, %v1664
    %v1666 = vpop.f32.mrb[0].mxu0
    %v1667 = vadd.f32 0.0, %v1666
    %v1668 = vpop.f32.mrb[0].mxu0
    %v1669 = vadd.f32 0.0, %v1668
    %1670 = vmatprep.mubr.bf16.mxu0 0
    %1671 = vmatmul.mubr.bf16.gmra.mrb[0].mxu0 %v1294
    %v1672 = vpop.f32.mrb[0].mxu0
    %v1673 = vadd.f32 0.0, %v1672
    %v1674 = vpop.f32.mrb[0].mxu0
    %v1675 = vadd.f32 0.0, %v1674
    %v1676 = vpop.f32.mrb[0].mxu0
    %v1677 = vadd.f32 0.0, %v1676
    %v1678 = vpop.f32.mrb[0].mxu0
    %v1679 = vadd.f32 0.0, %v1678
    %1680 = vmatprep.mubr.bf16.mxu0 0
    %1681 = vmatmul.mubr.bf16.gmra.mrb[0].mxu0 %v1296
    %v1682 = vpop.f32.mrb[0].mxu0
    %v1683 = vadd.f32 0.0, %v1682
    %v1684 = vpop.f32.mrb[0].mxu0
    %v1685 = vadd.f32 0.0, %v1684
    %v1686 = vpop.f32.mrb[0].mxu0
    %v1687 = vadd.f32 0.0, %v1686
    %v1688 = vpop.f32.mrb[0].mxu0
    %v1689 = vadd.f32 0.0, %v1688
    %1690 = vmatprep.mubr.bf16.mxu0 0
    %1691 = vmatmul.mubr.bf16.gmra.mrb[0].mxu0 %v1298
    %v1692 = vpop.f32.mrb[0].mxu0
    %v1693 = vadd.f32 0.0, %v1692
    %v1694 = vpop.f32.mrb[0].mxu0
    %v1695 = vadd.f32 0.0, %v1694
    %v1696 = vpop.f32.mrb[0].mxu0
    %v1697 = vadd.f32 0.0, %v1696
    %v1698 = vpop.f32.mrb[0].mxu0
    %v1699 = vadd.f32 0.0, %v1698
    %1700 = vmatprep.mubr.bf16.mxu0 0
    %1701 = vmatmul.mubr.bf16.gmra.mrb[0].mxu0 %v1300
    %v1702 = vpop.f32.mrb[0].mxu0
    %v1703 = vadd.f32 0.0, %v1702
    %v1704 = vpop.f32.mrb[0].mxu0
    %v1705 = vadd.f32 0.0, %v1704
    %v1706 = vpop.f32.mrb[0].mxu0
    %v1707 = vadd.f32 0.0, %v1706
    %v1708 = vpop.f32.mrb[0].mxu0
    %v1709 = vadd.f32 0.0, %v1708
    %1710 = vmatprep.mubr.bf16.mxu0 0
    %1711 = vmatmul.mubr.bf16.gmra.mrb[0].mxu0 %v1302
    %v1712 = vpop.f32.mrb[0].mxu0
    %v1713 = vadd.f32 0.0, %v1712
    %v1714 = vpop.f32.mrb[0].mxu0
    %v1715 = vadd.f32 0.0, %v1714
    %v1716 = vpop.f32.mrb[0].mxu0
    %v1717 = vadd.f32 0.0, %v1716
    %v1718 = vpop.f32.mrb[0].mxu0
    %v1719 = vadd.f32 0.0, %v1718
    %1720 = vmatprep.mubr.bf16.mxu0 0
    %1721 = vmatmul.mubr.bf16.gmra.mrb[0].mxu0 %v1304
    %v1722 = vpop.f32.mrb[0].mxu0
    %v1723 = vadd.f32 0.0, %v1722
    %v1724 = vpop.f32.mrb[0].mxu0
    %v1725 = vadd.f32 0.0, %v1724
    %v1726 = vpop.f32.mrb[0].mxu0
    %v1727 = vadd.f32 0.0, %v1726
    %v1728 = vpop.f32.mrb[0].mxu0
    %v1729 = vadd.f32 0.0, %v1728
    %1730 = vmatprep.mubr.bf16.mxu0 0
    %1731 = vmatmul.mubr.bf16.gmra.mrb[0].mxu0 %v1306
    %v1732 = vpop.f32.mrb[0].mxu0
    %v1733 = vadd.f32 0.0, %v1732
    %v1734 = vpop.f32.mrb[0].mxu0
    %v1735 = vadd.f32 0.0, %v1734
    %v1736 = vpop.f32.mrb[0].mxu0
    %v1737 = vadd.f32 0.0, %v1736
    %v1738 = vpop.f32.mrb[0].mxu0
    %v1739 = vadd.f32 0.0, %v1738
    %1740 = vmatprep.mubr.bf16.mxu0 0
    %1741 = vmatmul.mubr.bf16.gmra.mrb[0].mxu0 %v1308
    %v1742 = vpop.f32.mrb[0].mxu0
    %v1743 = vadd.f32 0.0, %v1742
    %v1744 = vpop.f32.mrb[0].mxu0
    %v1745 = vadd.f32 0.0, %v1744
    %v1746 = vpop.f32.mrb[0].mxu0
    %v1747 = vadd.f32 0.0, %v1746
    %v1748 = vpop.f32.mrb[0].mxu0
    %v1749 = vadd.f32 0.0, %v1748
    %1750 = vmatprep.mubr.bf16.mxu0 0
    %1751 = vmatmul.mubr.bf16.gmra.mrb[0].mxu0 %v1310
    %v1752 = vpop.f32.mrb[0].mxu0
    %v1753 = vadd.f32 0.0, %v1752
    %v1754 = vpop.f32.mrb[0].mxu0
    %v1755 = vadd.f32 0.0, %v1754
    %v1756 = vpop.f32.mrb[0].mxu0
    %v1757 = vadd.f32 0.0, %v1756
    %v1758 = vpop.f32.mrb[0].mxu0
    %v1759 = vadd.f32 0.0, %v1758
    %1760 = vmatprep.mubr.bf16.mxu0 0
    %1761 = vmatmul.mubr.bf16.gmra.mrb[0].mxu0 %v1312
    %v1762 = vpop.f32.mrb[0].mxu0
    %v1763 = vadd.f32 0.0, %v1762
    %v1764 = vpop.f32.mrb[0].mxu0
    %v1765 = vadd.f32 0.0, %v1764
    %v1766 = vpop.f32.mrb[0].mxu0
    %v1767 = vadd.f32 0.0, %v1766
    %v1768 = vpop.f32.mrb[0].mxu0
    %v1769 = vadd.f32 0.0, %v1768
    %1770 = vmatprep.mubr.bf16.mxu0 0
    %1771 = vmatmul.mubr.bf16.gmra.mrb[0].mxu0 %v1314
    %v1772 = vpop.f32.mrb[0].mxu0
    %v1773 = vadd.f32 0.0, %v1772
    %v1774 = vpop.f32.mrb[0].mxu0
    %v1775 = vadd.f32 0.0, %v1774
    %v1776 = vpop.f32.mrb[0].mxu0
    %v1777 = vadd.f32 0.0, %v1776
    %v1778 = vpop.f32.mrb[0].mxu0
    %v1779 = vadd.f32 0.0, %v1778
    %1780 = vmatprep.mubr.bf16.mxu0 0
    %1781 = vmatmul.mubr.bf16.gmra.mrb[0].mxu0 %v1316
    %v1782 = vpop.f32.mrb[0].mxu0
    %v1783 = vadd.f32 0.0, %v1782
    %v1784 = vpop.f32.mrb[0].mxu0
    %v1785 = vadd.f32 0.0, %v1784
    %v1786 = vpop.f32.mrb[0].mxu0
    %v1787 = vadd.f32 0.0, %v1786
    %v1788 = vpop.f32.mrb[0].mxu0
    %v1789 = vadd.f32 0.0, %v1788
    %1790 = vmatprep.mubr.bf16.mxu0 0
    %1791 = vmatmul.mubr.bf16.gmra.mrb[0].mxu0 %v1318
    %v1792 = vpop.f32.mrb[0].mxu0
    %v1793 = vadd.f32 0.0, %v1792
    %v1794 = vpop.f32.mrb[0].mxu0
    %v1795 = vadd.f32 0.0, %v1794
    %v1796 = vpop.f32.mrb[0].mxu0
    %v1797 = vadd.f32 0.0, %v1796
    %v1798 = vpop.f32.mrb[0].mxu0
    %v1799 = vadd.f32 0.0, %v1798
    %1800 = vmatprep.mubr.bf16.mxu0 0
    %1801 = vmatmul.mubr.bf16.gmra.mrb[0].mxu0 %v1320
    %v1802 = vpop.f32.mrb[0].mxu0
    %v1803 = vadd.f32 0.0, %v1802
    %v1804 = vpop.f32.mrb[0].mxu0
    %v1805 = vadd.f32 0.0, %v1804
    %v1806 = vpop.f32.mrb[0].mxu0
    %v1807 = vadd.f32 0.0, %v1806
    %v1808 = vpop.f32.mrb[0].mxu0
    %v1809 = vadd.f32 0.0, %v1808
    %1810 = vmatprep.mubr.bf16.mxu0 0
    %1811 = vmatmul.mubr.bf16.gmra.mrb[0].mxu0 %v1322
    %v1812 = vpop.f32.mrb[0].mxu0
    %v1813 = vadd.f32 0.0, %v1812
    %v1814 = vpop.f32.mrb[0].mxu0
    %v1815 = vadd.f32 0.0, %v1814
    %v1816 = vpop.f32.mrb[0].mxu0
    %v1817 = vadd.f32 0.0, %v1816
    %v1818 = vpop.f32.mrb[0].mxu0
    %v1819 = vadd.f32 0.0, %v1818
    %1820 = vmatprep.mubr.bf16.mxu0 0
    %1821 = vmatmul.mubr.bf16.gmra.mrb[0].mxu0 %v1324
    %v1822 = vpop.f32.mrb[0].mxu0
    %v1823 = vadd.f32 0.0, %v1822
    %v1824 = vpop.f32.mrb[0].mxu0
    %v1825 = vadd.f32 0.0, %v1824
    %v1826 = vpop.f32.mrb[0].mxu0
    %v1827 = vadd.f32 0.0, %v1826
    %v1828 = vpop.f32.mrb[0].mxu0
    %v1829 = vadd.f32 0.0, %v1828
    %1830 = vmatprep.mubr.bf16.mxu0 0
    %1831 = vmatmul.mubr.bf16.gmra.mrb[0].mxu0 %v1326
    %v1832 = vpop.f32.mrb[0].mxu0
    %v1833 = vadd.f32 0.0, %v1832
    %v1834 = vpop.f32.mrb[0].mxu0
    %v1835 = vadd.f32 0.0, %v1834
    %v1836 = vpop.f32.mrb[0].mxu0
    %v1837 = vadd.f32 0.0, %v1836
    %v1838 = vpop.f32.mrb[0].mxu0
    %v1839 = vadd.f32 0.0, %v1838
    %1840 = vmatprep.mubr.bf16.mxu0 0
    %1841 = vmatmul.mubr.bf16.gmra.mrb[0].mxu0 %v1328
    %v1842 = vpop.f32.mrb[0].mxu0
    %v1843 = vadd.f32 0.0, %v1842
    %v1844 = vpop.f32.mrb[0].mxu0
    %v1845 = vadd.f32 0.0, %v1844
    %v1846 = vpop.f32.mrb[0].mxu0
    %v1847 = vadd.f32 0.0, %v1846
    %v1848 = vpop.f32.mrb[0].mxu0
    %v1849 = vadd.f32 0.0, %v1848
    %1850 = vmatprep.mubr.bf16.mxu0 0
    %1851 = vmatmul.mubr.bf16.gmra.mrb[0].mxu0 %v1330
    %v1852 = vpop.f32.mrb[0].mxu0
    %v1853 = vadd.f32 0.0, %v1852
    %v1854 = vpop.f32.mrb[0].mxu0
    %v1855 = vadd.f32 0.0, %v1854
    %v1856 = vpop.f32.mrb[0].mxu0
    %v1857 = vadd.f32 0.0, %v1856
    %v1858 = vpop.f32.mrb[0].mxu0
    %v1859 = vadd.f32 0.0, %v1858
    %1860 = vmatprep.mubr.bf16.mxu0 0
    %1861 = vmatmul.mubr.bf16.gmra.mrb[0].mxu0 %v1332
    %v1862 = vpop.f32.mrb[0].mxu0
    %v1863 = vadd.f32 0.0, %v1862
    %v1864 = vpop.f32.mrb[0].mxu0
    %v1865 = vadd.f32 0.0, %v1864
    %v1866 = vpop.f32.mrb[0].mxu0
    %v1867 = vadd.f32 0.0, %v1866
    %v1868 = vpop.f32.mrb[0].mxu0
    %v1869 = vadd.f32 0.0, %v1868
    %1870 = vmatprep.mubr.bf16.mxu0 0
    %1871 = vmatmul.mubr.bf16.gmra.mrb[0].mxu0 %v1334
    %v1872 = vpop.f32.mrb[0].mxu0
    %v1873 = vadd.f32 0.0, %v1872
    %v1874 = vpop.f32.mrb[0].mxu0
    %v1875 = vadd.f32 0.0, %v1874
    %v1876 = vpop.f32.mrb[0].mxu0
    %v1877 = vadd.f32 0.0, %v1876
    %v1878 = vpop.f32.mrb[0].mxu0
    %v1879 = vadd.f32 0.0, %v1878
    %1880 = vmatprep.mubr.bf16.mxu0 0
    %1881 = vmatmul.mubr.bf16.gmra.mrb[0].mxu0 %v1336
    %v1882 = vpop.f32.mrb[0].mxu0
    %v1883 = vadd.f32 0.0, %v1882
    %v1884 = vpop.f32.mrb[0].mxu0
    %v1885 = vadd.f32 0.0, %v1884
    %v1886 = vpop.f32.mrb[0].mxu0
    %v1887 = vadd.f32 0.0, %v1886
    %v1888 = vpop.f32.mrb[0].mxu0
    %v1889 = vadd.f32 0.0, %v1888
    %1890 = vmatprep.mubr.bf16.mxu0 0
    %1891 = vmatmul.mubr.bf16.gmra.mrb[0].mxu0 %v1338
    %v1892 = vpop.f32.mrb[0].mxu0
    %v1893 = vadd.f32 0.0, %v1892
    %v1894 = vpop.f32.mrb[0].mxu0
    %v1895 = vadd.f32 0.0, %v1894
    %v1896 = vpop.f32.mrb[0].mxu0
    %v1897 = vadd.f32 0.0, %v1896
    %v1898 = vpop.f32.mrb[0].mxu0
    %v1899 = vadd.f32 0.0, %v1898
    %1900 = vmatprep.mubr.bf16.mxu0 0
    %1901 = vmatmul.mubr.bf16.gmra.mrb[0].mxu0 %v1340
    %v1902 = vpop.f32.mrb[0].mxu0
    %v1903 = vadd.f32 0.0, %v1902
    %v1904 = vpop.f32.mrb[0].mxu0
    %v1905 = vadd.f32 0.0, %v1904
    %v1906 = vpop.f32.mrb[0].mxu0
    %v1907 = vadd.f32 0.0, %v1906
    %v1908 = vpop.f32.mrb[0].mxu0
    %v1909 = vadd.f32 0.0, %v1908
    %1910 = vmatprep.mubr.bf16.mxu0 0
    %1911 = vmatmul.mubr.bf16.gmra.mrb[0].mxu0 %v1342
    %v1912 = vpop.f32.mrb[0].mxu0
    %v1913 = vadd.f32 0.0, %v1912
    %v1914 = vpop.f32.mrb[0].mxu0
    %v1915 = vadd.f32 0.0, %v1914
    %v1916 = vpop.f32.mrb[0].mxu0
    %v1917 = vadd.f32 0.0, %v1916
    %v1918 = vpop.f32.mrb[0].mxu0
    %v1919 = vadd.f32 0.0, %v1918
    %1920 = vmatprep.mubr.bf16.mxu0 0
    %1921 = vmatmul.mubr.bf16.gmra.mrb[0].mxu0 %v1344
    %v1922 = vpop.f32.mrb[0].mxu0
    %v1923 = vadd.f32 0.0, %v1922
    %v1924 = vpop.f32.mrb[0].mxu0
    %v1925 = vadd.f32 0.0, %v1924
    %v1926 = vpop.f32.mrb[0].mxu0
    %v1927 = vadd.f32 0.0, %v1926
    %v1928 = vpop.f32.mrb[0].mxu0
    %v1929 = vadd.f32 0.0, %v1928
    %1930 = vmatprep.mubr.bf16.mxu0 0
    %1931 = vmatmul.mubr.bf16.gmra.mrb[0].mxu0 %v1346
    %v1932 = vpop.f32.mrb[0].mxu0
    %v1933 = vadd.f32 0.0, %v1932
    %v1934 = vpop.f32.mrb[0].mxu0
    %v1935 = vadd.f32 0.0, %v1934
    %v1936 = vpop.f32.mrb[0].mxu0
    %v1937 = vadd.f32 0.0, %v1936
    %v1938 = vpop.f32.mrb[0].mxu0
    %v1939 = vadd.f32 0.0, %v1938
    %1940 = vdwg.mxu0
    %1941 = vmatprep.subr.bf16.mxu0 %v1190
    %1942 = vmatpush1.bf16.msra.mxu0 %v1189
    %1943 = vmatprep.subr.bf16.mxu0 %v1194
    %1944 = vmatpush1.bf16.msra.mxu0 %v1193
    %1945 = vmatprep.subr.bf16.mxu0 %v1198
    %1946 = vmatpush1.bf16.msra.mxu0 %v1197
    %1947 = vmatprep.subr.bf16.mxu0 %v1202
    %1948 = vmatpush1.bf16.msra.mxu0 %v1201
    %1949 = vmatprep.subr.bf16.mxu0 %v1206
    %1950 = vmatpush1.bf16.msra.mxu0 %v1205
    %1951 = vmatprep.subr.bf16.mxu0 %v1210
    %1952 = vmatpush1.bf16.msra.mxu0 %v1209
    %1953 = vmatprep.subr.bf16.mxu0 0
    %1954 = vmatpush1.bf16.msra.mxu0 0
    %1955 = vmatprep.subr.bf16.mxu0 0
    %1956 = vmatpush1.bf16.msra.mxu0 0
    %1957 = vmatprep.subr.bf16.mxu0 0
    %1958 = vmatpush1.bf16.msra.mxu0 0
    %1959 = vmatprep.subr.bf16.mxu0 0
    %1960 = vmatpush1.bf16.msra.mxu0 0
    %1961 = vmatprep.subr.bf16.mxu0 0
    %1962 = vmatpush1.bf16.msra.mxu0 0
    %1963 = vmatprep.subr.bf16.mxu0 0
    %1964 = vmatpush1.bf16.msra.mxu0 0
    %1965 = vmatprep.subr.bf16.mxu0 0
    %1966 = vmatpush1.bf16.msra.mxu0 0
    %1967 = vmatprep.subr.bf16.mxu0 0
    %1968 = vmatpush1.bf16.msra.mxu0 0
    %1969 = vmatprep.subr.bf16.mxu0 0
    %1970 = vmatpush1.bf16.msra.mxu0 0
    %1971 = vmatprep.subr.bf16.mxu0 0
    %1972 = vmatpush1.bf16.msra.mxu0 0
    %1973 = vmatprep.mubr.bf16.mxu0 0
    %1974 = vmatmul.mubr.bf16.gmra.mrb[0].mxu0 %v1236
    %v1975 = vpop.f32.mrb[0].mxu0
    %v1976 = vadd.f32 0.0, %v1975
    %v1977 = vpop.f32.mrb[0].mxu0
    %v1978 = vadd.f32 0.0, %v1977
    %v1979 = vpop.f32.mrb[0].mxu0
    %v1980 = vadd.f32 0.0, %v1979
    %v1981 = vpop.f32.mrb[0].mxu0
    %v1982 = vadd.f32 0.0, %v1981
    %1983 = vmatprep.mubr.bf16.mxu0 0
    %1984 = vmatmul.mubr.bf16.gmra.mrb[0].mxu0 %v1238
    %v1985 = vpop.f32.mrb[0].mxu0
    %v1986 = vadd.f32 0.0, %v1985
    %v1987 = vpop.f32.mrb[0].mxu0
    %v1988 = vadd.f32 0.0, %v1987
    %v1989 = vpop.f32.mrb[0].mxu0
    %v1990 = vadd.f32 0.0, %v1989
    %v1991 = vpop.f32.mrb[0].mxu0
    %v1992 = vadd.f32 0.0, %v1991
    %1993 = vmatprep.mubr.bf16.mxu0 0
    %1994 = vmatmul.mubr.bf16.gmra.mrb[0].mxu0 %v1240
    %v1995 = vpop.f32.mrb[0].mxu0
    %v1996 = vadd.f32 0.0, %v1995
    %v1997 = vpop.f32.mrb[0].mxu0
    %v1998 = vadd.f32 0.0, %v1997
    %v1999 = vpop.f32.mrb[0].mxu0
    %v2000 = vadd.f32 0.0, %v1999
    %v2001 = vpop.f32.mrb[0].mxu0
    %v2002 = vadd.f32 0.0, %v2001
    %2003 = vmatprep.mubr.bf16.mxu0 0
    %2004 = vmatmul.mubr.bf16.gmra.mrb[0].mxu0 %v1242
    %v2005 = vpop.f32.mrb[0].mxu0
    %v2006 = vadd.f32 0.0, %v2005
    %v2007 = vpop.f32.mrb[0].mxu0
    %v2008 = vadd.f32 0.0, %v2007
    %v2009 = vpop.f32.mrb[0].mxu0
    %v2010 = vadd.f32 0.0, %v2009
    %v2011 = vpop.f32.mrb[0].mxu0
    %v2012 = vadd.f32 0.0, %v2011
    %2013 = vmatprep.mubr.bf16.mxu0 0
    %2014 = vmatmul.mubr.bf16.gmra.mrb[0].mxu0 %v1244
    %v2015 = vpop.f32.mrb[0].mxu0
    %v2016 = vadd.f32 0.0, %v2015
    %v2017 = vpop.f32.mrb[0].mxu0
    %v2018 = vadd.f32 0.0, %v2017
    %v2019 = vpop.f32.mrb[0].mxu0
    %v2020 = vadd.f32 0.0, %v2019
    %v2021 = vpop.f32.mrb[0].mxu0
    %v2022 = vadd.f32 0.0, %v2021
    %2023 = vmatprep.mubr.bf16.mxu0 0
    %2024 = vmatmul.mubr.bf16.gmra.mrb[0].mxu0 %v1246
    %v2025 = vpop.f32.mrb[0].mxu0
    %v2026 = vadd.f32 0.0, %v2025
    %v2027 = vpop.f32.mrb[0].mxu0
    %v2028 = vadd.f32 0.0, %v2027
    %v2029 = vpop.f32.mrb[0].mxu0
    %v2030 = vadd.f32 0.0, %v2029
    %v2031 = vpop.f32.mrb[0].mxu0
    %v2032 = vadd.f32 0.0, %v2031
    %2033 = vmatprep.mubr.bf16.mxu0 0
    %2034 = vmatmul.mubr.bf16.gmra.mrb[0].mxu0 %v1248
    %v2035 = vpop.f32.mrb[0].mxu0
    %v2036 = vadd.f32 0.0, %v2035
    %v2037 = vpop.f32.mrb[0].mxu0
    %v2038 = vadd.f32 0.0, %v2037
    %v2039 = vpop.f32.mrb[0].mxu0
    %v2040 = vadd.f32 0.0, %v2039
    %v2041 = vpop.f32.mrb[0].mxu0
    %v2042 = vadd.f32 0.0, %v2041
    %2043 = vmatprep.mubr.bf16.mxu0 0
    %2044 = vmatmul.mubr.bf16.gmra.mrb[0].mxu0 %v1250
    %v2045 = vpop.f32.mrb[0].mxu0
    %v2046 = vadd.f32 0.0, %v2045
    %v2047 = vpop.f32.mrb[0].mxu0
    %v2048 = vadd.f32 0.0, %v2047
    %v2049 = vpop.f32.mrb[0].mxu0
    %v2050 = vadd.f32 0.0, %v2049
    %v2051 = vpop.f32.mrb[0].mxu0
    %v2052 = vadd.f32 0.0, %v2051
    %2053 = vmatprep.mubr.bf16.mxu0 0
    %2054 = vmatmul.mubr.bf16.gmra.mrb[0].mxu0 %v1252
    %v2055 = vpop.f32.mrb[0].mxu0
    %v2056 = vadd.f32 0.0, %v2055
    %v2057 = vpop.f32.mrb[0].mxu0
    %v2058 = vadd.f32 0.0, %v2057
    %v2059 = vpop.f32.mrb[0].mxu0
    %v2060 = vadd.f32 0.0, %v2059
    %v2061 = vpop.f32.mrb[0].mxu0
    %v2062 = vadd.f32 0.0, %v2061
    %2063 = vmatprep.mubr.bf16.mxu0 0
    %2064 = vmatmul.mubr.bf16.gmra.mrb[0].mxu0 %v1254
    %v2065 = vpop.f32.mrb[0].mxu0
    %v2066 = vadd.f32 0.0, %v2065
    %v2067 = vpop.f32.mrb[0].mxu0
    %v2068 = vadd.f32 0.0, %v2067
    %v2069 = vpop.f32.mrb[0].mxu0
    %v2070 = vadd.f32 0.0, %v2069
    %v2071 = vpop.f32.mrb[0].mxu0
    %v2072 = vadd.f32 0.0, %v2071
    %2073 = vmatprep.mubr.bf16.mxu0 0
    %2074 = vmatmul.mubr.bf16.gmra.mrb[0].mxu0 %v1256
    %v2075 = vpop.f32.mrb[0].mxu0
    %v2076 = vadd.f32 0.0, %v2075
    %v2077 = vpop.f32.mrb[0].mxu0
    %v2078 = vadd.f32 0.0, %v2077
    %v2079 = vpop.f32.mrb[0].mxu0
    %v2080 = vadd.f32 0.0, %v2079
    %v2081 = vpop.f32.mrb[0].mxu0
    %v2082 = vadd.f32 0.0, %v2081
    %2083 = vmatprep.mubr.bf16.mxu0 0
    %2084 = vmatmul.mubr.bf16.gmra.mrb[0].mxu0 %v1258
    %v2085 = vpop.f32.mrb[0].mxu0
    %v2086 = vadd.f32 0.0, %v2085
    %v2087 = vpop.f32.mrb[0].mxu0
    %v2088 = vadd.f32 0.0, %v2087
    %v2089 = vpop.f32.mrb[0].mxu0
    %v2090 = vadd.f32 0.0, %v2089
    %v2091 = vpop.f32.mrb[0].mxu0
    %v2092 = vadd.f32 0.0, %v2091
    %2093 = vmatprep.mubr.bf16.mxu0 0
    %2094 = vmatmul.mubr.bf16.gmra.mrb[0].mxu0 %v1260
    %v2095 = vpop.f32.mrb[0].mxu0
    %v2096 = vadd.f32 0.0, %v2095
    %v2097 = vpop.f32.mrb[0].mxu0
    %v2098 = vadd.f32 0.0, %v2097
    %v2099 = vpop.f32.mrb[0].mxu0
    %v2100 = vadd.f32 0.0, %v2099
    %v2101 = vpop.f32.mrb[0].mxu0
    %v2102 = vadd.f32 0.0, %v2101
    %2103 = vmatprep.mubr.bf16.mxu0 0
    %2104 = vmatmul.mubr.bf16.gmra.mrb[0].mxu0 %v1262
    %v2105 = vpop.f32.mrb[0].mxu0
    %v2106 = vadd.f32 0.0, %v2105
    %v2107 = vpop.f32.mrb[0].mxu0
    %v2108 = vadd.f32 0.0, %v2107
    %v2109 = vpop.f32.mrb[0].mxu0
    %v2110 = vadd.f32 0.0, %v2109
    %v2111 = vpop.f32.mrb[0].mxu0
    %v2112 = vadd.f32 0.0, %v2111
    %2113 = vmatprep.mubr.bf16.mxu0 0
    %2114 = vmatmul.mubr.bf16.gmra.mrb[0].mxu0 %v1264
    %v2115 = vpop.f32.mrb[0].mxu0
    %v2116 = vadd.f32 0.0, %v2115
    %v2117 = vpop.f32.mrb[0].mxu0
    %v2118 = vadd.f32 0.0, %v2117
    %v2119 = vpop.f32.mrb[0].mxu0
    %v2120 = vadd.f32 0.0, %v2119
    %v2121 = vpop.f32.mrb[0].mxu0
    %v2122 = vadd.f32 0.0, %v2121
    %2123 = vmatprep.mubr.bf16.mxu0 0
    %2124 = vmatmul.mubr.bf16.gmra.mrb[0].mxu0 %v1266
    %v2125 = vpop.f32.mrb[0].mxu0
    %v2126 = vadd.f32 0.0, %v2125
    %v2127 = vpop.f32.mrb[0].mxu0
    %v2128 = vadd.f32 0.0, %v2127
    %v2129 = vpop.f32.mrb[0].mxu0
    %v2130 = vadd.f32 0.0, %v2129
    %v2131 = vpop.f32.mrb[0].mxu0
    %v2132 = vadd.f32 0.0, %v2131
    %2133 = vmatprep.mubr.bf16.mxu0 0
    %2134 = vmatmul.mubr.bf16.gmra.mrb[0].mxu0 %v1268
    %v2135 = vpop.f32.mrb[0].mxu0
    %v2136 = vadd.f32 0.0, %v2135
    %v2137 = vpop.f32.mrb[0].mxu0
    %v2138 = vadd.f32 0.0, %v2137
    %v2139 = vpop.f32.mrb[0].mxu0
    %v2140 = vadd.f32 0.0, %v2139
    %v2141 = vpop.f32.mrb[0].mxu0
    %v2142 = vadd.f32 0.0, %v2141
    %2143 = vmatprep.mubr.bf16.mxu0 0
    %2144 = vmatmul.mubr.bf16.gmra.mrb[0].mxu0 %v1270
    %v2145 = vpop.f32.mrb[0].mxu0
    %v2146 = vadd.f32 0.0, %v2145
    %v2147 = vpop.f32.mrb[0].mxu0
    %v2148 = vadd.f32 0.0, %v2147
    %v2149 = vpop.f32.mrb[0].mxu0
    %v2150 = vadd.f32 0.0, %v2149
    %v2151 = vpop.f32.mrb[0].mxu0
    %v2152 = vadd.f32 0.0, %v2151
    %2153 = vmatprep.mubr.bf16.mxu0 0
    %2154 = vmatmul.mubr.bf16.gmra.mrb[0].mxu0 %v1272
    %v2155 = vpop.f32.mrb[0].mxu0
    %v2156 = vadd.f32 0.0, %v2155
    %v2157 = vpop.f32.mrb[0].mxu0
    %v2158 = vadd.f32 0.0, %v2157
    %v2159 = vpop.f32.mrb[0].mxu0
    %v2160 = vadd.f32 0.0, %v2159
    %v2161 = vpop.f32.mrb[0].mxu0
    %v2162 = vadd.f32 0.0, %v2161
    %2163 = vmatprep.mubr.bf16.mxu0 0
    %2164 = vmatmul.mubr.bf16.gmra.mrb[0].mxu0 %v1274
    %v2165 = vpop.f32.mrb[0].mxu0
    %v2166 = vadd.f32 0.0, %v2165
    %v2167 = vpop.f32.mrb[0].mxu0
    %v2168 = vadd.f32 0.0, %v2167
    %v2169 = vpop.f32.mrb[0].mxu0
    %v2170 = vadd.f32 0.0, %v2169
    %v2171 = vpop.f32.mrb[0].mxu0
    %v2172 = vadd.f32 0.0, %v2171
    %2173 = vmatprep.mubr.bf16.mxu0 0
    %2174 = vmatmul.mubr.bf16.gmra.mrb[0].mxu0 %v1276
    %v2175 = vpop.f32.mrb[0].mxu0
    %v2176 = vadd.f32 0.0, %v2175
    %v2177 = vpop.f32.mrb[0].mxu0
    %v2178 = vadd.f32 0.0, %v2177
    %v2179 = vpop.f32.mrb[0].mxu0
    %v2180 = vadd.f32 0.0, %v2179
    %v2181 = vpop.f32.mrb[0].mxu0
    %v2182 = vadd.f32 0.0, %v2181
    %2183 = vmatprep.mubr.bf16.mxu0 0
    %2184 = vmatmul.mubr.bf16.gmra.mrb[0].mxu0 %v1278
    %v2185 = vpop.f32.mrb[0].mxu0
    %v2186 = vadd.f32 0.0, %v2185
    %v2187 = vpop.f32.mrb[0].mxu0
    %v2188 = vadd.f32 0.0, %v2187
    %v2189 = vpop.f32.mrb[0].mxu0
    %v2190 = vadd.f32 0.0, %v2189
    %v2191 = vpop.f32.mrb[0].mxu0
    %v2192 = vadd.f32 0.0, %v2191
    %2193 = vmatprep.mubr.bf16.mxu0 0
    %2194 = vmatmul.mubr.bf16.gmra.mrb[0].mxu0 %v1280
    %v2195 = vpop.f32.mrb[0].mxu0
    %v2196 = vadd.f32 0.0, %v2195
    %v2197 = vpop.f32.mrb[0].mxu0
    %v2198 = vadd.f32 0.0, %v2197
    %v2199 = vpop.f32.mrb[0].mxu0
    %v2200 = vadd.f32 0.0, %v2199
    %v2201 = vpop.f32.mrb[0].mxu0
    %v2202 = vadd.f32 0.0, %v2201
    %2203 = vmatprep.mubr.bf16.mxu0 0
    %2204 = vmatmul.mubr.bf16.gmra.mrb[0].mxu0 %v1282
    %v2205 = vpop.f32.mrb[0].mxu0
    %v2206 = vadd.f32 0.0, %v2205
    %v2207 = vpop.f32.mrb[0].mxu0
    %v2208 = vadd.f32 0.0, %v2207
    %v2209 = vpop.f32.mrb[0].mxu0
    %v2210 = vadd.f32 0.0, %v2209
    %v2211 = vpop.f32.mrb[0].mxu0
    %v2212 = vadd.f32 0.0, %v2211
    %2213 = vmatprep.mubr.bf16.mxu0 0
    %2214 = vmatmul.mubr.bf16.gmra.mrb[0].mxu0 %v1284
    %v2215 = vpop.f32.mrb[0].mxu0
    %v2216 = vadd.f32 0.0, %v2215
    %v2217 = vpop.f32.mrb[0].mxu0
    %v2218 = vadd.f32 0.0, %v2217
    %v2219 = vpop.f32.mrb[0].mxu0
    %v2220 = vadd.f32 0.0, %v2219
    %v2221 = vpop.f32.mrb[0].mxu0
    %v2222 = vadd.f32 0.0, %v2221
    %2223 = vmatprep.mubr.bf16.mxu0 0
    %2224 = vmatmul.mubr.bf16.gmra.mrb[0].mxu0 %v1286
    %v2225 = vpop.f32.mrb[0].mxu0
    %v2226 = vadd.f32 0.0, %v2225
    %v2227 = vpop.f32.mrb[0].mxu0
    %v2228 = vadd.f32 0.0, %v2227
    %v2229 = vpop.f32.mrb[0].mxu0
    %v2230 = vadd.f32 0.0, %v2229
    %v2231 = vpop.f32.mrb[0].mxu0
    %v2232 = vadd.f32 0.0, %v2231
    %2233 = vmatprep.mubr.bf16.mxu0 0
    %2234 = vmatmul.mubr.bf16.gmra.mrb[0].mxu0 %v1288
    %v2235 = vpop.f32.mrb[0].mxu0
    %v2236 = vadd.f32 0.0, %v2235
    %v2237 = vpop.f32.mrb[0].mxu0
    %v2238 = vadd.f32 0.0, %v2237
    %v2239 = vpop.f32.mrb[0].mxu0
    %v2240 = vadd.f32 0.0, %v2239
    %v2241 = vpop.f32.mrb[0].mxu0
    %v2242 = vadd.f32 0.0, %v2241
    %2243 = vmatprep.mubr.bf16.mxu0 0
    %2244 = vmatmul.mubr.bf16.gmra.mrb[0].mxu0 %v1290
    %v2245 = vpop.f32.mrb[0].mxu0
    %v2246 = vadd.f32 0.0, %v2245
    %v2247 = vpop.f32.mrb[0].mxu0
    %v2248 = vadd.f32 0.0, %v2247
    %v2249 = vpop.f32.mrb[0].mxu0
    %v2250 = vadd.f32 0.0, %v2249
    %v2251 = vpop.f32.mrb[0].mxu0
    %v2252 = vadd.f32 0.0, %v2251
    %2253 = vmatprep.mubr.bf16.mxu0 0
    %2254 = vmatmul.mubr.bf16.gmra.mrb[0].mxu0 %v1292
    %v2255 = vpop.f32.mrb[0].mxu0
    %v2256 = vadd.f32 0.0, %v2255
    %v2257 = vpop.f32.mrb[0].mxu0
    %v2258 = vadd.f32 0.0, %v2257
    %v2259 = vpop.f32.mrb[0].mxu0
    %v2260 = vadd.f32 0.0, %v2259
    %v2261 = vpop.f32.mrb[0].mxu0
    %v2262 = vadd.f32 0.0, %v2261
    %2263 = vmatprep.mubr.bf16.mxu0 0
    %2264 = vmatmul.mubr.bf16.gmra.mrb[0].mxu0 %v1294
    %v2265 = vpop.f32.mrb[0].mxu0
    %v2266 = vadd.f32 0.0, %v2265
    %v2267 = vpop.f32.mrb[0].mxu0
    %v2268 = vadd.f32 0.0, %v2267
    %v2269 = vpop.f32.mrb[0].mxu0
    %v2270 = vadd.f32 0.0, %v2269
    %v2271 = vpop.f32.mrb[0].mxu0
    %v2272 = vadd.f32 0.0, %v2271
    %2273 = vmatprep.mubr.bf16.mxu0 0
    %2274 = vmatmul.mubr.bf16.gmra.mrb[0].mxu0 %v1296
    %v2275 = vpop.f32.mrb[0].mxu0
    %v2276 = vadd.f32 0.0, %v2275
    %v2277 = vpop.f32.mrb[0].mxu0
    %v2278 = vadd.f32 0.0, %v2277
    %v2279 = vpop.f32.mrb[0].mxu0
    %v2280 = vadd.f32 0.0, %v2279
    %v2281 = vpop.f32.mrb[0].mxu0
    %v2282 = vadd.f32 0.0, %v2281
    %2283 = vmatprep.mubr.bf16.mxu0 0
    %2284 = vmatmul.mubr.bf16.gmra.mrb[0].mxu0 %v1298
    %v2285 = vpop.f32.mrb[0].mxu0
    %v2286 = vadd.f32 0.0, %v2285
    %v2287 = vpop.f32.mrb[0].mxu0
    %v2288 = vadd.f32 0.0, %v2287
    %v2289 = vpop.f32.mrb[0].mxu0
    %v2290 = vadd.f32 0.0, %v2289
    %v2291 = vpop.f32.mrb[0].mxu0
    %v2292 = vadd.f32 0.0, %v2291
    %2293 = vmatprep.mubr.bf16.mxu0 0
    %2294 = vmatmul.mubr.bf16.gmra.mrb[0].mxu0 %v1300
    %v2295 = vpop.f32.mrb[0].mxu0
    %v2296 = vadd.f32 0.0, %v2295
    %v2297 = vpop.f32.mrb[0].mxu0
    %v2298 = vadd.f32 0.0, %v2297
    %v2299 = vpop.f32.mrb[0].mxu0
    %v2300 = vadd.f32 0.0, %v2299
    %v2301 = vpop.f32.mrb[0].mxu0
    %v2302 = vadd.f32 0.0, %v2301
    %2303 = vmatprep.mubr.bf16.mxu0 0
    %2304 = vmatmul.mubr.bf16.gmra.mrb[0].mxu0 %v1302
    %v2305 = vpop.f32.mrb[0].mxu0
    %v2306 = vadd.f32 0.0, %v2305
    %v2307 = vpop.f32.mrb[0].mxu0
    %v2308 = vadd.f32 0.0, %v2307
    %v2309 = vpop.f32.mrb[0].mxu0
    %v2310 = vadd.f32 0.0, %v2309
    %v2311 = vpop.f32.mrb[0].mxu0
    %v2312 = vadd.f32 0.0, %v2311
    %2313 = vmatprep.mubr.bf16.mxu0 0
    %2314 = vmatmul.mubr.bf16.gmra.mrb[0].mxu0 %v1304
    %v2315 = vpop.f32.mrb[0].mxu0
    %v2316 = vadd.f32 0.0, %v2315
    %v2317 = vpop.f32.mrb[0].mxu0
    %v2318 = vadd.f32 0.0, %v2317
    %v2319 = vpop.f32.mrb[0].mxu0
    %v2320 = vadd.f32 0.0, %v2319
    %v2321 = vpop.f32.mrb[0].mxu0
    %v2322 = vadd.f32 0.0, %v2321
    %2323 = vmatprep.mubr.bf16.mxu0 0
    %2324 = vmatmul.mubr.bf16.gmra.mrb[0].mxu0 %v1306
    %v2325 = vpop.f32.mrb[0].mxu0
    %v2326 = vadd.f32 0.0, %v2325
    %v2327 = vpop.f32.mrb[0].mxu0
    %v2328 = vadd.f32 0.0, %v2327
    %v2329 = vpop.f32.mrb[0].mxu0
    %v2330 = vadd.f32 0.0, %v2329
    %v2331 = vpop.f32.mrb[0].mxu0
    %v2332 = vadd.f32 0.0, %v2331
    %2333 = vmatprep.mubr.bf16.mxu0 0
    %2334 = vmatmul.mubr.bf16.gmra.mrb[0].mxu0 %v1308
    %v2335 = vpop.f32.mrb[0].mxu0
    %v2336 = vadd.f32 0.0, %v2335
    %v2337 = vpop.f32.mrb[0].mxu0
    %v2338 = vadd.f32 0.0, %v2337
    %v2339 = vpop.f32.mrb[0].mxu0
    %v2340 = vadd.f32 0.0, %v2339
    %v2341 = vpop.f32.mrb[0].mxu0
    %v2342 = vadd.f32 0.0, %v2341
    %2343 = vmatprep.mubr.bf16.mxu0 0
    %2344 = vmatmul.mubr.bf16.gmra.mrb[0].mxu0 %v1310
    %v2345 = vpop.f32.mrb[0].mxu0
    %v2346 = vadd.f32 0.0, %v2345
    %v2347 = vpop.f32.mrb[0].mxu0
    %v2348 = vadd.f32 0.0, %v2347
    %v2349 = vpop.f32.mrb[0].mxu0
    %v2350 = vadd.f32 0.0, %v2349
    %v2351 = vpop.f32.mrb[0].mxu0
    %v2352 = vadd.f32 0.0, %v2351
    %2353 = vmatprep.mubr.bf16.mxu0 0
    %2354 = vmatmul.mubr.bf16.gmra.mrb[0].mxu0 %v1312
    %v2355 = vpop.f32.mrb[0].mxu0
    %v2356 = vadd.f32 0.0, %v2355
    %v2357 = vpop.f32.mrb[0].mxu0
    %v2358 = vadd.f32 0.0, %v2357
    %v2359 = vpop.f32.mrb[0].mxu0
    %v2360 = vadd.f32 0.0, %v2359
    %v2361 = vpop.f32.mrb[0].mxu0
    %v2362 = vadd.f32 0.0, %v2361
    %2363 = vmatprep.mubr.bf16.mxu0 0
    %2364 = vmatmul.mubr.bf16.gmra.mrb[0].mxu0 %v1314
    %v2365 = vpop.f32.mrb[0].mxu0
    %v2366 = vadd.f32 0.0, %v2365
    %v2367 = vpop.f32.mrb[0].mxu0
    %v2368 = vadd.f32 0.0, %v2367
    %v2369 = vpop.f32.mrb[0].mxu0
    %v2370 = vadd.f32 0.0, %v2369
    %v2371 = vpop.f32.mrb[0].mxu0
    %v2372 = vadd.f32 0.0, %v2371
    %2373 = vmatprep.mubr.bf16.mxu0 0
    %2374 = vmatmul.mubr.bf16.gmra.mrb[0].mxu0 %v1316
    %v2375 = vpop.f32.mrb[0].mxu0
    %v2376 = vadd.f32 0.0, %v2375
    %v2377 = vpop.f32.mrb[0].mxu0
    %v2378 = vadd.f32 0.0, %v2377
    %v2379 = vpop.f32.mrb[0].mxu0
    %v2380 = vadd.f32 0.0, %v2379
    %v2381 = vpop.f32.mrb[0].mxu0
    %v2382 = vadd.f32 0.0, %v2381
    %2383 = vmatprep.mubr.bf16.mxu0 0
    %2384 = vmatmul.mubr.bf16.gmra.mrb[0].mxu0 %v1318
    %v2385 = vpop.f32.mrb[0].mxu0
    %v2386 = vadd.f32 0.0, %v2385
    %v2387 = vpop.f32.mrb[0].mxu0
    %v2388 = vadd.f32 0.0, %v2387
    %v2389 = vpop.f32.mrb[0].mxu0
    %v2390 = vadd.f32 0.0, %v2389
    %v2391 = vpop.f32.mrb[0].mxu0
    %v2392 = vadd.f32 0.0, %v2391
    %2393 = vmatprep.mubr.bf16.mxu0 0
    %2394 = vmatmul.mubr.bf16.gmra.mrb[0].mxu0 %v1320
    %v2395 = vpop.f32.mrb[0].mxu0
    %v2396 = vadd.f32 0.0, %v2395
    %v2397 = vpop.f32.mrb[0].mxu0
    %v2398 = vadd.f32 0.0, %v2397
    %v2399 = vpop.f32.mrb[0].mxu0
    %v2400 = vadd.f32 0.0, %v2399
    %v2401 = vpop.f32.mrb[0].mxu0
    %v2402 = vadd.f32 0.0, %v2401
    %2403 = vmatprep.mubr.bf16.mxu0 0
    %2404 = vmatmul.mubr.bf16.gmra.mrb[0].mxu0 %v1322
    %v2405 = vpop.f32.mrb[0].mxu0
    %v2406 = vadd.f32 0.0, %v2405
    %v2407 = vpop.f32.mrb[0].mxu0
    %v2408 = vadd.f32 0.0, %v2407
    %v2409 = vpop.f32.mrb[0].mxu0
    %v2410 = vadd.f32 0.0, %v2409
    %v2411 = vpop.f32.mrb[0].mxu0
    %v2412 = vadd.f32 0.0, %v2411
    %2413 = vmatprep.mubr.bf16.mxu0 0
    %2414 = vmatmul.mubr.bf16.gmra.mrb[0].mxu0 %v1324
    %v2415 = vpop.f32.mrb[0].mxu0
    %v2416 = vadd.f32 0.0, %v2415
    %v2417 = vpop.f32.mrb[0].mxu0
    %v2418 = vadd.f32 0.0, %v2417
    %v2419 = vpop.f32.mrb[0].mxu0
    %v2420 = vadd.f32 0.0, %v2419
    %v2421 = vpop.f32.mrb[0].mxu0
    %v2422 = vadd.f32 0.0, %v2421
    %2423 = vmatprep.mubr.bf16.mxu0 0
    %2424 = vmatmul.mubr.bf16.gmra.mrb[0].mxu0 %v1326
    %v2425 = vpop.f32.mrb[0].mxu0
    %v2426 = vadd.f32 0.0, %v2425
    %v2427 = vpop.f32.mrb[0].mxu0
    %v2428 = vadd.f32 0.0, %v2427
    %v2429 = vpop.f32.mrb[0].mxu0
    %v2430 = vadd.f32 0.0, %v2429
    %v2431 = vpop.f32.mrb[0].mxu0
    %v2432 = vadd.f32 0.0, %v2431
    %2433 = vmatprep.mubr.bf16.mxu0 0
    %2434 = vmatmul.mubr.bf16.gmra.mrb[0].mxu0 %v1328
    %v2435 = vpop.f32.mrb[0].mxu0
    %v2436 = vadd.f32 0.0, %v2435
    %v2437 = vpop.f32.mrb[0].mxu0
    %v2438 = vadd.f32 0.0, %v2437
    %v2439 = vpop.f32.mrb[0].mxu0
    %v2440 = vadd.f32 0.0, %v2439
    %v2441 = vpop.f32.mrb[0].mxu0
    %v2442 = vadd.f32 0.0, %v2441
    %2443 = vmatprep.mubr.bf16.mxu0 0
    %2444 = vmatmul.mubr.bf16.gmra.mrb[0].mxu0 %v1330
    %v2445 = vpop.f32.mrb[0].mxu0
    %v2446 = vadd.f32 0.0, %v2445
    %v2447 = vpop.f32.mrb[0].mxu0
    %v2448 = vadd.f32 0.0, %v2447
    %v2449 = vpop.f32.mrb[0].mxu0
    %v2450 = vadd.f32 0.0, %v2449
    %v2451 = vpop.f32.mrb[0].mxu0
    %v2452 = vadd.f32 0.0, %v2451
    %2453 = vmatprep.mubr.bf16.mxu0 0
    %2454 = vmatmul.mubr.bf16.gmra.mrb[0].mxu0 %v1332
    %v2455 = vpop.f32.mrb[0].mxu0
    %v2456 = vadd.f32 0.0, %v2455
    %v2457 = vpop.f32.mrb[0].mxu0
    %v2458 = vadd.f32 0.0, %v2457
    %v2459 = vpop.f32.mrb[0].mxu0
    %v2460 = vadd.f32 0.0, %v2459
    %v2461 = vpop.f32.mrb[0].mxu0
    %v2462 = vadd.f32 0.0, %v2461
    %2463 = vmatprep.mubr.bf16.mxu0 0
    %2464 = vmatmul.mubr.bf16.gmra.mrb[0].mxu0 %v1334
    %v2465 = vpop.f32.mrb[0].mxu0
    %v2466 = vadd.f32 0.0, %v2465
    %v2467 = vpop.f32.mrb[0].mxu0
    %v2468 = vadd.f32 0.0, %v2467
    %v2469 = vpop.f32.mrb[0].mxu0
    %v2470 = vadd.f32 0.0, %v2469
    %v2471 = vpop.f32.mrb[0].mxu0
    %v2472 = vadd.f32 0.0, %v2471
    %2473 = vmatprep.mubr.bf16.mxu0 0
    %2474 = vmatmul.mubr.bf16.gmra.mrb[0].mxu0 %v1336
    %v2475 = vpop.f32.mrb[0].mxu0
    %v2476 = vadd.f32 0.0, %v2475
    %v2477 = vpop.f32.mrb[0].mxu0
    %v2478 = vadd.f32 0.0, %v2477
    %v2479 = vpop.f32.mrb[0].mxu0
    %v2480 = vadd.f32 0.0, %v2479
    %v2481 = vpop.f32.mrb[0].mxu0
    %v2482 = vadd.f32 0.0, %v2481
    %2483 = vmatprep.mubr.bf16.mxu0 0
    %2484 = vmatmul.mubr.bf16.gmra.mrb[0].mxu0 %v1338
    %v2485 = vpop.f32.mrb[0].mxu0
    %v2486 = vadd.f32 0.0, %v2485
    %v2487 = vpop.f32.mrb[0].mxu0
    %v2488 = vadd.f32 0.0, %v2487
    %v2489 = vpop.f32.mrb[0].mxu0
    %v2490 = vadd.f32 0.0, %v2489
    %v2491 = vpop.f32.mrb[0].mxu0
    %v2492 = vadd.f32 0.0, %v2491
    %2493 = vmatprep.mubr.bf16.mxu0 0
    %2494 = vmatmul.mubr.bf16.gmra.mrb[0].mxu0 %v1340
    %v2495 = vpop.f32.mrb[0].mxu0
    %v2496 = vadd.f32 0.0, %v2495
    %v2497 = vpop.f32.mrb[0].mxu0
    %v2498 = vadd.f32 0.0, %v2497
    %v2499 = vpop.f32.mrb[0].mxu0
    %v2500 = vadd.f32 0.0, %v2499
    %v2501 = vpop.f32.mrb[0].mxu0
    %v2502 = vadd.f32 0.0, %v2501
    %2503 = vmatprep.mubr.bf16.mxu0 0
    %2504 = vmatmul.mubr.bf16.gmra.mrb[0].mxu0 %v1342
    %v2505 = vpop.f32.mrb[0].mxu0
    %v2506 = vadd.f32 0.0, %v2505
    %v2507 = vpop.f32.mrb[0].mxu0
    %v2508 = vadd.f32 0.0, %v2507
    %v2509 = vpop.f32.mrb[0].mxu0
    %v2510 = vadd.f32 0.0, %v2509
    %v2511 = vpop.f32.mrb[0].mxu0
    %v2512 = vadd.f32 0.0, %v2511
    %2513 = vmatprep.mubr.bf16.mxu0 0
    %2514 = vmatmul.mubr.bf16.gmra.mrb[0].mxu0 %v1344
    %v2515 = vpop.f32.mrb[0].mxu0
    %v2516 = vadd.f32 0.0, %v2515
    %v2517 = vpop.f32.mrb[0].mxu0
    %v2518 = vadd.f32 0.0, %v2517
    %v2519 = vpop.f32.mrb[0].mxu0
    %v2520 = vadd.f32 0.0, %v2519
    %v2521 = vpop.f32.mrb[0].mxu0
    %v2522 = vadd.f32 0.0, %v2521
    %2523 = vmatprep.mubr.bf16.mxu0 0
    %2524 = vmatmul.mubr.bf16.gmra.mrb[0].mxu0 %v1346
    %v2525 = vpop.f32.mrb[0].mxu0
    %v2526 = vadd.f32 0.0, %v2525
    %v2527 = vpop.f32.mrb[0].mxu0
    %v2528 = vadd.f32 0.0, %v2527
    %v2529 = vpop.f32.mrb[0].mxu0
    %v2530 = vadd.f32 0.0, %v2529
    %v2531 = vpop.f32.mrb[0].mxu0
    %v2532 = vadd.f32 0.0, %v2531
    %2533 = vdwg.mxu0
    %v2534 = vld [vmem:[#allocation10] ss:$2 sm:$0xf]
    %v2536 = vlaneseq
    %v2537 = vshrl.u32 %v2536, 7
    %v2538 = vsub.s32 0, %v2537
    %v2539 = vrot.slane %v2534, %v2538
    %v2540 = vlaneseq
    %v2541 = vshrl.u32 %v2540, 7
    %v2542 = vsub.s32 1, %v2541
    %v2543 = vrot.slane %v2534, %v2542
    %v2544 = vlaneseq
    %v2545 = vshrl.u32 %v2544, 7
    %v2546 = vsub.s32 2, %v2545
    %v2547 = vrot.slane %v2534, %v2546
    %v2548 = vlaneseq
    %v2549 = vshrl.u32 %v2548, 7
    %v2550 = vsub.s32 3, %v2549
    %v2551 = vrot.slane %v2534, %v2550
    %v2556 = vmul.f32 %v1383, %v2539
    %v2557 = vmul.f32 %v1385, %v2543
    %v2558 = vmul.f32 %v1976, %v2547
    %v2559 = vmul.f32 %v1978, %v2551
    %v2560 = vmul.f32 %v1387, %v2539
    %v2561 = vmul.f32 %v1389, %v2543
    %v2562 = vmul.f32 %v1980, %v2547
    %v2563 = vmul.f32 %v1982, %v2551
    %v2564 = vmul.f32 %v1393, %v2539
    %v2565 = vmul.f32 %v1395, %v2543
    %v2566 = vmul.f32 %v1986, %v2547
    %v2567 = vmul.f32 %v1988, %v2551
    %v2568 = vmul.f32 %v1397, %v2539
    %v2569 = vmul.f32 %v1399, %v2543
    %v2570 = vmul.f32 %v1990, %v2547
    %v2571 = vmul.f32 %v1992, %v2551
    %v2572 = vmul.f32 %v1403, %v2539
    %v2573 = vmul.f32 %v1405, %v2543
    %v2574 = vmul.f32 %v1996, %v2547
    %v2575 = vmul.f32 %v1998, %v2551
    %v2576 = vmul.f32 %v1407, %v2539
    %v2577 = vmul.f32 %v1409, %v2543
    %v2578 = vmul.f32 %v2000, %v2547
    %v2579 = vmul.f32 %v2002, %v2551
    %v2580 = vmul.f32 %v1413, %v2539
    %v2581 = vmul.f32 %v1415, %v2543
    %v2582 = vmul.f32 %v2006, %v2547
    %v2583 = vmul.f32 %v2008, %v2551
    %v2584 = vmul.f32 %v1417, %v2539
    %v2585 = vmul.f32 %v1419, %v2543
    %v2586 = vmul.f32 %v2010, %v2547
    %v2587 = vmul.f32 %v2012, %v2551
    %v2588 = vmul.f32 %v1423, %v2539
    %v2589 = vmul.f32 %v1425, %v2543
    %v2590 = vmul.f32 %v2016, %v2547
    %v2591 = vmul.f32 %v2018, %v2551
    %v2592 = vmul.f32 %v1427, %v2539
    %v2593 = vmul.f32 %v1429, %v2543
    %v2594 = vmul.f32 %v2020, %v2547
    %v2595 = vmul.f32 %v2022, %v2551
    %v2596 = vmul.f32 %v1433, %v2539
    %v2597 = vmul.f32 %v1435, %v2543
    %v2598 = vmul.f32 %v2026, %v2547
    %v2599 = vmul.f32 %v2028, %v2551
    %v2600 = vmul.f32 %v1437, %v2539
    %v2601 = vmul.f32 %v1439, %v2543
    %v2602 = vmul.f32 %v2030, %v2547
    %v2603 = vmul.f32 %v2032, %v2551
    %v2604 = vmul.f32 %v1443, %v2539
    %v2605 = vmul.f32 %v1445, %v2543
    %v2606 = vmul.f32 %v2036, %v2547
    %v2607 = vmul.f32 %v2038, %v2551
    %v2608 = vmul.f32 %v1447, %v2539
    %v2609 = vmul.f32 %v1449, %v2543
    %v2610 = vmul.f32 %v2040, %v2547
    %v2611 = vmul.f32 %v2042, %v2551
    %v2612 = vmul.f32 %v1453, %v2539
    %v2613 = vmul.f32 %v1455, %v2543
    %v2614 = vmul.f32 %v2046, %v2547
    %v2615 = vmul.f32 %v2048, %v2551
    %v2616 = vmul.f32 %v1457, %v2539
    %v2617 = vmul.f32 %v1459, %v2543
    %v2618 = vmul.f32 %v2050, %v2547
    %v2619 = vmul.f32 %v2052, %v2551
    %v2620 = vmul.f32 %v1463, %v2539
    %v2621 = vmul.f32 %v1465, %v2543
    %v2622 = vmul.f32 %v2056, %v2547
    %v2623 = vmul.f32 %v2058, %v2551
    %v2624 = vmul.f32 %v1467, %v2539
    %v2625 = vmul.f32 %v1469, %v2543
    %v2626 = vmul.f32 %v2060, %v2547
    %v2627 = vmul.f32 %v2062, %v2551
    %v2628 = vmul.f32 %v1473, %v2539
    %v2629 = vmul.f32 %v1475, %v2543
    %v2630 = vmul.f32 %v2066, %v2547
    %v2631 = vmul.f32 %v2068, %v2551
    %v2632 = vmul.f32 %v1477, %v2539
    %v2633 = vmul.f32 %v1479, %v2543
    %v2634 = vmul.f32 %v2070, %v2547
    %v2635 = vmul.f32 %v2072, %v2551
    %v2636 = vmul.f32 %v1483, %v2539
    %v2637 = vmul.f32 %v1485, %v2543
    %v2638 = vmul.f32 %v2076, %v2547
    %v2639 = vmul.f32 %v2078, %v2551
    %v2640 = vmul.f32 %v1487, %v2539
    %v2641 = vmul.f32 %v1489, %v2543
    %v2642 = vmul.f32 %v2080, %v2547
    %v2643 = vmul.f32 %v2082, %v2551
    %v2644 = vmul.f32 %v1493, %v2539
    %v2645 = vmul.f32 %v1495, %v2543
    %v2646 = vmul.f32 %v2086, %v2547
    %v2647 = vmul.f32 %v2088, %v2551
    %v2648 = vmul.f32 %v1497, %v2539
    %v2649 = vmul.f32 %v1499, %v2543
    %v2650 = vmul.f32 %v2090, %v2547
    %v2651 = vmul.f32 %v2092, %v2551
    %v2652 = vmul.f32 %v1503, %v2539
    %v2653 = vmul.f32 %v1505, %v2543
    %v2654 = vmul.f32 %v2096, %v2547
    %v2655 = vmul.f32 %v2098, %v2551
    %v2656 = vmul.f32 %v1507, %v2539
    %v2657 = vmul.f32 %v1509, %v2543
    %v2658 = vmul.f32 %v2100, %v2547
    %v2659 = vmul.f32 %v2102, %v2551
    %v2660 = vmul.f32 %v1513, %v2539
    %v2661 = vmul.f32 %v1515, %v2543
    %v2662 = vmul.f32 %v2106, %v2547
    %v2663 = vmul.f32 %v2108, %v2551
    %v2664 = vmul.f32 %v1517, %v2539
    %v2665 = vmul.f32 %v1519, %v2543
    %v2666 = vmul.f32 %v2110, %v2547
    %v2667 = vmul.f32 %v2112, %v2551
    %v2668 = vmul.f32 %v1523, %v2539
    %v2669 = vmul.f32 %v1525, %v2543
    %v2670 = vmul.f32 %v2116, %v2547
    %v2671 = vmul.f32 %v2118, %v2551
    %v2672 = vmul.f32 %v1527, %v2539
    %v2673 = vmul.f32 %v1529, %v2543
    %v2674 = vmul.f32 %v2120, %v2547
    %v2675 = vmul.f32 %v2122, %v2551
    %v2676 = vmul.f32 %v1533, %v2539
    %v2677 = vmul.f32 %v1535, %v2543
    %v2678 = vmul.f32 %v2126, %v2547
    %v2679 = vmul.f32 %v2128, %v2551
    %v2680 = vmul.f32 %v1537, %v2539
    %v2681 = vmul.f32 %v1539, %v2543
    %v2682 = vmul.f32 %v2130, %v2547
    %v2683 = vmul.f32 %v2132, %v2551
    %v2684 = vmul.f32 %v1543, %v2539
    %v2685 = vmul.f32 %v1545, %v2543
    %v2686 = vmul.f32 %v2136, %v2547
    %v2687 = vmul.f32 %v2138, %v2551
    %v2688 = vmul.f32 %v1547, %v2539
    %v2689 = vmul.f32 %v1549, %v2543
    %v2690 = vmul.f32 %v2140, %v2547
    %v2691 = vmul.f32 %v2142, %v2551
    %v2692 = vmul.f32 %v1553, %v2539
    %v2693 = vmul.f32 %v1555, %v2543
    %v2694 = vmul.f32 %v2146, %v2547
    %v2695 = vmul.f32 %v2148, %v2551
    %v2696 = vmul.f32 %v1557, %v2539
    %v2697 = vmul.f32 %v1559, %v2543
    %v2698 = vmul.f32 %v2150, %v2547
    %v2699 = vmul.f32 %v2152, %v2551
    %v2700 = vmul.f32 %v1563, %v2539
    %v2701 = vmul.f32 %v1565, %v2543
    %v2702 = vmul.f32 %v2156, %v2547
    %v2703 = vmul.f32 %v2158, %v2551
    %v2704 = vmul.f32 %v1567, %v2539
    %v2705 = vmul.f32 %v1569, %v2543
    %v2706 = vmul.f32 %v2160, %v2547
    %v2707 = vmul.f32 %v2162, %v2551
    %v2708 = vmul.f32 %v1573, %v2539
    %v2709 = vmul.f32 %v1575, %v2543
    %v2710 = vmul.f32 %v2166, %v2547
    %v2711 = vmul.f32 %v2168, %v2551
    %v2712 = vmul.f32 %v1577, %v2539
    %v2713 = vmul.f32 %v1579, %v2543
    %v2714 = vmul.f32 %v2170, %v2547
    %v2715 = vmul.f32 %v2172, %v2551
    %v2716 = vmul.f32 %v1583, %v2539
    %v2717 = vmul.f32 %v1585, %v2543
    %v2718 = vmul.f32 %v2176, %v2547
    %v2719 = vmul.f32 %v2178, %v2551
    %v2720 = vmul.f32 %v1587, %v2539
    %v2721 = vmul.f32 %v1589, %v2543
    %v2722 = vmul.f32 %v2180, %v2547
    %v2723 = vmul.f32 %v2182, %v2551
    %v2724 = vmul.f32 %v1593, %v2539
    %v2725 = vmul.f32 %v1595, %v2543
    %v2726 = vmul.f32 %v2186, %v2547
    %v2727 = vmul.f32 %v2188, %v2551
    %v2728 = vmul.f32 %v1597, %v2539
    %v2729 = vmul.f32 %v1599, %v2543
    %v2730 = vmul.f32 %v2190, %v2547
    %v2731 = vmul.f32 %v2192, %v2551
    %v2732 = vmul.f32 %v1603, %v2539
    %v2733 = vmul.f32 %v1605, %v2543
    %v2734 = vmul.f32 %v2196, %v2547
    %v2735 = vmul.f32 %v2198, %v2551
    %v2736 = vmul.f32 %v1607, %v2539
    %v2737 = vmul.f32 %v1609, %v2543
    %v2738 = vmul.f32 %v2200, %v2547
    %v2739 = vmul.f32 %v2202, %v2551
    %v2740 = vmul.f32 %v1613, %v2539
    %v2741 = vmul.f32 %v1615, %v2543
    %v2742 = vmul.f32 %v2206, %v2547
    %v2743 = vmul.f32 %v2208, %v2551
    %v2744 = vmul.f32 %v1617, %v2539
    %v2745 = vmul.f32 %v1619, %v2543
    %v2746 = vmul.f32 %v2210, %v2547
    %v2747 = vmul.f32 %v2212, %v2551
    %v2748 = vmul.f32 %v1623, %v2539
    %v2749 = vmul.f32 %v1625, %v2543
    %v2750 = vmul.f32 %v2216, %v2547
    %v2751 = vmul.f32 %v2218, %v2551
    %v2752 = vmul.f32 %v1627, %v2539
    %v2753 = vmul.f32 %v1629, %v2543
    %v2754 = vmul.f32 %v2220, %v2547
    %v2755 = vmul.f32 %v2222, %v2551
    %v2756 = vmul.f32 %v1633, %v2539
    %v2757 = vmul.f32 %v1635, %v2543
    %v2758 = vmul.f32 %v2226, %v2547
    %v2759 = vmul.f32 %v2228, %v2551
    %v2760 = vmul.f32 %v1637, %v2539
    %v2761 = vmul.f32 %v1639, %v2543
    %v2762 = vmul.f32 %v2230, %v2547
    %v2763 = vmul.f32 %v2232, %v2551
    %v2764 = vmul.f32 %v1643, %v2539
    %v2765 = vmul.f32 %v1645, %v2543
    %v2766 = vmul.f32 %v2236, %v2547
    %v2767 = vmul.f32 %v2238, %v2551
    %v2768 = vmul.f32 %v1647, %v2539
    %v2769 = vmul.f32 %v1649, %v2543
    %v2770 = vmul.f32 %v2240, %v2547
    %v2771 = vmul.f32 %v2242, %v2551
    %v2772 = vmul.f32 %v1653, %v2539
    %v2773 = vmul.f32 %v1655, %v2543
    %v2774 = vmul.f32 %v2246, %v2547
    %v2775 = vmul.f32 %v2248, %v2551
    %v2776 = vmul.f32 %v1657, %v2539
    %v2777 = vmul.f32 %v1659, %v2543
    %v2778 = vmul.f32 %v2250, %v2547
    %v2779 = vmul.f32 %v2252, %v2551
    %v2780 = vmul.f32 %v1663, %v2539
    %v2781 = vmul.f32 %v1665, %v2543
    %v2782 = vmul.f32 %v2256, %v2547
    %v2783 = vmul.f32 %v2258, %v2551
    %v2784 = vmul.f32 %v1667, %v2539
    %v2785 = vmul.f32 %v1669, %v2543
    %v2786 = vmul.f32 %v2260, %v2547
    %v2787 = vmul.f32 %v2262, %v2551
    %v2788 = vmul.f32 %v1673, %v2539
    %v2789 = vmul.f32 %v1675, %v2543
    %v2790 = vmul.f32 %v2266, %v2547
    %v2791 = vmul.f32 %v2268, %v2551
    %v2792 = vmul.f32 %v1677, %v2539
    %v2793 = vmul.f32 %v1679, %v2543
    %v2794 = vmul.f32 %v2270, %v2547
    %v2795 = vmul.f32 %v2272, %v2551
    %v2796 = vmul.f32 %v1683, %v2539
    %v2797 = vmul.f32 %v1685, %v2543
    %v2798 = vmul.f32 %v2276, %v2547
    %v2799 = vmul.f32 %v2278, %v2551
    %v2800 = vmul.f32 %v1687, %v2539
    %v2801 = vmul.f32 %v1689, %v2543
    %v2802 = vmul.f32 %v2280, %v2547
    %v2803 = vmul.f32 %v2282, %v2551
    %v2804 = vmul.f32 %v1693, %v2539
    %v2805 = vmul.f32 %v1695, %v2543
    %v2806 = vmul.f32 %v2286, %v2547
    %v2807 = vmul.f32 %v2288, %v2551
    %v2808 = vmul.f32 %v1697, %v2539
    %v2809 = vmul.f32 %v1699, %v2543
    %v2810 = vmul.f32 %v2290, %v2547
    %v2811 = vmul.f32 %v2292, %v2551
    %v2812 = vmul.f32 %v1703, %v2539
    %v2813 = vmul.f32 %v1705, %v2543
    %v2814 = vmul.f32 %v2296, %v2547
    %v2815 = vmul.f32 %v2298, %v2551
    %v2816 = vmul.f32 %v1707, %v2539
    %v2817 = vmul.f32 %v1709, %v2543
    %v2818 = vmul.f32 %v2300, %v2547
    %v2819 = vmul.f32 %v2302, %v2551
    %v2820 = vmul.f32 %v1713, %v2539
    %v2821 = vmul.f32 %v1715, %v2543
    %v2822 = vmul.f32 %v2306, %v2547
    %v2823 = vmul.f32 %v2308, %v2551
    %v2824 = vmul.f32 %v1717, %v2539
    %v2825 = vmul.f32 %v1719, %v2543
    %v2826 = vmul.f32 %v2310, %v2547
    %v2827 = vmul.f32 %v2312, %v2551
    %v2828 = vmul.f32 %v1723, %v2539
    %v2829 = vmul.f32 %v1725, %v2543
    %v2830 = vmul.f32 %v2316, %v2547
    %v2831 = vmul.f32 %v2318, %v2551
    %v2832 = vmul.f32 %v1727, %v2539
    %v2833 = vmul.f32 %v1729, %v2543
    %v2834 = vmul.f32 %v2320, %v2547
    %v2835 = vmul.f32 %v2322, %v2551
    %v2836 = vmul.f32 %v1733, %v2539
    %v2837 = vmul.f32 %v1735, %v2543
    %v2838 = vmul.f32 %v2326, %v2547
    %v2839 = vmul.f32 %v2328, %v2551
    %v2840 = vmul.f32 %v1737, %v2539
    %v2841 = vmul.f32 %v1739, %v2543
    %v2842 = vmul.f32 %v2330, %v2547
    %v2843 = vmul.f32 %v2332, %v2551
    %v2844 = vmul.f32 %v1743, %v2539
    %v2845 = vmul.f32 %v1745, %v2543
    %v2846 = vmul.f32 %v2336, %v2547
    %v2847 = vmul.f32 %v2338, %v2551
    %v2848 = vmul.f32 %v1747, %v2539
    %v2849 = vmul.f32 %v1749, %v2543
    %v2850 = vmul.f32 %v2340, %v2547
    %v2851 = vmul.f32 %v2342, %v2551
    %v2852 = vmul.f32 %v1753, %v2539
    %v2853 = vmul.f32 %v1755, %v2543
    %v2854 = vmul.f32 %v2346, %v2547
    %v2855 = vmul.f32 %v2348, %v2551
    %v2856 = vmul.f32 %v1757, %v2539
    %v2857 = vmul.f32 %v1759, %v2543
    %v2858 = vmul.f32 %v2350, %v2547
    %v2859 = vmul.f32 %v2352, %v2551
    %v2860 = vmul.f32 %v1763, %v2539
    %v2861 = vmul.f32 %v1765, %v2543
    %v2862 = vmul.f32 %v2356, %v2547
    %v2863 = vmul.f32 %v2358, %v2551
    %v2864 = vmul.f32 %v1767, %v2539
    %v2865 = vmul.f32 %v1769, %v2543
    %v2866 = vmul.f32 %v2360, %v2547
    %v2867 = vmul.f32 %v2362, %v2551
    %v2868 = vmul.f32 %v1773, %v2539
    %v2869 = vmul.f32 %v1775, %v2543
    %v2870 = vmul.f32 %v2366, %v2547
    %v2871 = vmul.f32 %v2368, %v2551
    %v2872 = vmul.f32 %v1777, %v2539
    %v2873 = vmul.f32 %v1779, %v2543
    %v2874 = vmul.f32 %v2370, %v2547
    %v2875 = vmul.f32 %v2372, %v2551
    %v2876 = vmul.f32 %v1783, %v2539
    %v2877 = vmul.f32 %v1785, %v2543
    %v2878 = vmul.f32 %v2376, %v2547
    %v2879 = vmul.f32 %v2378, %v2551
    %v2880 = vmul.f32 %v1787, %v2539
    %v2881 = vmul.f32 %v1789, %v2543
    %v2882 = vmul.f32 %v2380, %v2547
    %v2883 = vmul.f32 %v2382, %v2551
    %v2884 = vmul.f32 %v1793, %v2539
    %v2885 = vmul.f32 %v1795, %v2543
    %v2886 = vmul.f32 %v2386, %v2547
    %v2887 = vmul.f32 %v2388, %v2551
    %v2888 = vmul.f32 %v1797, %v2539
    %v2889 = vmul.f32 %v1799, %v2543
    %v2890 = vmul.f32 %v2390, %v2547
    %v2891 = vmul.f32 %v2392, %v2551
    %v2892 = vmul.f32 %v1803, %v2539
    %v2893 = vmul.f32 %v1805, %v2543
    %v2894 = vmul.f32 %v2396, %v2547
    %v2895 = vmul.f32 %v2398, %v2551
    %v2896 = vmul.f32 %v1807, %v2539
    %v2897 = vmul.f32 %v1809, %v2543
    %v2898 = vmul.f32 %v2400, %v2547
    %v2899 = vmul.f32 %v2402, %v2551
    %v2900 = vmul.f32 %v1813, %v2539
    %v2901 = vmul.f32 %v1815, %v2543
    %v2902 = vmul.f32 %v2406, %v2547
    %v2903 = vmul.f32 %v2408, %v2551
    %v2904 = vmul.f32 %v1817, %v2539
    %v2905 = vmul.f32 %v1819, %v2543
    %v2906 = vmul.f32 %v2410, %v2547
    %v2907 = vmul.f32 %v2412, %v2551
    %v2908 = vmul.f32 %v1823, %v2539
    %v2909 = vmul.f32 %v1825, %v2543
    %v2910 = vmul.f32 %v2416, %v2547
    %v2911 = vmul.f32 %v2418, %v2551
    %v2912 = vmul.f32 %v1827, %v2539
    %v2913 = vmul.f32 %v1829, %v2543
    %v2914 = vmul.f32 %v2420, %v2547
    %v2915 = vmul.f32 %v2422, %v2551
    %v2916 = vmul.f32 %v1833, %v2539
    %v2917 = vmul.f32 %v1835, %v2543
    %v2918 = vmul.f32 %v2426, %v2547
    %v2919 = vmul.f32 %v2428, %v2551
    %v2920 = vmul.f32 %v1837, %v2539
    %v2921 = vmul.f32 %v1839, %v2543
    %v2922 = vmul.f32 %v2430, %v2547
    %v2923 = vmul.f32 %v2432, %v2551
    %v2924 = vmul.f32 %v1843, %v2539
    %v2925 = vmul.f32 %v1845, %v2543
    %v2926 = vmul.f32 %v2436, %v2547
    %v2927 = vmul.f32 %v2438, %v2551
    %v2928 = vmul.f32 %v1847, %v2539
    %v2929 = vmul.f32 %v1849, %v2543
    %v2930 = vmul.f32 %v2440, %v2547
    %v2931 = vmul.f32 %v2442, %v2551
    %v2932 = vmul.f32 %v1853, %v2539
    %v2933 = vmul.f32 %v1855, %v2543
    %v2934 = vmul.f32 %v2446, %v2547
    %v2935 = vmul.f32 %v2448, %v2551
    %v2936 = vmul.f32 %v1857, %v2539
    %v2937 = vmul.f32 %v1859, %v2543
    %v2938 = vmul.f32 %v2450, %v2547
    %v2939 = vmul.f32 %v2452, %v2551
    %v2940 = vmul.f32 %v1863, %v2539
    %v2941 = vmul.f32 %v1865, %v2543
    %v2942 = vmul.f32 %v2456, %v2547
    %v2943 = vmul.f32 %v2458, %v2551
    %v2944 = vmul.f32 %v1867, %v2539
    %v2945 = vmul.f32 %v1869, %v2543
    %v2946 = vmul.f32 %v2460, %v2547
    %v2947 = vmul.f32 %v2462, %v2551
    %v2948 = vmul.f32 %v1873, %v2539
    %v2949 = vmul.f32 %v1875, %v2543
    %v2950 = vmul.f32 %v2466, %v2547
    %v2951 = vmul.f32 %v2468, %v2551
    %v2952 = vmul.f32 %v1877, %v2539
    %v2953 = vmul.f32 %v1879, %v2543
    %v2954 = vmul.f32 %v2470, %v2547
    %v2955 = vmul.f32 %v2472, %v2551
    %v2956 = vmul.f32 %v1883, %v2539
    %v2957 = vmul.f32 %v1885, %v2543
    %v2958 = vmul.f32 %v2476, %v2547
    %v2959 = vmul.f32 %v2478, %v2551
    %v2960 = vmul.f32 %v1887, %v2539
    %v2961 = vmul.f32 %v1889, %v2543
    %v2962 = vmul.f32 %v2480, %v2547
    %v2963 = vmul.f32 %v2482, %v2551
    %v2964 = vmul.f32 %v1893, %v2539
    %v2965 = vmul.f32 %v1895, %v2543
    %v2966 = vmul.f32 %v2486, %v2547
    %v2967 = vmul.f32 %v2488, %v2551
    %v2968 = vmul.f32 %v1897, %v2539
    %v2969 = vmul.f32 %v1899, %v2543
    %v2970 = vmul.f32 %v2490, %v2547
    %v2971 = vmul.f32 %v2492, %v2551
    %v2972 = vmul.f32 %v1903, %v2539
    %v2973 = vmul.f32 %v1905, %v2543
    %v2974 = vmul.f32 %v2496, %v2547
    %v2975 = vmul.f32 %v2498, %v2551
    %v2976 = vmul.f32 %v1907, %v2539
    %v2977 = vmul.f32 %v1909, %v2543
    %v2978 = vmul.f32 %v2500, %v2547
    %v2979 = vmul.f32 %v2502, %v2551
    %v2980 = vmul.f32 %v1913, %v2539
    %v2981 = vmul.f32 %v1915, %v2543
    %v2982 = vmul.f32 %v2506, %v2547
    %v2983 = vmul.f32 %v2508, %v2551
    %v2984 = vmul.f32 %v1917, %v2539
    %v2985 = vmul.f32 %v1919, %v2543
    %v2986 = vmul.f32 %v2510, %v2547
    %v2987 = vmul.f32 %v2512, %v2551
    %v2988 = vmul.f32 %v1923, %v2539
    %v2989 = vmul.f32 %v1925, %v2543
    %v2990 = vmul.f32 %v2516, %v2547
    %v2991 = vmul.f32 %v2518, %v2551
    %v2992 = vmul.f32 %v1927, %v2539
    %v2993 = vmul.f32 %v1929, %v2543
    %v2994 = vmul.f32 %v2520, %v2547
    %v2995 = vmul.f32 %v2522, %v2551
    %v2996 = vmul.f32 %v1933, %v2539
    %v2997 = vmul.f32 %v1935, %v2543
    %v2998 = vmul.f32 %v2526, %v2547
    %v2999 = vmul.f32 %v2528, %v2551
    %v3000 = vmul.f32 %v1937, %v2539
    %v3001 = vmul.f32 %v1939, %v2543
    %v3002 = vmul.f32 %v2530, %v2547
    %v3003 = vmul.f32 %v2532, %v2551
    %s3004 = scalar_lea.vmem [#allocation10], 1
    %v3005 = vld [vmem:[%s3004] ss:$2 sm:$0xf]
    %v3007 = vlaneseq
    %v3008 = vshrl.u32 %v3007, 7
    %v3009 = vsub.s32 0, %v3008
    %v3010 = vrot.slane %v3005, %v3009
    %v3011 = vlaneseq
    %v3012 = vshrl.u32 %v3011, 7
    %v3013 = vsub.s32 1, %v3012
    %v3014 = vrot.slane %v3005, %v3013
    %v3015 = vlaneseq
    %v3016 = vshrl.u32 %v3015, 7
    %v3017 = vsub.s32 2, %v3016
    %v3018 = vrot.slane %v3005, %v3017
    %v3019 = vlaneseq
    %v3020 = vshrl.u32 %v3019, 7
    %v3021 = vsub.s32 3, %v3020
    %v3022 = vrot.slane %v3005, %v3021
    %v3027 = vadd.f32 %v2556, %v3010
    %v3028 = vadd.f32 %v2557, %v3014
    %v3029 = vadd.f32 %v2558, %v3018
    %v3030 = vadd.f32 %v2559, %v3022
    %v3031 = vadd.f32 %v2560, %v3010
    %v3032 = vadd.f32 %v2561, %v3014
    %v3033 = vadd.f32 %v2562, %v3018
    %v3034 = vadd.f32 %v2563, %v3022
    %v3035 = vadd.f32 %v2564, %v3010
    %v3036 = vadd.f32 %v2565, %v3014
    %v3037 = vadd.f32 %v2566, %v3018
    %v3038 = vadd.f32 %v2567, %v3022
    %v3039 = vadd.f32 %v2568, %v3010
    %v3040 = vadd.f32 %v2569, %v3014
    %v3041 = vadd.f32 %v2570, %v3018
    %v3042 = vadd.f32 %v2571, %v3022
    %v3043 = vadd.f32 %v2572, %v3010
    %v3044 = vadd.f32 %v2573, %v3014
    %v3045 = vadd.f32 %v2574, %v3018
    %v3046 = vadd.f32 %v2575, %v3022
    %v3047 = vadd.f32 %v2576, %v3010
    %v3048 = vadd.f32 %v2577, %v3014
    %v3049 = vadd.f32 %v2578, %v3018
    %v3050 = vadd.f32 %v2579, %v3022
    %v3051 = vadd.f32 %v2580, %v3010
    %v3052 = vadd.f32 %v2581, %v3014
    %v3053 = vadd.f32 %v2582, %v3018
    %v3054 = vadd.f32 %v2583, %v3022
    %v3055 = vadd.f32 %v2584, %v3010
    %v3056 = vadd.f32 %v2585, %v3014
    %v3057 = vadd.f32 %v2586, %v3018
    %v3058 = vadd.f32 %v2587, %v3022
    %v3059 = vadd.f32 %v2588, %v3010
    %v3060 = vadd.f32 %v2589, %v3014
    %v3061 = vadd.f32 %v2590, %v3018
    %v3062 = vadd.f32 %v2591, %v3022
    %v3063 = vadd.f32 %v2592, %v3010
    %v3064 = vadd.f32 %v2593, %v3014
    %v3065 = vadd.f32 %v2594, %v3018
    %v3066 = vadd.f32 %v2595, %v3022
    %v3067 = vadd.f32 %v2596, %v3010
    %v3068 = vadd.f32 %v2597, %v3014
    %v3069 = vadd.f32 %v2598, %v3018
    %v3070 = vadd.f32 %v2599, %v3022
    %v3071 = vadd.f32 %v2600, %v3010
    %v3072 = vadd.f32 %v2601, %v3014
    %v3073 = vadd.f32 %v2602, %v3018
    %v3074 = vadd.f32 %v2603, %v3022
    %v3075 = vadd.f32 %v2604, %v3010
    %v3076 = vadd.f32 %v2605, %v3014
    %v3077 = vadd.f32 %v2606, %v3018
    %v3078 = vadd.f32 %v2607, %v3022
    %v3079 = vadd.f32 %v2608, %v3010
    %v3080 = vadd.f32 %v2609, %v3014
    %v3081 = vadd.f32 %v2610, %v3018
    %v3082 = vadd.f32 %v2611, %v3022
    %v3083 = vadd.f32 %v2612, %v3010
    %v3084 = vadd.f32 %v2613, %v3014
    %v3085 = vadd.f32 %v2614, %v3018
    %v3086 = vadd.f32 %v2615, %v3022
    %v3087 = vadd.f32 %v2616, %v3010
    %v3088 = vadd.f32 %v2617, %v3014
    %v3089 = vadd.f32 %v2618, %v3018
    %v3090 = vadd.f32 %v2619, %v3022
    %v3091 = vadd.f32 %v2620, %v3010
    %v3092 = vadd.f32 %v2621, %v3014
    %v3093 = vadd.f32 %v2622, %v3018
    %v3094 = vadd.f32 %v2623, %v3022
    %v3095 = vadd.f32 %v2624, %v3010
    %v3096 = vadd.f32 %v2625, %v3014
    %v3097 = vadd.f32 %v2626, %v3018
    %v3098 = vadd.f32 %v2627, %v3022
    %v3099 = vadd.f32 %v2628, %v3010
    %v3100 = vadd.f32 %v2629, %v3014
    %v3101 = vadd.f32 %v2630, %v3018
    %v3102 = vadd.f32 %v2631, %v3022
    %v3103 = vadd.f32 %v2632, %v3010
    %v3104 = vadd.f32 %v2633, %v3014
    %v3105 = vadd.f32 %v2634, %v3018
    %v3106 = vadd.f32 %v2635, %v3022
    %v3107 = vadd.f32 %v2636, %v3010
    %v3108 = vadd.f32 %v2637, %v3014
    %v3109 = vadd.f32 %v2638, %v3018
    %v3110 = vadd.f32 %v2639, %v3022
    %v3111 = vadd.f32 %v2640, %v3010
    %v3112 = vadd.f32 %v2641, %v3014
    %v3113 = vadd.f32 %v2642, %v3018
    %v3114 = vadd.f32 %v2643, %v3022
    %v3115 = vadd.f32 %v2644, %v3010
    %v3116 = vadd.f32 %v2645, %v3014
    %v3117 = vadd.f32 %v2646, %v3018
    %v3118 = vadd.f32 %v2647, %v3022
    %v3119 = vadd.f32 %v2648, %v3010
    %v3120 = vadd.f32 %v2649, %v3014
    %v3121 = vadd.f32 %v2650, %v3018
    %v3122 = vadd.f32 %v2651, %v3022
    %v3123 = vadd.f32 %v2652, %v3010
    %v3124 = vadd.f32 %v2653, %v3014
    %v3125 = vadd.f32 %v2654, %v3018
    %v3126 = vadd.f32 %v2655, %v3022
    %v3127 = vadd.f32 %v2656, %v3010
    %v3128 = vadd.f32 %v2657, %v3014
    %v3129 = vadd.f32 %v2658, %v3018
    %v3130 = vadd.f32 %v2659, %v3022
    %v3131 = vadd.f32 %v2660, %v3010
    %v3132 = vadd.f32 %v2661, %v3014
    %v3133 = vadd.f32 %v2662, %v3018
    %v3134 = vadd.f32 %v2663, %v3022
    %v3135 = vadd.f32 %v2664, %v3010
    %v3136 = vadd.f32 %v2665, %v3014
    %v3137 = vadd.f32 %v2666, %v3018
    %v3138 = vadd.f32 %v2667, %v3022
    %v3139 = vadd.f32 %v2668, %v3010
    %v3140 = vadd.f32 %v2669, %v3014
    %v3141 = vadd.f32 %v2670, %v3018
    %v3142 = vadd.f32 %v2671, %v3022
    %v3143 = vadd.f32 %v2672, %v3010
    %v3144 = vadd.f32 %v2673, %v3014
    %v3145 = vadd.f32 %v2674, %v3018
    %v3146 = vadd.f32 %v2675, %v3022
    %v3147 = vadd.f32 %v2676, %v3010
    %v3148 = vadd.f32 %v2677, %v3014
    %v3149 = vadd.f32 %v2678, %v3018
    %v3150 = vadd.f32 %v2679, %v3022
    %v3151 = vadd.f32 %v2680, %v3010
    %v3152 = vadd.f32 %v2681, %v3014
    %v3153 = vadd.f32 %v2682, %v3018
    %v3154 = vadd.f32 %v2683, %v3022
    %v3155 = vadd.f32 %v2684, %v3010
    %v3156 = vadd.f32 %v2685, %v3014
    %v3157 = vadd.f32 %v2686, %v3018
    %v3158 = vadd.f32 %v2687, %v3022
    %v3159 = vadd.f32 %v2688, %v3010
    %v3160 = vadd.f32 %v2689, %v3014
    %v3161 = vadd.f32 %v2690, %v3018
    %v3162 = vadd.f32 %v2691, %v3022
    %v3163 = vadd.f32 %v2692, %v3010
    %v3164 = vadd.f32 %v2693, %v3014
    %v3165 = vadd.f32 %v2694, %v3018
    %v3166 = vadd.f32 %v2695, %v3022
    %v3167 = vadd.f32 %v2696, %v3010
    %v3168 = vadd.f32 %v2697, %v3014
    %v3169 = vadd.f32 %v2698, %v3018
    %v3170 = vadd.f32 %v2699, %v3022
    %v3171 = vadd.f32 %v2700, %v3010
    %v3172 = vadd.f32 %v2701, %v3014
    %v3173 = vadd.f32 %v2702, %v3018
    %v3174 = vadd.f32 %v2703, %v3022
    %v3175 = vadd.f32 %v2704, %v3010
    %v3176 = vadd.f32 %v2705, %v3014
    %v3177 = vadd.f32 %v2706, %v3018
    %v3178 = vadd.f32 %v2707, %v3022
    %v3179 = vadd.f32 %v2708, %v3010
    %v3180 = vadd.f32 %v2709, %v3014
    %v3181 = vadd.f32 %v2710, %v3018
    %v3182 = vadd.f32 %v2711, %v3022
    %v3183 = vadd.f32 %v2712, %v3010
    %v3184 = vadd.f32 %v2713, %v3014
    %v3185 = vadd.f32 %v2714, %v3018
    %v3186 = vadd.f32 %v2715, %v3022
    %v3187 = vadd.f32 %v2716, %v3010
    %v3188 = vadd.f32 %v2717, %v3014
    %v3189 = vadd.f32 %v2718, %v3018
    %v3190 = vadd.f32 %v2719, %v3022
    %v3191 = vadd.f32 %v2720, %v3010
    %v3192 = vadd.f32 %v2721, %v3014
    %v3193 = vadd.f32 %v2722, %v3018
    %v3194 = vadd.f32 %v2723, %v3022
    %v3195 = vadd.f32 %v2724, %v3010
    %v3196 = vadd.f32 %v2725, %v3014
    %v3197 = vadd.f32 %v2726, %v3018
    %v3198 = vadd.f32 %v2727, %v3022
    %v3199 = vadd.f32 %v2728, %v3010
    %v3200 = vadd.f32 %v2729, %v3014
    %v3201 = vadd.f32 %v2730, %v3018
    %v3202 = vadd.f32 %v2731, %v3022
    %v3203 = vadd.f32 %v2732, %v3010
    %v3204 = vadd.f32 %v2733, %v3014
    %v3205 = vadd.f32 %v2734, %v3018
    %v3206 = vadd.f32 %v2735, %v3022
    %v3207 = vadd.f32 %v2736, %v3010
    %v3208 = vadd.f32 %v2737, %v3014
    %v3209 = vadd.f32 %v2738, %v3018
    %v3210 = vadd.f32 %v2739, %v3022
    %v3211 = vadd.f32 %v2740, %v3010
    %v3212 = vadd.f32 %v2741, %v3014
    %v3213 = vadd.f32 %v2742, %v3018
    %v3214 = vadd.f32 %v2743, %v3022
    %v3215 = vadd.f32 %v2744, %v3010
    %v3216 = vadd.f32 %v2745, %v3014
    %v3217 = vadd.f32 %v2746, %v3018
    %v3218 = vadd.f32 %v2747, %v3022
    %v3219 = vadd.f32 %v2748, %v3010
    %v3220 = vadd.f32 %v2749, %v3014
    %v3221 = vadd.f32 %v2750, %v3018
    %v3222 = vadd.f32 %v2751, %v3022
    %v3223 = vadd.f32 %v2752, %v3010
    %v3224 = vadd.f32 %v2753, %v3014
    %v3225 = vadd.f32 %v2754, %v3018
    %v3226 = vadd.f32 %v2755, %v3022
    %v3227 = vadd.f32 %v2756, %v3010
    %v3228 = vadd.f32 %v2757, %v3014
    %v3229 = vadd.f32 %v2758, %v3018
    %v3230 = vadd.f32 %v2759, %v3022
    %v3231 = vadd.f32 %v2760, %v3010
    %v3232 = vadd.f32 %v2761, %v3014
    %v3233 = vadd.f32 %v2762, %v3018
    %v3234 = vadd.f32 %v2763, %v3022
    %v3235 = vadd.f32 %v2764, %v3010
    %v3236 = vadd.f32 %v2765, %v3014
    %v3237 = vadd.f32 %v2766, %v3018
    %v3238 = vadd.f32 %v2767, %v3022
    %v3239 = vadd.f32 %v2768, %v3010
    %v3240 = vadd.f32 %v2769, %v3014
    %v3241 = vadd.f32 %v2770, %v3018
    %v3242 = vadd.f32 %v2771, %v3022
    %v3243 = vadd.f32 %v2772, %v3010
    %v3244 = vadd.f32 %v2773, %v3014
    %v3245 = vadd.f32 %v2774, %v3018
    %v3246 = vadd.f32 %v2775, %v3022
    %v3247 = vadd.f32 %v2776, %v3010
    %v3248 = vadd.f32 %v2777, %v3014
    %v3249 = vadd.f32 %v2778, %v3018
    %v3250 = vadd.f32 %v2779, %v3022
    %v3251 = vadd.f32 %v2780, %v3010
    %v3252 = vadd.f32 %v2781, %v3014
    %v3253 = vadd.f32 %v2782, %v3018
    %v3254 = vadd.f32 %v2783, %v3022
    %v3255 = vadd.f32 %v2784, %v3010
    %v3256 = vadd.f32 %v2785, %v3014
    %v3257 = vadd.f32 %v2786, %v3018
    %v3258 = vadd.f32 %v2787, %v3022
    %v3259 = vadd.f32 %v2788, %v3010
    %v3260 = vadd.f32 %v2789, %v3014
    %v3261 = vadd.f32 %v2790, %v3018
    %v3262 = vadd.f32 %v2791, %v3022
    %v3263 = vadd.f32 %v2792, %v3010
    %v3264 = vadd.f32 %v2793, %v3014
    %v3265 = vadd.f32 %v2794, %v3018
    %v3266 = vadd.f32 %v2795, %v3022
    %v3267 = vadd.f32 %v2796, %v3010
    %v3268 = vadd.f32 %v2797, %v3014
    %v3269 = vadd.f32 %v2798, %v3018
    %v3270 = vadd.f32 %v2799, %v3022
    %v3271 = vadd.f32 %v2800, %v3010
    %v3272 = vadd.f32 %v2801, %v3014
    %v3273 = vadd.f32 %v2802, %v3018
    %v3274 = vadd.f32 %v2803, %v3022
    %v3275 = vadd.f32 %v2804, %v3010
    %v3276 = vadd.f32 %v2805, %v3014
    %v3277 = vadd.f32 %v2806, %v3018
    %v3278 = vadd.f32 %v2807, %v3022
    %v3279 = vadd.f32 %v2808, %v3010
    %v3280 = vadd.f32 %v2809, %v3014
    %v3281 = vadd.f32 %v2810, %v3018
    %v3282 = vadd.f32 %v2811, %v3022
    %v3283 = vadd.f32 %v2812, %v3010
    %v3284 = vadd.f32 %v2813, %v3014
    %v3285 = vadd.f32 %v2814, %v3018
    %v3286 = vadd.f32 %v2815, %v3022
    %v3287 = vadd.f32 %v2816, %v3010
    %v3288 = vadd.f32 %v2817, %v3014
    %v3289 = vadd.f32 %v2818, %v3018
    %v3290 = vadd.f32 %v2819, %v3022
    %v3291 = vadd.f32 %v2820, %v3010
    %v3292 = vadd.f32 %v2821, %v3014
    %v3293 = vadd.f32 %v2822, %v3018
    %v3294 = vadd.f32 %v2823, %v3022
    %v3295 = vadd.f32 %v2824, %v3010
    %v3296 = vadd.f32 %v2825, %v3014
    %v3297 = vadd.f32 %v2826, %v3018
    %v3298 = vadd.f32 %v2827, %v3022
    %v3299 = vadd.f32 %v2828, %v3010
    %v3300 = vadd.f32 %v2829, %v3014
    %v3301 = vadd.f32 %v2830, %v3018
    %v3302 = vadd.f32 %v2831, %v3022
    %v3303 = vadd.f32 %v2832, %v3010
    %v3304 = vadd.f32 %v2833, %v3014
    %v3305 = vadd.f32 %v2834, %v3018
    %v3306 = vadd.f32 %v2835, %v3022
    %v3307 = vadd.f32 %v2836, %v3010
    %v3308 = vadd.f32 %v2837, %v3014
    %v3309 = vadd.f32 %v2838, %v3018
    %v3310 = vadd.f32 %v2839, %v3022
    %v3311 = vadd.f32 %v2840, %v3010
    %v3312 = vadd.f32 %v2841, %v3014
    %v3313 = vadd.f32 %v2842, %v3018
    %v3314 = vadd.f32 %v2843, %v3022
    %v3315 = vadd.f32 %v2844, %v3010
    %v3316 = vadd.f32 %v2845, %v3014
    %v3317 = vadd.f32 %v2846, %v3018
    %v3318 = vadd.f32 %v2847, %v3022
    %v3319 = vadd.f32 %v2848, %v3010
    %v3320 = vadd.f32 %v2849, %v3014
    %v3321 = vadd.f32 %v2850, %v3018
    %v3322 = vadd.f32 %v2851, %v3022
    %v3323 = vadd.f32 %v2852, %v3010
    %v3324 = vadd.f32 %v2853, %v3014
    %v3325 = vadd.f32 %v2854, %v3018
    %v3326 = vadd.f32 %v2855, %v3022
    %v3327 = vadd.f32 %v2856, %v3010
    %v3328 = vadd.f32 %v2857, %v3014
    %v3329 = vadd.f32 %v2858, %v3018
    %v3330 = vadd.f32 %v2859, %v3022
    %v3331 = vadd.f32 %v2860, %v3010
    %v3332 = vadd.f32 %v2861, %v3014
    %v3333 = vadd.f32 %v2862, %v3018
    %v3334 = vadd.f32 %v2863, %v3022
    %v3335 = vadd.f32 %v2864, %v3010
    %v3336 = vadd.f32 %v2865, %v3014
    %v3337 = vadd.f32 %v2866, %v3018
    %v3338 = vadd.f32 %v2867, %v3022
    %v3339 = vadd.f32 %v2868, %v3010
    %v3340 = vadd.f32 %v2869, %v3014
    %v3341 = vadd.f32 %v2870, %v3018
    %v3342 = vadd.f32 %v2871, %v3022
    %v3343 = vadd.f32 %v2872, %v3010
    %v3344 = vadd.f32 %v2873, %v3014
    %v3345 = vadd.f32 %v2874, %v3018
    %v3346 = vadd.f32 %v2875, %v3022
    %v3347 = vadd.f32 %v2876, %v3010
    %v3348 = vadd.f32 %v2877, %v3014
    %v3349 = vadd.f32 %v2878, %v3018
    %v3350 = vadd.f32 %v2879, %v3022
    %v3351 = vadd.f32 %v2880, %v3010
    %v3352 = vadd.f32 %v2881, %v3014
    %v3353 = vadd.f32 %v2882, %v3018
    %v3354 = vadd.f32 %v2883, %v3022
    %v3355 = vadd.f32 %v2884, %v3010
    %v3356 = vadd.f32 %v2885, %v3014
    %v3357 = vadd.f32 %v2886, %v3018
    %v3358 = vadd.f32 %v2887, %v3022
    %v3359 = vadd.f32 %v2888, %v3010
    %v3360 = vadd.f32 %v2889, %v3014
    %v3361 = vadd.f32 %v2890, %v3018
    %v3362 = vadd.f32 %v2891, %v3022
    %v3363 = vadd.f32 %v2892, %v3010
    %v3364 = vadd.f32 %v2893, %v3014
    %v3365 = vadd.f32 %v2894, %v3018
    %v3366 = vadd.f32 %v2895, %v3022
    %v3367 = vadd.f32 %v2896, %v3010
    %v3368 = vadd.f32 %v2897, %v3014
    %v3369 = vadd.f32 %v2898, %v3018
    %v3370 = vadd.f32 %v2899, %v3022
    %v3371 = vadd.f32 %v2900, %v3010
    %v3372 = vadd.f32 %v2901, %v3014
    %v3373 = vadd.f32 %v2902, %v3018
    %v3374 = vadd.f32 %v2903, %v3022
    %v3375 = vadd.f32 %v2904, %v3010
    %v3376 = vadd.f32 %v2905, %v3014
    %v3377 = vadd.f32 %v2906, %v3018
    %v3378 = vadd.f32 %v2907, %v3022
    %v3379 = vadd.f32 %v2908, %v3010
    %v3380 = vadd.f32 %v2909, %v3014
    %v3381 = vadd.f32 %v2910, %v3018
    %v3382 = vadd.f32 %v2911, %v3022
    %v3383 = vadd.f32 %v2912, %v3010
    %v3384 = vadd.f32 %v2913, %v3014
    %v3385 = vadd.f32 %v2914, %v3018
    %v3386 = vadd.f32 %v2915, %v3022
    %v3387 = vadd.f32 %v2916, %v3010
    %v3388 = vadd.f32 %v2917, %v3014
    %v3389 = vadd.f32 %v2918, %v3018
    %v3390 = vadd.f32 %v2919, %v3022
    %v3391 = vadd.f32 %v2920, %v3010
    %v3392 = vadd.f32 %v2921, %v3014
    %v3393 = vadd.f32 %v2922, %v3018
    %v3394 = vadd.f32 %v2923, %v3022
    %v3395 = vadd.f32 %v2924, %v3010
    %v3396 = vadd.f32 %v2925, %v3014
    %v3397 = vadd.f32 %v2926, %v3018
    %v3398 = vadd.f32 %v2927, %v3022
    %v3399 = vadd.f32 %v2928, %v3010
    %v3400 = vadd.f32 %v2929, %v3014
    %v3401 = vadd.f32 %v2930, %v3018
    %v3402 = vadd.f32 %v2931, %v3022
    %v3403 = vadd.f32 %v2932, %v3010
    %v3404 = vadd.f32 %v2933, %v3014
    %v3405 = vadd.f32 %v2934, %v3018
    %v3406 = vadd.f32 %v2935, %v3022
    %v3407 = vadd.f32 %v2936, %v3010
    %v3408 = vadd.f32 %v2937, %v3014
    %v3409 = vadd.f32 %v2938, %v3018
    %v3410 = vadd.f32 %v2939, %v3022
    %v3411 = vadd.f32 %v2940, %v3010
    %v3412 = vadd.f32 %v2941, %v3014
    %v3413 = vadd.f32 %v2942, %v3018
    %v3414 = vadd.f32 %v2943, %v3022
    %v3415 = vadd.f32 %v2944, %v3010
    %v3416 = vadd.f32 %v2945, %v3014
    %v3417 = vadd.f32 %v2946, %v3018
    %v3418 = vadd.f32 %v2947, %v3022
    %v3419 = vadd.f32 %v2948, %v3010
    %v3420 = vadd.f32 %v2949, %v3014
    %v3421 = vadd.f32 %v2950, %v3018
    %v3422 = vadd.f32 %v2951, %v3022
    %v3423 = vadd.f32 %v2952, %v3010
    %v3424 = vadd.f32 %v2953, %v3014
    %v3425 = vadd.f32 %v2954, %v3018
    %v3426 = vadd.f32 %v2955, %v3022
    %v3427 = vadd.f32 %v2956, %v3010
    %v3428 = vadd.f32 %v2957, %v3014
    %v3429 = vadd.f32 %v2958, %v3018
    %v3430 = vadd.f32 %v2959, %v3022
    %v3431 = vadd.f32 %v2960, %v3010
    %v3432 = vadd.f32 %v2961, %v3014
    %v3433 = vadd.f32 %v2962, %v3018
    %v3434 = vadd.f32 %v2963, %v3022
    %v3435 = vadd.f32 %v2964, %v3010
    %v3436 = vadd.f32 %v2965, %v3014
    %v3437 = vadd.f32 %v2966, %v3018
    %v3438 = vadd.f32 %v2967, %v3022
    %v3439 = vadd.f32 %v2968, %v3010
    %v3440 = vadd.f32 %v2969, %v3014
    %v3441 = vadd.f32 %v2970, %v3018
    %v3442 = vadd.f32 %v2971, %v3022
    %v3443 = vadd.f32 %v2972, %v3010
    %v3444 = vadd.f32 %v2973, %v3014
    %v3445 = vadd.f32 %v2974, %v3018
    %v3446 = vadd.f32 %v2975, %v3022
    %v3447 = vadd.f32 %v2976, %v3010
    %v3448 = vadd.f32 %v2977, %v3014
    %v3449 = vadd.f32 %v2978, %v3018
    %v3450 = vadd.f32 %v2979, %v3022
    %v3451 = vadd.f32 %v2980, %v3010
    %v3452 = vadd.f32 %v2981, %v3014
    %v3453 = vadd.f32 %v2982, %v3018
    %v3454 = vadd.f32 %v2983, %v3022
    %v3455 = vadd.f32 %v2984, %v3010
    %v3456 = vadd.f32 %v2985, %v3014
    %v3457 = vadd.f32 %v2986, %v3018
    %v3458 = vadd.f32 %v2987, %v3022
    %v3459 = vadd.f32 %v2988, %v3010
    %v3460 = vadd.f32 %v2989, %v3014
    %v3461 = vadd.f32 %v2990, %v3018
    %v3462 = vadd.f32 %v2991, %v3022
    %v3463 = vadd.f32 %v2992, %v3010
    %v3464 = vadd.f32 %v2993, %v3014
    %v3465 = vadd.f32 %v2994, %v3018
    %v3466 = vadd.f32 %v2995, %v3022
    %v3467 = vadd.f32 %v2996, %v3010
    %v3468 = vadd.f32 %v2997, %v3014
    %v3469 = vadd.f32 %v2998, %v3018
    %v3470 = vadd.f32 %v2999, %v3022
    %v3471 = vadd.f32 %v3000, %v3010
    %v3472 = vadd.f32 %v3001, %v3014
    %v3473 = vadd.f32 %v3002, %v3018
    %v3474 = vadd.f32 %v3003, %v3022
    %v3475 = vmax.f32 %v3027, 0.0
    %v3476 = vmax.f32 %v3028, 0.0
    %v3477 = vmax.f32 %v3029, 0.0
    %v3478 = vmax.f32 %v3030, 0.0
    %v3479 = vmax.f32 %v3031, 0.0
    %v3480 = vmax.f32 %v3032, 0.0
    %v3481 = vmax.f32 %v3033, 0.0
    %v3482 = vmax.f32 %v3034, 0.0
    %v3483 = vmax.f32 %v3035, 0.0
    %v3484 = vmax.f32 %v3036, 0.0
    %v3485 = vmax.f32 %v3037, 0.0
    %v3486 = vmax.f32 %v3038, 0.0
    %v3487 = vmax.f32 %v3039, 0.0
    %v3488 = vmax.f32 %v3040, 0.0
    %v3489 = vmax.f32 %v3041, 0.0
    %v3490 = vmax.f32 %v3042, 0.0
    %v3491 = vmax.f32 %v3043, 0.0
    %v3492 = vmax.f32 %v3044, 0.0
    %v3493 = vmax.f32 %v3045, 0.0
    %v3494 = vmax.f32 %v3046, 0.0
    %v3495 = vmax.f32 %v3047, 0.0
    %v3496 = vmax.f32 %v3048, 0.0
    %v3497 = vmax.f32 %v3049, 0.0
    %v3498 = vmax.f32 %v3050, 0.0
    %v3499 = vmax.f32 %v3051, 0.0
    %v3500 = vmax.f32 %v3052, 0.0
    %v3501 = vmax.f32 %v3053, 0.0
    %v3502 = vmax.f32 %v3054, 0.0
    %v3503 = vmax.f32 %v3055, 0.0
    %v3504 = vmax.f32 %v3056, 0.0
    %v3505 = vmax.f32 %v3057, 0.0
    %v3506 = vmax.f32 %v3058, 0.0
    %v3507 = vmax.f32 %v3059, 0.0
    %v3508 = vmax.f32 %v3060, 0.0
    %v3509 = vmax.f32 %v3061, 0.0
    %v3510 = vmax.f32 %v3062, 0.0
    %v3511 = vmax.f32 %v3063, 0.0
    %v3512 = vmax.f32 %v3064, 0.0
    %v3513 = vmax.f32 %v3065, 0.0
    %v3514 = vmax.f32 %v3066, 0.0
    %v3515 = vmax.f32 %v3067, 0.0
    %v3516 = vmax.f32 %v3068, 0.0
    %v3517 = vmax.f32 %v3069, 0.0
    %v3518 = vmax.f32 %v3070, 0.0
    %v3519 = vmax.f32 %v3071, 0.0
    %v3520 = vmax.f32 %v3072, 0.0
    %v3521 = vmax.f32 %v3073, 0.0
    %v3522 = vmax.f32 %v3074, 0.0
    %v3523 = vmax.f32 %v3075, 0.0
    %v3524 = vmax.f32 %v3076, 0.0
    %v3525 = vmax.f32 %v3077, 0.0
    %v3526 = vmax.f32 %v3078, 0.0
    %v3527 = vmax.f32 %v3079, 0.0
    %v3528 = vmax.f32 %v3080, 0.0
    %v3529 = vmax.f32 %v3081, 0.0
    %v3530 = vmax.f32 %v3082, 0.0
    %v3531 = vmax.f32 %v3083, 0.0
    %v3532 = vmax.f32 %v3084, 0.0
    %v3533 = vmax.f32 %v3085, 0.0
    %v3534 = vmax.f32 %v3086, 0.0
    %v3535 = vmax.f32 %v3087, 0.0
    %v3536 = vmax.f32 %v3088, 0.0
    %v3537 = vmax.f32 %v3089, 0.0
    %v3538 = vmax.f32 %v3090, 0.0
    %v3539 = vmax.f32 %v3091, 0.0
    %v3540 = vmax.f32 %v3092, 0.0
    %v3541 = vmax.f32 %v3093, 0.0
    %v3542 = vmax.f32 %v3094, 0.0
    %v3543 = vmax.f32 %v3095, 0.0
    %v3544 = vmax.f32 %v3096, 0.0
    %v3545 = vmax.f32 %v3097, 0.0
    %v3546 = vmax.f32 %v3098, 0.0
    %v3547 = vmax.f32 %v3099, 0.0
    %v3548 = vmax.f32 %v3100, 0.0
    %v3549 = vmax.f32 %v3101, 0.0
    %v3550 = vmax.f32 %v3102, 0.0
    %v3551 = vmax.f32 %v3103, 0.0
    %v3552 = vmax.f32 %v3104, 0.0
    %v3553 = vmax.f32 %v3105, 0.0
    %v3554 = vmax.f32 %v3106, 0.0
    %v3555 = vmax.f32 %v3107, 0.0
    %v3556 = vmax.f32 %v3108, 0.0
    %v3557 = vmax.f32 %v3109, 0.0
    %v3558 = vmax.f32 %v3110, 0.0
    %v3559 = vmax.f32 %v3111, 0.0
    %v3560 = vmax.f32 %v3112, 0.0
    %v3561 = vmax.f32 %v3113, 0.0
    %v3562 = vmax.f32 %v3114, 0.0
    %v3563 = vmax.f32 %v3115, 0.0
    %v3564 = vmax.f32 %v3116, 0.0
    %v3565 = vmax.f32 %v3117, 0.0
    %v3566 = vmax.f32 %v3118, 0.0
    %v3567 = vmax.f32 %v3119, 0.0
    %v3568 = vmax.f32 %v3120, 0.0
    %v3569 = vmax.f32 %v3121, 0.0
    %v3570 = vmax.f32 %v3122, 0.0
    %v3571 = vmax.f32 %v3123, 0.0
    %v3572 = vmax.f32 %v3124, 0.0
    %v3573 = vmax.f32 %v3125, 0.0
    %v3574 = vmax.f32 %v3126, 0.0
    %v3575 = vmax.f32 %v3127, 0.0
    %v3576 = vmax.f32 %v3128, 0.0
    %v3577 = vmax.f32 %v3129, 0.0
    %v3578 = vmax.f32 %v3130, 0.0
    %v3579 = vmax.f32 %v3131, 0.0
    %v3580 = vmax.f32 %v3132, 0.0
    %v3581 = vmax.f32 %v3133, 0.0
    %v3582 = vmax.f32 %v3134, 0.0
    %v3583 = vmax.f32 %v3135, 0.0
    %v3584 = vmax.f32 %v3136, 0.0
    %v3585 = vmax.f32 %v3137, 0.0
    %v3586 = vmax.f32 %v3138, 0.0
    %v3587 = vmax.f32 %v3139, 0.0
    %v3588 = vmax.f32 %v3140, 0.0
    %v3589 = vmax.f32 %v3141, 0.0
    %v3590 = vmax.f32 %v3142, 0.0
    %v3591 = vmax.f32 %v3143, 0.0
    %v3592 = vmax.f32 %v3144, 0.0
    %v3593 = vmax.f32 %v3145, 0.0
    %v3594 = vmax.f32 %v3146, 0.0
    %v3595 = vmax.f32 %v3147, 0.0
    %v3596 = vmax.f32 %v3148, 0.0
    %v3597 = vmax.f32 %v3149, 0.0
    %v3598 = vmax.f32 %v3150, 0.0
    %v3599 = vmax.f32 %v3151, 0.0
    %v3600 = vmax.f32 %v3152, 0.0
    %v3601 = vmax.f32 %v3153, 0.0
    %v3602 = vmax.f32 %v3154, 0.0
    %v3603 = vmax.f32 %v3155, 0.0
    %v3604 = vmax.f32 %v3156, 0.0
    %v3605 = vmax.f32 %v3157, 0.0
    %v3606 = vmax.f32 %v3158, 0.0
    %v3607 = vmax.f32 %v3159, 0.0
    %v3608 = vmax.f32 %v3160, 0.0
    %v3609 = vmax.f32 %v3161, 0.0
    %v3610 = vmax.f32 %v3162, 0.0
    %v3611 = vmax.f32 %v3163, 0.0
    %v3612 = vmax.f32 %v3164, 0.0
    %v3613 = vmax.f32 %v3165, 0.0
    %v3614 = vmax.f32 %v3166, 0.0
    %v3615 = vmax.f32 %v3167, 0.0
    %v3616 = vmax.f32 %v3168, 0.0
    %v3617 = vmax.f32 %v3169, 0.0
    %v3618 = vmax.f32 %v3170, 0.0
    %v3619 = vmax.f32 %v3171, 0.0
    %v3620 = vmax.f32 %v3172, 0.0
    %v3621 = vmax.f32 %v3173, 0.0
    %v3622 = vmax.f32 %v3174, 0.0
    %v3623 = vmax.f32 %v3175, 0.0
    %v3624 = vmax.f32 %v3176, 0.0
    %v3625 = vmax.f32 %v3177, 0.0
    %v3626 = vmax.f32 %v3178, 0.0
    %v3627 = vmax.f32 %v3179, 0.0
    %v3628 = vmax.f32 %v3180, 0.0
    %v3629 = vmax.f32 %v3181, 0.0
    %v3630 = vmax.f32 %v3182, 0.0
    %v3631 = vmax.f32 %v3183, 0.0
    %v3632 = vmax.f32 %v3184, 0.0
    %v3633 = vmax.f32 %v3185, 0.0
    %v3634 = vmax.f32 %v3186, 0.0
    %v3635 = vmax.f32 %v3187, 0.0
    %v3636 = vmax.f32 %v3188, 0.0
    %v3637 = vmax.f32 %v3189, 0.0
    %v3638 = vmax.f32 %v3190, 0.0
    %v3639 = vmax.f32 %v3191, 0.0
    %v3640 = vmax.f32 %v3192, 0.0
    %v3641 = vmax.f32 %v3193, 0.0
    %v3642 = vmax.f32 %v3194, 0.0
    %v3643 = vmax.f32 %v3195, 0.0
    %v3644 = vmax.f32 %v3196, 0.0
    %v3645 = vmax.f32 %v3197, 0.0
    %v3646 = vmax.f32 %v3198, 0.0
    %v3647 = vmax.f32 %v3199, 0.0
    %v3648 = vmax.f32 %v3200, 0.0
    %v3649 = vmax.f32 %v3201, 0.0
    %v3650 = vmax.f32 %v3202, 0.0
    %v3651 = vmax.f32 %v3203, 0.0
    %v3652 = vmax.f32 %v3204, 0.0
    %v3653 = vmax.f32 %v3205, 0.0
    %v3654 = vmax.f32 %v3206, 0.0
    %v3655 = vmax.f32 %v3207, 0.0
    %v3656 = vmax.f32 %v3208, 0.0
    %v3657 = vmax.f32 %v3209, 0.0
    %v3658 = vmax.f32 %v3210, 0.0
    %v3659 = vmax.f32 %v3211, 0.0
    %v3660 = vmax.f32 %v3212, 0.0
    %v3661 = vmax.f32 %v3213, 0.0
    %v3662 = vmax.f32 %v3214, 0.0
    %v3663 = vmax.f32 %v3215, 0.0
    %v3664 = vmax.f32 %v3216, 0.0
    %v3665 = vmax.f32 %v3217, 0.0
    %v3666 = vmax.f32 %v3218, 0.0
    %v3667 = vmax.f32 %v3219, 0.0
    %v3668 = vmax.f32 %v3220, 0.0
    %v3669 = vmax.f32 %v3221, 0.0
    %v3670 = vmax.f32 %v3222, 0.0
    %v3671 = vmax.f32 %v3223, 0.0
    %v3672 = vmax.f32 %v3224, 0.0
    %v3673 = vmax.f32 %v3225, 0.0
    %v3674 = vmax.f32 %v3226, 0.0
    %v3675 = vmax.f32 %v3227, 0.0
    %v3676 = vmax.f32 %v3228, 0.0
    %v3677 = vmax.f32 %v3229, 0.0
    %v3678 = vmax.f32 %v3230, 0.0
    %v3679 = vmax.f32 %v3231, 0.0
    %v3680 = vmax.f32 %v3232, 0.0
    %v3681 = vmax.f32 %v3233, 0.0
    %v3682 = vmax.f32 %v3234, 0.0
    %v3683 = vmax.f32 %v3235, 0.0
    %v3684 = vmax.f32 %v3236, 0.0
    %v3685 = vmax.f32 %v3237, 0.0
    %v3686 = vmax.f32 %v3238, 0.0
    %v3687 = vmax.f32 %v3239, 0.0
    %v3688 = vmax.f32 %v3240, 0.0
    %v3689 = vmax.f32 %v3241, 0.0
    %v3690 = vmax.f32 %v3242, 0.0
    %v3691 = vmax.f32 %v3243, 0.0
    %v3692 = vmax.f32 %v3244, 0.0
    %v3693 = vmax.f32 %v3245, 0.0
    %v3694 = vmax.f32 %v3246, 0.0
    %v3695 = vmax.f32 %v3247, 0.0
    %v3696 = vmax.f32 %v3248, 0.0
    %v3697 = vmax.f32 %v3249, 0.0
    %v3698 = vmax.f32 %v3250, 0.0
    %v3699 = vmax.f32 %v3251, 0.0
    %v3700 = vmax.f32 %v3252, 0.0
    %v3701 = vmax.f32 %v3253, 0.0
    %v3702 = vmax.f32 %v3254, 0.0
    %v3703 = vmax.f32 %v3255, 0.0
    %v3704 = vmax.f32 %v3256, 0.0
    %v3705 = vmax.f32 %v3257, 0.0
    %v3706 = vmax.f32 %v3258, 0.0
    %v3707 = vmax.f32 %v3259, 0.0
    %v3708 = vmax.f32 %v3260, 0.0
    %v3709 = vmax.f32 %v3261, 0.0
    %v3710 = vmax.f32 %v3262, 0.0
    %v3711 = vmax.f32 %v3263, 0.0
    %v3712 = vmax.f32 %v3264, 0.0
    %v3713 = vmax.f32 %v3265, 0.0
    %v3714 = vmax.f32 %v3266, 0.0
    %v3715 = vmax.f32 %v3267, 0.0
    %v3716 = vmax.f32 %v3268, 0.0
    %v3717 = vmax.f32 %v3269, 0.0
    %v3718 = vmax.f32 %v3270, 0.0
    %v3719 = vmax.f32 %v3271, 0.0
    %v3720 = vmax.f32 %v3272, 0.0
    %v3721 = vmax.f32 %v3273, 0.0
    %v3722 = vmax.f32 %v3274, 0.0
    %v3723 = vmax.f32 %v3275, 0.0
    %v3724 = vmax.f32 %v3276, 0.0
    %v3725 = vmax.f32 %v3277, 0.0
    %v3726 = vmax.f32 %v3278, 0.0
    %v3727 = vmax.f32 %v3279, 0.0
    %v3728 = vmax.f32 %v3280, 0.0
    %v3729 = vmax.f32 %v3281, 0.0
    %v3730 = vmax.f32 %v3282, 0.0
    %v3731 = vmax.f32 %v3283, 0.0
    %v3732 = vmax.f32 %v3284, 0.0
    %v3733 = vmax.f32 %v3285, 0.0
    %v3734 = vmax.f32 %v3286, 0.0
    %v3735 = vmax.f32 %v3287, 0.0
    %v3736 = vmax.f32 %v3288, 0.0
    %v3737 = vmax.f32 %v3289, 0.0
    %v3738 = vmax.f32 %v3290, 0.0
    %v3739 = vmax.f32 %v3291, 0.0
    %v3740 = vmax.f32 %v3292, 0.0
    %v3741 = vmax.f32 %v3293, 0.0
    %v3742 = vmax.f32 %v3294, 0.0
    %v3743 = vmax.f32 %v3295, 0.0
    %v3744 = vmax.f32 %v3296, 0.0
    %v3745 = vmax.f32 %v3297, 0.0
    %v3746 = vmax.f32 %v3298, 0.0
    %v3747 = vmax.f32 %v3299, 0.0
    %v3748 = vmax.f32 %v3300, 0.0
    %v3749 = vmax.f32 %v3301, 0.0
    %v3750 = vmax.f32 %v3302, 0.0
    %v3751 = vmax.f32 %v3303, 0.0
    %v3752 = vmax.f32 %v3304, 0.0
    %v3753 = vmax.f32 %v3305, 0.0
    %v3754 = vmax.f32 %v3306, 0.0
    %v3755 = vmax.f32 %v3307, 0.0
    %v3756 = vmax.f32 %v3308, 0.0
    %v3757 = vmax.f32 %v3309, 0.0
    %v3758 = vmax.f32 %v3310, 0.0
    %v3759 = vmax.f32 %v3311, 0.0
    %v3760 = vmax.f32 %v3312, 0.0
    %v3761 = vmax.f32 %v3313, 0.0
    %v3762 = vmax.f32 %v3314, 0.0
    %v3763 = vmax.f32 %v3315, 0.0
    %v3764 = vmax.f32 %v3316, 0.0
    %v3765 = vmax.f32 %v3317, 0.0
    %v3766 = vmax.f32 %v3318, 0.0
    %v3767 = vmax.f32 %v3319, 0.0
    %v3768 = vmax.f32 %v3320, 0.0
    %v3769 = vmax.f32 %v3321, 0.0
    %v3770 = vmax.f32 %v3322, 0.0
    %v3771 = vmax.f32 %v3323, 0.0
    %v3772 = vmax.f32 %v3324, 0.0
    %v3773 = vmax.f32 %v3325, 0.0
    %v3774 = vmax.f32 %v3326, 0.0
    %v3775 = vmax.f32 %v3327, 0.0
    %v3776 = vmax.f32 %v3328, 0.0
    %v3777 = vmax.f32 %v3329, 0.0
    %v3778 = vmax.f32 %v3330, 0.0
    %v3779 = vmax.f32 %v3331, 0.0
    %v3780 = vmax.f32 %v3332, 0.0
    %v3781 = vmax.f32 %v3333, 0.0
    %v3782 = vmax.f32 %v3334, 0.0
    %v3783 = vmax.f32 %v3335, 0.0
    %v3784 = vmax.f32 %v3336, 0.0
    %v3785 = vmax.f32 %v3337, 0.0
    %v3786 = vmax.f32 %v3338, 0.0
    %v3787 = vmax.f32 %v3339, 0.0
    %v3788 = vmax.f32 %v3340, 0.0
    %v3789 = vmax.f32 %v3341, 0.0
    %v3790 = vmax.f32 %v3342, 0.0
    %v3791 = vmax.f32 %v3343, 0.0
    %v3792 = vmax.f32 %v3344, 0.0
    %v3793 = vmax.f32 %v3345, 0.0
    %v3794 = vmax.f32 %v3346, 0.0
    %v3795 = vmax.f32 %v3347, 0.0
    %v3796 = vmax.f32 %v3348, 0.0
    %v3797 = vmax.f32 %v3349, 0.0
    %v3798 = vmax.f32 %v3350, 0.0
    %v3799 = vmax.f32 %v3351, 0.0
    %v3800 = vmax.f32 %v3352, 0.0
    %v3801 = vmax.f32 %v3353, 0.0
    %v3802 = vmax.f32 %v3354, 0.0
    %v3803 = vmax.f32 %v3355, 0.0
    %v3804 = vmax.f32 %v3356, 0.0
    %v3805 = vmax.f32 %v3357, 0.0
    %v3806 = vmax.f32 %v3358, 0.0
    %v3807 = vmax.f32 %v3359, 0.0
    %v3808 = vmax.f32 %v3360, 0.0
    %v3809 = vmax.f32 %v3361, 0.0
    %v3810 = vmax.f32 %v3362, 0.0
    %v3811 = vmax.f32 %v3363, 0.0
    %v3812 = vmax.f32 %v3364, 0.0
    %v3813 = vmax.f32 %v3365, 0.0
    %v3814 = vmax.f32 %v3366, 0.0
    %v3815 = vmax.f32 %v3367, 0.0
    %v3816 = vmax.f32 %v3368, 0.0
    %v3817 = vmax.f32 %v3369, 0.0
    %v3818 = vmax.f32 %v3370, 0.0
    %v3819 = vmax.f32 %v3371, 0.0
    %v3820 = vmax.f32 %v3372, 0.0
    %v3821 = vmax.f32 %v3373, 0.0
    %v3822 = vmax.f32 %v3374, 0.0
    %v3823 = vmax.f32 %v3375, 0.0
    %v3824 = vmax.f32 %v3376, 0.0
    %v3825 = vmax.f32 %v3377, 0.0
    %v3826 = vmax.f32 %v3378, 0.0
    %v3827 = vmax.f32 %v3379, 0.0
    %v3828 = vmax.f32 %v3380, 0.0
    %v3829 = vmax.f32 %v3381, 0.0
    %v3830 = vmax.f32 %v3382, 0.0
    %v3831 = vmax.f32 %v3383, 0.0
    %v3832 = vmax.f32 %v3384, 0.0
    %v3833 = vmax.f32 %v3385, 0.0
    %v3834 = vmax.f32 %v3386, 0.0
    %v3835 = vmax.f32 %v3387, 0.0
    %v3836 = vmax.f32 %v3388, 0.0
    %v3837 = vmax.f32 %v3389, 0.0
    %v3838 = vmax.f32 %v3390, 0.0
    %v3839 = vmax.f32 %v3391, 0.0
    %v3840 = vmax.f32 %v3392, 0.0
    %v3841 = vmax.f32 %v3393, 0.0
    %v3842 = vmax.f32 %v3394, 0.0
    %v3843 = vmax.f32 %v3395, 0.0
    %v3844 = vmax.f32 %v3396, 0.0
    %v3845 = vmax.f32 %v3397, 0.0
    %v3846 = vmax.f32 %v3398, 0.0
    %v3847 = vmax.f32 %v3399, 0.0
    %v3848 = vmax.f32 %v3400, 0.0
    %v3849 = vmax.f32 %v3401, 0.0
    %v3850 = vmax.f32 %v3402, 0.0
    %v3851 = vmax.f32 %v3403, 0.0
    %v3852 = vmax.f32 %v3404, 0.0
    %v3853 = vmax.f32 %v3405, 0.0
    %v3854 = vmax.f32 %v3406, 0.0
    %v3855 = vmax.f32 %v3407, 0.0
    %v3856 = vmax.f32 %v3408, 0.0
    %v3857 = vmax.f32 %v3409, 0.0
    %v3858 = vmax.f32 %v3410, 0.0
    %v3859 = vmax.f32 %v3411, 0.0
    %v3860 = vmax.f32 %v3412, 0.0
    %v3861 = vmax.f32 %v3413, 0.0
    %v3862 = vmax.f32 %v3414, 0.0
    %v3863 = vmax.f32 %v3415, 0.0
    %v3864 = vmax.f32 %v3416, 0.0
    %v3865 = vmax.f32 %v3417, 0.0
    %v3866 = vmax.f32 %v3418, 0.0
    %v3867 = vmax.f32 %v3419, 0.0
    %v3868 = vmax.f32 %v3420, 0.0
    %v3869 = vmax.f32 %v3421, 0.0
    %v3870 = vmax.f32 %v3422, 0.0
    %v3871 = vmax.f32 %v3423, 0.0
    %v3872 = vmax.f32 %v3424, 0.0
    %v3873 = vmax.f32 %v3425, 0.0
    %v3874 = vmax.f32 %v3426, 0.0
    %v3875 = vmax.f32 %v3427, 0.0
    %v3876 = vmax.f32 %v3428, 0.0
    %v3877 = vmax.f32 %v3429, 0.0
    %v3878 = vmax.f32 %v3430, 0.0
    %v3879 = vmax.f32 %v3431, 0.0
    %v3880 = vmax.f32 %v3432, 0.0
    %v3881 = vmax.f32 %v3433, 0.0
    %v3882 = vmax.f32 %v3434, 0.0
    %v3883 = vmax.f32 %v3435, 0.0
    %v3884 = vmax.f32 %v3436, 0.0
    %v3885 = vmax.f32 %v3437, 0.0
    %v3886 = vmax.f32 %v3438, 0.0
    %v3887 = vmax.f32 %v3439, 0.0
    %v3888 = vmax.f32 %v3440, 0.0
    %v3889 = vmax.f32 %v3441, 0.0
    %v3890 = vmax.f32 %v3442, 0.0
    %v3891 = vmax.f32 %v3443, 0.0
    %v3892 = vmax.f32 %v3444, 0.0
    %v3893 = vmax.f32 %v3445, 0.0
    %v3894 = vmax.f32 %v3446, 0.0
    %v3895 = vmax.f32 %v3447, 0.0
    %v3896 = vmax.f32 %v3448, 0.0
    %v3897 = vmax.f32 %v3449, 0.0
    %v3898 = vmax.f32 %v3450, 0.0
    %v3899 = vmax.f32 %v3451, 0.0
    %v3900 = vmax.f32 %v3452, 0.0
    %v3901 = vmax.f32 %v3453, 0.0
    %v3902 = vmax.f32 %v3454, 0.0
    %v3903 = vmax.f32 %v3455, 0.0
    %v3904 = vmax.f32 %v3456, 0.0
    %v3905 = vmax.f32 %v3457, 0.0
    %v3906 = vmax.f32 %v3458, 0.0
    %v3907 = vmax.f32 %v3459, 0.0
    %v3908 = vmax.f32 %v3460, 0.0
    %v3909 = vmax.f32 %v3461, 0.0
    %v3910 = vmax.f32 %v3462, 0.0
    %v3911 = vmax.f32 %v3463, 0.0
    %v3912 = vmax.f32 %v3464, 0.0
    %v3913 = vmax.f32 %v3465, 0.0
    %v3914 = vmax.f32 %v3466, 0.0
    %v3915 = vmax.f32 %v3467, 0.0
    %v3916 = vmax.f32 %v3468, 0.0
    %v3917 = vmax.f32 %v3469, 0.0
    %v3918 = vmax.f32 %v3470, 0.0
    %v3919 = vmax.f32 %v3471, 0.0
    %v3920 = vmax.f32 %v3472, 0.0
    %v3921 = vmax.f32 %v3473, 0.0
    %v3922 = vmax.f32 %v3474, 0.0
    %v3923 = vpack.c.bf16 %v3479, %v3475
    %v3924 = vpack.c.bf16 %v3480, %v3476
    %v3925 = vpack.c.bf16 %v3481, %v3477
    %v3926 = vpack.c.bf16 %v3482, %v3478
    %v3927 = vpack.c.bf16 %v3487, %v3483
    %v3928 = vpack.c.bf16 %v3488, %v3484
    %v3929 = vpack.c.bf16 %v3489, %v3485
    %v3930 = vpack.c.bf16 %v3490, %v3486
    %v3931 = vpack.c.bf16 %v3495, %v3491
    %v3932 = vpack.c.bf16 %v3496, %v3492
    %v3933 = vpack.c.bf16 %v3497, %v3493
    %v3934 = vpack.c.bf16 %v3498, %v3494
    %v3935 = vpack.c.bf16 %v3503, %v3499
    %v3936 = vpack.c.bf16 %v3504, %v3500
    %v3937 = vpack.c.bf16 %v3505, %v3501
    %v3938 = vpack.c.bf16 %v3506, %v3502
    %v3939 = vpack.c.bf16 %v3511, %v3507
    %v3940 = vpack.c.bf16 %v3512, %v3508
    %v3941 = vpack.c.bf16 %v3513, %v3509
    %v3942 = vpack.c.bf16 %v3514, %v3510
    %v3943 = vpack.c.bf16 %v3519, %v3515
    %v3944 = vpack.c.bf16 %v3520, %v3516
    %v3945 = vpack.c.bf16 %v3521, %v3517
    %v3946 = vpack.c.bf16 %v3522, %v3518
    %v3947 = vpack.c.bf16 %v3527, %v3523
    %v3948 = vpack.c.bf16 %v3528, %v3524
    %v3949 = vpack.c.bf16 %v3529, %v3525
    %v3950 = vpack.c.bf16 %v3530, %v3526
    %v3951 = vpack.c.bf16 %v3535, %v3531
    %v3952 = vpack.c.bf16 %v3536, %v3532
    %v3953 = vpack.c.bf16 %v3537, %v3533
    %v3954 = vpack.c.bf16 %v3538, %v3534
    %v3955 = vpack.c.bf16 %v3543, %v3539
    %v3956 = vpack.c.bf16 %v3544, %v3540
    %v3957 = vpack.c.bf16 %v3545, %v3541
    %v3958 = vpack.c.bf16 %v3546, %v3542
    %v3959 = vpack.c.bf16 %v3551, %v3547
    %v3960 = vpack.c.bf16 %v3552, %v3548
    %v3961 = vpack.c.bf16 %v3553, %v3549
    %v3962 = vpack.c.bf16 %v3554, %v3550
    %v3963 = vpack.c.bf16 %v3559, %v3555
    %v3964 = vpack.c.bf16 %v3560, %v3556
    %v3965 = vpack.c.bf16 %v3561, %v3557
    %v3966 = vpack.c.bf16 %v3562, %v3558
    %v3967 = vpack.c.bf16 %v3567, %v3563
    %v3968 = vpack.c.bf16 %v3568, %v3564
    %v3969 = vpack.c.bf16 %v3569, %v3565
    %v3970 = vpack.c.bf16 %v3570, %v3566
    %v3971 = vpack.c.bf16 %v3575, %v3571
    %v3972 = vpack.c.bf16 %v3576, %v3572
    %v3973 = vpack.c.bf16 %v3577, %v3573
    %v3974 = vpack.c.bf16 %v3578, %v3574
    %v3975 = vpack.c.bf16 %v3583, %v3579
    %v3976 = vpack.c.bf16 %v3584, %v3580
    %v3977 = vpack.c.bf16 %v3585, %v3581
    %v3978 = vpack.c.bf16 %v3586, %v3582
    %v3979 = vpack.c.bf16 %v3591, %v3587
    %v3980 = vpack.c.bf16 %v3592, %v3588
    %v3981 = vpack.c.bf16 %v3593, %v3589
    %v3982 = vpack.c.bf16 %v3594, %v3590
    %v3983 = vpack.c.bf16 %v3599, %v3595
    %v3984 = vpack.c.bf16 %v3600, %v3596
    %v3985 = vpack.c.bf16 %v3601, %v3597
    %v3986 = vpack.c.bf16 %v3602, %v3598
    %v3987 = vpack.c.bf16 %v3607, %v3603
    %v3988 = vpack.c.bf16 %v3608, %v3604
    %v3989 = vpack.c.bf16 %v3609, %v3605
    %v3990 = vpack.c.bf16 %v3610, %v3606
    %v3991 = vpack.c.bf16 %v3615, %v3611
    %v3992 = vpack.c.bf16 %v3616, %v3612
    %v3993 = vpack.c.bf16 %v3617, %v3613
    %v3994 = vpack.c.bf16 %v3618, %v3614
    %v3995 = vpack.c.bf16 %v3623, %v3619
    %v3996 = vpack.c.bf16 %v3624, %v3620
    %v3997 = vpack.c.bf16 %v3625, %v3621
    %v3998 = vpack.c.bf16 %v3626, %v3622
    %v3999 = vpack.c.bf16 %v3631, %v3627
    %v4000 = vpack.c.bf16 %v3632, %v3628
    %v4001 = vpack.c.bf16 %v3633, %v3629
    %v4002 = vpack.c.bf16 %v3634, %v3630
    %v4003 = vpack.c.bf16 %v3639, %v3635
    %v4004 = vpack.c.bf16 %v3640, %v3636
    %v4005 = vpack.c.bf16 %v3641, %v3637
    %v4006 = vpack.c.bf16 %v3642, %v3638
    %v4007 = vpack.c.bf16 %v3647, %v3643
    %v4008 = vpack.c.bf16 %v3648, %v3644
    %v4009 = vpack.c.bf16 %v3649, %v3645
    %v4010 = vpack.c.bf16 %v3650, %v3646
    %v4011 = vpack.c.bf16 %v3655, %v3651
    %v4012 = vpack.c.bf16 %v3656, %v3652
    %v4013 = vpack.c.bf16 %v3657, %v3653
    %v4014 = vpack.c.bf16 %v3658, %v3654
    %v4015 = vpack.c.bf16 %v3663, %v3659
    %v4016 = vpack.c.bf16 %v3664, %v3660
    %v4017 = vpack.c.bf16 %v3665, %v3661
    %v4018 = vpack.c.bf16 %v3666, %v3662
    %v4019 = vpack.c.bf16 %v3671, %v3667
    %v4020 = vpack.c.bf16 %v3672, %v3668
    %v4021 = vpack.c.bf16 %v3673, %v3669
    %v4022 = vpack.c.bf16 %v3674, %v3670
    %v4023 = vpack.c.bf16 %v3679, %v3675
    %v4024 = vpack.c.bf16 %v3680, %v3676
    %v4025 = vpack.c.bf16 %v3681, %v3677
    %v4026 = vpack.c.bf16 %v3682, %v3678
    %v4027 = vpack.c.bf16 %v3687, %v3683
    %v4028 = vpack.c.bf16 %v3688, %v3684
    %v4029 = vpack.c.bf16 %v3689, %v3685
    %v4030 = vpack.c.bf16 %v3690, %v3686
    %v4031 = vpack.c.bf16 %v3695, %v3691
    %v4032 = vpack.c.bf16 %v3696, %v3692
    %v4033 = vpack.c.bf16 %v3697, %v3693
    %v4034 = vpack.c.bf16 %v3698, %v3694
    %v4035 = vpack.c.bf16 %v3703, %v3699
    %v4036 = vpack.c.bf16 %v3704, %v3700
    %v4037 = vpack.c.bf16 %v3705, %v3701
    %v4038 = vpack.c.bf16 %v3706, %v3702
    %v4039 = vpack.c.bf16 %v3711, %v3707
    %v4040 = vpack.c.bf16 %v3712, %v3708
    %v4041 = vpack.c.bf16 %v3713, %v3709
    %v4042 = vpack.c.bf16 %v3714, %v3710
    %v4043 = vpack.c.bf16 %v3719, %v3715
    %v4044 = vpack.c.bf16 %v3720, %v3716
    %v4045 = vpack.c.bf16 %v3721, %v3717
    %v4046 = vpack.c.bf16 %v3722, %v3718
    %v4047 = vpack.c.bf16 %v3727, %v3723
    %v4048 = vpack.c.bf16 %v3728, %v3724
    %v4049 = vpack.c.bf16 %v3729, %v3725
    %v4050 = vpack.c.bf16 %v3730, %v3726
    %v4051 = vpack.c.bf16 %v3735, %v3731
    %v4052 = vpack.c.bf16 %v3736, %v3732
    %v4053 = vpack.c.bf16 %v3737, %v3733
    %v4054 = vpack.c.bf16 %v3738, %v3734
    %v4055 = vpack.c.bf16 %v3743, %v3739
    %v4056 = vpack.c.bf16 %v3744, %v3740
    %v4057 = vpack.c.bf16 %v3745, %v3741
    %v4058 = vpack.c.bf16 %v3746, %v3742
    %v4059 = vpack.c.bf16 %v3751, %v3747
    %v4060 = vpack.c.bf16 %v3752, %v3748
    %v4061 = vpack.c.bf16 %v3753, %v3749
    %v4062 = vpack.c.bf16 %v3754, %v3750
    %v4063 = vpack.c.bf16 %v3759, %v3755
    %v4064 = vpack.c.bf16 %v3760, %v3756
    %v4065 = vpack.c.bf16 %v3761, %v3757
    %v4066 = vpack.c.bf16 %v3762, %v3758
    %v4067 = vpack.c.bf16 %v3767, %v3763
    %v4068 = vpack.c.bf16 %v3768, %v3764
    %v4069 = vpack.c.bf16 %v3769, %v3765
    %v4070 = vpack.c.bf16 %v3770, %v3766
    %v4071 = vpack.c.bf16 %v3775, %v3771
    %v4072 = vpack.c.bf16 %v3776, %v3772
    %v4073 = vpack.c.bf16 %v3777, %v3773
    %v4074 = vpack.c.bf16 %v3778, %v3774
    %v4075 = vpack.c.bf16 %v3783, %v3779
    %v4076 = vpack.c.bf16 %v3784, %v3780
    %v4077 = vpack.c.bf16 %v3785, %v3781
    %v4078 = vpack.c.bf16 %v3786, %v3782
    %v4079 = vpack.c.bf16 %v3791, %v3787
    %v4080 = vpack.c.bf16 %v3792, %v3788
    %v4081 = vpack.c.bf16 %v3793, %v3789
    %v4082 = vpack.c.bf16 %v3794, %v3790
    %v4083 = vpack.c.bf16 %v3799, %v3795
    %v4084 = vpack.c.bf16 %v3800, %v3796
    %v4085 = vpack.c.bf16 %v3801, %v3797
    %v4086 = vpack.c.bf16 %v3802, %v3798
    %v4087 = vpack.c.bf16 %v3807, %v3803
    %v4088 = vpack.c.bf16 %v3808, %v3804
    %v4089 = vpack.c.bf16 %v3809, %v3805
    %v4090 = vpack.c.bf16 %v3810, %v3806
    %v4091 = vpack.c.bf16 %v3815, %v3811
    %v4092 = vpack.c.bf16 %v3816, %v3812
    %v4093 = vpack.c.bf16 %v3817, %v3813
    %v4094 = vpack.c.bf16 %v3818, %v3814
    %v4095 = vpack.c.bf16 %v3823, %v3819
    %v4096 = vpack.c.bf16 %v3824, %v3820
    %v4097 = vpack.c.bf16 %v3825, %v3821
    %v4098 = vpack.c.bf16 %v3826, %v3822
    %v4099 = vpack.c.bf16 %v3831, %v3827
    %v4100 = vpack.c.bf16 %v3832, %v3828
    %v4101 = vpack.c.bf16 %v3833, %v3829
    %v4102 = vpack.c.bf16 %v3834, %v3830
    %v4103 = vpack.c.bf16 %v3839, %v3835
    %v4104 = vpack.c.bf16 %v3840, %v3836
    %v4105 = vpack.c.bf16 %v3841, %v3837
    %v4106 = vpack.c.bf16 %v3842, %v3838
    %v4107 = vpack.c.bf16 %v3847, %v3843
    %v4108 = vpack.c.bf16 %v3848, %v3844
    %v4109 = vpack.c.bf16 %v3849, %v3845
    %v4110 = vpack.c.bf16 %v3850, %v3846
    %v4111 = vpack.c.bf16 %v3855, %v3851
    %v4112 = vpack.c.bf16 %v3856, %v3852
    %v4113 = vpack.c.bf16 %v3857, %v3853
    %v4114 = vpack.c.bf16 %v3858, %v3854
    %v4115 = vpack.c.bf16 %v3863, %v3859
    %v4116 = vpack.c.bf16 %v3864, %v3860
    %v4117 = vpack.c.bf16 %v3865, %v3861
    %v4118 = vpack.c.bf16 %v3866, %v3862
    %v4119 = vpack.c.bf16 %v3871, %v3867
    %v4120 = vpack.c.bf16 %v3872, %v3868
    %v4121 = vpack.c.bf16 %v3873, %v3869
    %v4122 = vpack.c.bf16 %v3874, %v3870
    %v4123 = vpack.c.bf16 %v3879, %v3875
    %v4124 = vpack.c.bf16 %v3880, %v3876
    %v4125 = vpack.c.bf16 %v3881, %v3877
    %v4126 = vpack.c.bf16 %v3882, %v3878
    %v4127 = vpack.c.bf16 %v3887, %v3883
    %v4128 = vpack.c.bf16 %v3888, %v3884
    %v4129 = vpack.c.bf16 %v3889, %v3885
    %v4130 = vpack.c.bf16 %v3890, %v3886
    %v4131 = vpack.c.bf16 %v3895, %v3891
    %v4132 = vpack.c.bf16 %v3896, %v3892
    %v4133 = vpack.c.bf16 %v3897, %v3893
    %v4134 = vpack.c.bf16 %v3898, %v3894
    %v4135 = vpack.c.bf16 %v3903, %v3899
    %v4136 = vpack.c.bf16 %v3904, %v3900
    %v4137 = vpack.c.bf16 %v3905, %v3901
    %v4138 = vpack.c.bf16 %v3906, %v3902
    %v4139 = vpack.c.bf16 %v3911, %v3907
    %v4140 = vpack.c.bf16 %v3912, %v3908
    %v4141 = vpack.c.bf16 %v3913, %v3909
    %v4142 = vpack.c.bf16 %v3914, %v3910
    %v4143 = vpack.c.bf16 %v3919, %v3915
    %v4144 = vpack.c.bf16 %v3920, %v3916
    %v4145 = vpack.c.bf16 %v3921, %v3917
    %v4146 = vpack.c.bf16 %v3922, %v3918
    %v4147 = vmax.bf16 %v3923, %v3925
    %v4148 = vmax.bf16 %v3924, %v3926
    %v4149 = vmax.bf16 %v3927, %v3929
    %v4150 = vmax.bf16 %v3928, %v3930
    %v4151 = vmax.bf16 %v3931, %v3933
    %v4152 = vmax.bf16 %v3932, %v3934
    %v4153 = vmax.bf16 %v3935, %v3937
    %v4154 = vmax.bf16 %v3936, %v3938
    %v4155 = vmax.bf16 %v3939, %v3941
    %v4156 = vmax.bf16 %v3940, %v3942
    %v4157 = vmax.bf16 %v3943, %v3945
    %v4158 = vmax.bf16 %v3944, %v3946
    %v4159 = vmax.bf16 %v3947, %v3949
    %v4160 = vmax.bf16 %v3948, %v3950
    %v4161 = vmax.bf16 %v3951, %v3953
    %v4162 = vmax.bf16 %v3952, %v3954
    %v4163 = vmax.bf16 %v3955, %v3957
    %v4164 = vmax.bf16 %v3956, %v3958
    %v4165 = vmax.bf16 %v3959, %v3961
    %v4166 = vmax.bf16 %v3960, %v3962
    %v4167 = vmax.bf16 %v3963, %v3965
    %v4168 = vmax.bf16 %v3964, %v3966
    %v4169 = vmax.bf16 %v3967, %v3969
    %v4170 = vmax.bf16 %v3968, %v3970
    %v4171 = vmax.bf16 %v3971, %v3973
    %v4172 = vmax.bf16 %v3972, %v3974
    %v4173 = vmax.bf16 %v3975, %v3977
    %v4174 = vmax.bf16 %v3976, %v3978
    %v4175 = vmax.bf16 %v3979, %v3981
    %v4176 = vmax.bf16 %v3980, %v3982
    %v4177 = vmax.bf16 %v3983, %v3985
    %v4178 = vmax.bf16 %v3984, %v3986
    %v4179 = vmax.bf16 %v3987, %v3989
    %v4180 = vmax.bf16 %v3988, %v3990
    %v4181 = vmax.bf16 %v3991, %v3993
    %v4182 = vmax.bf16 %v3992, %v3994
    %v4183 = vmax.bf16 %v3995, %v3997
    %v4184 = vmax.bf16 %v3996, %v3998
    %v4185 = vmax.bf16 %v3999, %v4001
    %v4186 = vmax.bf16 %v4000, %v4002
    %v4187 = vmax.bf16 %v4003, %v4005
    %v4188 = vmax.bf16 %v4004, %v4006
    %v4189 = vmax.bf16 %v4007, %v4009
    %v4190 = vmax.bf16 %v4008, %v4010
    %v4191 = vmax.bf16 %v4011, %v4013
    %v4192 = vmax.bf16 %v4012, %v4014
    %v4193 = vmax.bf16 %v4015, %v4017
    %v4194 = vmax.bf16 %v4016, %v4018
    %v4195 = vmax.bf16 %v4019, %v4021
    %v4196 = vmax.bf16 %v4020, %v4022
    %v4197 = vmax.bf16 %v4023, %v4025
    %v4198 = vmax.bf16 %v4024, %v4026
    %v4199 = vmax.bf16 %v4027, %v4029
    %v4200 = vmax.bf16 %v4028, %v4030
    %v4201 = vmax.bf16 %v4031, %v4033
    %v4202 = vmax.bf16 %v4032, %v4034
    %v4203 = vmax.bf16 %v4035, %v4037
    %v4204 = vmax.bf16 %v4036, %v4038
    %v4205 = vmax.bf16 %v4039, %v4041
    %v4206 = vmax.bf16 %v4040, %v4042
    %v4207 = vmax.bf16 %v4043, %v4045
    %v4208 = vmax.bf16 %v4044, %v4046
    %v4209 = vmax.bf16 %v4047, %v4049
    %v4210 = vmax.bf16 %v4048, %v4050
    %v4211 = vmax.bf16 %v4051, %v4053
    %v4212 = vmax.bf16 %v4052, %v4054
    %v4213 = vmax.bf16 %v4055, %v4057
    %v4214 = vmax.bf16 %v4056, %v4058
    %v4215 = vmax.bf16 %v4059, %v4061
    %v4216 = vmax.bf16 %v4060, %v4062
    %v4217 = vmax.bf16 %v4063, %v4065
    %v4218 = vmax.bf16 %v4064, %v4066
    %v4219 = vmax.bf16 %v4067, %v4069
    %v4220 = vmax.bf16 %v4068, %v4070
    %v4221 = vmax.bf16 %v4071, %v4073
    %v4222 = vmax.bf16 %v4072, %v4074
    %v4223 = vmax.bf16 %v4075, %v4077
    %v4224 = vmax.bf16 %v4076, %v4078
    %v4225 = vmax.bf16 %v4079, %v4081
    %v4226 = vmax.bf16 %v4080, %v4082
    %v4227 = vmax.bf16 %v4083, %v4085
    %v4228 = vmax.bf16 %v4084, %v4086
    %v4229 = vmax.bf16 %v4087, %v4089
    %v4230 = vmax.bf16 %v4088, %v4090
    %v4231 = vmax.bf16 %v4091, %v4093
    %v4232 = vmax.bf16 %v4092, %v4094
    %v4233 = vmax.bf16 %v4095, %v4097
    %v4234 = vmax.bf16 %v4096, %v4098
    %v4235 = vmax.bf16 %v4099, %v4101
    %v4236 = vmax.bf16 %v4100, %v4102
    %v4237 = vmax.bf16 %v4103, %v4105
    %v4238 = vmax.bf16 %v4104, %v4106
    %v4239 = vmax.bf16 %v4107, %v4109
    %v4240 = vmax.bf16 %v4108, %v4110
    %v4241 = vmax.bf16 %v4111, %v4113
    %v4242 = vmax.bf16 %v4112, %v4114
    %v4243 = vmax.bf16 %v4115, %v4117
    %v4244 = vmax.bf16 %v4116, %v4118
    %v4245 = vmax.bf16 %v4119, %v4121
    %v4246 = vmax.bf16 %v4120, %v4122
    %v4247 = vmax.bf16 %v4123, %v4125
    %v4248 = vmax.bf16 %v4124, %v4126
    %v4249 = vmax.bf16 %v4127, %v4129
    %v4250 = vmax.bf16 %v4128, %v4130
    %v4251 = vmax.bf16 %v4131, %v4133
    %v4252 = vmax.bf16 %v4132, %v4134
    %v4253 = vmax.bf16 %v4135, %v4137
    %v4254 = vmax.bf16 %v4136, %v4138
    %v4255 = vmax.bf16 %v4139, %v4141
    %v4256 = vmax.bf16 %v4140, %v4142
    %v4257 = vmax.bf16 %v4143, %v4145
    %v4258 = vmax.bf16 %v4144, %v4146
    %v4259 = vmax.bf16 %v4147, %v4151
    %v4260 = vmax.bf16 %v4148, %v4152
    %v4261 = vmax.bf16 %v4149, %v4153
    %v4262 = vmax.bf16 %v4150, %v4154
    %v4263 = vmax.bf16 %v4155, %v4159
    %v4264 = vmax.bf16 %v4156, %v4160
    %v4265 = vmax.bf16 %v4157, %v4161
    %v4266 = vmax.bf16 %v4158, %v4162
    %v4267 = vmax.bf16 %v4163, %v4167
    %v4268 = vmax.bf16 %v4164, %v4168
    %v4269 = vmax.bf16 %v4165, %v4169
    %v4270 = vmax.bf16 %v4166, %v4170
    %v4271 = vmax.bf16 %v4171, %v4175
    %v4272 = vmax.bf16 %v4172, %v4176
    %v4273 = vmax.bf16 %v4173, %v4177
    %v4274 = vmax.bf16 %v4174, %v4178
    %v4275 = vmax.bf16 %v4179, %v4183
    %v4276 = vmax.bf16 %v4180, %v4184
    %v4277 = vmax.bf16 %v4181, %v4185
    %v4278 = vmax.bf16 %v4182, %v4186
    %v4279 = vmax.bf16 %v4187, %v4191
    %v4280 = vmax.bf16 %v4188, %v4192
    %v4281 = vmax.bf16 %v4189, %v4193
    %v4282 = vmax.bf16 %v4190, %v4194
    %v4283 = vmax.bf16 %v4195, %v4199
    %v4284 = vmax.bf16 %v4196, %v4200
    %v4285 = vmax.bf16 %v4197, %v4201
    %v4286 = vmax.bf16 %v4198, %v4202
    %v4287 = vmax.bf16 %v4203, %v4207
    %v4288 = vmax.bf16 %v4204, %v4208
    %v4289 = vmax.bf16 %v4205, %v4209
    %v4290 = vmax.bf16 %v4206, %v4210
    %v4291 = vmax.bf16 %v4211, %v4215
    %v4292 = vmax.bf16 %v4212, %v4216
    %v4293 = vmax.bf16 %v4213, %v4217
    %v4294 = vmax.bf16 %v4214, %v4218
    %v4295 = vmax.bf16 %v4219, %v4223
    %v4296 = vmax.bf16 %v4220, %v4224
    %v4297 = vmax.bf16 %v4221, %v4225
    %v4298 = vmax.bf16 %v4222, %v4226
    %v4299 = vmax.bf16 %v4227, %v4231
    %v4300 = vmax.bf16 %v4228, %v4232
    %v4301 = vmax.bf16 %v4229, %v4233
    %v4302 = vmax.bf16 %v4230, %v4234
    %v4303 = vmax.bf16 %v4235, %v4239
    %v4304 = vmax.bf16 %v4236, %v4240
    %v4305 = vmax.bf16 %v4237, %v4241
    %v4306 = vmax.bf16 %v4238, %v4242
    %v4307 = vmax.bf16 %v4243, %v4247
    %v4308 = vmax.bf16 %v4244, %v4248
    %v4309 = vmax.bf16 %v4245, %v4249
    %v4310 = vmax.bf16 %v4246, %v4250
    %v4311 = vmax.bf16 %v4251, %v4255
    %v4312 = vmax.bf16 %v4252, %v4256
    %v4313 = vmax.bf16 %v4253, %v4257
    %v4314 = vmax.bf16 %v4254, %v4258
    %v4315 = vld [vmem:[#allocation4] sm:$0xff]
    %v4316 = vld [vmem:[#allocation4 + $0x8] sm:$0xff]
    %v4317 = vld [vmem:[#allocation4 + $0x10] sm:$0xff]
    %v4318 = vld [vmem:[#allocation4 + $0x18] sm:$0xff]
    %v4319 = vld [vmem:[#allocation4 + $0x20] sm:$0xff]
    %v4320 = vld [vmem:[#allocation4 + $0x28] sm:$0xff]
    %v4321 = vld [vmem:[#allocation4 + $0x30] sm:$0xff]
    %v4322 = vld [vmem:[#allocation4 + $0x38] sm:$0xff]
    %v4323 = vld [vmem:[#allocation4 + $0x40] sm:$0xff]
    %v4324 = vld [vmem:[#allocation4 + $0x48] sm:$0xff]
    %v4325 = vld [vmem:[#allocation4 + $0x50] sm:$0xff]
    %v4326 = vld [vmem:[#allocation4 + $0x58] sm:$0xff]
    %v4327 = vld [vmem:[#allocation4 + $0x60] sm:$0xff]
    %v4328 = vld [vmem:[#allocation4 + $0x68] sm:$0xff]
    %v4329 = vld [vmem:[#allocation4 + $0x70] sm:$0xff]
    %v4330 = vld [vmem:[#allocation4 + $0x78] sm:$0xff]
    %v4331 = vld [vmem:[#allocation4 + $0x80] sm:$0xff]
    %v4332 = vld [vmem:[#allocation4 + $0x88] sm:$0xff]
    %v4333 = vld [vmem:[#allocation4 + $0x90] sm:$0xff]
    %v4334 = vld [vmem:[#allocation4 + $0x98] sm:$0xff]
    %v4335 = vld [vmem:[#allocation4 + $0xa0] sm:$0xff]
    %v4336 = vld [vmem:[#allocation4 + $0xa8] sm:$0xff]
    %v4337 = vld [vmem:[#allocation4 + $0xb0] sm:$0xff]
    %v4338 = vld [vmem:[#allocation4 + $0xb8] sm:$0xff]
    %v4339 = vld [vmem:[#allocation4 + $0xc0] sm:$0xff]
    %v4340 = vld [vmem:[#allocation4 + $0xc8] sm:$0xff]
    %v4341 = vld [vmem:[#allocation4 + $0xd0] sm:$0xff]
    %v4342 = vld [vmem:[#allocation4 + $0xd8] sm:$0xff]
    %v4343 = vld [vmem:[#allocation4 + $0xe0] sm:$0xff]
    %v4344 = vld [vmem:[#allocation4 + $0xe8] sm:$0xff]
    %v4345 = vld [vmem:[#allocation4 + $0xf0] sm:$0xff]
    %v4346 = vld [vmem:[#allocation4 + $0xf8] sm:$0xff]
    %v4347 = vld [vmem:[#allocation4 + $0x100] sm:$0xff]
    %v4348 = vld [vmem:[#allocation4 + $0x108] sm:$0xff]
    %v4349 = vld [vmem:[#allocation4 + $0x110] sm:$0xff]
    %v4350 = vld [vmem:[#allocation4 + $0x118] sm:$0xff]
    %v4351 = vld [vmem:[#allocation4 + $0x120] sm:$0xff]
    %v4352 = vld [vmem:[#allocation4 + $0x128] sm:$0xff]
    %v4353 = vld [vmem:[#allocation4 + $0x130] sm:$0xff]
    %v4354 = vld [vmem:[#allocation4 + $0x138] sm:$0xff]
    %v4355 = vld [vmem:[#allocation4 + $0x140] sm:$0xff]
    %v4356 = vld [vmem:[#allocation4 + $0x148] sm:$0xff]
    %v4357 = vld [vmem:[#allocation4 + $0x150] sm:$0xff]
    %v4358 = vld [vmem:[#allocation4 + $0x158] sm:$0xff]
    %v4359 = vld [vmem:[#allocation4 + $0x160] sm:$0xff]
    %v4360 = vld [vmem:[#allocation4 + $0x168] sm:$0xff]
    %v4361 = vld [vmem:[#allocation4 + $0x170] sm:$0xff]
    %v4362 = vld [vmem:[#allocation4 + $0x178] sm:$0xff]
    %v4363 = vld [vmem:[#allocation4 + $0x180] sm:$0xff]
    %v4364 = vld [vmem:[#allocation4 + $0x188] sm:$0xff]
    %v4365 = vld [vmem:[#allocation4 + $0x190] sm:$0xff]
    %v4366 = vld [vmem:[#allocation4 + $0x198] sm:$0xff]
    %v4367 = vld [vmem:[#allocation4 + $0x1a0] sm:$0xff]
    %v4368 = vld [vmem:[#allocation4 + $0x1a8] sm:$0xff]
    %v4369 = vld [vmem:[#allocation4 + $0x1b0] sm:$0xff]
    %v4370 = vld [vmem:[#allocation4 + $0x1b8] sm:$0xff]
    %v4371 = vld [vmem:[#allocation4 + $0x1c0] sm:$0xff]
    %v4372 = vld [vmem:[#allocation4 + $0x1c8] sm:$0xff]
    %v4373 = vld [vmem:[#allocation4 + $0x1d0] sm:$0xff]
    %v4374 = vld [vmem:[#allocation4 + $0x1d8] sm:$0xff]
    %v4375 = vld [vmem:[#allocation4 + $0x1e0] sm:$0xff]
    %v4376 = vld [vmem:[#allocation4 + $0x1e8] sm:$0xff]
    %v4377 = vld [vmem:[#allocation4 + $0x1f0] sm:$0xff]
    %v4378 = vld [vmem:[#allocation4 + $0x1f8] sm:$0xff]
    %v4379 = vld [vmem:[#allocation4 + $0x200] sm:$0xff]
    %v4380 = vld [vmem:[#allocation4 + $0x208] sm:$0xff]
    %v4381 = vld [vmem:[#allocation4 + $0x210] sm:$0xff]
    %v4382 = vld [vmem:[#allocation4 + $0x218] sm:$0xff]
    %v4383 = vld [vmem:[#allocation4 + $0x220] sm:$0xff]
    %v4384 = vld [vmem:[#allocation4 + $0x228] sm:$0xff]
    %v4385 = vld [vmem:[#allocation4 + $0x230] sm:$0xff]
    %v4386 = vld [vmem:[#allocation4 + $0x238] sm:$0xff]
    %v4387 = vld [vmem:[#allocation4 + $0x240] sm:$0xff]
    %v4388 = vld [vmem:[#allocation4 + $0x248] sm:$0xff]
    %v4389 = vld [vmem:[#allocation4 + $0x250] sm:$0xff]
    %v4390 = vld [vmem:[#allocation4 + $0x258] sm:$0xff]
    %v4391 = vld [vmem:[#allocation4 + $0x260] sm:$0xff]
    %v4392 = vld [vmem:[#allocation4 + $0x268] sm:$0xff]
    %v4393 = vld [vmem:[#allocation4 + $0x270] sm:$0xff]
    %v4394 = vld [vmem:[#allocation4 + $0x278] sm:$0xff]
    %v4395 = vld [vmem:[#allocation4 + $0x280] sm:$0xff]
    %v4396 = vld [vmem:[#allocation4 + $0x288] sm:$0xff]
    %v4397 = vld [vmem:[#allocation4 + $0x290] sm:$0xff]
    %v4398 = vld [vmem:[#allocation4 + $0x298] sm:$0xff]
    %v4399 = vld [vmem:[#allocation4 + $0x2a0] sm:$0xff]
    %v4400 = vld [vmem:[#allocation4 + $0x2a8] sm:$0xff]
    %v4401 = vld [vmem:[#allocation4 + $0x2b0] sm:$0xff]
    %v4402 = vld [vmem:[#allocation4 + $0x2b8] sm:$0xff]
    %v4403 = vld [vmem:[#allocation4 + $0x2c0] sm:$0xff]
    %v4404 = vld [vmem:[#allocation4 + $0x2c8] sm:$0xff]
    %v4405 = vld [vmem:[#allocation4 + $0x2d0] sm:$0xff]
    %v4406 = vld [vmem:[#allocation4 + $0x2d8] sm:$0xff]
    %v4407 = vld [vmem:[#allocation4 + $0x2e0] sm:$0xff]
    %v4408 = vld [vmem:[#allocation4 + $0x2e8] sm:$0xff]
    %v4409 = vld [vmem:[#allocation4 + $0x2f0] sm:$0xff]
    %v4410 = vld [vmem:[#allocation4 + $0x2f8] sm:$0xff]
    %v4411 = vld [vmem:[#allocation4 + $0x300] sm:$0xff]
    %v4412 = vld [vmem:[#allocation4 + $0x308] sm:$0xff]
    %v4413 = vld [vmem:[#allocation4 + $0x310] sm:$0xff]
    %v4414 = vld [vmem:[#allocation4 + $0x318] sm:$0xff]
    %v4415 = vld [vmem:[#allocation4 + $0x320] sm:$0xff]
    %v4416 = vld [vmem:[#allocation4 + $0x328] sm:$0xff]
    %v4417 = vld [vmem:[#allocation4 + $0x330] sm:$0xff]
    %v4418 = vld [vmem:[#allocation4 + $0x338] sm:$0xff]
    %v4419 = vld [vmem:[#allocation4 + $0x340] sm:$0xff]
    %v4420 = vld [vmem:[#allocation4 + $0x348] sm:$0xff]
    %v4421 = vld [vmem:[#allocation4 + $0x350] sm:$0xff]
    %v4422 = vld [vmem:[#allocation4 + $0x358] sm:$0xff]
    %v4423 = vld [vmem:[#allocation4 + $0x360] sm:$0xff]
    %v4424 = vld [vmem:[#allocation4 + $0x368] sm:$0xff]
    %v4425 = vld [vmem:[#allocation4 + $0x370] sm:$0xff]
    %v4426 = vld [vmem:[#allocation4 + $0x378] sm:$0xff]
    %v4427 = vld [vmem:[#allocation4 + $0x380] sm:$0xff]
    %v4428 = vld [vmem:[#allocation4 + $0x388] sm:$0xff]
    %v4429 = vld [vmem:[#allocation4 + $0x390] sm:$0xff]
    %v4430 = vld [vmem:[#allocation4 + $0x398] sm:$0xff]
    %v4431 = vld [vmem:[#allocation4 + $0x3a0] sm:$0xff]
    %v4432 = vld [vmem:[#allocation4 + $0x3a8] sm:$0xff]
    %v4433 = vld [vmem:[#allocation4 + $0x3b0] sm:$0xff]
    %v4434 = vld [vmem:[#allocation4 + $0x3b8] sm:$0xff]
    %v4435 = vld [vmem:[#allocation4 + $0x3c0] sm:$0xff]
    %v4436 = vld [vmem:[#allocation4 + $0x3c8] sm:$0xff]
    %v4437 = vld [vmem:[#allocation4 + $0x3d0] sm:$0xff]
    %v4438 = vld [vmem:[#allocation4 + $0x3d8] sm:$0xff]
    %v4439 = vld [vmem:[#allocation4 + $0x3e0] sm:$0xff]
    %v4440 = vld [vmem:[#allocation4 + $0x3e8] sm:$0xff]
    %v4441 = vld [vmem:[#allocation4 + $0x3f0] sm:$0xff]
    %v4442 = vld [vmem:[#allocation4 + $0x3f8] sm:$0xff]
    %v4443 = vld [vmem:[#allocation4 + $0x400] sm:$0xff]
    %v4444 = vld [vmem:[#allocation4 + $0x408] sm:$0xff]
    %v4445 = vld [vmem:[#allocation4 + $0x410] sm:$0xff]
    %v4446 = vld [vmem:[#allocation4 + $0x418] sm:$0xff]
    %v4447 = vld [vmem:[#allocation4 + $0x420] sm:$0xff]
    %v4448 = vld [vmem:[#allocation4 + $0x428] sm:$0xff]
    %v4449 = vld [vmem:[#allocation4 + $0x430] sm:$0xff]
    %v4450 = vld [vmem:[#allocation4 + $0x438] sm:$0xff]
    %v4451 = vld [vmem:[#allocation4 + $0x440] sm:$0xff]
    %v4452 = vld [vmem:[#allocation4 + $0x448] sm:$0xff]
    %v4453 = vld [vmem:[#allocation4 + $0x450] sm:$0xff]
    %v4454 = vld [vmem:[#allocation4 + $0x458] sm:$0xff]
    %v4455 = vld [vmem:[#allocation4 + $0x460] sm:$0xff]
    %v4456 = vld [vmem:[#allocation4 + $0x468] sm:$0xff]
    %v4457 = vld [vmem:[#allocation4 + $0x470] sm:$0xff]
    %v4458 = vld [vmem:[#allocation4 + $0x478] sm:$0xff]
    %v4459 = vld [vmem:[#allocation4 + $0x480] sm:$0xff]
    %v4460 = vld [vmem:[#allocation4 + $0x488] sm:$0xff]
    %v4461 = vld [vmem:[#allocation4 + $0x490] sm:$0xff]
    %v4462 = vld [vmem:[#allocation4 + $0x498] sm:$0xff]
    %v4463 = vld [vmem:[#allocation4 + $0x4a0] sm:$0xff]
    %v4464 = vld [vmem:[#allocation4 + $0x4a8] sm:$0xff]
    %v4465 = vld [vmem:[#allocation4 + $0x4b0] sm:$0xff]
    %v4466 = vld [vmem:[#allocation4 + $0x4b8] sm:$0xff]
    %v4467 = vld [vmem:[#allocation4 + $0x4c0] sm:$0xff]
    %v4468 = vld [vmem:[#allocation4 + $0x4c8] sm:$0xff]
    %v4469 = vld [vmem:[#allocation4 + $0x4d0] sm:$0xff]
    %v4470 = vld [vmem:[#allocation4 + $0x4d8] sm:$0xff]
    %v4471 = vld [vmem:[#allocation4 + $0x4e0] sm:$0xff]
    %v4472 = vld [vmem:[#allocation4 + $0x4e8] sm:$0xff]
    %v4473 = vld [vmem:[#allocation4 + $0x4f0] sm:$0xff]
    %v4474 = vld [vmem:[#allocation4 + $0x4f8] sm:$0xff]
    %v4475 = vld [vmem:[#allocation4 + $0x500] sm:$0xff]
    %v4476 = vld [vmem:[#allocation4 + $0x508] sm:$0xff]
    %v4477 = vld [vmem:[#allocation4 + $0x510] sm:$0xff]
    %v4478 = vld [vmem:[#allocation4 + $0x518] sm:$0xff]
    %v4479 = vld [vmem:[#allocation4 + $0x520] sm:$0xff]
    %v4480 = vld [vmem:[#allocation4 + $0x528] sm:$0xff]
    %v4481 = vld [vmem:[#allocation4 + $0x530] sm:$0xff]
    %v4482 = vld [vmem:[#allocation4 + $0x538] sm:$0xff]
    %v4483 = vld [vmem:[#allocation4 + $0x540] sm:$0xff]
    %v4484 = vld [vmem:[#allocation4 + $0x548] sm:$0xff]
    %v4485 = vld [vmem:[#allocation4 + $0x550] sm:$0xff]
    %v4486 = vld [vmem:[#allocation4 + $0x558] sm:$0xff]
    %v4487 = vld [vmem:[#allocation4 + $0x560] sm:$0xff]
    %v4488 = vld [vmem:[#allocation4 + $0x568] sm:$0xff]
    %v4489 = vld [vmem:[#allocation4 + $0x570] sm:$0xff]
    %v4490 = vld [vmem:[#allocation4 + $0x578] sm:$0xff]
    %v4491 = vld [vmem:[#allocation4 + $0x580] sm:$0xff]
    %v4492 = vld [vmem:[#allocation4 + $0x588] sm:$0xff]
    %v4493 = vld [vmem:[#allocation4 + $0x590] sm:$0xff]
    %v4494 = vld [vmem:[#allocation4 + $0x598] sm:$0xff]
    %v4495 = vld [vmem:[#allocation4 + $0x5a0] sm:$0xff]
    %v4496 = vld [vmem:[#allocation4 + $0x5a8] sm:$0xff]
    %v4497 = vld [vmem:[#allocation4 + $0x5b0] sm:$0xff]
    %v4498 = vld [vmem:[#allocation4 + $0x5b8] sm:$0xff]
    %v4499 = vld [vmem:[#allocation4 + $0x5c0] sm:$0xff]
    %v4500 = vld [vmem:[#allocation4 + $0x5c8] sm:$0xff]
    %v4501 = vld [vmem:[#allocation4 + $0x5d0] sm:$0xff]
    %v4502 = vld [vmem:[#allocation4 + $0x5d8] sm:$0xff]
    %v4503 = vld [vmem:[#allocation4 + $0x5e0] sm:$0xff]
    %v4504 = vld [vmem:[#allocation4 + $0x5e8] sm:$0xff]
    %v4505 = vld [vmem:[#allocation4 + $0x5f0] sm:$0xff]
    %v4506 = vld [vmem:[#allocation4 + $0x5f8] sm:$0xff]
    %v4699 = vunpack.c.l.b16 %v4315
    %v4700 = vunpack.c.h.b16 %v4315
    %v4701 = vunpack.c.l.b16 %v4316
    %v4702 = vunpack.c.h.b16 %v4316
    %v4703 = vunpack.c.l.b16 %v4317
    %v4704 = vunpack.c.h.b16 %v4317
    %v4705 = vunpack.c.l.b16 %v4318
    %v4706 = vunpack.c.h.b16 %v4318
    %v4707 = vunpack.c.l.b16 %v4319
    %v4708 = vunpack.c.h.b16 %v4319
    %v4709 = vunpack.c.l.b16 %v4320
    %v4710 = vunpack.c.h.b16 %v4320
    %v4711 = vunpack.c.l.b16 %v4321
    %v4712 = vunpack.c.h.b16 %v4321
    %v4713 = vunpack.c.l.b16 %v4322
    %v4714 = vunpack.c.h.b16 %v4322
    %v4715 = vunpack.c.l.b16 %v4323
    %v4716 = vunpack.c.h.b16 %v4323
    %v4717 = vunpack.c.l.b16 %v4324
    %v4718 = vunpack.c.h.b16 %v4324
    %v4719 = vunpack.c.l.b16 %v4325
    %v4720 = vunpack.c.h.b16 %v4325
    %v4721 = vunpack.c.l.b16 %v4326
    %v4722 = vunpack.c.h.b16 %v4326
    %v4723 = vunpack.c.l.b16 %v4327
    %v4724 = vunpack.c.h.b16 %v4327
    %v4725 = vunpack.c.l.b16 %v4328
    %v4726 = vunpack.c.h.b16 %v4328
    %v4727 = vunpack.c.l.b16 %v4329
    %v4728 = vunpack.c.h.b16 %v4329
    %v4729 = vunpack.c.l.b16 %v4330
    %v4730 = vunpack.c.h.b16 %v4330
    %v4731 = vunpack.c.l.b16 %v4331
    %v4732 = vunpack.c.h.b16 %v4331
    %v4733 = vunpack.c.l.b16 %v4332
    %v4734 = vunpack.c.h.b16 %v4332
    %v4735 = vunpack.c.l.b16 %v4333
    %v4736 = vunpack.c.h.b16 %v4333
    %v4737 = vunpack.c.l.b16 %v4334
    %v4738 = vunpack.c.h.b16 %v4334
    %v4739 = vunpack.c.l.b16 %v4335
    %v4740 = vunpack.c.h.b16 %v4335
    %v4741 = vunpack.c.l.b16 %v4336
    %v4742 = vunpack.c.h.b16 %v4336
    %v4743 = vunpack.c.l.b16 %v4337
    %v4744 = vunpack.c.h.b16 %v4337
    %v4745 = vunpack.c.l.b16 %v4338
    %v4746 = vunpack.c.h.b16 %v4338
    %v4747 = vunpack.c.l.b16 %v4339
    %v4748 = vunpack.c.h.b16 %v4339
    %v4749 = vunpack.c.l.b16 %v4340
    %v4750 = vunpack.c.h.b16 %v4340
    %v4751 = vunpack.c.l.b16 %v4341
    %v4752 = vunpack.c.h.b16 %v4341
    %v4753 = vunpack.c.l.b16 %v4342
    %v4754 = vunpack.c.h.b16 %v4342
    %v4755 = vunpack.c.l.b16 %v4343
    %v4756 = vunpack.c.h.b16 %v4343
    %v4757 = vunpack.c.l.b16 %v4344
    %v4758 = vunpack.c.h.b16 %v4344
    %v4759 = vunpack.c.l.b16 %v4345
    %v4760 = vunpack.c.h.b16 %v4345
    %v4761 = vunpack.c.l.b16 %v4346
    %v4762 = vunpack.c.h.b16 %v4346
    %v4763 = vunpack.c.l.b16 %v4347
    %v4764 = vunpack.c.h.b16 %v4347
    %v4765 = vunpack.c.l.b16 %v4348
    %v4766 = vunpack.c.h.b16 %v4348
    %v4767 = vunpack.c.l.b16 %v4349
    %v4768 = vunpack.c.h.b16 %v4349
    %v4769 = vunpack.c.l.b16 %v4350
    %v4770 = vunpack.c.h.b16 %v4350
    %v4771 = vunpack.c.l.b16 %v4351
    %v4772 = vunpack.c.h.b16 %v4351
    %v4773 = vunpack.c.l.b16 %v4352
    %v4774 = vunpack.c.h.b16 %v4352
    %v4775 = vunpack.c.l.b16 %v4353
    %v4776 = vunpack.c.h.b16 %v4353
    %v4777 = vunpack.c.l.b16 %v4354
    %v4778 = vunpack.c.h.b16 %v4354
    %v4779 = vunpack.c.l.b16 %v4355
    %v4780 = vunpack.c.h.b16 %v4355
    %v4781 = vunpack.c.l.b16 %v4356
    %v4782 = vunpack.c.h.b16 %v4356
    %v4783 = vunpack.c.l.b16 %v4357
    %v4784 = vunpack.c.h.b16 %v4357
    %v4785 = vunpack.c.l.b16 %v4358
    %v4786 = vunpack.c.h.b16 %v4358
    %v4787 = vunpack.c.l.b16 %v4359
    %v4788 = vunpack.c.h.b16 %v4359
    %v4789 = vunpack.c.l.b16 %v4360
    %v4790 = vunpack.c.h.b16 %v4360
    %v4791 = vunpack.c.l.b16 %v4361
    %v4792 = vunpack.c.h.b16 %v4361
    %v4793 = vunpack.c.l.b16 %v4362
    %v4794 = vunpack.c.h.b16 %v4362
    %v4795 = vunpack.c.l.b16 %v4363
    %v4796 = vunpack.c.h.b16 %v4363
    %v4797 = vunpack.c.l.b16 %v4364
    %v4798 = vunpack.c.h.b16 %v4364
    %v4799 = vunpack.c.l.b16 %v4365
    %v4800 = vunpack.c.h.b16 %v4365
    %v4801 = vunpack.c.l.b16 %v4366
    %v4802 = vunpack.c.h.b16 %v4366
    %v4803 = vunpack.c.l.b16 %v4367
    %v4804 = vunpack.c.h.b16 %v4367
    %v4805 = vunpack.c.l.b16 %v4368
    %v4806 = vunpack.c.h.b16 %v4368
    %v4807 = vunpack.c.l.b16 %v4369
    %v4808 = vunpack.c.h.b16 %v4369
    %v4809 = vunpack.c.l.b16 %v4370
    %v4810 = vunpack.c.h.b16 %v4370
    %v4811 = vunpack.c.l.b16 %v4371
    %v4812 = vunpack.c.h.b16 %v4371
    %v4813 = vunpack.c.l.b16 %v4372
    %v4814 = vunpack.c.h.b16 %v4372
    %v4815 = vunpack.c.l.b16 %v4373
    %v4816 = vunpack.c.h.b16 %v4373
    %v4817 = vunpack.c.l.b16 %v4374
    %v4818 = vunpack.c.h.b16 %v4374
    %v4819 = vunpack.c.l.b16 %v4375
    %v4820 = vunpack.c.h.b16 %v4375
    %v4821 = vunpack.c.l.b16 %v4376
    %v4822 = vunpack.c.h.b16 %v4376
    %v4823 = vunpack.c.l.b16 %v4377
    %v4824 = vunpack.c.h.b16 %v4377
    %v4825 = vunpack.c.l.b16 %v4378
    %v4826 = vunpack.c.h.b16 %v4378
    %v4827 = vunpack.c.l.b16 %v4379
    %v4828 = vunpack.c.h.b16 %v4379
    %v4829 = vunpack.c.l.b16 %v4380
    %v4830 = vunpack.c.h.b16 %v4380
    %v4831 = vunpack.c.l.b16 %v4381
    %v4832 = vunpack.c.h.b16 %v4381
    %v4833 = vunpack.c.l.b16 %v4382
    %v4834 = vunpack.c.h.b16 %v4382
    %v4835 = vunpack.c.l.b16 %v4383
    %v4836 = vunpack.c.h.b16 %v4383
    %v4837 = vunpack.c.l.b16 %v4384
    %v4838 = vunpack.c.h.b16 %v4384
    %v4839 = vunpack.c.l.b16 %v4385
    %v4840 = vunpack.c.h.b16 %v4385
    %v4841 = vunpack.c.l.b16 %v4386
    %v4842 = vunpack.c.h.b16 %v4386
    %v4843 = vunpack.c.l.b16 %v4387
    %v4844 = vunpack.c.h.b16 %v4387
    %v4845 = vunpack.c.l.b16 %v4388
    %v4846 = vunpack.c.h.b16 %v4388
    %v4847 = vunpack.c.l.b16 %v4389
    %v4848 = vunpack.c.h.b16 %v4389
    %v4849 = vunpack.c.l.b16 %v4390
    %v4850 = vunpack.c.h.b16 %v4390
    %v4851 = vunpack.c.l.b16 %v4391
    %v4852 = vunpack.c.h.b16 %v4391
    %v4853 = vunpack.c.l.b16 %v4392
    %v4854 = vunpack.c.h.b16 %v4392
    %v4855 = vunpack.c.l.b16 %v4393
    %v4856 = vunpack.c.h.b16 %v4393
    %v4857 = vunpack.c.l.b16 %v4394
    %v4858 = vunpack.c.h.b16 %v4394
    %v4859 = vunpack.c.l.b16 %v4395
    %v4860 = vunpack.c.h.b16 %v4395
    %v4861 = vunpack.c.l.b16 %v4396
    %v4862 = vunpack.c.h.b16 %v4396
    %v4863 = vunpack.c.l.b16 %v4397
    %v4864 = vunpack.c.h.b16 %v4397
    %v4865 = vunpack.c.l.b16 %v4398
    %v4866 = vunpack.c.h.b16 %v4398
    %v4867 = vunpack.c.l.b16 %v4399
    %v4868 = vunpack.c.h.b16 %v4399
    %v4869 = vunpack.c.l.b16 %v4400
    %v4870 = vunpack.c.h.b16 %v4400
    %v4871 = vunpack.c.l.b16 %v4401
    %v4872 = vunpack.c.h.b16 %v4401
    %v4873 = vunpack.c.l.b16 %v4402
    %v4874 = vunpack.c.h.b16 %v4402
    %v4875 = vunpack.c.l.b16 %v4403
    %v4876 = vunpack.c.h.b16 %v4403
    %v4877 = vunpack.c.l.b16 %v4404
    %v4878 = vunpack.c.h.b16 %v4404
    %v4879 = vunpack.c.l.b16 %v4405
    %v4880 = vunpack.c.h.b16 %v4405
    %v4881 = vunpack.c.l.b16 %v4406
    %v4882 = vunpack.c.h.b16 %v4406
    %v4883 = vunpack.c.l.b16 %v4407
    %v4884 = vunpack.c.h.b16 %v4407
    %v4885 = vunpack.c.l.b16 %v4408
    %v4886 = vunpack.c.h.b16 %v4408
    %v4887 = vunpack.c.l.b16 %v4409
    %v4888 = vunpack.c.h.b16 %v4409
    %v4889 = vunpack.c.l.b16 %v4410
    %v4890 = vunpack.c.h.b16 %v4410
    %v4891 = vunpack.c.l.b16 %v4411
    %v4892 = vunpack.c.h.b16 %v4411
    %v4893 = vunpack.c.l.b16 %v4412
    %v4894 = vunpack.c.h.b16 %v4412
    %v4895 = vunpack.c.l.b16 %v4413
    %v4896 = vunpack.c.h.b16 %v4413
    %v4897 = vunpack.c.l.b16 %v4414
    %v4898 = vunpack.c.h.b16 %v4414
    %v4899 = vunpack.c.l.b16 %v4415
    %v4900 = vunpack.c.h.b16 %v4415
    %v4901 = vunpack.c.l.b16 %v4416
    %v4902 = vunpack.c.h.b16 %v4416
    %v4903 = vunpack.c.l.b16 %v4417
    %v4904 = vunpack.c.h.b16 %v4417
    %v4905 = vunpack.c.l.b16 %v4418
    %v4906 = vunpack.c.h.b16 %v4418
    %v4907 = vunpack.c.l.b16 %v4419
    %v4908 = vunpack.c.h.b16 %v4419
    %v4909 = vunpack.c.l.b16 %v4420
    %v4910 = vunpack.c.h.b16 %v4420
    %v4911 = vunpack.c.l.b16 %v4421
    %v4912 = vunpack.c.h.b16 %v4421
    %v4913 = vunpack.c.l.b16 %v4422
    %v4914 = vunpack.c.h.b16 %v4422
    %v4915 = vunpack.c.l.b16 %v4423
    %v4916 = vunpack.c.h.b16 %v4423
    %v4917 = vunpack.c.l.b16 %v4424
    %v4918 = vunpack.c.h.b16 %v4424
    %v4919 = vunpack.c.l.b16 %v4425
    %v4920 = vunpack.c.h.b16 %v4425
    %v4921 = vunpack.c.l.b16 %v4426
    %v4922 = vunpack.c.h.b16 %v4426
    %v4923 = vunpack.c.l.b16 %v4427
    %v4924 = vunpack.c.h.b16 %v4427
    %v4925 = vunpack.c.l.b16 %v4428
    %v4926 = vunpack.c.h.b16 %v4428
    %v4927 = vunpack.c.l.b16 %v4429
    %v4928 = vunpack.c.h.b16 %v4429
    %v4929 = vunpack.c.l.b16 %v4430
    %v4930 = vunpack.c.h.b16 %v4430
    %v4931 = vunpack.c.l.b16 %v4431
    %v4932 = vunpack.c.h.b16 %v4431
    %v4933 = vunpack.c.l.b16 %v4432
    %v4934 = vunpack.c.h.b16 %v4432
    %v4935 = vunpack.c.l.b16 %v4433
    %v4936 = vunpack.c.h.b16 %v4433
    %v4937 = vunpack.c.l.b16 %v4434
    %v4938 = vunpack.c.h.b16 %v4434
    %v4939 = vunpack.c.l.b16 %v4435
    %v4940 = vunpack.c.h.b16 %v4435
    %v4941 = vunpack.c.l.b16 %v4436
    %v4942 = vunpack.c.h.b16 %v4436
    %v4943 = vunpack.c.l.b16 %v4437
    %v4944 = vunpack.c.h.b16 %v4437
    %v4945 = vunpack.c.l.b16 %v4438
    %v4946 = vunpack.c.h.b16 %v4438
    %v4947 = vunpack.c.l.b16 %v4439
    %v4948 = vunpack.c.h.b16 %v4439
    %v4949 = vunpack.c.l.b16 %v4440
    %v4950 = vunpack.c.h.b16 %v4440
    %v4951 = vunpack.c.l.b16 %v4441
    %v4952 = vunpack.c.h.b16 %v4441
    %v4953 = vunpack.c.l.b16 %v4442
    %v4954 = vunpack.c.h.b16 %v4442
    %v4955 = vunpack.c.l.b16 %v4443
    %v4956 = vunpack.c.h.b16 %v4443
    %v4957 = vunpack.c.l.b16 %v4444
    %v4958 = vunpack.c.h.b16 %v4444
    %v4959 = vunpack.c.l.b16 %v4445
    %v4960 = vunpack.c.h.b16 %v4445
    %v4961 = vunpack.c.l.b16 %v4446
    %v4962 = vunpack.c.h.b16 %v4446
    %v4963 = vunpack.c.l.b16 %v4447
    %v4964 = vunpack.c.h.b16 %v4447
    %v4965 = vunpack.c.l.b16 %v4448
    %v4966 = vunpack.c.h.b16 %v4448
    %v4967 = vunpack.c.l.b16 %v4449
    %v4968 = vunpack.c.h.b16 %v4449
    %v4969 = vunpack.c.l.b16 %v4450
    %v4970 = vunpack.c.h.b16 %v4450
    %v4971 = vunpack.c.l.b16 %v4451
    %v4972 = vunpack.c.h.b16 %v4451
    %v4973 = vunpack.c.l.b16 %v4452
    %v4974 = vunpack.c.h.b16 %v4452
    %v4975 = vunpack.c.l.b16 %v4453
    %v4976 = vunpack.c.h.b16 %v4453
    %v4977 = vunpack.c.l.b16 %v4454
    %v4978 = vunpack.c.h.b16 %v4454
    %v4979 = vunpack.c.l.b16 %v4455
    %v4980 = vunpack.c.h.b16 %v4455
    %v4981 = vunpack.c.l.b16 %v4456
    %v4982 = vunpack.c.h.b16 %v4456
    %v4983 = vunpack.c.l.b16 %v4457
    %v4984 = vunpack.c.h.b16 %v4457
    %v4985 = vunpack.c.l.b16 %v4458
    %v4986 = vunpack.c.h.b16 %v4458
    %v4987 = vunpack.c.l.b16 %v4459
    %v4988 = vunpack.c.h.b16 %v4459
    %v4989 = vunpack.c.l.b16 %v4460
    %v4990 = vunpack.c.h.b16 %v4460
    %v4991 = vunpack.c.l.b16 %v4461
    %v4992 = vunpack.c.h.b16 %v4461
    %v4993 = vunpack.c.l.b16 %v4462
    %v4994 = vunpack.c.h.b16 %v4462
    %v4995 = vunpack.c.l.b16 %v4463
    %v4996 = vunpack.c.h.b16 %v4463
    %v4997 = vunpack.c.l.b16 %v4464
    %v4998 = vunpack.c.h.b16 %v4464
    %v4999 = vunpack.c.l.b16 %v4465
    %v5000 = vunpack.c.h.b16 %v4465
    %v5001 = vunpack.c.l.b16 %v4466
    %v5002 = vunpack.c.h.b16 %v4466
    %v5003 = vunpack.c.l.b16 %v4467
    %v5004 = vunpack.c.h.b16 %v4467
    %v5005 = vunpack.c.l.b16 %v4468
    %v5006 = vunpack.c.h.b16 %v4468
    %v5007 = vunpack.c.l.b16 %v4469
    %v5008 = vunpack.c.h.b16 %v4469
    %v5009 = vunpack.c.l.b16 %v4470
    %v5010 = vunpack.c.h.b16 %v4470
    %v5011 = vunpack.c.l.b16 %v4471
    %v5012 = vunpack.c.h.b16 %v4471
    %v5013 = vunpack.c.l.b16 %v4472
    %v5014 = vunpack.c.h.b16 %v4472
    %v5015 = vunpack.c.l.b16 %v4473
    %v5016 = vunpack.c.h.b16 %v4473
    %v5017 = vunpack.c.l.b16 %v4474
    %v5018 = vunpack.c.h.b16 %v4474
    %v5019 = vunpack.c.l.b16 %v4475
    %v5020 = vunpack.c.h.b16 %v4475
    %v5021 = vunpack.c.l.b16 %v4476
    %v5022 = vunpack.c.h.b16 %v4476
    %v5023 = vunpack.c.l.b16 %v4477
    %v5024 = vunpack.c.h.b16 %v4477
    %v5025 = vunpack.c.l.b16 %v4478
    %v5026 = vunpack.c.h.b16 %v4478
    %v5027 = vunpack.c.l.b16 %v4479
    %v5028 = vunpack.c.h.b16 %v4479
    %v5029 = vunpack.c.l.b16 %v4480
    %v5030 = vunpack.c.h.b16 %v4480
    %v5031 = vunpack.c.l.b16 %v4481
    %v5032 = vunpack.c.h.b16 %v4481
    %v5033 = vunpack.c.l.b16 %v4482
    %v5034 = vunpack.c.h.b16 %v4482
    %v5035 = vunpack.c.l.b16 %v4483
    %v5036 = vunpack.c.h.b16 %v4483
    %v5037 = vunpack.c.l.b16 %v4484
    %v5038 = vunpack.c.h.b16 %v4484
    %v5039 = vunpack.c.l.b16 %v4485
    %v5040 = vunpack.c.h.b16 %v4485
    %v5041 = vunpack.c.l.b16 %v4486
    %v5042 = vunpack.c.h.b16 %v4486
    %v5043 = vunpack.c.l.b16 %v4487
    %v5044 = vunpack.c.h.b16 %v4487
    %v5045 = vunpack.c.l.b16 %v4488
    %v5046 = vunpack.c.h.b16 %v4488
    %v5047 = vunpack.c.l.b16 %v4489
    %v5048 = vunpack.c.h.b16 %v4489
    %v5049 = vunpack.c.l.b16 %v4490
    %v5050 = vunpack.c.h.b16 %v4490
    %v5051 = vunpack.c.l.b16 %v4491
    %v5052 = vunpack.c.h.b16 %v4491
    %v5053 = vunpack.c.l.b16 %v4492
    %v5054 = vunpack.c.h.b16 %v4492
    %v5055 = vunpack.c.l.b16 %v4493
    %v5056 = vunpack.c.h.b16 %v4493
    %v5057 = vunpack.c.l.b16 %v4494
    %v5058 = vunpack.c.h.b16 %v4494
    %v5059 = vunpack.c.l.b16 %v4495
    %v5060 = vunpack.c.h.b16 %v4495
    %v5061 = vunpack.c.l.b16 %v4496
    %v5062 = vunpack.c.h.b16 %v4496
    %v5063 = vunpack.c.l.b16 %v4497
    %v5064 = vunpack.c.h.b16 %v4497
    %v5065 = vunpack.c.l.b16 %v4498
    %v5066 = vunpack.c.h.b16 %v4498
    %v5067 = vunpack.c.l.b16 %v4499
    %v5068 = vunpack.c.h.b16 %v4499
    %v5069 = vunpack.c.l.b16 %v4500
    %v5070 = vunpack.c.h.b16 %v4500
    %v5071 = vunpack.c.l.b16 %v4501
    %v5072 = vunpack.c.h.b16 %v4501
    %v5073 = vunpack.c.l.b16 %v4502
    %v5074 = vunpack.c.h.b16 %v4502
    %v5075 = vunpack.c.l.b16 %v4503
    %v5076 = vunpack.c.h.b16 %v4503
    %v5077 = vunpack.c.l.b16 %v4504
    %v5078 = vunpack.c.h.b16 %v4504
    %v5079 = vunpack.c.l.b16 %v4505
    %v5080 = vunpack.c.h.b16 %v4505
    %v5081 = vunpack.c.l.b16 %v4506
    %v5082 = vunpack.c.h.b16 %v4506
    %v5083 = vpack.c.b16 %v4703, %v4699
    %v5084 = vpack.c.b16 %v4704, %v4700
    %v5085 = vpack.c.b16 %v4705, %v4701
    %v5086 = vpack.c.b16 %v4706, %v4702
    %v5087 = vpack.c.b16 %v4711, %v4707
    %v5088 = vpack.c.b16 %v4712, %v4708
    %v5089 = vpack.c.b16 %v4713, %v4709
    %v5090 = vpack.c.b16 %v4714, %v4710
    %v5091 = vpack.c.b16 %v4719, %v4715
    %v5092 = vpack.c.b16 %v4720, %v4716
    %v5093 = vpack.c.b16 %v4721, %v4717
    %v5094 = vpack.c.b16 %v4722, %v4718
    %v5095 = vpack.c.b16 %v4727, %v4723
    %v5096 = vpack.c.b16 %v4728, %v4724
    %v5097 = vpack.c.b16 %v4729, %v4725
    %v5098 = vpack.c.b16 %v4730, %v4726
    %v5099 = vpack.c.b16 %v4735, %v4731
    %v5100 = vpack.c.b16 %v4736, %v4732
    %v5101 = vpack.c.b16 %v4737, %v4733
    %v5102 = vpack.c.b16 %v4738, %v4734
    %v5103 = vpack.c.b16 %v4743, %v4739
    %v5104 = vpack.c.b16 %v4744, %v4740
    %v5105 = vpack.c.b16 %v4745, %v4741
    %v5106 = vpack.c.b16 %v4746, %v4742
    %v5107 = vpack.c.b16 %v4751, %v4747
    %v5108 = vpack.c.b16 %v4752, %v4748
    %v5109 = vpack.c.b16 %v4753, %v4749
    %v5110 = vpack.c.b16 %v4754, %v4750
    %v5111 = vpack.c.b16 %v4759, %v4755
    %v5112 = vpack.c.b16 %v4760, %v4756
    %v5113 = vpack.c.b16 %v4761, %v4757
    %v5114 = vpack.c.b16 %v4762, %v4758
    %v5115 = vpack.c.b16 %v4767, %v4763
    %v5116 = vpack.c.b16 %v4768, %v4764
    %v5117 = vpack.c.b16 %v4769, %v4765
    %v5118 = vpack.c.b16 %v4770, %v4766
    %v5119 = vpack.c.b16 %v4775, %v4771
    %v5120 = vpack.c.b16 %v4776, %v4772
    %v5121 = vpack.c.b16 %v4777, %v4773
    %v5122 = vpack.c.b16 %v4778, %v4774
    %v5123 = vpack.c.b16 %v4783, %v4779
    %v5124 = vpack.c.b16 %v4784, %v4780
    %v5125 = vpack.c.b16 %v4785, %v4781
    %v5126 = vpack.c.b16 %v4786, %v4782
    %v5127 = vpack.c.b16 %v4791, %v4787
    %v5128 = vpack.c.b16 %v4792, %v4788
    %v5129 = vpack.c.b16 %v4793, %v4789
    %v5130 = vpack.c.b16 %v4794, %v4790
    %v5131 = vpack.c.b16 %v4799, %v4795
    %v5132 = vpack.c.b16 %v4800, %v4796
    %v5133 = vpack.c.b16 %v4801, %v4797
    %v5134 = vpack.c.b16 %v4802, %v4798
    %v5135 = vpack.c.b16 %v4807, %v4803
    %v5136 = vpack.c.b16 %v4808, %v4804
    %v5137 = vpack.c.b16 %v4809, %v4805
    %v5138 = vpack.c.b16 %v4810, %v4806
    %v5139 = vpack.c.b16 %v4815, %v4811
    %v5140 = vpack.c.b16 %v4816, %v4812
    %v5141 = vpack.c.b16 %v4817, %v4813
    %v5142 = vpack.c.b16 %v4818, %v4814
    %v5143 = vpack.c.b16 %v4823, %v4819
    %v5144 = vpack.c.b16 %v4824, %v4820
    %v5145 = vpack.c.b16 %v4825, %v4821
    %v5146 = vpack.c.b16 %v4826, %v4822
    %v5147 = vpack.c.b16 %v4831, %v4827
    %v5148 = vpack.c.b16 %v4832, %v4828
    %v5149 = vpack.c.b16 %v4833, %v4829
    %v5150 = vpack.c.b16 %v4834, %v4830
    %v5151 = vpack.c.b16 %v4839, %v4835
    %v5152 = vpack.c.b16 %v4840, %v4836
    %v5153 = vpack.c.b16 %v4841, %v4837
    %v5154 = vpack.c.b16 %v4842, %v4838
    %v5155 = vpack.c.b16 %v4847, %v4843
    %v5156 = vpack.c.b16 %v4848, %v4844
    %v5157 = vpack.c.b16 %v4849, %v4845
    %v5158 = vpack.c.b16 %v4850, %v4846
    %v5159 = vpack.c.b16 %v4855, %v4851
    %v5160 = vpack.c.b16 %v4856, %v4852
    %v5161 = vpack.c.b16 %v4857, %v4853
    %v5162 = vpack.c.b16 %v4858, %v4854
    %v5163 = vpack.c.b16 %v4863, %v4859
    %v5164 = vpack.c.b16 %v4864, %v4860
    %v5165 = vpack.c.b16 %v4865, %v4861
    %v5166 = vpack.c.b16 %v4866, %v4862
    %v5167 = vpack.c.b16 %v4871, %v4867
    %v5168 = vpack.c.b16 %v4872, %v4868
    %v5169 = vpack.c.b16 %v4873, %v4869
    %v5170 = vpack.c.b16 %v4874, %v4870
    %v5171 = vpack.c.b16 %v4879, %v4875
    %v5172 = vpack.c.b16 %v4880, %v4876
    %v5173 = vpack.c.b16 %v4881, %v4877
    %v5174 = vpack.c.b16 %v4882, %v4878
    %v5175 = vpack.c.b16 %v4887, %v4883
    %v5176 = vpack.c.b16 %v4888, %v4884
    %v5177 = vpack.c.b16 %v4889, %v4885
    %v5178 = vpack.c.b16 %v4890, %v4886
    %v5179 = vpack.c.b16 %v4895, %v4891
    %v5180 = vpack.c.b16 %v4896, %v4892
    %v5181 = vpack.c.b16 %v4897, %v4893
    %v5182 = vpack.c.b16 %v4898, %v4894
    %v5183 = vpack.c.b16 %v4903, %v4899
    %v5184 = vpack.c.b16 %v4904, %v4900
    %v5185 = vpack.c.b16 %v4905, %v4901
    %v5186 = vpack.c.b16 %v4906, %v4902
    %v5187 = vpack.c.b16 %v4911, %v4907
    %v5188 = vpack.c.b16 %v4912, %v4908
    %v5189 = vpack.c.b16 %v4913, %v4909
    %v5190 = vpack.c.b16 %v4914, %v4910
    %v5191 = vpack.c.b16 %v4919, %v4915
    %v5192 = vpack.c.b16 %v4920, %v4916
    %v5193 = vpack.c.b16 %v4921, %v4917
    %v5194 = vpack.c.b16 %v4922, %v4918
    %v5195 = vpack.c.b16 %v4927, %v4923
    %v5196 = vpack.c.b16 %v4928, %v4924
    %v5197 = vpack.c.b16 %v4929, %v4925
    %v5198 = vpack.c.b16 %v4930, %v4926
    %v5199 = vpack.c.b16 %v4935, %v4931
    %v5200 = vpack.c.b16 %v4936, %v4932
    %v5201 = vpack.c.b16 %v4937, %v4933
    %v5202 = vpack.c.b16 %v4938, %v4934
    %v5203 = vpack.c.b16 %v4943, %v4939
    %v5204 = vpack.c.b16 %v4944, %v4940
    %v5205 = vpack.c.b16 %v4945, %v4941
    %v5206 = vpack.c.b16 %v4946, %v4942
    %v5207 = vpack.c.b16 %v4951, %v4947
    %v5208 = vpack.c.b16 %v4952, %v4948
    %v5209 = vpack.c.b16 %v4953, %v4949
    %v5210 = vpack.c.b16 %v4954, %v4950
    %v5211 = vpack.c.b16 %v4959, %v4955
    %v5212 = vpack.c.b16 %v4960, %v4956
    %v5213 = vpack.c.b16 %v4961, %v4957
    %v5214 = vpack.c.b16 %v4962, %v4958
    %v5215 = vpack.c.b16 %v4967, %v4963
    %v5216 = vpack.c.b16 %v4968, %v4964
    %v5217 = vpack.c.b16 %v4969, %v4965
    %v5218 = vpack.c.b16 %v4970, %v4966
    %v5219 = vpack.c.b16 %v4975, %v4971
    %v5220 = vpack.c.b16 %v4976, %v4972
    %v5221 = vpack.c.b16 %v4977, %v4973
    %v5222 = vpack.c.b16 %v4978, %v4974
    %v5223 = vpack.c.b16 %v4983, %v4979
    %v5224 = vpack.c.b16 %v4984, %v4980
    %v5225 = vpack.c.b16 %v4985, %v4981
    %v5226 = vpack.c.b16 %v4986, %v4982
    %v5227 = vpack.c.b16 %v4991, %v4987
    %v5228 = vpack.c.b16 %v4992, %v4988
    %v5229 = vpack.c.b16 %v4993, %v4989
    %v5230 = vpack.c.b16 %v4994, %v4990
    %v5231 = vpack.c.b16 %v4999, %v4995
    %v5232 = vpack.c.b16 %v5000, %v4996
    %v5233 = vpack.c.b16 %v5001, %v4997
    %v5234 = vpack.c.b16 %v5002, %v4998
    %v5235 = vpack.c.b16 %v5007, %v5003
    %v5236 = vpack.c.b16 %v5008, %v5004
    %v5237 = vpack.c.b16 %v5009, %v5005
    %v5238 = vpack.c.b16 %v5010, %v5006
    %v5239 = vpack.c.b16 %v5015, %v5011
    %v5240 = vpack.c.b16 %v5016, %v5012
    %v5241 = vpack.c.b16 %v5017, %v5013
    %v5242 = vpack.c.b16 %v5018, %v5014
    %v5243 = vpack.c.b16 %v5023, %v5019
    %v5244 = vpack.c.b16 %v5024, %v5020
    %v5245 = vpack.c.b16 %v5025, %v5021
    %v5246 = vpack.c.b16 %v5026, %v5022
    %v5247 = vpack.c.b16 %v5031, %v5027
    %v5248 = vpack.c.b16 %v5032, %v5028
    %v5249 = vpack.c.b16 %v5033, %v5029
    %v5250 = vpack.c.b16 %v5034, %v5030
    %v5251 = vpack.c.b16 %v5039, %v5035
    %v5252 = vpack.c.b16 %v5040, %v5036
    %v5253 = vpack.c.b16 %v5041, %v5037
    %v5254 = vpack.c.b16 %v5042, %v5038
    %v5255 = vpack.c.b16 %v5047, %v5043
    %v5256 = vpack.c.b16 %v5048, %v5044
    %v5257 = vpack.c.b16 %v5049, %v5045
    %v5258 = vpack.c.b16 %v5050, %v5046
    %v5259 = vpack.c.b16 %v5055, %v5051
    %v5260 = vpack.c.b16 %v5056, %v5052
    %v5261 = vpack.c.b16 %v5057, %v5053
    %v5262 = vpack.c.b16 %v5058, %v5054
    %v5263 = vpack.c.b16 %v5063, %v5059
    %v5264 = vpack.c.b16 %v5064, %v5060
    %v5265 = vpack.c.b16 %v5065, %v5061
    %v5266 = vpack.c.b16 %v5066, %v5062
    %v5267 = vpack.c.b16 %v5071, %v5067
    %v5268 = vpack.c.b16 %v5072, %v5068
    %v5269 = vpack.c.b16 %v5073, %v5069
    %v5270 = vpack.c.b16 %v5074, %v5070
    %v5271 = vpack.c.b16 %v5079, %v5075
    %v5272 = vpack.c.b16 %v5080, %v5076
    %v5273 = vpack.c.b16 %v5081, %v5077
    %v5274 = vpack.c.b16 %v5082, %v5078
    %5467 = vmatprep.subr.bf16.mxu0 %v5084
    %5468 = vmatpush1.bf16.msra.mxu0 %v5083
    %5469 = vmatprep.subr.bf16.mxu0 %v5088
    %5470 = vmatpush1.bf16.msra.mxu0 %v5087
    %5471 = vmatprep.subr.bf16.mxu0 %v5092
    %5472 = vmatpush1.bf16.msra.mxu0 %v5091
    %5473 = vmatprep.subr.bf16.mxu0 %v5096
    %5474 = vmatpush1.bf16.msra.mxu0 %v5095
    %5475 = vmatprep.subr.bf16.mxu0 %v5100
    %5476 = vmatpush1.bf16.msra.mxu0 %v5099
    %5477 = vmatprep.subr.bf16.mxu0 %v5104
    %5478 = vmatpush1.bf16.msra.mxu0 %v5103
    %5479 = vmatprep.subr.bf16.mxu0 %v5108
    %5480 = vmatpush1.bf16.msra.mxu0 %v5107
    %5481 = vmatprep.subr.bf16.mxu0 %v5112
    %5482 = vmatpush1.bf16.msra.mxu0 %v5111
    %5483 = vmatprep.subr.bf16.mxu0 %v5116
    %5484 = vmatpush1.bf16.msra.mxu0 %v5115
    %5485 = vmatprep.subr.bf16.mxu0 %v5120
    %5486 = vmatpush1.bf16.msra.mxu0 %v5119
    %5487 = vmatprep.subr.bf16.mxu0 %v5124
    %5488 = vmatpush1.bf16.msra.mxu0 %v5123
    %5489 = vmatprep.subr.bf16.mxu0 %v5128
    %5490 = vmatpush1.bf16.msra.mxu0 %v5127
    %5491 = vmatprep.subr.bf16.mxu0 %v5132
    %5492 = vmatpush1.bf16.msra.mxu0 %v5131
    %5493 = vmatprep.subr.bf16.mxu0 %v5136
    %5494 = vmatpush1.bf16.msra.mxu0 %v5135
    %5495 = vmatprep.subr.bf16.mxu0 %v5140
    %5496 = vmatpush1.bf16.msra.mxu0 %v5139
    %5497 = vmatprep.subr.bf16.mxu0 %v5144
    %5498 = vmatpush1.bf16.msra.mxu0 %v5143
    %5499 = vmatprep.mubr.bf16.mxu0 0
    %5500 = vmatmul.mubr.bf16.gmra.mrb[0].mxu0 0
    %v5501 = vpop.f32.mrb[0].mxu0
    %v5502 = vadd.f32 0.0, %v5501
    %v5503 = vpop.f32.mrb[0].mxu0
    %v5504 = vadd.f32 0.0, %v5503
    %v5505 = vpop.f32.mrb[0].mxu0
    %v5506 = vadd.f32 0.0, %v5505
    %v5507 = vpop.f32.mrb[0].mxu0
    %v5508 = vadd.f32 0.0, %v5507
    %5509 = vmatprep.mubr.bf16.mxu0 0
    %5510 = vmatmul.mubr.bf16.gmra.mrb[0].mxu0 0
    %v5511 = vpop.f32.mrb[0].mxu0
    %v5512 = vadd.f32 0.0, %v5511
    %v5513 = vpop.f32.mrb[0].mxu0
    %v5514 = vadd.f32 0.0, %v5513
    %v5515 = vpop.f32.mrb[0].mxu0
    %v5516 = vadd.f32 0.0, %v5515
    %v5517 = vpop.f32.mrb[0].mxu0
    %v5518 = vadd.f32 0.0, %v5517
    %5519 = vmatprep.mubr.bf16.mxu0 %v4260
    %5520 = vmatmul.mubr.bf16.gmra.mrb[0].mxu0 %v4259
    %v5521 = vpop.f32.mrb[0].mxu0
    %v5522 = vadd.f32 0.0, %v5521
    %v5523 = vpop.f32.mrb[0].mxu0
    %v5524 = vadd.f32 0.0, %v5523
    %v5525 = vpop.f32.mrb[0].mxu0
    %v5526 = vadd.f32 0.0, %v5525
    %v5527 = vpop.f32.mrb[0].mxu0
    %v5528 = vadd.f32 0.0, %v5527
    %5529 = vmatprep.mubr.bf16.mxu0 %v4262
    %5530 = vmatmul.mubr.bf16.gmra.mrb[0].mxu0 %v4261
    %v5531 = vpop.f32.mrb[0].mxu0
    %v5532 = vadd.f32 0.0, %v5531
    %v5533 = vpop.f32.mrb[0].mxu0
    %v5534 = vadd.f32 0.0, %v5533
    %v5535 = vpop.f32.mrb[0].mxu0
    %v5536 = vadd.f32 0.0, %v5535
    %v5537 = vpop.f32.mrb[0].mxu0
    %v5538 = vadd.f32 0.0, %v5537
    %5539 = vmatprep.mubr.bf16.mxu0 %v4264
    %5540 = vmatmul.mubr.bf16.gmra.mrb[0].mxu0 %v4263
    %v5541 = vpop.f32.mrb[0].mxu0
    %v5542 = vadd.f32 0.0, %v5541
    %v5543 = vpop.f32.mrb[0].mxu0
    %v5544 = vadd.f32 0.0, %v5543
    %v5545 = vpop.f32.mrb[0].mxu0
    %v5546 = vadd.f32 0.0, %v5545
    %v5547 = vpop.f32.mrb[0].mxu0
    %v5548 = vadd.f32 0.0, %v5547
    %5549 = vmatprep.mubr.bf16.mxu0 %v4266
    %5550 = vmatmul.mubr.bf16.gmra.mrb[0].mxu0 %v4265
    %v5551 = vpop.f32.mrb[0].mxu0
    %v5552 = vadd.f32 0.0, %v5551
    %v5553 = vpop.f32.mrb[0].mxu0
    %v5554 = vadd.f32 0.0, %v5553
    %v5555 = vpop.f32.mrb[0].mxu0
    %v5556 = vadd.f32 0.0, %v5555
    %v5557 = vpop.f32.mrb[0].mxu0
    %v5558 = vadd.f32 0.0, %v5557
    %5559 = vmatprep.mubr.bf16.mxu0 %v4268
    %5560 = vmatmul.mubr.bf16.gmra.mrb[0].mxu0 %v4267
    %v5561 = vpop.f32.mrb[0].mxu0
    %v5562 = vadd.f32 0.0, %v5561
    %v5563 = vpop.f32.mrb[0].mxu0
    %v5564 = vadd.f32 0.0, %v5563
    %v5565 = vpop.f32.mrb[0].mxu0
    %v5566 = vadd.f32 0.0, %v5565
    %v5567 = vpop.f32.mrb[0].mxu0
    %v5568 = vadd.f32 0.0, %v5567
    %5569 = vmatprep.mubr.bf16.mxu0 %v4270
    %5570 = vmatmul.mubr.bf16.gmra.mrb[0].mxu0 %v4269
    %v5571 = vpop.f32.mrb[0].mxu0
    %v5572 = vadd.f32 0.0, %v5571
    %v5573 = vpop.f32.mrb[0].mxu0
    %v5574 = vadd.f32 0.0, %v5573
    %v5575 = vpop.f32.mrb[0].mxu0
    %v5576 = vadd.f32 0.0, %v5575
    %v5577 = vpop.f32.mrb[0].mxu0
    %v5578 = vadd.f32 0.0, %v5577
    %5579 = vmatprep.mubr.bf16.mxu0 %v4272
    %5580 = vmatmul.mubr.bf16.gmra.mrb[0].mxu0 %v4271
    %v5581 = vpop.f32.mrb[0].mxu0
    %v5582 = vadd.f32 0.0, %v5581
    %v5583 = vpop.f32.mrb[0].mxu0
    %v5584 = vadd.f32 0.0, %v5583
    %v5585 = vpop.f32.mrb[0].mxu0
    %v5586 = vadd.f32 0.0, %v5585
    %v5587 = vpop.f32.mrb[0].mxu0
    %v5588 = vadd.f32 0.0, %v5587
    %5589 = vmatprep.mubr.bf16.mxu0 %v4274
    %5590 = vmatmul.mubr.bf16.gmra.mrb[0].mxu0 %v4273
    %v5591 = vpop.f32.mrb[0].mxu0
    %v5592 = vadd.f32 0.0, %v5591
    %v5593 = vpop.f32.mrb[0].mxu0
    %v5594 = vadd.f32 0.0, %v5593
    %v5595 = vpop.f32.mrb[0].mxu0
    %v5596 = vadd.f32 0.0, %v5595
    %v5597 = vpop.f32.mrb[0].mxu0
    %v5598 = vadd.f32 0.0, %v5597
    %5599 = vmatprep.mubr.bf16.mxu0 %v4276
    %5600 = vmatmul.mubr.bf16.gmra.mrb[0].mxu0 %v4275
    %v5601 = vpop.f32.mrb[0].mxu0
    %v5602 = vadd.f32 0.0, %v5601
    %v5603 = vpop.f32.mrb[0].mxu0
    %v5604 = vadd.f32 0.0, %v5603
    %v5605 = vpop.f32.mrb[0].mxu0
    %v5606 = vadd.f32 0.0, %v5605
    %v5607 = vpop.f32.mrb[0].mxu0
    %v5608 = vadd.f32 0.0, %v5607
    %5609 = vmatprep.mubr.bf16.mxu0 %v4278
    %5610 = vmatmul.mubr.bf16.gmra.mrb[0].mxu0 %v4277
    %v5611 = vpop.f32.mrb[0].mxu0
    %v5612 = vadd.f32 0.0, %v5611
    %v5613 = vpop.f32.mrb[0].mxu0
    %v5614 = vadd.f32 0.0, %v5613
    %v5615 = vpop.f32.mrb[0].mxu0
    %v5616 = vadd.f32 0.0, %v5615
    %v5617 = vpop.f32.mrb[0].mxu0
    %v5618 = vadd.f32 0.0, %v5617
    %5619 = vmatprep.mubr.bf16.mxu0 %v4280
    %5620 = vmatmul.mubr.bf16.gmra.mrb[0].mxu0 %v4279
    %v5621 = vpop.f32.mrb[0].mxu0
    %v5622 = vadd.f32 0.0, %v5621
    %v5623 = vpop.f32.mrb[0].mxu0
    %v5624 = vadd.f32 0.0, %v5623
    %v5625 = vpop.f32.mrb[0].mxu0
    %v5626 = vadd.f32 0.0, %v5625
    %v5627 = vpop.f32.mrb[0].mxu0
    %v5628 = vadd.f32 0.0, %v5627
    %5629 = vmatprep.mubr.bf16.mxu0 %v4282
    %5630 = vmatmul.mubr.bf16.gmra.mrb[0].mxu0 %v4281
    %v5631 = vpop.f32.mrb[0].mxu0
    %v5632 = vadd.f32 0.0, %v5631
    %v5633 = vpop.f32.mrb[0].mxu0
    %v5634 = vadd.f32 0.0, %v5633
    %v5635 = vpop.f32.mrb[0].mxu0
    %v5636 = vadd.f32 0.0, %v5635
    %v5637 = vpop.f32.mrb[0].mxu0
    %v5638 = vadd.f32 0.0, %v5637
    %5639 = vmatprep.mubr.bf16.mxu0 %v4284
    %5640 = vmatmul.mubr.bf16.gmra.mrb[0].mxu0 %v4283
    %v5641 = vpop.f32.mrb[0].mxu0
    %v5642 = vadd.f32 0.0, %v5641
    %v5643 = vpop.f32.mrb[0].mxu0
    %v5644 = vadd.f32 0.0, %v5643
    %v5645 = vpop.f32.mrb[0].mxu0
    %v5646 = vadd.f32 0.0, %v5645
    %v5647 = vpop.f32.mrb[0].mxu0
    %v5648 = vadd.f32 0.0, %v5647
    %5649 = vmatprep.mubr.bf16.mxu0 %v4286
    %5650 = vmatmul.mubr.bf16.gmra.mrb[0].mxu0 %v4285
    %v5651 = vpop.f32.mrb[0].mxu0
    %v5652 = vadd.f32 0.0, %v5651
    %v5653 = vpop.f32.mrb[0].mxu0
    %v5654 = vadd.f32 0.0, %v5653
    %v5655 = vpop.f32.mrb[0].mxu0
    %v5656 = vadd.f32 0.0, %v5655
    %v5657 = vpop.f32.mrb[0].mxu0
    %v5658 = vadd.f32 0.0, %v5657
    %5659 = vmatprep.mubr.bf16.mxu0 %v4288
    %5660 = vmatmul.mubr.bf16.gmra.mrb[0].mxu0 %v4287
    %v5661 = vpop.f32.mrb[0].mxu0
    %v5662 = vadd.f32 0.0, %v5661
    %v5663 = vpop.f32.mrb[0].mxu0
    %v5664 = vadd.f32 0.0, %v5663
    %v5665 = vpop.f32.mrb[0].mxu0
    %v5666 = vadd.f32 0.0, %v5665
    %v5667 = vpop.f32.mrb[0].mxu0
    %v5668 = vadd.f32 0.0, %v5667
    %5669 = vmatprep.mubr.bf16.mxu0 %v4290
    %5670 = vmatmul.mubr.bf16.gmra.mrb[0].mxu0 %v4289
    %v5671 = vpop.f32.mrb[0].mxu0
    %v5672 = vadd.f32 0.0, %v5671
    %v5673 = vpop.f32.mrb[0].mxu0
    %v5674 = vadd.f32 0.0, %v5673
    %v5675 = vpop.f32.mrb[0].mxu0
    %v5676 = vadd.f32 0.0, %v5675
    %v5677 = vpop.f32.mrb[0].mxu0
    %v5678 = vadd.f32 0.0, %v5677
    %5679 = vmatprep.mubr.bf16.mxu0 %v4292
    %5680 = vmatmul.mubr.bf16.gmra.mrb[0].mxu0 %v4291
    %v5681 = vpop.f32.mrb[0].mxu0
    %v5682 = vadd.f32 0.0, %v5681
    %v5683 = vpop.f32.mrb[0].mxu0
    %v5684 = vadd.f32 0.0, %v5683
    %v5685 = vpop.f32.mrb[0].mxu0
    %v5686 = vadd.f32 0.0, %v5685
    %v5687 = vpop.f32.mrb[0].mxu0
    %v5688 = vadd.f32 0.0, %v5687
    %5689 = vmatprep.mubr.bf16.mxu0 %v4294
    %5690 = vmatmul.mubr.bf16.gmra.mrb[0].mxu0 %v4293
    %v5691 = vpop.f32.mrb[0].mxu0
    %v5692 = vadd.f32 0.0, %v5691
    %v5693 = vpop.f32.mrb[0].mxu0
    %v5694 = vadd.f32 0.0, %v5693
    %v5695 = vpop.f32.mrb[0].mxu0
    %v5696 = vadd.f32 0.0, %v5695
    %v5697 = vpop.f32.mrb[0].mxu0
    %v5698 = vadd.f32 0.0, %v5697
    %5699 = vmatprep.mubr.bf16.mxu0 %v4296
    %5700 = vmatmul.mubr.bf16.gmra.mrb[0].mxu0 %v4295
    %v5701 = vpop.f32.mrb[0].mxu0
    %v5702 = vadd.f32 0.0, %v5701
    %v5703 = vpop.f32.mrb[0].mxu0
    %v5704 = vadd.f32 0.0, %v5703
    %v5705 = vpop.f32.mrb[0].mxu0
    %v5706 = vadd.f32 0.0, %v5705
    %v5707 = vpop.f32.mrb[0].mxu0
    %v5708 = vadd.f32 0.0, %v5707
    %5709 = vmatprep.mubr.bf16.mxu0 %v4298
    %5710 = vmatmul.mubr.bf16.gmra.mrb[0].mxu0 %v4297
    %v5711 = vpop.f32.mrb[0].mxu0
    %v5712 = vadd.f32 0.0, %v5711
    %v5713 = vpop.f32.mrb[0].mxu0
    %v5714 = vadd.f32 0.0, %v5713
    %v5715 = vpop.f32.mrb[0].mxu0
    %v5716 = vadd.f32 0.0, %v5715
    %v5717 = vpop.f32.mrb[0].mxu0
    %v5718 = vadd.f32 0.0, %v5717
    %5719 = vmatprep.mubr.bf16.mxu0 %v4300
    %5720 = vmatmul.mubr.bf16.gmra.mrb[0].mxu0 %v4299
    %v5721 = vpop.f32.mrb[0].mxu0
    %v5722 = vadd.f32 0.0, %v5721
    %v5723 = vpop.f32.mrb[0].mxu0
    %v5724 = vadd.f32 0.0, %v5723
    %v5725 = vpop.f32.mrb[0].mxu0
    %v5726 = vadd.f32 0.0, %v5725
    %v5727 = vpop.f32.mrb[0].mxu0
    %v5728 = vadd.f32 0.0, %v5727
    %5729 = vmatprep.mubr.bf16.mxu0 %v4302
    %5730 = vmatmul.mubr.bf16.gmra.mrb[0].mxu0 %v4301
    %v5731 = vpop.f32.mrb[0].mxu0
    %v5732 = vadd.f32 0.0, %v5731
    %v5733 = vpop.f32.mrb[0].mxu0
    %v5734 = vadd.f32 0.0, %v5733
    %v5735 = vpop.f32.mrb[0].mxu0
    %v5736 = vadd.f32 0.0, %v5735
    %v5737 = vpop.f32.mrb[0].mxu0
    %v5738 = vadd.f32 0.0, %v5737
    %5739 = vmatprep.mubr.bf16.mxu0 %v4304
    %5740 = vmatmul.mubr.bf16.gmra.mrb[0].mxu0 %v4303
    %v5741 = vpop.f32.mrb[0].mxu0
    %v5742 = vadd.f32 0.0, %v5741
    %v5743 = vpop.f32.mrb[0].mxu0
    %v5744 = vadd.f32 0.0, %v5743
    %v5745 = vpop.f32.mrb[0].mxu0
    %v5746 = vadd.f32 0.0, %v5745
    %v5747 = vpop.f32.mrb[0].mxu0
    %v5748 = vadd.f32 0.0, %v5747
    %5749 = vmatprep.mubr.bf16.mxu0 %v4306
    %5750 = vmatmul.mubr.bf16.gmra.mrb[0].mxu0 %v4305
    %v5751 = vpop.f32.mrb[0].mxu0
    %v5752 = vadd.f32 0.0, %v5751
    %v5753 = vpop.f32.mrb[0].mxu0
    %v5754 = vadd.f32 0.0, %v5753
    %v5755 = vpop.f32.mrb[0].mxu0
    %v5756 = vadd.f32 0.0, %v5755
    %v5757 = vpop.f32.mrb[0].mxu0
    %v5758 = vadd.f32 0.0, %v5757
    %5759 = vmatprep.mubr.bf16.mxu0 %v4308
    %5760 = vmatmul.mubr.bf16.gmra.mrb[0].mxu0 %v4307
    %v5761 = vpop.f32.mrb[0].mxu0
    %v5762 = vadd.f32 0.0, %v5761
    %v5763 = vpop.f32.mrb[0].mxu0
    %v5764 = vadd.f32 0.0, %v5763
    %v5765 = vpop.f32.mrb[0].mxu0
    %v5766 = vadd.f32 0.0, %v5765
    %v5767 = vpop.f32.mrb[0].mxu0
    %v5768 = vadd.f32 0.0, %v5767
    %5769 = vmatprep.mubr.bf16.mxu0 %v4310
    %5770 = vmatmul.mubr.bf16.gmra.mrb[0].mxu0 %v4309
    %v5771 = vpop.f32.mrb[0].mxu0
    %v5772 = vadd.f32 0.0, %v5771
    %v5773 = vpop.f32.mrb[0].mxu0
    %v5774 = vadd.f32 0.0, %v5773
    %v5775 = vpop.f32.mrb[0].mxu0
    %v5776 = vadd.f32 0.0, %v5775
    %v5777 = vpop.f32.mrb[0].mxu0
    %v5778 = vadd.f32 0.0, %v5777
    %5779 = vdwg.mxu0
    %5780 = vmatprep.subr.bf16.mxu0 %v5148
    %5781 = vmatpush1.bf16.msra.mxu0 %v5147
    %5782 = vmatprep.subr.bf16.mxu0 %v5152
    %5783 = vmatpush1.bf16.msra.mxu0 %v5151
    %5784 = vmatprep.subr.bf16.mxu0 %v5156
    %5785 = vmatpush1.bf16.msra.mxu0 %v5155
    %5786 = vmatprep.subr.bf16.mxu0 %v5160
    %5787 = vmatpush1.bf16.msra.mxu0 %v5159
    %5788 = vmatprep.subr.bf16.mxu0 %v5164
    %5789 = vmatpush1.bf16.msra.mxu0 %v5163
    %5790 = vmatprep.subr.bf16.mxu0 %v5168
    %5791 = vmatpush1.bf16.msra.mxu0 %v5167
    %5792 = vmatprep.subr.bf16.mxu0 %v5172
    %5793 = vmatpush1.bf16.msra.mxu0 %v5171
    %5794 = vmatprep.subr.bf16.mxu0 %v5176
    %5795 = vmatpush1.bf16.msra.mxu0 %v5175
    %5796 = vmatprep.subr.bf16.mxu0 %v5180
    %5797 = vmatpush1.bf16.msra.mxu0 %v5179
    %5798 = vmatprep.subr.bf16.mxu0 %v5184
    %5799 = vmatpush1.bf16.msra.mxu0 %v5183
    %5800 = vmatprep.subr.bf16.mxu0 %v5188
    %5801 = vmatpush1.bf16.msra.mxu0 %v5187
    %5802 = vmatprep.subr.bf16.mxu0 %v5192
    %5803 = vmatpush1.bf16.msra.mxu0 %v5191
    %5804 = vmatprep.subr.bf16.mxu0 %v5196
    %5805 = vmatpush1.bf16.msra.mxu0 %v5195
    %5806 = vmatprep.subr.bf16.mxu0 %v5200
    %5807 = vmatpush1.bf16.msra.mxu0 %v5199
    %5808 = vmatprep.subr.bf16.mxu0 %v5204
    %5809 = vmatpush1.bf16.msra.mxu0 %v5203
    %5810 = vmatprep.subr.bf16.mxu0 %v5208
    %5811 = vmatpush1.bf16.msra.mxu0 %v5207
    %5812 = vmatprep.mubr.bf16.mxu0 %v4260
    %5813 = vmatmul.mubr.bf16.gmra.mrb[0].mxu0 %v4259
    %v5814 = vpop.f32.mrb[0].mxu0
    %v5815 = vadd.f32 %v5502, %v5814
    %v5816 = vpop.f32.mrb[0].mxu0
    %v5817 = vadd.f32 %v5504, %v5816
    %v5818 = vpop.f32.mrb[0].mxu0
    %v5819 = vadd.f32 %v5506, %v5818
    %v5820 = vpop.f32.mrb[0].mxu0
    %v5821 = vadd.f32 %v5508, %v5820
    %5822 = vmatprep.mubr.bf16.mxu0 %v4262
    %5823 = vmatmul.mubr.bf16.gmra.mrb[0].mxu0 %v4261
    %v5824 = vpop.f32.mrb[0].mxu0
    %v5825 = vadd.f32 %v5512, %v5824
    %v5826 = vpop.f32.mrb[0].mxu0
    %v5827 = vadd.f32 %v5514, %v5826
    %v5828 = vpop.f32.mrb[0].mxu0
    %v5829 = vadd.f32 %v5516, %v5828
    %v5830 = vpop.f32.mrb[0].mxu0
    %v5831 = vadd.f32 %v5518, %v5830
    %5832 = vmatprep.mubr.bf16.mxu0 %v4264
    %5833 = vmatmul.mubr.bf16.gmra.mrb[0].mxu0 %v4263
    %v5834 = vpop.f32.mrb[0].mxu0
    %v5835 = vadd.f32 %v5522, %v5834
    %v5836 = vpop.f32.mrb[0].mxu0
    %v5837 = vadd.f32 %v5524, %v5836
    %v5838 = vpop.f32.mrb[0].mxu0
    %v5839 = vadd.f32 %v5526, %v5838
    %v5840 = vpop.f32.mrb[0].mxu0
    %v5841 = vadd.f32 %v5528, %v5840
    %5842 = vmatprep.mubr.bf16.mxu0 %v4266
    %5843 = vmatmul.mubr.bf16.gmra.mrb[0].mxu0 %v4265
    %v5844 = vpop.f32.mrb[0].mxu0
    %v5845 = vadd.f32 %v5532, %v5844
    %v5846 = vpop.f32.mrb[0].mxu0
    %v5847 = vadd.f32 %v5534, %v5846
    %v5848 = vpop.f32.mrb[0].mxu0
    %v5849 = vadd.f32 %v5536, %v5848
    %v5850 = vpop.f32.mrb[0].mxu0
    %v5851 = vadd.f32 %v5538, %v5850
    %5852 = vmatprep.mubr.bf16.mxu0 %v4268
    %5853 = vmatmul.mubr.bf16.gmra.mrb[0].mxu0 %v4267
    %v5854 = vpop.f32.mrb[0].mxu0
    %v5855 = vadd.f32 %v5542, %v5854
    %v5856 = vpop.f32.mrb[0].mxu0
    %v5857 = vadd.f32 %v5544, %v5856
    %v5858 = vpop.f32.mrb[0].mxu0
    %v5859 = vadd.f32 %v5546, %v5858
    %v5860 = vpop.f32.mrb[0].mxu0
    %v5861 = vadd.f32 %v5548, %v5860
    %5862 = vmatprep.mubr.bf16.mxu0 %v4270
    %5863 = vmatmul.mubr.bf16.gmra.mrb[0].mxu0 %v4269
    %v5864 = vpop.f32.mrb[0].mxu0
    %v5865 = vadd.f32 %v5552, %v5864
    %v5866 = vpop.f32.mrb[0].mxu0
    %v5867 = vadd.f32 %v5554, %v5866
    %v5868 = vpop.f32.mrb[0].mxu0
    %v5869 = vadd.f32 %v5556, %v5868
    %v5870 = vpop.f32.mrb[0].mxu0
    %v5871 = vadd.f32 %v5558, %v5870
    %5872 = vmatprep.mubr.bf16.mxu0 %v4272
    %5873 = vmatmul.mubr.bf16.gmra.mrb[0].mxu0 %v4271
    %v5874 = vpop.f32.mrb[0].mxu0
    %v5875 = vadd.f32 %v5562, %v5874
    %v5876 = vpop.f32.mrb[0].mxu0
    %v5877 = vadd.f32 %v5564, %v5876
    %v5878 = vpop.f32.mrb[0].mxu0
    %v5879 = vadd.f32 %v5566, %v5878
    %v5880 = vpop.f32.mrb[0].mxu0
    %v5881 = vadd.f32 %v5568, %v5880
    %5882 = vmatprep.mubr.bf16.mxu0 %v4274
    %5883 = vmatmul.mubr.bf16.gmra.mrb[0].mxu0 %v4273
    %v5884 = vpop.f32.mrb[0].mxu0
    %v5885 = vadd.f32 %v5572, %v5884
    %v5886 = vpop.f32.mrb[0].mxu0
    %v5887 = vadd.f32 %v5574, %v5886
    %v5888 = vpop.f32.mrb[0].mxu0
    %v5889 = vadd.f32 %v5576, %v5888
    %v5890 = vpop.f32.mrb[0].mxu0
    %v5891 = vadd.f32 %v5578, %v5890
    %5892 = vmatprep.mubr.bf16.mxu0 %v4276
    %5893 = vmatmul.mubr.bf16.gmra.mrb[0].mxu0 %v4275
    %v5894 = vpop.f32.mrb[0].mxu0
    %v5895 = vadd.f32 %v5582, %v5894
    %v5896 = vpop.f32.mrb[0].mxu0
    %v5897 = vadd.f32 %v5584, %v5896
    %v5898 = vpop.f32.mrb[0].mxu0
    %v5899 = vadd.f32 %v5586, %v5898
    %v5900 = vpop.f32.mrb[0].mxu0
    %v5901 = vadd.f32 %v5588, %v5900
    %5902 = vmatprep.mubr.bf16.mxu0 %v4278
    %5903 = vmatmul.mubr.bf16.gmra.mrb[0].mxu0 %v4277
    %v5904 = vpop.f32.mrb[0].mxu0
    %v5905 = vadd.f32 %v5592, %v5904
    %v5906 = vpop.f32.mrb[0].mxu0
    %v5907 = vadd.f32 %v5594, %v5906
    %v5908 = vpop.f32.mrb[0].mxu0
    %v5909 = vadd.f32 %v5596, %v5908
    %v5910 = vpop.f32.mrb[0].mxu0
    %v5911 = vadd.f32 %v5598, %v5910
    %5912 = vmatprep.mubr.bf16.mxu0 %v4280
    %5913 = vmatmul.mubr.bf16.gmra.mrb[0].mxu0 %v4279
    %v5914 = vpop.f32.mrb[0].mxu0
    %v5915 = vadd.f32 %v5602, %v5914
    %v5916 = vpop.f32.mrb[0].mxu0
    %v5917 = vadd.f32 %v5604, %v5916
    %v5918 = vpop.f32.mrb[0].mxu0
    %v5919 = vadd.f32 %v5606, %v5918
    %v5920 = vpop.f32.mrb[0].mxu0
    %v5921 = vadd.f32 %v5608, %v5920
    %5922 = vmatprep.mubr.bf16.mxu0 %v4282
    %5923 = vmatmul.mubr.bf16.gmra.mrb[0].mxu0 %v4281
    %v5924 = vpop.f32.mrb[0].mxu0
    %v5925 = vadd.f32 %v5612, %v5924
    %v5926 = vpop.f32.mrb[0].mxu0
    %v5927 = vadd.f32 %v5614, %v5926
    %v5928 = vpop.f32.mrb[0].mxu0
    %v5929 = vadd.f32 %v5616, %v5928
    %v5930 = vpop.f32.mrb[0].mxu0
    %v5931 = vadd.f32 %v5618, %v5930
    %5932 = vmatprep.mubr.bf16.mxu0 %v4284
    %5933 = vmatmul.mubr.bf16.gmra.mrb[0].mxu0 %v4283
    %v5934 = vpop.f32.mrb[0].mxu0
    %v5935 = vadd.f32 %v5622, %v5934
    %v5936 = vpop.f32.mrb[0].mxu0
    %v5937 = vadd.f32 %v5624, %v5936
    %v5938 = vpop.f32.mrb[0].mxu0
    %v5939 = vadd.f32 %v5626, %v5938
    %v5940 = vpop.f32.mrb[0].mxu0
    %v5941 = vadd.f32 %v5628, %v5940
    %5942 = vmatprep.mubr.bf16.mxu0 %v4286
    %5943 = vmatmul.mubr.bf16.gmra.mrb[0].mxu0 %v4285
    %v5944 = vpop.f32.mrb[0].mxu0
    %v5945 = vadd.f32 %v5632, %v5944
    %v5946 = vpop.f32.mrb[0].mxu0
    %v5947 = vadd.f32 %v5634, %v5946
    %v5948 = vpop.f32.mrb[0].mxu0
    %v5949 = vadd.f32 %v5636, %v5948
    %v5950 = vpop.f32.mrb[0].mxu0
    %v5951 = vadd.f32 %v5638, %v5950
    %5952 = vmatprep.mubr.bf16.mxu0 %v4288
    %5953 = vmatmul.mubr.bf16.gmra.mrb[0].mxu0 %v4287
    %v5954 = vpop.f32.mrb[0].mxu0
    %v5955 = vadd.f32 %v5642, %v5954
    %v5956 = vpop.f32.mrb[0].mxu0
    %v5957 = vadd.f32 %v5644, %v5956
    %v5958 = vpop.f32.mrb[0].mxu0
    %v5959 = vadd.f32 %v5646, %v5958
    %v5960 = vpop.f32.mrb[0].mxu0
    %v5961 = vadd.f32 %v5648, %v5960
    %5962 = vmatprep.mubr.bf16.mxu0 %v4290
    %5963 = vmatmul.mubr.bf16.gmra.mrb[0].mxu0 %v4289
    %v5964 = vpop.f32.mrb[0].mxu0
    %v5965 = vadd.f32 %v5652, %v5964
    %v5966 = vpop.f32.mrb[0].mxu0
    %v5967 = vadd.f32 %v5654, %v5966
    %v5968 = vpop.f32.mrb[0].mxu0
    %v5969 = vadd.f32 %v5656, %v5968
    %v5970 = vpop.f32.mrb[0].mxu0
    %v5971 = vadd.f32 %v5658, %v5970
    %5972 = vmatprep.mubr.bf16.mxu0 %v4292
    %5973 = vmatmul.mubr.bf16.gmra.mrb[0].mxu0 %v4291
    %v5974 = vpop.f32.mrb[0].mxu0
    %v5975 = vadd.f32 %v5662, %v5974
    %v5976 = vpop.f32.mrb[0].mxu0
    %v5977 = vadd.f32 %v5664, %v5976
    %v5978 = vpop.f32.mrb[0].mxu0
    %v5979 = vadd.f32 %v5666, %v5978
    %v5980 = vpop.f32.mrb[0].mxu0
    %v5981 = vadd.f32 %v5668, %v5980
    %5982 = vmatprep.mubr.bf16.mxu0 %v4294
    %5983 = vmatmul.mubr.bf16.gmra.mrb[0].mxu0 %v4293
    %v5984 = vpop.f32.mrb[0].mxu0
    %v5985 = vadd.f32 %v5672, %v5984
    %v5986 = vpop.f32.mrb[0].mxu0
    %v5987 = vadd.f32 %v5674, %v5986
    %v5988 = vpop.f32.mrb[0].mxu0
    %v5989 = vadd.f32 %v5676, %v5988
    %v5990 = vpop.f32.mrb[0].mxu0
    %v5991 = vadd.f32 %v5678, %v5990
    %5992 = vmatprep.mubr.bf16.mxu0 %v4296
    %5993 = vmatmul.mubr.bf16.gmra.mrb[0].mxu0 %v4295
    %v5994 = vpop.f32.mrb[0].mxu0
    %v5995 = vadd.f32 %v5682, %v5994
    %v5996 = vpop.f32.mrb[0].mxu0
    %v5997 = vadd.f32 %v5684, %v5996
    %v5998 = vpop.f32.mrb[0].mxu0
    %v5999 = vadd.f32 %v5686, %v5998
    %v6000 = vpop.f32.mrb[0].mxu0
    %v6001 = vadd.f32 %v5688, %v6000
    %6002 = vmatprep.mubr.bf16.mxu0 %v4298
    %6003 = vmatmul.mubr.bf16.gmra.mrb[0].mxu0 %v4297
    %v6004 = vpop.f32.mrb[0].mxu0
    %v6005 = vadd.f32 %v5692, %v6004
    %v6006 = vpop.f32.mrb[0].mxu0
    %v6007 = vadd.f32 %v5694, %v6006
    %v6008 = vpop.f32.mrb[0].mxu0
    %v6009 = vadd.f32 %v5696, %v6008
    %v6010 = vpop.f32.mrb[0].mxu0
    %v6011 = vadd.f32 %v5698, %v6010
    %6012 = vmatprep.mubr.bf16.mxu0 %v4300
    %6013 = vmatmul.mubr.bf16.gmra.mrb[0].mxu0 %v4299
    %v6014 = vpop.f32.mrb[0].mxu0
    %v6015 = vadd.f32 %v5702, %v6014
    %v6016 = vpop.f32.mrb[0].mxu0
    %v6017 = vadd.f32 %v5704, %v6016
    %v6018 = vpop.f32.mrb[0].mxu0
    %v6019 = vadd.f32 %v5706, %v6018
    %v6020 = vpop.f32.mrb[0].mxu0
    %v6021 = vadd.f32 %v5708, %v6020
    %6022 = vmatprep.mubr.bf16.mxu0 %v4302
    %6023 = vmatmul.mubr.bf16.gmra.mrb[0].mxu0 %v4301
    %v6024 = vpop.f32.mrb[0].mxu0
    %v6025 = vadd.f32 %v5712, %v6024
    %v6026 = vpop.f32.mrb[0].mxu0
    %v6027 = vadd.f32 %v5714, %v6026
    %v6028 = vpop.f32.mrb[0].mxu0
    %v6029 = vadd.f32 %v5716, %v6028
    %v6030 = vpop.f32.mrb[0].mxu0
    %v6031 = vadd.f32 %v5718, %v6030
    %6032 = vmatprep.mubr.bf16.mxu0 %v4304
    %6033 = vmatmul.mubr.bf16.gmra.mrb[0].mxu0 %v4303
    %v6034 = vpop.f32.mrb[0].mxu0
    %v6035 = vadd.f32 %v5722, %v6034
    %v6036 = vpop.f32.mrb[0].mxu0
    %v6037 = vadd.f32 %v5724, %v6036
    %v6038 = vpop.f32.mrb[0].mxu0
    %v6039 = vadd.f32 %v5726, %v6038
    %v6040 = vpop.f32.mrb[0].mxu0
    %v6041 = vadd.f32 %v5728, %v6040
    %6042 = vmatprep.mubr.bf16.mxu0 %v4306
    %6043 = vmatmul.mubr.bf16.gmra.mrb[0].mxu0 %v4305
    %v6044 = vpop.f32.mrb[0].mxu0
    %v6045 = vadd.f32 %v5732, %v6044
    %v6046 = vpop.f32.mrb[0].mxu0
    %v6047 = vadd.f32 %v5734, %v6046
    %v6048 = vpop.f32.mrb[0].mxu0
    %v6049 = vadd.f32 %v5736, %v6048
    %v6050 = vpop.f32.mrb[0].mxu0
    %v6051 = vadd.f32 %v5738, %v6050
    %6052 = vmatprep.mubr.bf16.mxu0 %v4308
    %6053 = vmatmul.mubr.bf16.gmra.mrb[0].mxu0 %v4307
    %v6054 = vpop.f32.mrb[0].mxu0
    %v6055 = vadd.f32 %v5742, %v6054
    %v6056 = vpop.f32.mrb[0].mxu0
    %v6057 = vadd.f32 %v5744, %v6056
    %v6058 = vpop.f32.mrb[0].mxu0
    %v6059 = vadd.f32 %v5746, %v6058
    %v6060 = vpop.f32.mrb[0].mxu0
    %v6061 = vadd.f32 %v5748, %v6060
    %6062 = vmatprep.mubr.bf16.mxu0 %v4310
    %6063 = vmatmul.mubr.bf16.gmra.mrb[0].mxu0 %v4309
    %v6064 = vpop.f32.mrb[0].mxu0
    %v6065 = vadd.f32 %v5752, %v6064
    %v6066 = vpop.f32.mrb[0].mxu0
    %v6067 = vadd.f32 %v5754, %v6066
    %v6068 = vpop.f32.mrb[0].mxu0
    %v6069 = vadd.f32 %v5756, %v6068
    %v6070 = vpop.f32.mrb[0].mxu0
    %v6071 = vadd.f32 %v5758, %v6070
    %6072 = vmatprep.mubr.bf16.mxu0 %v4312
    %6073 = vmatmul.mubr.bf16.gmra.mrb[0].mxu0 %v4311
    %v6074 = vpop.f32.mrb[0].mxu0
    %v6075 = vadd.f32 %v5762, %v6074
    %v6076 = vpop.f32.mrb[0].mxu0
    %v6077 = vadd.f32 %v5764, %v6076
    %v6078 = vpop.f32.mrb[0].mxu0
    %v6079 = vadd.f32 %v5766, %v6078
    %v6080 = vpop.f32.mrb[0].mxu0
    %v6081 = vadd.f32 %v5768, %v6080
    %6082 = vmatprep.mubr.bf16.mxu0 %v4314
    %6083 = vmatmul.mubr.bf16.gmra.mrb[0].mxu0 %v4313
    %v6084 = vpop.f32.mrb[0].mxu0
    %v6085 = vadd.f32 %v5772, %v6084
    %v6086 = vpop.f32.mrb[0].mxu0
    %v6087 = vadd.f32 %v5774, %v6086
    %v6088 = vpop.f32.mrb[0].mxu0
    %v6089 = vadd.f32 %v5776, %v6088
    %v6090 = vpop.f32.mrb[0].mxu0
    %v6091 = vadd.f32 %v5778, %v6090
    %6092 = vdwg.mxu0
    %6093 = vmatprep.subr.bf16.mxu0 %v5212
    %6094 = vmatpush1.bf16.msra.mxu0 %v5211
    %6095 = vmatprep.subr.bf16.mxu0 %v5216
    %6096 = vmatpush1.bf16.msra.mxu0 %v5215
    %6097 = vmatprep.subr.bf16.mxu0 %v5220
    %6098 = vmatpush1.bf16.msra.mxu0 %v5219
    %6099 = vmatprep.subr.bf16.mxu0 %v5224
    %6100 = vmatpush1.bf16.msra.mxu0 %v5223
    %6101 = vmatprep.subr.bf16.mxu0 %v5228
    %6102 = vmatpush1.bf16.msra.mxu0 %v5227
    %6103 = vmatprep.subr.bf16.mxu0 %v5232
    %6104 = vmatpush1.bf16.msra.mxu0 %v5231
    %6105 = vmatprep.subr.bf16.mxu0 %v5236
    %6106 = vmatpush1.bf16.msra.mxu0 %v5235
    %6107 = vmatprep.subr.bf16.mxu0 %v5240
    %6108 = vmatpush1.bf16.msra.mxu0 %v5239
    %6109 = vmatprep.subr.bf16.mxu0 %v5244
    %6110 = vmatpush1.bf16.msra.mxu0 %v5243
    %6111 = vmatprep.subr.bf16.mxu0 %v5248
    %6112 = vmatpush1.bf16.msra.mxu0 %v5247
    %6113 = vmatprep.subr.bf16.mxu0 %v5252
    %6114 = vmatpush1.bf16.msra.mxu0 %v5251
    %6115 = vmatprep.subr.bf16.mxu0 %v5256
    %6116 = vmatpush1.bf16.msra.mxu0 %v5255
    %6117 = vmatprep.subr.bf16.mxu0 %v5260
    %6118 = vmatpush1.bf16.msra.mxu0 %v5259
    %6119 = vmatprep.subr.bf16.mxu0 %v5264
    %6120 = vmatpush1.bf16.msra.mxu0 %v5263
    %6121 = vmatprep.subr.bf16.mxu0 %v5268
    %6122 = vmatpush1.bf16.msra.mxu0 %v5267
    %6123 = vmatprep.subr.bf16.mxu0 %v5272
    %6124 = vmatpush1.bf16.msra.mxu0 %v5271
    %6125 = vmatprep.mubr.bf16.mxu0 %v4264
    %6126 = vmatmul.mubr.bf16.gmra.mrb[0].mxu0 %v4263
    %v6127 = vpop.f32.mrb[0].mxu0
    %v6128 = vadd.f32 %v5815, %v6127
    %v6129 = vpop.f32.mrb[0].mxu0
    %v6130 = vadd.f32 %v5817, %v6129
    %v6131 = vpop.f32.mrb[0].mxu0
    %v6132 = vadd.f32 %v5819, %v6131
    %v6133 = vpop.f32.mrb[0].mxu0
    %v6134 = vadd.f32 %v5821, %v6133
    %6135 = vmatprep.mubr.bf16.mxu0 %v4266
    %6136 = vmatmul.mubr.bf16.gmra.mrb[0].mxu0 %v4265
    %v6137 = vpop.f32.mrb[0].mxu0
    %v6138 = vadd.f32 %v5825, %v6137
    %v6139 = vpop.f32.mrb[0].mxu0
    %v6140 = vadd.f32 %v5827, %v6139
    %v6141 = vpop.f32.mrb[0].mxu0
    %v6142 = vadd.f32 %v5829, %v6141
    %v6143 = vpop.f32.mrb[0].mxu0
    %v6144 = vadd.f32 %v5831, %v6143
    %6145 = vmatprep.mubr.bf16.mxu0 %v4268
    %6146 = vmatmul.mubr.bf16.gmra.mrb[0].mxu0 %v4267
    %v6147 = vpop.f32.mrb[0].mxu0
    %v6148 = vadd.f32 %v5835, %v6147
    %v6149 = vpop.f32.mrb[0].mxu0
    %v6150 = vadd.f32 %v5837, %v6149
    %v6151 = vpop.f32.mrb[0].mxu0
    %v6152 = vadd.f32 %v5839, %v6151
    %v6153 = vpop.f32.mrb[0].mxu0
    %v6154 = vadd.f32 %v5841, %v6153
    %6155 = vmatprep.mubr.bf16.mxu0 %v4270
    %6156 = vmatmul.mubr.bf16.gmra.mrb[0].mxu0 %v4269
    %v6157 = vpop.f32.mrb[0].mxu0
    %v6158 = vadd.f32 %v5845, %v6157
    %v6159 = vpop.f32.mrb[0].mxu0
    %v6160 = vadd.f32 %v5847, %v6159
    %v6161 = vpop.f32.mrb[0].mxu0
    %v6162 = vadd.f32 %v5849, %v6161
    %v6163 = vpop.f32.mrb[0].mxu0
    %v6164 = vadd.f32 %v5851, %v6163
    %6165 = vmatprep.mubr.bf16.mxu0 %v4272
    %6166 = vmatmul.mubr.bf16.gmra.mrb[0].mxu0 %v4271
    %v6167 = vpop.f32.mrb[0].mxu0
    %v6168 = vadd.f32 %v5855, %v6167
    %v6169 = vpop.f32.mrb[0].mxu0
    %v6170 = vadd.f32 %v5857, %v6169
    %v6171 = vpop.f32.mrb[0].mxu0
    %v6172 = vadd.f32 %v5859, %v6171
    %v6173 = vpop.f32.mrb[0].mxu0
    %v6174 = vadd.f32 %v5861, %v6173
    %6175 = vmatprep.mubr.bf16.mxu0 %v4274
    %6176 = vmatmul.mubr.bf16.gmra.mrb[0].mxu0 %v4273
    %v6177 = vpop.f32.mrb[0].mxu0
    %v6178 = vadd.f32 %v5865, %v6177
    %v6179 = vpop.f32.mrb[0].mxu0
    %v6180 = vadd.f32 %v5867, %v6179
    %v6181 = vpop.f32.mrb[0].mxu0
    %v6182 = vadd.f32 %v5869, %v6181
    %v6183 = vpop.f32.mrb[0].mxu0
    %v6184 = vadd.f32 %v5871, %v6183
    %6185 = vmatprep.mubr.bf16.mxu0 %v4276
    %6186 = vmatmul.mubr.bf16.gmra.mrb[0].mxu0 %v4275
    %v6187 = vpop.f32.mrb[0].mxu0
    %v6188 = vadd.f32 %v5875, %v6187
    %v6189 = vpop.f32.mrb[0].mxu0
    %v6190 = vadd.f32 %v5877, %v6189
    %v6191 = vpop.f32.mrb[0].mxu0
    %v6192 = vadd.f32 %v5879, %v6191
    %v6193 = vpop.f32.mrb[0].mxu0
    %v6194 = vadd.f32 %v5881, %v6193
    %6195 = vmatprep.mubr.bf16.mxu0 %v4278
    %6196 = vmatmul.mubr.bf16.gmra.mrb[0].mxu0 %v4277
    %v6197 = vpop.f32.mrb[0].mxu0
    %v6198 = vadd.f32 %v5885, %v6197
    %v6199 = vpop.f32.mrb[0].mxu0
    %v6200 = vadd.f32 %v5887, %v6199
    %v6201 = vpop.f32.mrb[0].mxu0
    %v6202 = vadd.f32 %v5889, %v6201
    %v6203 = vpop.f32.mrb[0].mxu0
    %v6204 = vadd.f32 %v5891, %v6203
    %6205 = vmatprep.mubr.bf16.mxu0 %v4280
    %6206 = vmatmul.mubr.bf16.gmra.mrb[0].mxu0 %v4279
    %v6207 = vpop.f32.mrb[0].mxu0
    %v6208 = vadd.f32 %v5895, %v6207
    %v6209 = vpop.f32.mrb[0].mxu0
    %v6210 = vadd.f32 %v5897, %v6209
    %v6211 = vpop.f32.mrb[0].mxu0
    %v6212 = vadd.f32 %v5899, %v6211
    %v6213 = vpop.f32.mrb[0].mxu0
    %v6214 = vadd.f32 %v5901, %v6213
    %6215 = vmatprep.mubr.bf16.mxu0 %v4282
    %6216 = vmatmul.mubr.bf16.gmra.mrb[0].mxu0 %v4281
    %v6217 = vpop.f32.mrb[0].mxu0
    %v6218 = vadd.f32 %v5905, %v6217
    %v6219 = vpop.f32.mrb[0].mxu0
    %v6220 = vadd.f32 %v5907, %v6219
    %v6221 = vpop.f32.mrb[0].mxu0
    %v6222 = vadd.f32 %v5909, %v6221
    %v6223 = vpop.f32.mrb[0].mxu0
    %v6224 = vadd.f32 %v5911, %v6223
    %6225 = vmatprep.mubr.bf16.mxu0 %v4284
    %6226 = vmatmul.mubr.bf16.gmra.mrb[0].mxu0 %v4283
    %v6227 = vpop.f32.mrb[0].mxu0
    %v6228 = vadd.f32 %v5915, %v6227
    %v6229 = vpop.f32.mrb[0].mxu0
    %v6230 = vadd.f32 %v5917, %v6229
    %v6231 = vpop.f32.mrb[0].mxu0
    %v6232 = vadd.f32 %v5919, %v6231
    %v6233 = vpop.f32.mrb[0].mxu0
    %v6234 = vadd.f32 %v5921, %v6233
    %6235 = vmatprep.mubr.bf16.mxu0 %v4286
    %6236 = vmatmul.mubr.bf16.gmra.mrb[0].mxu0 %v4285
    %v6237 = vpop.f32.mrb[0].mxu0
    %v6238 = vadd.f32 %v5925, %v6237
    %v6239 = vpop.f32.mrb[0].mxu0
    %v6240 = vadd.f32 %v5927, %v6239
    %v6241 = vpop.f32.mrb[0].mxu0
    %v6242 = vadd.f32 %v5929, %v6241
    %v6243 = vpop.f32.mrb[0].mxu0
    %v6244 = vadd.f32 %v5931, %v6243
    %6245 = vmatprep.mubr.bf16.mxu0 %v4288
    %6246 = vmatmul.mubr.bf16.gmra.mrb[0].mxu0 %v4287
    %v6247 = vpop.f32.mrb[0].mxu0
    %v6248 = vadd.f32 %v5935, %v6247
    %v6249 = vpop.f32.mrb[0].mxu0
    %v6250 = vadd.f32 %v5937, %v6249
    %v6251 = vpop.f32.mrb[0].mxu0
    %v6252 = vadd.f32 %v5939, %v6251
    %v6253 = vpop.f32.mrb[0].mxu0
    %v6254 = vadd.f32 %v5941, %v6253
    %6255 = vmatprep.mubr.bf16.mxu0 %v4290
    %6256 = vmatmul.mubr.bf16.gmra.mrb[0].mxu0 %v4289
    %v6257 = vpop.f32.mrb[0].mxu0
    %v6258 = vadd.f32 %v5945, %v6257
    %v6259 = vpop.f32.mrb[0].mxu0
    %v6260 = vadd.f32 %v5947, %v6259
    %v6261 = vpop.f32.mrb[0].mxu0
    %v6262 = vadd.f32 %v5949, %v6261
    %v6263 = vpop.f32.mrb[0].mxu0
    %v6264 = vadd.f32 %v5951, %v6263
    %6265 = vmatprep.mubr.bf16.mxu0 %v4292
    %6266 = vmatmul.mubr.bf16.gmra.mrb[0].mxu0 %v4291
    %v6267 = vpop.f32.mrb[0].mxu0
    %v6268 = vadd.f32 %v5955, %v6267
    %v6269 = vpop.f32.mrb[0].mxu0
    %v6270 = vadd.f32 %v5957, %v6269
    %v6271 = vpop.f32.mrb[0].mxu0
    %v6272 = vadd.f32 %v5959, %v6271
    %v6273 = vpop.f32.mrb[0].mxu0
    %v6274 = vadd.f32 %v5961, %v6273
    %6275 = vmatprep.mubr.bf16.mxu0 %v4294
    %6276 = vmatmul.mubr.bf16.gmra.mrb[0].mxu0 %v4293
    %v6277 = vpop.f32.mrb[0].mxu0
    %v6278 = vadd.f32 %v5965, %v6277
    %v6279 = vpop.f32.mrb[0].mxu0
    %v6280 = vadd.f32 %v5967, %v6279
    %v6281 = vpop.f32.mrb[0].mxu0
    %v6282 = vadd.f32 %v5969, %v6281
    %v6283 = vpop.f32.mrb[0].mxu0
    %v6284 = vadd.f32 %v5971, %v6283
    %6285 = vmatprep.mubr.bf16.mxu0 %v4296
    %6286 = vmatmul.mubr.bf16.gmra.mrb[0].mxu0 %v4295
    %v6287 = vpop.f32.mrb[0].mxu0
    %v6288 = vadd.f32 %v5975, %v6287
    %v6289 = vpop.f32.mrb[0].mxu0
    %v6290 = vadd.f32 %v5977, %v6289
    %v6291 = vpop.f32.mrb[0].mxu0
    %v6292 = vadd.f32 %v5979, %v6291
    %v6293 = vpop.f32.mrb[0].mxu0
    %v6294 = vadd.f32 %v5981, %v6293
    %6295 = vmatprep.mubr.bf16.mxu0 %v4298
    %6296 = vmatmul.mubr.bf16.gmra.mrb[0].mxu0 %v4297
    %v6297 = vpop.f32.mrb[0].mxu0
    %v6298 = vadd.f32 %v5985, %v6297
    %v6299 = vpop.f32.mrb[0].mxu0
    %v6300 = vadd.f32 %v5987, %v6299
    %v6301 = vpop.f32.mrb[0].mxu0
    %v6302 = vadd.f32 %v5989, %v6301
    %v6303 = vpop.f32.mrb[0].mxu0
    %v6304 = vadd.f32 %v5991, %v6303
    %6305 = vmatprep.mubr.bf16.mxu0 %v4300
    %6306 = vmatmul.mubr.bf16.gmra.mrb[0].mxu0 %v4299
    %v6307 = vpop.f32.mrb[0].mxu0
    %v6308 = vadd.f32 %v5995, %v6307
    %v6309 = vpop.f32.mrb[0].mxu0
    %v6310 = vadd.f32 %v5997, %v6309
    %v6311 = vpop.f32.mrb[0].mxu0
    %v6312 = vadd.f32 %v5999, %v6311
    %v6313 = vpop.f32.mrb[0].mxu0
    %v6314 = vadd.f32 %v6001, %v6313
    %6315 = vmatprep.mubr.bf16.mxu0 %v4302
    %6316 = vmatmul.mubr.bf16.gmra.mrb[0].mxu0 %v4301
    %v6317 = vpop.f32.mrb[0].mxu0
    %v6318 = vadd.f32 %v6005, %v6317
    %v6319 = vpop.f32.mrb[0].mxu0
    %v6320 = vadd.f32 %v6007, %v6319
    %v6321 = vpop.f32.mrb[0].mxu0
    %v6322 = vadd.f32 %v6009, %v6321
    %v6323 = vpop.f32.mrb[0].mxu0
    %v6324 = vadd.f32 %v6011, %v6323
    %6325 = vmatprep.mubr.bf16.mxu0 %v4304
    %6326 = vmatmul.mubr.bf16.gmra.mrb[0].mxu0 %v4303
    %v6327 = vpop.f32.mrb[0].mxu0
    %v6328 = vadd.f32 %v6015, %v6327
    %v6329 = vpop.f32.mrb[0].mxu0
    %v6330 = vadd.f32 %v6017, %v6329
    %v6331 = vpop.f32.mrb[0].mxu0
    %v6332 = vadd.f32 %v6019, %v6331
    %v6333 = vpop.f32.mrb[0].mxu0
    %v6334 = vadd.f32 %v6021, %v6333
    %6335 = vmatprep.mubr.bf16.mxu0 %v4306
    %6336 = vmatmul.mubr.bf16.gmra.mrb[0].mxu0 %v4305
    %v6337 = vpop.f32.mrb[0].mxu0
    %v6338 = vadd.f32 %v6025, %v6337
    %v6339 = vpop.f32.mrb[0].mxu0
    %v6340 = vadd.f32 %v6027, %v6339
    %v6341 = vpop.f32.mrb[0].mxu0
    %v6342 = vadd.f32 %v6029, %v6341
    %v6343 = vpop.f32.mrb[0].mxu0
    %v6344 = vadd.f32 %v6031, %v6343
    %6345 = vmatprep.mubr.bf16.mxu0 %v4308
    %6346 = vmatmul.mubr.bf16.gmra.mrb[0].mxu0 %v4307
    %v6347 = vpop.f32.mrb[0].mxu0
    %v6348 = vadd.f32 %v6035, %v6347
    %v6349 = vpop.f32.mrb[0].mxu0
    %v6350 = vadd.f32 %v6037, %v6349
    %v6351 = vpop.f32.mrb[0].mxu0
    %v6352 = vadd.f32 %v6039, %v6351
    %v6353 = vpop.f32.mrb[0].mxu0
    %v6354 = vadd.f32 %v6041, %v6353
    %6355 = vmatprep.mubr.bf16.mxu0 %v4310
    %6356 = vmatmul.mubr.bf16.gmra.mrb[0].mxu0 %v4309
    %v6357 = vpop.f32.mrb[0].mxu0
    %v6358 = vadd.f32 %v6045, %v6357
    %v6359 = vpop.f32.mrb[0].mxu0
    %v6360 = vadd.f32 %v6047, %v6359
    %v6361 = vpop.f32.mrb[0].mxu0
    %v6362 = vadd.f32 %v6049, %v6361
    %v6363 = vpop.f32.mrb[0].mxu0
    %v6364 = vadd.f32 %v6051, %v6363
    %6365 = vmatprep.mubr.bf16.mxu0 %v4312
    %6366 = vmatmul.mubr.bf16.gmra.mrb[0].mxu0 %v4311
    %v6367 = vpop.f32.mrb[0].mxu0
    %v6368 = vadd.f32 %v6055, %v6367
    %v6369 = vpop.f32.mrb[0].mxu0
    %v6370 = vadd.f32 %v6057, %v6369
    %v6371 = vpop.f32.mrb[0].mxu0
    %v6372 = vadd.f32 %v6059, %v6371
    %v6373 = vpop.f32.mrb[0].mxu0
    %v6374 = vadd.f32 %v6061, %v6373
    %6375 = vmatprep.mubr.bf16.mxu0 %v4314
    %6376 = vmatmul.mubr.bf16.gmra.mrb[0].mxu0 %v4313
    %v6377 = vpop.f32.mrb[0].mxu0
    %v6378 = vadd.f32 %v6065, %v6377
    %v6379 = vpop.f32.mrb[0].mxu0
    %v6380 = vadd.f32 %v6067, %v6379
    %v6381 = vpop.f32.mrb[0].mxu0
    %v6382 = vadd.f32 %v6069, %v6381
    %v6383 = vpop.f32.mrb[0].mxu0
    %v6384 = vadd.f32 %v6071, %v6383
    %6385 = vmatprep.mubr.bf16.mxu0 0
    %6386 = vmatmul.mubr.bf16.gmra.mrb[0].mxu0 0
    %v6387 = vpop.f32.mrb[0].mxu0
    %v6388 = vadd.f32 %v6075, %v6387
    %v6389 = vpop.f32.mrb[0].mxu0
    %v6390 = vadd.f32 %v6077, %v6389
    %v6391 = vpop.f32.mrb[0].mxu0
    %v6392 = vadd.f32 %v6079, %v6391
    %v6393 = vpop.f32.mrb[0].mxu0
    %v6394 = vadd.f32 %v6081, %v6393
    %6395 = vmatprep.mubr.bf16.mxu0 0
    %6396 = vmatmul.mubr.bf16.gmra.mrb[0].mxu0 0
    %v6397 = vpop.f32.mrb[0].mxu0
    %v6398 = vadd.f32 %v6085, %v6397
    %v6399 = vpop.f32.mrb[0].mxu0
    %v6400 = vadd.f32 %v6087, %v6399
    %v6401 = vpop.f32.mrb[0].mxu0
    %v6402 = vadd.f32 %v6089, %v6401
    %v6403 = vpop.f32.mrb[0].mxu0
    %v6404 = vadd.f32 %v6091, %v6403
    %6405 = vdwg.mxu0
    %6406 = vmatprep.subr.bf16.mxu0 %v5086
    %6407 = vmatpush1.bf16.msra.mxu0 %v5085
    %6408 = vmatprep.subr.bf16.mxu0 %v5090
    %6409 = vmatpush1.bf16.msra.mxu0 %v5089
    %6410 = vmatprep.subr.bf16.mxu0 %v5094
    %6411 = vmatpush1.bf16.msra.mxu0 %v5093
    %6412 = vmatprep.subr.bf16.mxu0 %v5098
    %6413 = vmatpush1.bf16.msra.mxu0 %v5097
    %6414 = vmatprep.subr.bf16.mxu0 %v5102
    %6415 = vmatpush1.bf16.msra.mxu0 %v5101
    %6416 = vmatprep.subr.bf16.mxu0 %v5106
    %6417 = vmatpush1.bf16.msra.mxu0 %v5105
    %6418 = vmatprep.subr.bf16.mxu0 %v5110
    %6419 = vmatpush1.bf16.msra.mxu0 %v5109
    %6420 = vmatprep.subr.bf16.mxu0 %v5114
    %6421 = vmatpush1.bf16.msra.mxu0 %v5113
    %6422 = vmatprep.subr.bf16.mxu0 %v5118
    %6423 = vmatpush1.bf16.msra.mxu0 %v5117
    %6424 = vmatprep.subr.bf16.mxu0 %v5122
    %6425 = vmatpush1.bf16.msra.mxu0 %v5121
    %6426 = vmatprep.subr.bf16.mxu0 %v5126
    %6427 = vmatpush1.bf16.msra.mxu0 %v5125
    %6428 = vmatprep.subr.bf16.mxu0 %v5130
    %6429 = vmatpush1.bf16.msra.mxu0 %v5129
    %6430 = vmatprep.subr.bf16.mxu0 %v5134
    %6431 = vmatpush1.bf16.msra.mxu0 %v5133
    %6432 = vmatprep.subr.bf16.mxu0 %v5138
    %6433 = vmatpush1.bf16.msra.mxu0 %v5137
    %6434 = vmatprep.subr.bf16.mxu0 %v5142
    %6435 = vmatpush1.bf16.msra.mxu0 %v5141
    %6436 = vmatprep.subr.bf16.mxu0 %v5146
    %6437 = vmatpush1.bf16.msra.mxu0 %v5145
    %6438 = vmatprep.mubr.bf16.mxu0 0
    %6439 = vmatmul.mubr.bf16.gmra.mrb[0].mxu0 0
    %v6440 = vpop.f32.mrb[0].mxu0
    %v6441 = vadd.f32 0.0, %v6440
    %v6442 = vpop.f32.mrb[0].mxu0
    %v6443 = vadd.f32 0.0, %v6442
    %v6444 = vpop.f32.mrb[0].mxu0
    %v6445 = vadd.f32 0.0, %v6444
    %v6446 = vpop.f32.mrb[0].mxu0
    %v6447 = vadd.f32 0.0, %v6446
    %6448 = vmatprep.mubr.bf16.mxu0 0
    %6449 = vmatmul.mubr.bf16.gmra.mrb[0].mxu0 0
    %v6450 = vpop.f32.mrb[0].mxu0
    %v6451 = vadd.f32 0.0, %v6450
    %v6452 = vpop.f32.mrb[0].mxu0
    %v6453 = vadd.f32 0.0, %v6452
    %v6454 = vpop.f32.mrb[0].mxu0
    %v6455 = vadd.f32 0.0, %v6454
    %v6456 = vpop.f32.mrb[0].mxu0
    %v6457 = vadd.f32 0.0, %v6456
    %6458 = vmatprep.mubr.bf16.mxu0 %v4260
    %6459 = vmatmul.mubr.bf16.gmra.mrb[0].mxu0 %v4259
    %v6460 = vpop.f32.mrb[0].mxu0
    %v6461 = vadd.f32 0.0, %v6460
    %v6462 = vpop.f32.mrb[0].mxu0
    %v6463 = vadd.f32 0.0, %v6462
    %v6464 = vpop.f32.mrb[0].mxu0
    %v6465 = vadd.f32 0.0, %v6464
    %v6466 = vpop.f32.mrb[0].mxu0
    %v6467 = vadd.f32 0.0, %v6466
    %6468 = vmatprep.mubr.bf16.mxu0 %v4262
    %6469 = vmatmul.mubr.bf16.gmra.mrb[0].mxu0 %v4261
    %v6470 = vpop.f32.mrb[0].mxu0
    %v6471 = vadd.f32 0.0, %v6470
    %v6472 = vpop.f32.mrb[0].mxu0
    %v6473 = vadd.f32 0.0, %v6472
    %v6474 = vpop.f32.mrb[0].mxu0
    %v6475 = vadd.f32 0.0, %v6474
    %v6476 = vpop.f32.mrb[0].mxu0
    %v6477 = vadd.f32 0.0, %v6476
    %6478 = vmatprep.mubr.bf16.mxu0 %v4264
    %6479 = vmatmul.mubr.bf16.gmra.mrb[0].mxu0 %v4263
    %v6480 = vpop.f32.mrb[0].mxu0
    %v6481 = vadd.f32 0.0, %v6480
    %v6482 = vpop.f32.mrb[0].mxu0
    %v6483 = vadd.f32 0.0, %v6482
    %v6484 = vpop.f32.mrb[0].mxu0
    %v6485 = vadd.f32 0.0, %v6484
    %v6486 = vpop.f32.mrb[0].mxu0
    %v6487 = vadd.f32 0.0, %v6486
    %6488 = vmatprep.mubr.bf16.mxu0 %v4266
    %6489 = vmatmul.mubr.bf16.gmra.mrb[0].mxu0 %v4265
    %v6490 = vpop.f32.mrb[0].mxu0
    %v6491 = vadd.f32 0.0, %v6490
    %v6492 = vpop.f32.mrb[0].mxu0
    %v6493 = vadd.f32 0.0, %v6492
    %v6494 = vpop.f32.mrb[0].mxu0
    %v6495 = vadd.f32 0.0, %v6494
    %v6496 = vpop.f32.mrb[0].mxu0
    %v6497 = vadd.f32 0.0, %v6496
    %6498 = vmatprep.mubr.bf16.mxu0 %v4268
    %6499 = vmatmul.mubr.bf16.gmra.mrb[0].mxu0 %v4267
    %v6500 = vpop.f32.mrb[0].mxu0
    %v6501 = vadd.f32 0.0, %v6500
    %v6502 = vpop.f32.mrb[0].mxu0
    %v6503 = vadd.f32 0.0, %v6502
    %v6504 = vpop.f32.mrb[0].mxu0
    %v6505 = vadd.f32 0.0, %v6504
    %v6506 = vpop.f32.mrb[0].mxu0
    %v6507 = vadd.f32 0.0, %v6506
    %6508 = vmatprep.mubr.bf16.mxu0 %v4270
    %6509 = vmatmul.mubr.bf16.gmra.mrb[0].mxu0 %v4269
    %v6510 = vpop.f32.mrb[0].mxu0
    %v6511 = vadd.f32 0.0, %v6510
    %v6512 = vpop.f32.mrb[0].mxu0
    %v6513 = vadd.f32 0.0, %v6512
    %v6514 = vpop.f32.mrb[0].mxu0
    %v6515 = vadd.f32 0.0, %v6514
    %v6516 = vpop.f32.mrb[0].mxu0
    %v6517 = vadd.f32 0.0, %v6516
    %6518 = vmatprep.mubr.bf16.mxu0 %v4272
    %6519 = vmatmul.mubr.bf16.gmra.mrb[0].mxu0 %v4271
    %v6520 = vpop.f32.mrb[0].mxu0
    %v6521 = vadd.f32 0.0, %v6520
    %v6522 = vpop.f32.mrb[0].mxu0
    %v6523 = vadd.f32 0.0, %v6522
    %v6524 = vpop.f32.mrb[0].mxu0
    %v6525 = vadd.f32 0.0, %v6524
    %v6526 = vpop.f32.mrb[0].mxu0
    %v6527 = vadd.f32 0.0, %v6526
    %6528 = vmatprep.mubr.bf16.mxu0 %v4274
    %6529 = vmatmul.mubr.bf16.gmra.mrb[0].mxu0 %v4273
    %v6530 = vpop.f32.mrb[0].mxu0
    %v6531 = vadd.f32 0.0, %v6530
    %v6532 = vpop.f32.mrb[0].mxu0
    %v6533 = vadd.f32 0.0, %v6532
    %v6534 = vpop.f32.mrb[0].mxu0
    %v6535 = vadd.f32 0.0, %v6534
    %v6536 = vpop.f32.mrb[0].mxu0
    %v6537 = vadd.f32 0.0, %v6536
    %6538 = vmatprep.mubr.bf16.mxu0 %v4276
    %6539 = vmatmul.mubr.bf16.gmra.mrb[0].mxu0 %v4275
    %v6540 = vpop.f32.mrb[0].mxu0
    %v6541 = vadd.f32 0.0, %v6540
    %v6542 = vpop.f32.mrb[0].mxu0
    %v6543 = vadd.f32 0.0, %v6542
    %v6544 = vpop.f32.mrb[0].mxu0
    %v6545 = vadd.f32 0.0, %v6544
    %v6546 = vpop.f32.mrb[0].mxu0
    %v6547 = vadd.f32 0.0, %v6546
    %6548 = vmatprep.mubr.bf16.mxu0 %v4278
    %6549 = vmatmul.mubr.bf16.gmra.mrb[0].mxu0 %v4277
    %v6550 = vpop.f32.mrb[0].mxu0
    %v6551 = vadd.f32 0.0, %v6550
    %v6552 = vpop.f32.mrb[0].mxu0
    %v6553 = vadd.f32 0.0, %v6552
    %v6554 = vpop.f32.mrb[0].mxu0
    %v6555 = vadd.f32 0.0, %v6554
    %v6556 = vpop.f32.mrb[0].mxu0
    %v6557 = vadd.f32 0.0, %v6556
    %6558 = vmatprep.mubr.bf16.mxu0 %v4280
    %6559 = vmatmul.mubr.bf16.gmra.mrb[0].mxu0 %v4279
    %v6560 = vpop.f32.mrb[0].mxu0
    %v6561 = vadd.f32 0.0, %v6560
    %v6562 = vpop.f32.mrb[0].mxu0
    %v6563 = vadd.f32 0.0, %v6562
    %v6564 = vpop.f32.mrb[0].mxu0
    %v6565 = vadd.f32 0.0, %v6564
    %v6566 = vpop.f32.mrb[0].mxu0
    %v6567 = vadd.f32 0.0, %v6566
    %6568 = vmatprep.mubr.bf16.mxu0 %v4282
    %6569 = vmatmul.mubr.bf16.gmra.mrb[0].mxu0 %v4281
    %v6570 = vpop.f32.mrb[0].mxu0
    %v6571 = vadd.f32 0.0, %v6570
    %v6572 = vpop.f32.mrb[0].mxu0
    %v6573 = vadd.f32 0.0, %v6572
    %v6574 = vpop.f32.mrb[0].mxu0
    %v6575 = vadd.f32 0.0, %v6574
    %v6576 = vpop.f32.mrb[0].mxu0
    %v6577 = vadd.f32 0.0, %v6576
    %6578 = vmatprep.mubr.bf16.mxu0 %v4284
    %6579 = vmatmul.mubr.bf16.gmra.mrb[0].mxu0 %v4283
    %v6580 = vpop.f32.mrb[0].mxu0
    %v6581 = vadd.f32 0.0, %v6580
    %v6582 = vpop.f32.mrb[0].mxu0
    %v6583 = vadd.f32 0.0, %v6582
    %v6584 = vpop.f32.mrb[0].mxu0
    %v6585 = vadd.f32 0.0, %v6584
    %v6586 = vpop.f32.mrb[0].mxu0
    %v6587 = vadd.f32 0.0, %v6586
    %6588 = vmatprep.mubr.bf16.mxu0 %v4286
    %6589 = vmatmul.mubr.bf16.gmra.mrb[0].mxu0 %v4285
    %v6590 = vpop.f32.mrb[0].mxu0
    %v6591 = vadd.f32 0.0, %v6590
    %v6592 = vpop.f32.mrb[0].mxu0
    %v6593 = vadd.f32 0.0, %v6592
    %v6594 = vpop.f32.mrb[0].mxu0
    %v6595 = vadd.f32 0.0, %v6594
    %v6596 = vpop.f32.mrb[0].mxu0
    %v6597 = vadd.f32 0.0, %v6596
    %6598 = vmatprep.mubr.bf16.mxu0 %v4288
    %6599 = vmatmul.mubr.bf16.gmra.mrb[0].mxu0 %v4287
    %v6600 = vpop.f32.mrb[0].mxu0
    %v6601 = vadd.f32 0.0, %v6600
    %v6602 = vpop.f32.mrb[0].mxu0
    %v6603 = vadd.f32 0.0, %v6602
    %v6604 = vpop.f32.mrb[0].mxu0
    %v6605 = vadd.f32 0.0, %v6604
    %v6606 = vpop.f32.mrb[0].mxu0
    %v6607 = vadd.f32 0.0, %v6606
    %6608 = vmatprep.mubr.bf16.mxu0 %v4290
    %6609 = vmatmul.mubr.bf16.gmra.mrb[0].mxu0 %v4289
    %v6610 = vpop.f32.mrb[0].mxu0
    %v6611 = vadd.f32 0.0, %v6610
    %v6612 = vpop.f32.mrb[0].mxu0
    %v6613 = vadd.f32 0.0, %v6612
    %v6614 = vpop.f32.mrb[0].mxu0
    %v6615 = vadd.f32 0.0, %v6614
    %v6616 = vpop.f32.mrb[0].mxu0
    %v6617 = vadd.f32 0.0, %v6616
    %6618 = vmatprep.mubr.bf16.mxu0 %v4292
    %6619 = vmatmul.mubr.bf16.gmra.mrb[0].mxu0 %v4291
    %v6620 = vpop.f32.mrb[0].mxu0
    %v6621 = vadd.f32 0.0, %v6620
    %v6622 = vpop.f32.mrb[0].mxu0
    %v6623 = vadd.f32 0.0, %v6622
    %v6624 = vpop.f32.mrb[0].mxu0
    %v6625 = vadd.f32 0.0, %v6624
    %v6626 = vpop.f32.mrb[0].mxu0
    %v6627 = vadd.f32 0.0, %v6626
    %6628 = vmatprep.mubr.bf16.mxu0 %v4294
    %6629 = vmatmul.mubr.bf16.gmra.mrb[0].mxu0 %v4293
    %v6630 = vpop.f32.mrb[0].mxu0
    %v6631 = vadd.f32 0.0, %v6630
    %v6632 = vpop.f32.mrb[0].mxu0
    %v6633 = vadd.f32 0.0, %v6632
    %v6634 = vpop.f32.mrb[0].mxu0
    %v6635 = vadd.f32 0.0, %v6634
    %v6636 = vpop.f32.mrb[0].mxu0
    %v6637 = vadd.f32 0.0, %v6636
    %6638 = vmatprep.mubr.bf16.mxu0 %v4296
    %6639 = vmatmul.mubr.bf16.gmra.mrb[0].mxu0 %v4295
    %v6640 = vpop.f32.mrb[0].mxu0
    %v6641 = vadd.f32 0.0, %v6640
    %v6642 = vpop.f32.mrb[0].mxu0
    %v6643 = vadd.f32 0.0, %v6642
    %v6644 = vpop.f32.mrb[0].mxu0
    %v6645 = vadd.f32 0.0, %v6644
    %v6646 = vpop.f32.mrb[0].mxu0
    %v6647 = vadd.f32 0.0, %v6646
    %6648 = vmatprep.mubr.bf16.mxu0 %v4298
    %6649 = vmatmul.mubr.bf16.gmra.mrb[0].mxu0 %v4297
    %v6650 = vpop.f32.mrb[0].mxu0
    %v6651 = vadd.f32 0.0, %v6650
    %v6652 = vpop.f32.mrb[0].mxu0
    %v6653 = vadd.f32 0.0, %v6652
    %v6654 = vpop.f32.mrb[0].mxu0
    %v6655 = vadd.f32 0.0, %v6654
    %v6656 = vpop.f32.mrb[0].mxu0
    %v6657 = vadd.f32 0.0, %v6656
    %6658 = vmatprep.mubr.bf16.mxu0 %v4300
    %6659 = vmatmul.mubr.bf16.gmra.mrb[0].mxu0 %v4299
    %v6660 = vpop.f32.mrb[0].mxu0
    %v6661 = vadd.f32 0.0, %v6660
    %v6662 = vpop.f32.mrb[0].mxu0
    %v6663 = vadd.f32 0.0, %v6662
    %v6664 = vpop.f32.mrb[0].mxu0
    %v6665 = vadd.f32 0.0, %v6664
    %v6666 = vpop.f32.mrb[0].mxu0
    %v6667 = vadd.f32 0.0, %v6666
    %6668 = vmatprep.mubr.bf16.mxu0 %v4302
    %6669 = vmatmul.mubr.bf16.gmra.mrb[0].mxu0 %v4301
    %v6670 = vpop.f32.mrb[0].mxu0
    %v6671 = vadd.f32 0.0, %v6670
    %v6672 = vpop.f32.mrb[0].mxu0
    %v6673 = vadd.f32 0.0, %v6672
    %v6674 = vpop.f32.mrb[0].mxu0
    %v6675 = vadd.f32 0.0, %v6674
    %v6676 = vpop.f32.mrb[0].mxu0
    %v6677 = vadd.f32 0.0, %v6676
    %6678 = vmatprep.mubr.bf16.mxu0 %v4304
    %6679 = vmatmul.mubr.bf16.gmra.mrb[0].mxu0 %v4303
    %v6680 = vpop.f32.mrb[0].mxu0
    %v6681 = vadd.f32 0.0, %v6680
    %v6682 = vpop.f32.mrb[0].mxu0
    %v6683 = vadd.f32 0.0, %v6682
    %v6684 = vpop.f32.mrb[0].mxu0
    %v6685 = vadd.f32 0.0, %v6684
    %v6686 = vpop.f32.mrb[0].mxu0
    %v6687 = vadd.f32 0.0, %v6686
    %6688 = vmatprep.mubr.bf16.mxu0 %v4306
    %6689 = vmatmul.mubr.bf16.gmra.mrb[0].mxu0 %v4305
    %v6690 = vpop.f32.mrb[0].mxu0
    %v6691 = vadd.f32 0.0, %v6690
    %v6692 = vpop.f32.mrb[0].mxu0
    %v6693 = vadd.f32 0.0, %v6692
    %v6694 = vpop.f32.mrb[0].mxu0
    %v6695 = vadd.f32 0.0, %v6694
    %v6696 = vpop.f32.mrb[0].mxu0
    %v6697 = vadd.f32 0.0, %v6696
    %6698 = vmatprep.mubr.bf16.mxu0 %v4308
    %6699 = vmatmul.mubr.bf16.gmra.mrb[0].mxu0 %v4307
    %v6700 = vpop.f32.mrb[0].mxu0
    %v6701 = vadd.f32 0.0, %v6700
    %v6702 = vpop.f32.mrb[0].mxu0
    %v6703 = vadd.f32 0.0, %v6702
    %v6704 = vpop.f32.mrb[0].mxu0
    %v6705 = vadd.f32 0.0, %v6704
    %v6706 = vpop.f32.mrb[0].mxu0
    %v6707 = vadd.f32 0.0, %v6706
    %6708 = vmatprep.mubr.bf16.mxu0 %v4310
    %6709 = vmatmul.mubr.bf16.gmra.mrb[0].mxu0 %v4309
    %v6710 = vpop.f32.mrb[0].mxu0
    %v6711 = vadd.f32 0.0, %v6710
    %v6712 = vpop.f32.mrb[0].mxu0
    %v6713 = vadd.f32 0.0, %v6712
    %v6714 = vpop.f32.mrb[0].mxu0
    %v6715 = vadd.f32 0.0, %v6714
    %v6716 = vpop.f32.mrb[0].mxu0
    %v6717 = vadd.f32 0.0, %v6716
    %6718 = vdwg.mxu0
    %6719 = vmatprep.subr.bf16.mxu0 %v5150
    %6720 = vmatpush1.bf16.msra.mxu0 %v5149
    %6721 = vmatprep.subr.bf16.mxu0 %v5154
    %6722 = vmatpush1.bf16.msra.mxu0 %v5153
    %6723 = vmatprep.subr.bf16.mxu0 %v5158
    %6724 = vmatpush1.bf16.msra.mxu0 %v5157
    %6725 = vmatprep.subr.bf16.mxu0 %v5162
    %6726 = vmatpush1.bf16.msra.mxu0 %v5161
    %6727 = vmatprep.subr.bf16.mxu0 %v5166
    %6728 = vmatpush1.bf16.msra.mxu0 %v5165
    %6729 = vmatprep.subr.bf16.mxu0 %v5170
    %6730 = vmatpush1.bf16.msra.mxu0 %v5169
    %6731 = vmatprep.subr.bf16.mxu0 %v5174
    %6732 = vmatpush1.bf16.msra.mxu0 %v5173
    %6733 = vmatprep.subr.bf16.mxu0 %v5178
    %6734 = vmatpush1.bf16.msra.mxu0 %v5177
    %6735 = vmatprep.subr.bf16.mxu0 %v5182
    %6736 = vmatpush1.bf16.msra.mxu0 %v5181
    %6737 = vmatprep.subr.bf16.mxu0 %v5186
    %6738 = vmatpush1.bf16.msra.mxu0 %v5185
    %6739 = vmatprep.subr.bf16.mxu0 %v5190
    %6740 = vmatpush1.bf16.msra.mxu0 %v5189
    %6741 = vmatprep.subr.bf16.mxu0 %v5194
    %6742 = vmatpush1.bf16.msra.mxu0 %v5193
    %6743 = vmatprep.subr.bf16.mxu0 %v5198
    %6744 = vmatpush1.bf16.msra.mxu0 %v5197
    %6745 = vmatprep.subr.bf16.mxu0 %v5202
    %6746 = vmatpush1.bf16.msra.mxu0 %v5201
    %6747 = vmatprep.subr.bf16.mxu0 %v5206
    %6748 = vmatpush1.bf16.msra.mxu0 %v5205
    %6749 = vmatprep.subr.bf16.mxu0 %v5210
    %6750 = vmatpush1.bf16.msra.mxu0 %v5209
    %6751 = vmatprep.mubr.bf16.mxu0 %v4260
    %6752 = vmatmul.mubr.bf16.gmra.mrb[0].mxu0 %v4259
    %v6753 = vpop.f32.mrb[0].mxu0
    %v6754 = vadd.f32 %v6441, %v6753
    %v6755 = vpop.f32.mrb[0].mxu0
    %v6756 = vadd.f32 %v6443, %v6755
    %v6757 = vpop.f32.mrb[0].mxu0
    %v6758 = vadd.f32 %v6445, %v6757
    %v6759 = vpop.f32.mrb[0].mxu0
    %v6760 = vadd.f32 %v6447, %v6759
    %6761 = vmatprep.mubr.bf16.mxu0 %v4262
    %6762 = vmatmul.mubr.bf16.gmra.mrb[0].mxu0 %v4261
    %v6763 = vpop.f32.mrb[0].mxu0
    %v6764 = vadd.f32 %v6451, %v6763
    %v6765 = vpop.f32.mrb[0].mxu0
    %v6766 = vadd.f32 %v6453, %v6765
    %v6767 = vpop.f32.mrb[0].mxu0
    %v6768 = vadd.f32 %v6455, %v6767
    %v6769 = vpop.f32.mrb[0].mxu0
    %v6770 = vadd.f32 %v6457, %v6769
    %6771 = vmatprep.mubr.bf16.mxu0 %v4264
    %6772 = vmatmul.mubr.bf16.gmra.mrb[0].mxu0 %v4263
    %v6773 = vpop.f32.mrb[0].mxu0
    %v6774 = vadd.f32 %v6461, %v6773
    %v6775 = vpop.f32.mrb[0].mxu0
    %v6776 = vadd.f32 %v6463, %v6775
    %v6777 = vpop.f32.mrb[0].mxu0
    %v6778 = vadd.f32 %v6465, %v6777
    %v6779 = vpop.f32.mrb[0].mxu0
    %v6780 = vadd.f32 %v6467, %v6779
    %6781 = vmatprep.mubr.bf16.mxu0 %v4266
    %6782 = vmatmul.mubr.bf16.gmra.mrb[0].mxu0 %v4265
    %v6783 = vpop.f32.mrb[0].mxu0
    %v6784 = vadd.f32 %v6471, %v6783
    %v6785 = vpop.f32.mrb[0].mxu0
    %v6786 = vadd.f32 %v6473, %v6785
    %v6787 = vpop.f32.mrb[0].mxu0
    %v6788 = vadd.f32 %v6475, %v6787
    %v6789 = vpop.f32.mrb[0].mxu0
    %v6790 = vadd.f32 %v6477, %v6789
    %6791 = vmatprep.mubr.bf16.mxu0 %v4268
    %6792 = vmatmul.mubr.bf16.gmra.mrb[0].mxu0 %v4267
    %v6793 = vpop.f32.mrb[0].mxu0
    %v6794 = vadd.f32 %v6481, %v6793
    %v6795 = vpop.f32.mrb[0].mxu0
    %v6796 = vadd.f32 %v6483, %v6795
    %v6797 = vpop.f32.mrb[0].mxu0
    %v6798 = vadd.f32 %v6485, %v6797
    %v6799 = vpop.f32.mrb[0].mxu0
    %v6800 = vadd.f32 %v6487, %v6799
    %6801 = vmatprep.mubr.bf16.mxu0 %v4270
    %6802 = vmatmul.mubr.bf16.gmra.mrb[0].mxu0 %v4269
    %v6803 = vpop.f32.mrb[0].mxu0
    %v6804 = vadd.f32 %v6491, %v6803
    %v6805 = vpop.f32.mrb[0].mxu0
    %v6806 = vadd.f32 %v6493, %v6805
    %v6807 = vpop.f32.mrb[0].mxu0
    %v6808 = vadd.f32 %v6495, %v6807
    %v6809 = vpop.f32.mrb[0].mxu0
    %v6810 = vadd.f32 %v6497, %v6809
    %6811 = vmatprep.mubr.bf16.mxu0 %v4272
    %6812 = vmatmul.mubr.bf16.gmra.mrb[0].mxu0 %v4271
    %v6813 = vpop.f32.mrb[0].mxu0
    %v6814 = vadd.f32 %v6501, %v6813
    %v6815 = vpop.f32.mrb[0].mxu0
    %v6816 = vadd.f32 %v6503, %v6815
    %v6817 = vpop.f32.mrb[0].mxu0
    %v6818 = vadd.f32 %v6505, %v6817
    %v6819 = vpop.f32.mrb[0].mxu0
    %v6820 = vadd.f32 %v6507, %v6819
    %6821 = vmatprep.mubr.bf16.mxu0 %v4274
    %6822 = vmatmul.mubr.bf16.gmra.mrb[0].mxu0 %v4273
    %v6823 = vpop.f32.mrb[0].mxu0
    %v6824 = vadd.f32 %v6511, %v6823
    %v6825 = vpop.f32.mrb[0].mxu0
    %v6826 = vadd.f32 %v6513, %v6825
    %v6827 = vpop.f32.mrb[0].mxu0
    %v6828 = vadd.f32 %v6515, %v6827
    %v6829 = vpop.f32.mrb[0].mxu0
    %v6830 = vadd.f32 %v6517, %v6829
    %6831 = vmatprep.mubr.bf16.mxu0 %v4276
    %6832 = vmatmul.mubr.bf16.gmra.mrb[0].mxu0 %v4275
    %v6833 = vpop.f32.mrb[0].mxu0
    %v6834 = vadd.f32 %v6521, %v6833
    %v6835 = vpop.f32.mrb[0].mxu0
    %v6836 = vadd.f32 %v6523, %v6835
    %v6837 = vpop.f32.mrb[0].mxu0
    %v6838 = vadd.f32 %v6525, %v6837
    %v6839 = vpop.f32.mrb[0].mxu0
    %v6840 = vadd.f32 %v6527, %v6839
    %6841 = vmatprep.mubr.bf16.mxu0 %v4278
    %6842 = vmatmul.mubr.bf16.gmra.mrb[0].mxu0 %v4277
    %v6843 = vpop.f32.mrb[0].mxu0
    %v6844 = vadd.f32 %v6531, %v6843
    %v6845 = vpop.f32.mrb[0].mxu0
    %v6846 = vadd.f32 %v6533, %v6845
    %v6847 = vpop.f32.mrb[0].mxu0
    %v6848 = vadd.f32 %v6535, %v6847
    %v6849 = vpop.f32.mrb[0].mxu0
    %v6850 = vadd.f32 %v6537, %v6849
    %6851 = vmatprep.mubr.bf16.mxu0 %v4280
    %6852 = vmatmul.mubr.bf16.gmra.mrb[0].mxu0 %v4279
    %v6853 = vpop.f32.mrb[0].mxu0
    %v6854 = vadd.f32 %v6541, %v6853
    %v6855 = vpop.f32.mrb[0].mxu0
    %v6856 = vadd.f32 %v6543, %v6855
    %v6857 = vpop.f32.mrb[0].mxu0
    %v6858 = vadd.f32 %v6545, %v6857
    %v6859 = vpop.f32.mrb[0].mxu0
    %v6860 = vadd.f32 %v6547, %v6859
    %6861 = vmatprep.mubr.bf16.mxu0 %v4282
    %6862 = vmatmul.mubr.bf16.gmra.mrb[0].mxu0 %v4281
    %v6863 = vpop.f32.mrb[0].mxu0
    %v6864 = vadd.f32 %v6551, %v6863
    %v6865 = vpop.f32.mrb[0].mxu0
    %v6866 = vadd.f32 %v6553, %v6865
    %v6867 = vpop.f32.mrb[0].mxu0
    %v6868 = vadd.f32 %v6555, %v6867
    %v6869 = vpop.f32.mrb[0].mxu0
    %v6870 = vadd.f32 %v6557, %v6869
    %6871 = vmatprep.mubr.bf16.mxu0 %v4284
    %6872 = vmatmul.mubr.bf16.gmra.mrb[0].mxu0 %v4283
    %v6873 = vpop.f32.mrb[0].mxu0
    %v6874 = vadd.f32 %v6561, %v6873
    %v6875 = vpop.f32.mrb[0].mxu0
    %v6876 = vadd.f32 %v6563, %v6875
    %v6877 = vpop.f32.mrb[0].mxu0
    %v6878 = vadd.f32 %v6565, %v6877
    %v6879 = vpop.f32.mrb[0].mxu0
    %v6880 = vadd.f32 %v6567, %v6879
    %6881 = vmatprep.mubr.bf16.mxu0 %v4286
    %6882 = vmatmul.mubr.bf16.gmra.mrb[0].mxu0 %v4285
    %v6883 = vpop.f32.mrb[0].mxu0
    %v6884 = vadd.f32 %v6571, %v6883
    %v6885 = vpop.f32.mrb[0].mxu0
    %v6886 = vadd.f32 %v6573, %v6885
    %v6887 = vpop.f32.mrb[0].mxu0
    %v6888 = vadd.f32 %v6575, %v6887
    %v6889 = vpop.f32.mrb[0].mxu0
    %v6890 = vadd.f32 %v6577, %v6889
    %6891 = vmatprep.mubr.bf16.mxu0 %v4288
    %6892 = vmatmul.mubr.bf16.gmra.mrb[0].mxu0 %v4287
    %v6893 = vpop.f32.mrb[0].mxu0
    %v6894 = vadd.f32 %v6581, %v6893
    %v6895 = vpop.f32.mrb[0].mxu0
    %v6896 = vadd.f32 %v6583, %v6895
    %v6897 = vpop.f32.mrb[0].mxu0
    %v6898 = vadd.f32 %v6585, %v6897
    %v6899 = vpop.f32.mrb[0].mxu0
    %v6900 = vadd.f32 %v6587, %v6899
    %6901 = vmatprep.mubr.bf16.mxu0 %v4290
    %6902 = vmatmul.mubr.bf16.gmra.mrb[0].mxu0 %v4289
    %v6903 = vpop.f32.mrb[0].mxu0
    %v6904 = vadd.f32 %v6591, %v6903
    %v6905 = vpop.f32.mrb[0].mxu0
    %v6906 = vadd.f32 %v6593, %v6905
    %v6907 = vpop.f32.mrb[0].mxu0
    %v6908 = vadd.f32 %v6595, %v6907
    %v6909 = vpop.f32.mrb[0].mxu0
    %v6910 = vadd.f32 %v6597, %v6909
    %6911 = vmatprep.mubr.bf16.mxu0 %v4292
    %6912 = vmatmul.mubr.bf16.gmra.mrb[0].mxu0 %v4291
    %v6913 = vpop.f32.mrb[0].mxu0
    %v6914 = vadd.f32 %v6601, %v6913
    %v6915 = vpop.f32.mrb[0].mxu0
    %v6916 = vadd.f32 %v6603, %v6915
    %v6917 = vpop.f32.mrb[0].mxu0
    %v6918 = vadd.f32 %v6605, %v6917
    %v6919 = vpop.f32.mrb[0].mxu0
    %v6920 = vadd.f32 %v6607, %v6919
    %6921 = vmatprep.mubr.bf16.mxu0 %v4294
    %6922 = vmatmul.mubr.bf16.gmra.mrb[0].mxu0 %v4293
    %v6923 = vpop.f32.mrb[0].mxu0
    %v6924 = vadd.f32 %v6611, %v6923
    %v6925 = vpop.f32.mrb[0].mxu0
    %v6926 = vadd.f32 %v6613, %v6925
    %v6927 = vpop.f32.mrb[0].mxu0
    %v6928 = vadd.f32 %v6615, %v6927
    %v6929 = vpop.f32.mrb[0].mxu0
    %v6930 = vadd.f32 %v6617, %v6929
    %6931 = vmatprep.mubr.bf16.mxu0 %v4296
    %6932 = vmatmul.mubr.bf16.gmra.mrb[0].mxu0 %v4295
    %v6933 = vpop.f32.mrb[0].mxu0
    %v6934 = vadd.f32 %v6621, %v6933
    %v6935 = vpop.f32.mrb[0].mxu0
    %v6936 = vadd.f32 %v6623, %v6935
    %v6937 = vpop.f32.mrb[0].mxu0
    %v6938 = vadd.f32 %v6625, %v6937
    %v6939 = vpop.f32.mrb[0].mxu0
    %v6940 = vadd.f32 %v6627, %v6939
    %6941 = vmatprep.mubr.bf16.mxu0 %v4298
    %6942 = vmatmul.mubr.bf16.gmra.mrb[0].mxu0 %v4297
    %v6943 = vpop.f32.mrb[0].mxu0
    %v6944 = vadd.f32 %v6631, %v6943
    %v6945 = vpop.f32.mrb[0].mxu0
    %v6946 = vadd.f32 %v6633, %v6945
    %v6947 = vpop.f32.mrb[0].mxu0
    %v6948 = vadd.f32 %v6635, %v6947
    %v6949 = vpop.f32.mrb[0].mxu0
    %v6950 = vadd.f32 %v6637, %v6949
    %6951 = vmatprep.mubr.bf16.mxu0 %v4300
    %6952 = vmatmul.mubr.bf16.gmra.mrb[0].mxu0 %v4299
    %v6953 = vpop.f32.mrb[0].mxu0
    %v6954 = vadd.f32 %v6641, %v6953
    %v6955 = vpop.f32.mrb[0].mxu0
    %v6956 = vadd.f32 %v6643, %v6955
    %v6957 = vpop.f32.mrb[0].mxu0
    %v6958 = vadd.f32 %v6645, %v6957
    %v6959 = vpop.f32.mrb[0].mxu0
    %v6960 = vadd.f32 %v6647, %v6959
    %6961 = vmatprep.mubr.bf16.mxu0 %v4302
    %6962 = vmatmul.mubr.bf16.gmra.mrb[0].mxu0 %v4301
    %v6963 = vpop.f32.mrb[0].mxu0
    %v6964 = vadd.f32 %v6651, %v6963
    %v6965 = vpop.f32.mrb[0].mxu0
    %v6966 = vadd.f32 %v6653, %v6965
    %v6967 = vpop.f32.mrb[0].mxu0
    %v6968 = vadd.f32 %v6655, %v6967
    %v6969 = vpop.f32.mrb[0].mxu0
    %v6970 = vadd.f32 %v6657, %v6969
    %6971 = vmatprep.mubr.bf16.mxu0 %v4304
    %6972 = vmatmul.mubr.bf16.gmra.mrb[0].mxu0 %v4303
    %v6973 = vpop.f32.mrb[0].mxu0
    %v6974 = vadd.f32 %v6661, %v6973
    %v6975 = vpop.f32.mrb[0].mxu0
    %v6976 = vadd.f32 %v6663, %v6975
    %v6977 = vpop.f32.mrb[0].mxu0
    %v6978 = vadd.f32 %v6665, %v6977
    %v6979 = vpop.f32.mrb[0].mxu0
    %v6980 = vadd.f32 %v6667, %v6979
    %6981 = vmatprep.mubr.bf16.mxu0 %v4306
    %6982 = vmatmul.mubr.bf16.gmra.mrb[0].mxu0 %v4305
    %v6983 = vpop.f32.mrb[0].mxu0
    %v6984 = vadd.f32 %v6671, %v6983
    %v6985 = vpop.f32.mrb[0].mxu0
    %v6986 = vadd.f32 %v6673, %v6985
    %v6987 = vpop.f32.mrb[0].mxu0
    %v6988 = vadd.f32 %v6675, %v6987
    %v6989 = vpop.f32.mrb[0].mxu0
    %v6990 = vadd.f32 %v6677, %v6989
    %6991 = vmatprep.mubr.bf16.mxu0 %v4308
    %6992 = vmatmul.mubr.bf16.gmra.mrb[0].mxu0 %v4307
    %v6993 = vpop.f32.mrb[0].mxu0
    %v6994 = vadd.f32 %v6681, %v6993
    %v6995 = vpop.f32.mrb[0].mxu0
    %v6996 = vadd.f32 %v6683, %v6995
    %v6997 = vpop.f32.mrb[0].mxu0
    %v6998 = vadd.f32 %v6685, %v6997
    %v6999 = vpop.f32.mrb[0].mxu0
    %v7000 = vadd.f32 %v6687, %v6999
    %7001 = vmatprep.mubr.bf16.mxu0 %v4310
    %7002 = vmatmul.mubr.bf16.gmra.mrb[0].mxu0 %v4309
    %v7003 = vpop.f32.mrb[0].mxu0
    %v7004 = vadd.f32 %v6691, %v7003
    %v7005 = vpop.f32.mrb[0].mxu0
    %v7006 = vadd.f32 %v6693, %v7005
    %v7007 = vpop.f32.mrb[0].mxu0
    %v7008 = vadd.f32 %v6695, %v7007
    %v7009 = vpop.f32.mrb[0].mxu0
    %v7010 = vadd.f32 %v6697, %v7009
    %7011 = vmatprep.mubr.bf16.mxu0 %v4312
    %7012 = vmatmul.mubr.bf16.gmra.mrb[0].mxu0 %v4311
    %v7013 = vpop.f32.mrb[0].mxu0
    %v7014 = vadd.f32 %v6701, %v7013
    %v7015 = vpop.f32.mrb[0].mxu0
    %v7016 = vadd.f32 %v6703, %v7015
    %v7017 = vpop.f32.mrb[0].mxu0
    %v7018 = vadd.f32 %v6705, %v7017
    %v7019 = vpop.f32.mrb[0].mxu0
    %v7020 = vadd.f32 %v6707, %v7019
    %7021 = vmatprep.mubr.bf16.mxu0 %v4314
    %7022 = vmatmul.mubr.bf16.gmra.mrb[0].mxu0 %v4313
    %v7023 = vpop.f32.mrb[0].mxu0
    %v7024 = vadd.f32 %v6711, %v7023
    %v7025 = vpop.f32.mrb[0].mxu0
    %v7026 = vadd.f32 %v6713, %v7025
    %v7027 = vpop.f32.mrb[0].mxu0
    %v7028 = vadd.f32 %v6715, %v7027
    %v7029 = vpop.f32.mrb[0].mxu0
    %v7030 = vadd.f32 %v6717, %v7029
    %7031 = vdwg.mxu0
    %7032 = vmatprep.subr.bf16.mxu0 %v5214
    %7033 = vmatpush1.bf16.msra.mxu0 %v5213
    %7034 = vmatprep.subr.bf16.mxu0 %v5218
    %7035 = vmatpush1.bf16.msra.mxu0 %v5217
    %7036 = vmatprep.subr.bf16.mxu0 %v5222
    %7037 = vmatpush1.bf16.msra.mxu0 %v5221
    %7038 = vmatprep.subr.bf16.mxu0 %v5226
    %7039 = vmatpush1.bf16.msra.mxu0 %v5225
    %7040 = vmatprep.subr.bf16.mxu0 %v5230
    %7041 = vmatpush1.bf16.msra.mxu0 %v5229
    %7042 = vmatprep.subr.bf16.mxu0 %v5234
    %7043 = vmatpush1.bf16.msra.mxu0 %v5233
    %7044 = vmatprep.subr.bf16.mxu0 %v5238
    %7045 = vmatpush1.bf16.msra.mxu0 %v5237
    %7046 = vmatprep.subr.bf16.mxu0 %v5242
    %7047 = vmatpush1.bf16.msra.mxu0 %v5241
    %7048 = vmatprep.subr.bf16.mxu0 %v5246
    %7049 = vmatpush1.bf16.msra.mxu0 %v5245
    %7050 = vmatprep.subr.bf16.mxu0 %v5250
    %7051 = vmatpush1.bf16.msra.mxu0 %v5249
    %7052 = vmatprep.subr.bf16.mxu0 %v5254
    %7053 = vmatpush1.bf16.msra.mxu0 %v5253
    %7054 = vmatprep.subr.bf16.mxu0 %v5258
    %7055 = vmatpush1.bf16.msra.mxu0 %v5257
    %7056 = vmatprep.subr.bf16.mxu0 %v5262
    %7057 = vmatpush1.bf16.msra.mxu0 %v5261
    %7058 = vmatprep.subr.bf16.mxu0 %v5266
    %7059 = vmatpush1.bf16.msra.mxu0 %v5265
    %7060 = vmatprep.subr.bf16.mxu0 %v5270
    %7061 = vmatpush1.bf16.msra.mxu0 %v5269
    %7062 = vmatprep.subr.bf16.mxu0 %v5274
    %7063 = vmatpush1.bf16.msra.mxu0 %v5273
    %7064 = vmatprep.mubr.bf16.mxu0 %v4264
    %7065 = vmatmul.mubr.bf16.gmra.mrb[0].mxu0 %v4263
    %v7066 = vpop.f32.mrb[0].mxu0
    %v7067 = vadd.f32 %v6754, %v7066
    %v7068 = vpop.f32.mrb[0].mxu0
    %v7069 = vadd.f32 %v6756, %v7068
    %v7070 = vpop.f32.mrb[0].mxu0
    %v7071 = vadd.f32 %v6758, %v7070
    %v7072 = vpop.f32.mrb[0].mxu0
    %v7073 = vadd.f32 %v6760, %v7072
    %7074 = vmatprep.mubr.bf16.mxu0 %v4266
    %7075 = vmatmul.mubr.bf16.gmra.mrb[0].mxu0 %v4265
    %v7076 = vpop.f32.mrb[0].mxu0
    %v7077 = vadd.f32 %v6764, %v7076
    %v7078 = vpop.f32.mrb[0].mxu0
    %v7079 = vadd.f32 %v6766, %v7078
    %v7080 = vpop.f32.mrb[0].mxu0
    %v7081 = vadd.f32 %v6768, %v7080
    %v7082 = vpop.f32.mrb[0].mxu0
    %v7083 = vadd.f32 %v6770, %v7082
    %7084 = vmatprep.mubr.bf16.mxu0 %v4268
    %7085 = vmatmul.mubr.bf16.gmra.mrb[0].mxu0 %v4267
    %v7086 = vpop.f32.mrb[0].mxu0
    %v7087 = vadd.f32 %v6774, %v7086
    %v7088 = vpop.f32.mrb[0].mxu0
    %v7089 = vadd.f32 %v6776, %v7088
    %v7090 = vpop.f32.mrb[0].mxu0
    %v7091 = vadd.f32 %v6778, %v7090
    %v7092 = vpop.f32.mrb[0].mxu0
    %v7093 = vadd.f32 %v6780, %v7092
    %7094 = vmatprep.mubr.bf16.mxu0 %v4270
    %7095 = vmatmul.mubr.bf16.gmra.mrb[0].mxu0 %v4269
    %v7096 = vpop.f32.mrb[0].mxu0
    %v7097 = vadd.f32 %v6784, %v7096
    %v7098 = vpop.f32.mrb[0].mxu0
    %v7099 = vadd.f32 %v6786, %v7098
    %v7100 = vpop.f32.mrb[0].mxu0
    %v7101 = vadd.f32 %v6788, %v7100
    %v7102 = vpop.f32.mrb[0].mxu0
    %v7103 = vadd.f32 %v6790, %v7102
    %7104 = vmatprep.mubr.bf16.mxu0 %v4272
    %7105 = vmatmul.mubr.bf16.gmra.mrb[0].mxu0 %v4271
    %v7106 = vpop.f32.mrb[0].mxu0
    %v7107 = vadd.f32 %v6794, %v7106
    %v7108 = vpop.f32.mrb[0].mxu0
    %v7109 = vadd.f32 %v6796, %v7108
    %v7110 = vpop.f32.mrb[0].mxu0
    %v7111 = vadd.f32 %v6798, %v7110
    %v7112 = vpop.f32.mrb[0].mxu0
    %v7113 = vadd.f32 %v6800, %v7112
    %7114 = vmatprep.mubr.bf16.mxu0 %v4274
    %7115 = vmatmul.mubr.bf16.gmra.mrb[0].mxu0 %v4273
    %v7116 = vpop.f32.mrb[0].mxu0
    %v7117 = vadd.f32 %v6804, %v7116
    %v7118 = vpop.f32.mrb[0].mxu0
    %v7119 = vadd.f32 %v6806, %v7118
    %v7120 = vpop.f32.mrb[0].mxu0
    %v7121 = vadd.f32 %v6808, %v7120
    %v7122 = vpop.f32.mrb[0].mxu0
    %v7123 = vadd.f32 %v6810, %v7122
    %7124 = vmatprep.mubr.bf16.mxu0 %v4276
    %7125 = vmatmul.mubr.bf16.gmra.mrb[0].mxu0 %v4275
    %v7126 = vpop.f32.mrb[0].mxu0
    %v7127 = vadd.f32 %v6814, %v7126
    %v7128 = vpop.f32.mrb[0].mxu0
    %v7129 = vadd.f32 %v6816, %v7128
    %v7130 = vpop.f32.mrb[0].mxu0
    %v7131 = vadd.f32 %v6818, %v7130
    %v7132 = vpop.f32.mrb[0].mxu0
    %v7133 = vadd.f32 %v6820, %v7132
    %7134 = vmatprep.mubr.bf16.mxu0 %v4278
    %7135 = vmatmul.mubr.bf16.gmra.mrb[0].mxu0 %v4277
    %v7136 = vpop.f32.mrb[0].mxu0
    %v7137 = vadd.f32 %v6824, %v7136
    %v7138 = vpop.f32.mrb[0].mxu0
    %v7139 = vadd.f32 %v6826, %v7138
    %v7140 = vpop.f32.mrb[0].mxu0
    %v7141 = vadd.f32 %v6828, %v7140
    %v7142 = vpop.f32.mrb[0].mxu0
    %v7143 = vadd.f32 %v6830, %v7142
    %7144 = vmatprep.mubr.bf16.mxu0 %v4280
    %7145 = vmatmul.mubr.bf16.gmra.mrb[0].mxu0 %v4279
    %v7146 = vpop.f32.mrb[0].mxu0
    %v7147 = vadd.f32 %v6834, %v7146
    %v7148 = vpop.f32.mrb[0].mxu0
    %v7149 = vadd.f32 %v6836, %v7148
    %v7150 = vpop.f32.mrb[0].mxu0
    %v7151 = vadd.f32 %v6838, %v7150
    %v7152 = vpop.f32.mrb[0].mxu0
    %v7153 = vadd.f32 %v6840, %v7152
    %7154 = vmatprep.mubr.bf16.mxu0 %v4282
    %7155 = vmatmul.mubr.bf16.gmra.mrb[0].mxu0 %v4281
    %v7156 = vpop.f32.mrb[0].mxu0
    %v7157 = vadd.f32 %v6844, %v7156
    %v7158 = vpop.f32.mrb[0].mxu0
    %v7159 = vadd.f32 %v6846, %v7158
    %v7160 = vpop.f32.mrb[0].mxu0
    %v7161 = vadd.f32 %v6848, %v7160
    %v7162 = vpop.f32.mrb[0].mxu0
    %v7163 = vadd.f32 %v6850, %v7162
    %7164 = vmatprep.mubr.bf16.mxu0 %v4284
    %7165 = vmatmul.mubr.bf16.gmra.mrb[0].mxu0 %v4283
    %v7166 = vpop.f32.mrb[0].mxu0
    %v7167 = vadd.f32 %v6854, %v7166
    %v7168 = vpop.f32.mrb[0].mxu0
    %v7169 = vadd.f32 %v6856, %v7168
    %v7170 = vpop.f32.mrb[0].mxu0
    %v7171 = vadd.f32 %v6858, %v7170
    %v7172 = vpop.f32.mrb[0].mxu0
    %v7173 = vadd.f32 %v6860, %v7172
    %7174 = vmatprep.mubr.bf16.mxu0 %v4286
    %7175 = vmatmul.mubr.bf16.gmra.mrb[0].mxu0 %v4285
    %v7176 = vpop.f32.mrb[0].mxu0
    %v7177 = vadd.f32 %v6864, %v7176
    %v7178 = vpop.f32.mrb[0].mxu0
    %v7179 = vadd.f32 %v6866, %v7178
    %v7180 = vpop.f32.mrb[0].mxu0
    %v7181 = vadd.f32 %v6868, %v7180
    %v7182 = vpop.f32.mrb[0].mxu0
    %v7183 = vadd.f32 %v6870, %v7182
    %7184 = vmatprep.mubr.bf16.mxu0 %v4288
    %7185 = vmatmul.mubr.bf16.gmra.mrb[0].mxu0 %v4287
    %v7186 = vpop.f32.mrb[0].mxu0
    %v7187 = vadd.f32 %v6874, %v7186
    %v7188 = vpop.f32.mrb[0].mxu0
    %v7189 = vadd.f32 %v6876, %v7188
    %v7190 = vpop.f32.mrb[0].mxu0
    %v7191 = vadd.f32 %v6878, %v7190
    %v7192 = vpop.f32.mrb[0].mxu0
    %v7193 = vadd.f32 %v6880, %v7192
    %7194 = vmatprep.mubr.bf16.mxu0 %v4290
    %7195 = vmatmul.mubr.bf16.gmra.mrb[0].mxu0 %v4289
    %v7196 = vpop.f32.mrb[0].mxu0
    %v7197 = vadd.f32 %v6884, %v7196
    %v7198 = vpop.f32.mrb[0].mxu0
    %v7199 = vadd.f32 %v6886, %v7198
    %v7200 = vpop.f32.mrb[0].mxu0
    %v7201 = vadd.f32 %v6888, %v7200
    %v7202 = vpop.f32.mrb[0].mxu0
    %v7203 = vadd.f32 %v6890, %v7202
    %7204 = vmatprep.mubr.bf16.mxu0 %v4292
    %7205 = vmatmul.mubr.bf16.gmra.mrb[0].mxu0 %v4291
    %v7206 = vpop.f32.mrb[0].mxu0
    %v7207 = vadd.f32 %v6894, %v7206
    %v7208 = vpop.f32.mrb[0].mxu0
    %v7209 = vadd.f32 %v6896, %v7208
    %v7210 = vpop.f32.mrb[0].mxu0
    %v7211 = vadd.f32 %v6898, %v7210
    %v7212 = vpop.f32.mrb[0].mxu0
    %v7213 = vadd.f32 %v6900, %v7212
    %7214 = vmatprep.mubr.bf16.mxu0 %v4294
    %7215 = vmatmul.mubr.bf16.gmra.mrb[0].mxu0 %v4293
    %v7216 = vpop.f32.mrb[0].mxu0
    %v7217 = vadd.f32 %v6904, %v7216
    %v7218 = vpop.f32.mrb[0].mxu0
    %v7219 = vadd.f32 %v6906, %v7218
    %v7220 = vpop.f32.mrb[0].mxu0
    %v7221 = vadd.f32 %v6908, %v7220
    %v7222 = vpop.f32.mrb[0].mxu0
    %v7223 = vadd.f32 %v6910, %v7222
    %7224 = vmatprep.mubr.bf16.mxu0 %v4296
    %7225 = vmatmul.mubr.bf16.gmra.mrb[0].mxu0 %v4295
    %v7226 = vpop.f32.mrb[0].mxu0
    %v7227 = vadd.f32 %v6914, %v7226
    %v7228 = vpop.f32.mrb[0].mxu0
    %v7229 = vadd.f32 %v6916, %v7228
    %v7230 = vpop.f32.mrb[0].mxu0
    %v7231 = vadd.f32 %v6918, %v7230
    %v7232 = vpop.f32.mrb[0].mxu0
    %v7233 = vadd.f32 %v6920, %v7232
    %7234 = vmatprep.mubr.bf16.mxu0 %v4298
    %7235 = vmatmul.mubr.bf16.gmra.mrb[0].mxu0 %v4297
    %v7236 = vpop.f32.mrb[0].mxu0
    %v7237 = vadd.f32 %v6924, %v7236
    %v7238 = vpop.f32.mrb[0].mxu0
    %v7239 = vadd.f32 %v6926, %v7238
    %v7240 = vpop.f32.mrb[0].mxu0
    %v7241 = vadd.f32 %v6928, %v7240
    %v7242 = vpop.f32.mrb[0].mxu0
    %v7243 = vadd.f32 %v6930, %v7242
    %7244 = vmatprep.mubr.bf16.mxu0 %v4300
    %7245 = vmatmul.mubr.bf16.gmra.mrb[0].mxu0 %v4299
    %v7246 = vpop.f32.mrb[0].mxu0
    %v7247 = vadd.f32 %v6934, %v7246
    %v7248 = vpop.f32.mrb[0].mxu0
    %v7249 = vadd.f32 %v6936, %v7248
    %v7250 = vpop.f32.mrb[0].mxu0
    %v7251 = vadd.f32 %v6938, %v7250
    %v7252 = vpop.f32.mrb[0].mxu0
    %v7253 = vadd.f32 %v6940, %v7252
    %7254 = vmatprep.mubr.bf16.mxu0 %v4302
    %7255 = vmatmul.mubr.bf16.gmra.mrb[0].mxu0 %v4301
    %v7256 = vpop.f32.mrb[0].mxu0
    %v7257 = vadd.f32 %v6944, %v7256
    %v7258 = vpop.f32.mrb[0].mxu0
    %v7259 = vadd.f32 %v6946, %v7258
    %v7260 = vpop.f32.mrb[0].mxu0
    %v7261 = vadd.f32 %v6948, %v7260
    %v7262 = vpop.f32.mrb[0].mxu0
    %v7263 = vadd.f32 %v6950, %v7262
    %7264 = vmatprep.mubr.bf16.mxu0 %v4304
    %7265 = vmatmul.mubr.bf16.gmra.mrb[0].mxu0 %v4303
    %v7266 = vpop.f32.mrb[0].mxu0
    %v7267 = vadd.f32 %v6954, %v7266
    %v7268 = vpop.f32.mrb[0].mxu0
    %v7269 = vadd.f32 %v6956, %v7268
    %v7270 = vpop.f32.mrb[0].mxu0
    %v7271 = vadd.f32 %v6958, %v7270
    %v7272 = vpop.f32.mrb[0].mxu0
    %v7273 = vadd.f32 %v6960, %v7272
    %7274 = vmatprep.mubr.bf16.mxu0 %v4306
    %7275 = vmatmul.mubr.bf16.gmra.mrb[0].mxu0 %v4305
    %v7276 = vpop.f32.mrb[0].mxu0
    %v7277 = vadd.f32 %v6964, %v7276
    %v7278 = vpop.f32.mrb[0].mxu0
    %v7279 = vadd.f32 %v6966, %v7278
    %v7280 = vpop.f32.mrb[0].mxu0
    %v7281 = vadd.f32 %v6968, %v7280
    %v7282 = vpop.f32.mrb[0].mxu0
    %v7283 = vadd.f32 %v6970, %v7282
    %7284 = vmatprep.mubr.bf16.mxu0 %v4308
    %7285 = vmatmul.mubr.bf16.gmra.mrb[0].mxu0 %v4307
    %v7286 = vpop.f32.mrb[0].mxu0
    %v7287 = vadd.f32 %v6974, %v7286
    %v7288 = vpop.f32.mrb[0].mxu0
    %v7289 = vadd.f32 %v6976, %v7288
    %v7290 = vpop.f32.mrb[0].mxu0
    %v7291 = vadd.f32 %v6978, %v7290
    %v7292 = vpop.f32.mrb[0].mxu0
    %v7293 = vadd.f32 %v6980, %v7292
    %7294 = vmatprep.mubr.bf16.mxu0 %v4310
    %7295 = vmatmul.mubr.bf16.gmra.mrb[0].mxu0 %v4309
    %v7296 = vpop.f32.mrb[0].mxu0
    %v7297 = vadd.f32 %v6984, %v7296
    %v7298 = vpop.f32.mrb[0].mxu0
    %v7299 = vadd.f32 %v6986, %v7298
    %v7300 = vpop.f32.mrb[0].mxu0
    %v7301 = vadd.f32 %v6988, %v7300
    %v7302 = vpop.f32.mrb[0].mxu0
    %v7303 = vadd.f32 %v6990, %v7302
    %7304 = vmatprep.mubr.bf16.mxu0 %v4312
    %7305 = vmatmul.mubr.bf16.gmra.mrb[0].mxu0 %v4311
    %v7306 = vpop.f32.mrb[0].mxu0
    %v7307 = vadd.f32 %v6994, %v7306
    %v7308 = vpop.f32.mrb[0].mxu0
    %v7309 = vadd.f32 %v6996, %v7308
    %v7310 = vpop.f32.mrb[0].mxu0
    %v7311 = vadd.f32 %v6998, %v7310
    %v7312 = vpop.f32.mrb[0].mxu0
    %v7313 = vadd.f32 %v7000, %v7312
    %7314 = vmatprep.mubr.bf16.mxu0 %v4314
    %7315 = vmatmul.mubr.bf16.gmra.mrb[0].mxu0 %v4313
    %v7316 = vpop.f32.mrb[0].mxu0
    %v7317 = vadd.f32 %v7004, %v7316
    %v7318 = vpop.f32.mrb[0].mxu0
    %v7319 = vadd.f32 %v7006, %v7318
    %v7320 = vpop.f32.mrb[0].mxu0
    %v7321 = vadd.f32 %v7008, %v7320
    %v7322 = vpop.f32.mrb[0].mxu0
    %v7323 = vadd.f32 %v7010, %v7322
    %7324 = vmatprep.mubr.bf16.mxu0 0
    %7325 = vmatmul.mubr.bf16.gmra.mrb[0].mxu0 0
    %v7326 = vpop.f32.mrb[0].mxu0
    %v7327 = vadd.f32 %v7014, %v7326
    %v7328 = vpop.f32.mrb[0].mxu0
    %v7329 = vadd.f32 %v7016, %v7328
    %v7330 = vpop.f32.mrb[0].mxu0
    %v7331 = vadd.f32 %v7018, %v7330
    %v7332 = vpop.f32.mrb[0].mxu0
    %v7333 = vadd.f32 %v7020, %v7332
    %7334 = vmatprep.mubr.bf16.mxu0 0
    %7335 = vmatmul.mubr.bf16.gmra.mrb[0].mxu0 0
    %v7336 = vpop.f32.mrb[0].mxu0
    %v7337 = vadd.f32 %v7024, %v7336
    %v7338 = vpop.f32.mrb[0].mxu0
    %v7339 = vadd.f32 %v7026, %v7338
    %v7340 = vpop.f32.mrb[0].mxu0
    %v7341 = vadd.f32 %v7028, %v7340
    %v7342 = vpop.f32.mrb[0].mxu0
    %v7343 = vadd.f32 %v7030, %v7342
    %7344 = vdwg.mxu0
    %v7345 = vld [vmem:[#allocation12] ss:$2 sm:$0xf]
    %v7347 = vlaneseq
    %v7348 = vshrl.u32 %v7347, 7
    %v7349 = vsub.s32 0, %v7348
    %v7350 = vrot.slane %v7345, %v7349
    %v7351 = vlaneseq
    %v7352 = vshrl.u32 %v7351, 7
    %v7353 = vsub.s32 1, %v7352
    %v7354 = vrot.slane %v7345, %v7353
    %v7355 = vlaneseq
    %v7356 = vshrl.u32 %v7355, 7
    %v7357 = vsub.s32 2, %v7356
    %v7358 = vrot.slane %v7345, %v7357
    %v7359 = vlaneseq
    %v7360 = vshrl.u32 %v7359, 7
    %v7361 = vsub.s32 3, %v7360
    %v7362 = vrot.slane %v7345, %v7361
    %v7367 = vmul.f32 %v6128, %v7350
    %v7368 = vmul.f32 %v6130, %v7354
    %v7369 = vmul.f32 %v7067, %v7358
    %v7370 = vmul.f32 %v7069, %v7362
    %v7371 = vmul.f32 %v6132, %v7350
    %v7372 = vmul.f32 %v6134, %v7354
    %v7373 = vmul.f32 %v7071, %v7358
    %v7374 = vmul.f32 %v7073, %v7362
    %v7375 = vmul.f32 %v6138, %v7350
    %v7376 = vmul.f32 %v6140, %v7354
    %v7377 = vmul.f32 %v7077, %v7358
    %v7378 = vmul.f32 %v7079, %v7362
    %v7379 = vmul.f32 %v6142, %v7350
    %v7380 = vmul.f32 %v6144, %v7354
    %v7381 = vmul.f32 %v7081, %v7358
    %v7382 = vmul.f32 %v7083, %v7362
    %v7383 = vmul.f32 %v6148, %v7350
    %v7384 = vmul.f32 %v6150, %v7354
    %v7385 = vmul.f32 %v7087, %v7358
    %v7386 = vmul.f32 %v7089, %v7362
    %v7387 = vmul.f32 %v6152, %v7350
    %v7388 = vmul.f32 %v6154, %v7354
    %v7389 = vmul.f32 %v7091, %v7358
    %v7390 = vmul.f32 %v7093, %v7362
    %v7391 = vmul.f32 %v6158, %v7350
    %v7392 = vmul.f32 %v6160, %v7354
    %v7393 = vmul.f32 %v7097, %v7358
    %v7394 = vmul.f32 %v7099, %v7362
    %v7395 = vmul.f32 %v6162, %v7350
    %v7396 = vmul.f32 %v6164, %v7354
    %v7397 = vmul.f32 %v7101, %v7358
    %v7398 = vmul.f32 %v7103, %v7362
    %v7399 = vmul.f32 %v6168, %v7350
    %v7400 = vmul.f32 %v6170, %v7354
    %v7401 = vmul.f32 %v7107, %v7358
    %v7402 = vmul.f32 %v7109, %v7362
    %v7403 = vmul.f32 %v6172, %v7350
    %v7404 = vmul.f32 %v6174, %v7354
    %v7405 = vmul.f32 %v7111, %v7358
    %v7406 = vmul.f32 %v7113, %v7362
    %v7407 = vmul.f32 %v6178, %v7350
    %v7408 = vmul.f32 %v6180, %v7354
    %v7409 = vmul.f32 %v7117, %v7358
    %v7410 = vmul.f32 %v7119, %v7362
    %v7411 = vmul.f32 %v6182, %v7350
    %v7412 = vmul.f32 %v6184, %v7354
    %v7413 = vmul.f32 %v7121, %v7358
    %v7414 = vmul.f32 %v7123, %v7362
    %v7415 = vmul.f32 %v6188, %v7350
    %v7416 = vmul.f32 %v6190, %v7354
    %v7417 = vmul.f32 %v7127, %v7358
    %v7418 = vmul.f32 %v7129, %v7362
    %v7419 = vmul.f32 %v6192, %v7350
    %v7420 = vmul.f32 %v6194, %v7354
    %v7421 = vmul.f32 %v7131, %v7358
    %v7422 = vmul.f32 %v7133, %v7362
    %v7423 = vmul.f32 %v6198, %v7350
    %v7424 = vmul.f32 %v6200, %v7354
    %v7425 = vmul.f32 %v7137, %v7358
    %v7426 = vmul.f32 %v7139, %v7362
    %v7427 = vmul.f32 %v6202, %v7350
    %v7428 = vmul.f32 %v6204, %v7354
    %v7429 = vmul.f32 %v7141, %v7358
    %v7430 = vmul.f32 %v7143, %v7362
    %v7431 = vmul.f32 %v6208, %v7350
    %v7432 = vmul.f32 %v6210, %v7354
    %v7433 = vmul.f32 %v7147, %v7358
    %v7434 = vmul.f32 %v7149, %v7362
    %v7435 = vmul.f32 %v6212, %v7350
    %v7436 = vmul.f32 %v6214, %v7354
    %v7437 = vmul.f32 %v7151, %v7358
    %v7438 = vmul.f32 %v7153, %v7362
    %v7439 = vmul.f32 %v6218, %v7350
    %v7440 = vmul.f32 %v6220, %v7354
    %v7441 = vmul.f32 %v7157, %v7358
    %v7442 = vmul.f32 %v7159, %v7362
    %v7443 = vmul.f32 %v6222, %v7350
    %v7444 = vmul.f32 %v6224, %v7354
    %v7445 = vmul.f32 %v7161, %v7358
    %v7446 = vmul.f32 %v7163, %v7362
    %v7447 = vmul.f32 %v6228, %v7350
    %v7448 = vmul.f32 %v6230, %v7354
    %v7449 = vmul.f32 %v7167, %v7358
    %v7450 = vmul.f32 %v7169, %v7362
    %v7451 = vmul.f32 %v6232, %v7350
    %v7452 = vmul.f32 %v6234, %v7354
    %v7453 = vmul.f32 %v7171, %v7358
    %v7454 = vmul.f32 %v7173, %v7362
    %v7455 = vmul.f32 %v6238, %v7350
    %v7456 = vmul.f32 %v6240, %v7354
    %v7457 = vmul.f32 %v7177, %v7358
    %v7458 = vmul.f32 %v7179, %v7362
    %v7459 = vmul.f32 %v6242, %v7350
    %v7460 = vmul.f32 %v6244, %v7354
    %v7461 = vmul.f32 %v7181, %v7358
    %v7462 = vmul.f32 %v7183, %v7362
    %v7463 = vmul.f32 %v6248, %v7350
    %v7464 = vmul.f32 %v6250, %v7354
    %v7465 = vmul.f32 %v7187, %v7358
    %v7466 = vmul.f32 %v7189, %v7362
    %v7467 = vmul.f32 %v6252, %v7350
    %v7468 = vmul.f32 %v6254, %v7354
    %v7469 = vmul.f32 %v7191, %v7358
    %v7470 = vmul.f32 %v7193, %v7362
    %v7471 = vmul.f32 %v6258, %v7350
    %v7472 = vmul.f32 %v6260, %v7354
    %v7473 = vmul.f32 %v7197, %v7358
    %v7474 = vmul.f32 %v7199, %v7362
    %v7475 = vmul.f32 %v6262, %v7350
    %v7476 = vmul.f32 %v6264, %v7354
    %v7477 = vmul.f32 %v7201, %v7358
    %v7478 = vmul.f32 %v7203, %v7362
    %v7479 = vmul.f32 %v6268, %v7350
    %v7480 = vmul.f32 %v6270, %v7354
    %v7481 = vmul.f32 %v7207, %v7358
    %v7482 = vmul.f32 %v7209, %v7362
    %v7483 = vmul.f32 %v6272, %v7350
    %v7484 = vmul.f32 %v6274, %v7354
    %v7485 = vmul.f32 %v7211, %v7358
    %v7486 = vmul.f32 %v7213, %v7362
    %v7487 = vmul.f32 %v6278, %v7350
    %v7488 = vmul.f32 %v6280, %v7354
    %v7489 = vmul.f32 %v7217, %v7358
    %v7490 = vmul.f32 %v7219, %v7362
    %v7491 = vmul.f32 %v6282, %v7350
    %v7492 = vmul.f32 %v6284, %v7354
    %v7493 = vmul.f32 %v7221, %v7358
    %v7494 = vmul.f32 %v7223, %v7362
    %v7495 = vmul.f32 %v6288, %v7350
    %v7496 = vmul.f32 %v6290, %v7354
    %v7497 = vmul.f32 %v7227, %v7358
    %v7498 = vmul.f32 %v7229, %v7362
    %v7499 = vmul.f32 %v6292, %v7350
    %v7500 = vmul.f32 %v6294, %v7354
    %v7501 = vmul.f32 %v7231, %v7358
    %v7502 = vmul.f32 %v7233, %v7362
    %v7503 = vmul.f32 %v6298, %v7350
    %v7504 = vmul.f32 %v6300, %v7354
    %v7505 = vmul.f32 %v7237, %v7358
    %v7506 = vmul.f32 %v7239, %v7362
    %v7507 = vmul.f32 %v6302, %v7350
    %v7508 = vmul.f32 %v6304, %v7354
    %v7509 = vmul.f32 %v7241, %v7358
    %v7510 = vmul.f32 %v7243, %v7362
    %v7511 = vmul.f32 %v6308, %v7350
    %v7512 = vmul.f32 %v6310, %v7354
    %v7513 = vmul.f32 %v7247, %v7358
    %v7514 = vmul.f32 %v7249, %v7362
    %v7515 = vmul.f32 %v6312, %v7350
    %v7516 = vmul.f32 %v6314, %v7354
    %v7517 = vmul.f32 %v7251, %v7358
    %v7518 = vmul.f32 %v7253, %v7362
    %v7519 = vmul.f32 %v6318, %v7350
    %v7520 = vmul.f32 %v6320, %v7354
    %v7521 = vmul.f32 %v7257, %v7358
    %v7522 = vmul.f32 %v7259, %v7362
    %v7523 = vmul.f32 %v6322, %v7350
    %v7524 = vmul.f32 %v6324, %v7354
    %v7525 = vmul.f32 %v7261, %v7358
    %v7526 = vmul.f32 %v7263, %v7362
    %v7527 = vmul.f32 %v6328, %v7350
    %v7528 = vmul.f32 %v6330, %v7354
    %v7529 = vmul.f32 %v7267, %v7358
    %v7530 = vmul.f32 %v7269, %v7362
    %v7531 = vmul.f32 %v6332, %v7350
    %v7532 = vmul.f32 %v6334, %v7354
    %v7533 = vmul.f32 %v7271, %v7358
    %v7534 = vmul.f32 %v7273, %v7362
    %v7535 = vmul.f32 %v6338, %v7350
    %v7536 = vmul.f32 %v6340, %v7354
    %v7537 = vmul.f32 %v7277, %v7358
    %v7538 = vmul.f32 %v7279, %v7362
    %v7539 = vmul.f32 %v6342, %v7350
    %v7540 = vmul.f32 %v6344, %v7354
    %v7541 = vmul.f32 %v7281, %v7358
    %v7542 = vmul.f32 %v7283, %v7362
    %v7543 = vmul.f32 %v6348, %v7350
    %v7544 = vmul.f32 %v6350, %v7354
    %v7545 = vmul.f32 %v7287, %v7358
    %v7546 = vmul.f32 %v7289, %v7362
    %v7547 = vmul.f32 %v6352, %v7350
    %v7548 = vmul.f32 %v6354, %v7354
    %v7549 = vmul.f32 %v7291, %v7358
    %v7550 = vmul.f32 %v7293, %v7362
    %v7551 = vmul.f32 %v6358, %v7350
    %v7552 = vmul.f32 %v6360, %v7354
    %v7553 = vmul.f32 %v7297, %v7358
    %v7554 = vmul.f32 %v7299, %v7362
    %v7555 = vmul.f32 %v6362, %v7350
    %v7556 = vmul.f32 %v6364, %v7354
    %v7557 = vmul.f32 %v7301, %v7358
    %v7558 = vmul.f32 %v7303, %v7362
    %v7559 = vmul.f32 %v6368, %v7350
    %v7560 = vmul.f32 %v6370, %v7354
    %v7561 = vmul.f32 %v7307, %v7358
    %v7562 = vmul.f32 %v7309, %v7362
    %v7563 = vmul.f32 %v6372, %v7350
    %v7564 = vmul.f32 %v6374, %v7354
    %v7565 = vmul.f32 %v7311, %v7358
    %v7566 = vmul.f32 %v7313, %v7362
    %v7567 = vmul.f32 %v6378, %v7350
    %v7568 = vmul.f32 %v6380, %v7354
    %v7569 = vmul.f32 %v7317, %v7358
    %v7570 = vmul.f32 %v7319, %v7362
    %v7571 = vmul.f32 %v6382, %v7350
    %v7572 = vmul.f32 %v6384, %v7354
    %v7573 = vmul.f32 %v7321, %v7358
    %v7574 = vmul.f32 %v7323, %v7362
    %v7575 = vmul.f32 %v6388, %v7350
    %v7576 = vmul.f32 %v6390, %v7354
    %v7577 = vmul.f32 %v7327, %v7358
    %v7578 = vmul.f32 %v7329, %v7362
    %v7579 = vmul.f32 %v6392, %v7350
    %v7580 = vmul.f32 %v6394, %v7354
    %v7581 = vmul.f32 %v7331, %v7358
    %v7582 = vmul.f32 %v7333, %v7362
    %v7583 = vmul.f32 %v6398, %v7350
    %v7584 = vmul.f32 %v6400, %v7354
    %v7585 = vmul.f32 %v7337, %v7358
    %v7586 = vmul.f32 %v7339, %v7362
    %v7587 = vmul.f32 %v6402, %v7350
    %v7588 = vmul.f32 %v6404, %v7354
    %v7589 = vmul.f32 %v7341, %v7358
    %v7590 = vmul.f32 %v7343, %v7362
    %s7591 = scalar_lea.vmem [#allocation12], 1
    %v7592 = vld [vmem:[%s7591] ss:$2 sm:$0xf]
    %v7594 = vlaneseq
    %v7595 = vshrl.u32 %v7594, 7
    %v7596 = vsub.s32 0, %v7595
    %v7597 = vrot.slane %v7592, %v7596
    %v7598 = vlaneseq
    %v7599 = vshrl.u32 %v7598, 7
    %v7600 = vsub.s32 1, %v7599
    %v7601 = vrot.slane %v7592, %v7600
    %v7602 = vlaneseq
    %v7603 = vshrl.u32 %v7602, 7
    %v7604 = vsub.s32 2, %v7603
    %v7605 = vrot.slane %v7592, %v7604
    %v7606 = vlaneseq
    %v7607 = vshrl.u32 %v7606, 7
    %v7608 = vsub.s32 3, %v7607
    %v7609 = vrot.slane %v7592, %v7608
    %v7614 = vadd.f32 %v7367, %v7597
    %v7615 = vadd.f32 %v7368, %v7601
    %v7616 = vadd.f32 %v7369, %v7605
    %v7617 = vadd.f32 %v7370, %v7609
    %v7618 = vadd.f32 %v7371, %v7597
    %v7619 = vadd.f32 %v7372, %v7601
    %v7620 = vadd.f32 %v7373, %v7605
    %v7621 = vadd.f32 %v7374, %v7609
    %v7622 = vadd.f32 %v7375, %v7597
    %v7623 = vadd.f32 %v7376, %v7601
    %v7624 = vadd.f32 %v7377, %v7605
    %v7625 = vadd.f32 %v7378, %v7609
    %v7626 = vadd.f32 %v7379, %v7597
    %v7627 = vadd.f32 %v7380, %v7601
    %v7628 = vadd.f32 %v7381, %v7605
    %v7629 = vadd.f32 %v7382, %v7609
    %v7630 = vadd.f32 %v7383, %v7597
    %v7631 = vadd.f32 %v7384, %v7601
    %v7632 = vadd.f32 %v7385, %v7605
    %v7633 = vadd.f32 %v7386, %v7609
    %v7634 = vadd.f32 %v7387, %v7597
    %v7635 = vadd.f32 %v7388, %v7601
    %v7636 = vadd.f32 %v7389, %v7605
    %v7637 = vadd.f32 %v7390, %v7609
    %v7638 = vadd.f32 %v7391, %v7597
    %v7639 = vadd.f32 %v7392, %v7601
    %v7640 = vadd.f32 %v7393, %v7605
    %v7641 = vadd.f32 %v7394, %v7609
    %v7642 = vadd.f32 %v7395, %v7597
    %v7643 = vadd.f32 %v7396, %v7601
    %v7644 = vadd.f32 %v7397, %v7605
    %v7645 = vadd.f32 %v7398, %v7609
    %v7646 = vadd.f32 %v7399, %v7597
    %v7647 = vadd.f32 %v7400, %v7601
    %v7648 = vadd.f32 %v7401, %v7605
    %v7649 = vadd.f32 %v7402, %v7609
    %v7650 = vadd.f32 %v7403, %v7597
    %v7651 = vadd.f32 %v7404, %v7601
    %v7652 = vadd.f32 %v7405, %v7605
    %v7653 = vadd.f32 %v7406, %v7609
    %v7654 = vadd.f32 %v7407, %v7597
    %v7655 = vadd.f32 %v7408, %v7601
    %v7656 = vadd.f32 %v7409, %v7605
    %v7657 = vadd.f32 %v7410, %v7609
    %v7658 = vadd.f32 %v7411, %v7597
    %v7659 = vadd.f32 %v7412, %v7601
    %v7660 = vadd.f32 %v7413, %v7605
    %v7661 = vadd.f32 %v7414, %v7609
    %v7662 = vadd.f32 %v7415, %v7597
    %v7663 = vadd.f32 %v7416, %v7601
    %v7664 = vadd.f32 %v7417, %v7605
    %v7665 = vadd.f32 %v7418, %v7609
    %v7666 = vadd.f32 %v7419, %v7597
    %v7667 = vadd.f32 %v7420, %v7601
    %v7668 = vadd.f32 %v7421, %v7605
    %v7669 = vadd.f32 %v7422, %v7609
    %v7670 = vadd.f32 %v7423, %v7597
    %v7671 = vadd.f32 %v7424, %v7601
    %v7672 = vadd.f32 %v7425, %v7605
    %v7673 = vadd.f32 %v7426, %v7609
    %v7674 = vadd.f32 %v7427, %v7597
    %v7675 = vadd.f32 %v7428, %v7601
    %v7676 = vadd.f32 %v7429, %v7605
    %v7677 = vadd.f32 %v7430, %v7609
    %v7678 = vadd.f32 %v7431, %v7597
    %v7679 = vadd.f32 %v7432, %v7601
    %v7680 = vadd.f32 %v7433, %v7605
    %v7681 = vadd.f32 %v7434, %v7609
    %v7682 = vadd.f32 %v7435, %v7597
    %v7683 = vadd.f32 %v7436, %v7601
    %v7684 = vadd.f32 %v7437, %v7605
    %v7685 = vadd.f32 %v7438, %v7609
    %v7686 = vadd.f32 %v7439, %v7597
    %v7687 = vadd.f32 %v7440, %v7601
    %v7688 = vadd.f32 %v7441, %v7605
    %v7689 = vadd.f32 %v7442, %v7609
    %v7690 = vadd.f32 %v7443, %v7597
    %v7691 = vadd.f32 %v7444, %v7601
    %v7692 = vadd.f32 %v7445, %v7605
    %v7693 = vadd.f32 %v7446, %v7609
    %v7694 = vadd.f32 %v7447, %v7597
    %v7695 = vadd.f32 %v7448, %v7601
    %v7696 = vadd.f32 %v7449, %v7605
    %v7697 = vadd.f32 %v7450, %v7609
    %v7698 = vadd.f32 %v7451, %v7597
    %v7699 = vadd.f32 %v7452, %v7601
    %v7700 = vadd.f32 %v7453, %v7605
    %v7701 = vadd.f32 %v7454, %v7609
    %v7702 = vadd.f32 %v7455, %v7597
    %v7703 = vadd.f32 %v7456, %v7601
    %v7704 = vadd.f32 %v7457, %v7605
    %v7705 = vadd.f32 %v7458, %v7609
    %v7706 = vadd.f32 %v7459, %v7597
    %v7707 = vadd.f32 %v7460, %v7601
    %v7708 = vadd.f32 %v7461, %v7605
    %v7709 = vadd.f32 %v7462, %v7609
    %v7710 = vadd.f32 %v7463, %v7597
    %v7711 = vadd.f32 %v7464, %v7601
    %v7712 = vadd.f32 %v7465, %v7605
    %v7713 = vadd.f32 %v7466, %v7609
    %v7714 = vadd.f32 %v7467, %v7597
    %v7715 = vadd.f32 %v7468, %v7601
    %v7716 = vadd.f32 %v7469, %v7605
    %v7717 = vadd.f32 %v7470, %v7609
    %v7718 = vadd.f32 %v7471, %v7597
    %v7719 = vadd.f32 %v7472, %v7601
    %v7720 = vadd.f32 %v7473, %v7605
    %v7721 = vadd.f32 %v7474, %v7609
    %v7722 = vadd.f32 %v7475, %v7597
    %v7723 = vadd.f32 %v7476, %v7601
    %v7724 = vadd.f32 %v7477, %v7605
    %v7725 = vadd.f32 %v7478, %v7609
    %v7726 = vadd.f32 %v7479, %v7597
    %v7727 = vadd.f32 %v7480, %v7601
    %v7728 = vadd.f32 %v7481, %v7605
    %v7729 = vadd.f32 %v7482, %v7609
    %v7730 = vadd.f32 %v7483, %v7597
    %v7731 = vadd.f32 %v7484, %v7601
    %v7732 = vadd.f32 %v7485, %v7605
    %v7733 = vadd.f32 %v7486, %v7609
    %v7734 = vadd.f32 %v7487, %v7597
    %v7735 = vadd.f32 %v7488, %v7601
    %v7736 = vadd.f32 %v7489, %v7605
    %v7737 = vadd.f32 %v7490, %v7609
    %v7738 = vadd.f32 %v7491, %v7597
    %v7739 = vadd.f32 %v7492, %v7601
    %v7740 = vadd.f32 %v7493, %v7605
    %v7741 = vadd.f32 %v7494, %v7609
    %v7742 = vadd.f32 %v7495, %v7597
    %v7743 = vadd.f32 %v7496, %v7601
    %v7744 = vadd.f32 %v7497, %v7605
    %v7745 = vadd.f32 %v7498, %v7609
    %v7746 = vadd.f32 %v7499, %v7597
    %v7747 = vadd.f32 %v7500, %v7601
    %v7748 = vadd.f32 %v7501, %v7605
    %v7749 = vadd.f32 %v7502, %v7609
    %v7750 = vadd.f32 %v7503, %v7597
    %v7751 = vadd.f32 %v7504, %v7601
    %v7752 = vadd.f32 %v7505, %v7605
    %v7753 = vadd.f32 %v7506, %v7609
    %v7754 = vadd.f32 %v7507, %v7597
    %v7755 = vadd.f32 %v7508, %v7601
    %v7756 = vadd.f32 %v7509, %v7605
    %v7757 = vadd.f32 %v7510, %v7609
    %v7758 = vadd.f32 %v7511, %v7597
    %v7759 = vadd.f32 %v7512, %v7601
    %v7760 = vadd.f32 %v7513, %v7605
    %v7761 = vadd.f32 %v7514, %v7609
    %v7762 = vadd.f32 %v7515, %v7597
    %v7763 = vadd.f32 %v7516, %v7601
    %v7764 = vadd.f32 %v7517, %v7605
    %v7765 = vadd.f32 %v7518, %v7609
    %v7766 = vadd.f32 %v7519, %v7597
    %v7767 = vadd.f32 %v7520, %v7601
    %v7768 = vadd.f32 %v7521, %v7605
    %v7769 = vadd.f32 %v7522, %v7609
    %v7770 = vadd.f32 %v7523, %v7597
    %v7771 = vadd.f32 %v7524, %v7601
    %v7772 = vadd.f32 %v7525, %v7605
    %v7773 = vadd.f32 %v7526, %v7609
    %v7774 = vadd.f32 %v7527, %v7597
    %v7775 = vadd.f32 %v7528, %v7601
    %v7776 = vadd.f32 %v7529, %v7605
    %v7777 = vadd.f32 %v7530, %v7609
    %v7778 = vadd.f32 %v7531, %v7597
    %v7779 = vadd.f32 %v7532, %v7601
    %v7780 = vadd.f32 %v7533, %v7605
    %v7781 = vadd.f32 %v7534, %v7609
    %v7782 = vadd.f32 %v7535, %v7597
    %v7783 = vadd.f32 %v7536, %v7601
    %v7784 = vadd.f32 %v7537, %v7605
    %v7785 = vadd.f32 %v7538, %v7609
    %v7786 = vadd.f32 %v7539, %v7597
    %v7787 = vadd.f32 %v7540, %v7601
    %v7788 = vadd.f32 %v7541, %v7605
    %v7789 = vadd.f32 %v7542, %v7609
    %v7790 = vadd.f32 %v7543, %v7597
    %v7791 = vadd.f32 %v7544, %v7601
    %v7792 = vadd.f32 %v7545, %v7605
    %v7793 = vadd.f32 %v7546, %v7609
    %v7794 = vadd.f32 %v7547, %v7597
    %v7795 = vadd.f32 %v7548, %v7601
    %v7796 = vadd.f32 %v7549, %v7605
    %v7797 = vadd.f32 %v7550, %v7609
    %v7798 = vadd.f32 %v7551, %v7597
    %v7799 = vadd.f32 %v7552, %v7601
    %v7800 = vadd.f32 %v7553, %v7605
    %v7801 = vadd.f32 %v7554, %v7609
    %v7802 = vadd.f32 %v7555, %v7597
    %v7803 = vadd.f32 %v7556, %v7601
    %v7804 = vadd.f32 %v7557, %v7605
    %v7805 = vadd.f32 %v7558, %v7609
    %v7806 = vadd.f32 %v7559, %v7597
    %v7807 = vadd.f32 %v7560, %v7601
    %v7808 = vadd.f32 %v7561, %v7605
    %v7809 = vadd.f32 %v7562, %v7609
    %v7810 = vadd.f32 %v7563, %v7597
    %v7811 = vadd.f32 %v7564, %v7601
    %v7812 = vadd.f32 %v7565, %v7605
    %v7813 = vadd.f32 %v7566, %v7609
    %v7814 = vadd.f32 %v7567, %v7597
    %v7815 = vadd.f32 %v7568, %v7601
    %v7816 = vadd.f32 %v7569, %v7605
    %v7817 = vadd.f32 %v7570, %v7609
    %v7818 = vadd.f32 %v7571, %v7597
    %v7819 = vadd.f32 %v7572, %v7601
    %v7820 = vadd.f32 %v7573, %v7605
    %v7821 = vadd.f32 %v7574, %v7609
    %v7822 = vadd.f32 %v7575, %v7597
    %v7823 = vadd.f32 %v7576, %v7601
    %v7824 = vadd.f32 %v7577, %v7605
    %v7825 = vadd.f32 %v7578, %v7609
    %v7826 = vadd.f32 %v7579, %v7597
    %v7827 = vadd.f32 %v7580, %v7601
    %v7828 = vadd.f32 %v7581, %v7605
    %v7829 = vadd.f32 %v7582, %v7609
    %v7830 = vadd.f32 %v7583, %v7597
    %v7831 = vadd.f32 %v7584, %v7601
    %v7832 = vadd.f32 %v7585, %v7605
    %v7833 = vadd.f32 %v7586, %v7609
    %v7834 = vadd.f32 %v7587, %v7597
    %v7835 = vadd.f32 %v7588, %v7601
    %v7836 = vadd.f32 %v7589, %v7605
    %v7837 = vadd.f32 %v7590, %v7609
    %v7838 = vmax.f32 %v7614, 0.0
    %v7839 = vmax.f32 %v7615, 0.0
    %v7840 = vmax.f32 %v7616, 0.0
    %v7841 = vmax.f32 %v7617, 0.0
    %v7842 = vmax.f32 %v7618, 0.0
    %v7843 = vmax.f32 %v7619, 0.0
    %v7844 = vmax.f32 %v7620, 0.0
    %v7845 = vmax.f32 %v7621, 0.0
    %v7846 = vmax.f32 %v7622, 0.0
    %v7847 = vmax.f32 %v7623, 0.0
    %v7848 = vmax.f32 %v7624, 0.0
    %v7849 = vmax.f32 %v7625, 0.0
    %v7850 = vmax.f32 %v7626, 0.0
    %v7851 = vmax.f32 %v7627, 0.0
    %v7852 = vmax.f32 %v7628, 0.0
    %v7853 = vmax.f32 %v7629, 0.0
    %v7854 = vmax.f32 %v7630, 0.0
    %v7855 = vmax.f32 %v7631, 0.0
    %v7856 = vmax.f32 %v7632, 0.0
    %v7857 = vmax.f32 %v7633, 0.0
    %v7858 = vmax.f32 %v7634, 0.0
    %v7859 = vmax.f32 %v7635, 0.0
    %v7860 = vmax.f32 %v7636, 0.0
    %v7861 = vmax.f32 %v7637, 0.0
    %v7862 = vmax.f32 %v7638, 0.0
    %v7863 = vmax.f32 %v7639, 0.0
    %v7864 = vmax.f32 %v7640, 0.0
    %v7865 = vmax.f32 %v7641, 0.0
    %v7866 = vmax.f32 %v7642, 0.0
    %v7867 = vmax.f32 %v7643, 0.0
    %v7868 = vmax.f32 %v7644, 0.0
    %v7869 = vmax.f32 %v7645, 0.0
    %v7870 = vmax.f32 %v7646, 0.0
    %v7871 = vmax.f32 %v7647, 0.0
    %v7872 = vmax.f32 %v7648, 0.0
    %v7873 = vmax.f32 %v7649, 0.0
    %v7874 = vmax.f32 %v7650, 0.0
    %v7875 = vmax.f32 %v7651, 0.0
    %v7876 = vmax.f32 %v7652, 0.0
    %v7877 = vmax.f32 %v7653, 0.0
    %v7878 = vmax.f32 %v7654, 0.0
    %v7879 = vmax.f32 %v7655, 0.0
    %v7880 = vmax.f32 %v7656, 0.0
    %v7881 = vmax.f32 %v7657, 0.0
    %v7882 = vmax.f32 %v7658, 0.0
    %v7883 = vmax.f32 %v7659, 0.0
    %v7884 = vmax.f32 %v7660, 0.0
    %v7885 = vmax.f32 %v7661, 0.0
    %v7886 = vmax.f32 %v7662, 0.0
    %v7887 = vmax.f32 %v7663, 0.0
    %v7888 = vmax.f32 %v7664, 0.0
    %v7889 = vmax.f32 %v7665, 0.0
    %v7890 = vmax.f32 %v7666, 0.0
    %v7891 = vmax.f32 %v7667, 0.0
    %v7892 = vmax.f32 %v7668, 0.0
    %v7893 = vmax.f32 %v7669, 0.0
    %v7894 = vmax.f32 %v7670, 0.0
    %v7895 = vmax.f32 %v7671, 0.0
    %v7896 = vmax.f32 %v7672, 0.0
    %v7897 = vmax.f32 %v7673, 0.0
    %v7898 = vmax.f32 %v7674, 0.0
    %v7899 = vmax.f32 %v7675, 0.0
    %v7900 = vmax.f32 %v7676, 0.0
    %v7901 = vmax.f32 %v7677, 0.0
    %v7902 = vmax.f32 %v7678, 0.0
    %v7903 = vmax.f32 %v7679, 0.0
    %v7904 = vmax.f32 %v7680, 0.0
    %v7905 = vmax.f32 %v7681, 0.0
    %v7906 = vmax.f32 %v7682, 0.0
    %v7907 = vmax.f32 %v7683, 0.0
    %v7908 = vmax.f32 %v7684, 0.0
    %v7909 = vmax.f32 %v7685, 0.0
    %v7910 = vmax.f32 %v7686, 0.0
    %v7911 = vmax.f32 %v7687, 0.0
    %v7912 = vmax.f32 %v7688, 0.0
    %v7913 = vmax.f32 %v7689, 0.0
    %v7914 = vmax.f32 %v7690, 0.0
    %v7915 = vmax.f32 %v7691, 0.0
    %v7916 = vmax.f32 %v7692, 0.0
    %v7917 = vmax.f32 %v7693, 0.0
    %v7918 = vmax.f32 %v7694, 0.0
    %v7919 = vmax.f32 %v7695, 0.0
    %v7920 = vmax.f32 %v7696, 0.0
    %v7921 = vmax.f32 %v7697, 0.0
    %v7922 = vmax.f32 %v7698, 0.0
    %v7923 = vmax.f32 %v7699, 0.0
    %v7924 = vmax.f32 %v7700, 0.0
    %v7925 = vmax.f32 %v7701, 0.0
    %v7926 = vmax.f32 %v7702, 0.0
    %v7927 = vmax.f32 %v7703, 0.0
    %v7928 = vmax.f32 %v7704, 0.0
    %v7929 = vmax.f32 %v7705, 0.0
    %v7930 = vmax.f32 %v7706, 0.0
    %v7931 = vmax.f32 %v7707, 0.0
    %v7932 = vmax.f32 %v7708, 0.0
    %v7933 = vmax.f32 %v7709, 0.0
    %v7934 = vmax.f32 %v7710, 0.0
    %v7935 = vmax.f32 %v7711, 0.0
    %v7936 = vmax.f32 %v7712, 0.0
    %v7937 = vmax.f32 %v7713, 0.0
    %v7938 = vmax.f32 %v7714, 0.0
    %v7939 = vmax.f32 %v7715, 0.0
    %v7940 = vmax.f32 %v7716, 0.0
    %v7941 = vmax.f32 %v7717, 0.0
    %v7942 = vmax.f32 %v7718, 0.0
    %v7943 = vmax.f32 %v7719, 0.0
    %v7944 = vmax.f32 %v7720, 0.0
    %v7945 = vmax.f32 %v7721, 0.0
    %v7946 = vmax.f32 %v7722, 0.0
    %v7947 = vmax.f32 %v7723, 0.0
    %v7948 = vmax.f32 %v7724, 0.0
    %v7949 = vmax.f32 %v7725, 0.0
    %v7950 = vmax.f32 %v7726, 0.0
    %v7951 = vmax.f32 %v7727, 0.0
    %v7952 = vmax.f32 %v7728, 0.0
    %v7953 = vmax.f32 %v7729, 0.0
    %v7954 = vmax.f32 %v7730, 0.0
    %v7955 = vmax.f32 %v7731, 0.0
    %v7956 = vmax.f32 %v7732, 0.0
    %v7957 = vmax.f32 %v7733, 0.0
    %v7958 = vmax.f32 %v7734, 0.0
    %v7959 = vmax.f32 %v7735, 0.0
    %v7960 = vmax.f32 %v7736, 0.0
    %v7961 = vmax.f32 %v7737, 0.0
    %v7962 = vmax.f32 %v7738, 0.0
    %v7963 = vmax.f32 %v7739, 0.0
    %v7964 = vmax.f32 %v7740, 0.0
    %v7965 = vmax.f32 %v7741, 0.0
    %v7966 = vmax.f32 %v7742, 0.0
    %v7967 = vmax.f32 %v7743, 0.0
    %v7968 = vmax.f32 %v7744, 0.0
    %v7969 = vmax.f32 %v7745, 0.0
    %v7970 = vmax.f32 %v7746, 0.0
    %v7971 = vmax.f32 %v7747, 0.0
    %v7972 = vmax.f32 %v7748, 0.0
    %v7973 = vmax.f32 %v7749, 0.0
    %v7974 = vmax.f32 %v7750, 0.0
    %v7975 = vmax.f32 %v7751, 0.0
    %v7976 = vmax.f32 %v7752, 0.0
    %v7977 = vmax.f32 %v7753, 0.0
    %v7978 = vmax.f32 %v7754, 0.0
    %v7979 = vmax.f32 %v7755, 0.0
    %v7980 = vmax.f32 %v7756, 0.0
    %v7981 = vmax.f32 %v7757, 0.0
    %v7982 = vmax.f32 %v7758, 0.0
    %v7983 = vmax.f32 %v7759, 0.0
    %v7984 = vmax.f32 %v7760, 0.0
    %v7985 = vmax.f32 %v7761, 0.0
    %v7986 = vmax.f32 %v7762, 0.0
    %v7987 = vmax.f32 %v7763, 0.0
    %v7988 = vmax.f32 %v7764, 0.0
    %v7989 = vmax.f32 %v7765, 0.0
    %v7990 = vmax.f32 %v7766, 0.0
    %v7991 = vmax.f32 %v7767, 0.0
    %v7992 = vmax.f32 %v7768, 0.0
    %v7993 = vmax.f32 %v7769, 0.0
    %v7994 = vmax.f32 %v7770, 0.0
    %v7995 = vmax.f32 %v7771, 0.0
    %v7996 = vmax.f32 %v7772, 0.0
    %v7997 = vmax.f32 %v7773, 0.0
    %v7998 = vmax.f32 %v7774, 0.0
    %v7999 = vmax.f32 %v7775, 0.0
    %v8000 = vmax.f32 %v7776, 0.0
    %v8001 = vmax.f32 %v7777, 0.0
    %v8002 = vmax.f32 %v7778, 0.0
    %v8003 = vmax.f32 %v7779, 0.0
    %v8004 = vmax.f32 %v7780, 0.0
    %v8005 = vmax.f32 %v7781, 0.0
    %v8006 = vmax.f32 %v7782, 0.0
    %v8007 = vmax.f32 %v7783, 0.0
    %v8008 = vmax.f32 %v7784, 0.0
    %v8009 = vmax.f32 %v7785, 0.0
    %v8010 = vmax.f32 %v7786, 0.0
    %v8011 = vmax.f32 %v7787, 0.0
    %v8012 = vmax.f32 %v7788, 0.0
    %v8013 = vmax.f32 %v7789, 0.0
    %v8014 = vmax.f32 %v7790, 0.0
    %v8015 = vmax.f32 %v7791, 0.0
    %v8016 = vmax.f32 %v7792, 0.0
    %v8017 = vmax.f32 %v7793, 0.0
    %v8018 = vmax.f32 %v7794, 0.0
    %v8019 = vmax.f32 %v7795, 0.0
    %v8020 = vmax.f32 %v7796, 0.0
    %v8021 = vmax.f32 %v7797, 0.0
    %v8022 = vmax.f32 %v7798, 0.0
    %v8023 = vmax.f32 %v7799, 0.0
    %v8024 = vmax.f32 %v7800, 0.0
    %v8025 = vmax.f32 %v7801, 0.0
    %v8026 = vmax.f32 %v7802, 0.0
    %v8027 = vmax.f32 %v7803, 0.0
    %v8028 = vmax.f32 %v7804, 0.0
    %v8029 = vmax.f32 %v7805, 0.0
    %v8030 = vmax.f32 %v7806, 0.0
    %v8031 = vmax.f32 %v7807, 0.0
    %v8032 = vmax.f32 %v7808, 0.0
    %v8033 = vmax.f32 %v7809, 0.0
    %v8034 = vmax.f32 %v7810, 0.0
    %v8035 = vmax.f32 %v7811, 0.0
    %v8036 = vmax.f32 %v7812, 0.0
    %v8037 = vmax.f32 %v7813, 0.0
    %v8038 = vmax.f32 %v7814, 0.0
    %v8039 = vmax.f32 %v7815, 0.0
    %v8040 = vmax.f32 %v7816, 0.0
    %v8041 = vmax.f32 %v7817, 0.0
    %v8042 = vmax.f32 %v7818, 0.0
    %v8043 = vmax.f32 %v7819, 0.0
    %v8044 = vmax.f32 %v7820, 0.0
    %v8045 = vmax.f32 %v7821, 0.0
    %v8046 = vmax.f32 %v7822, 0.0
    %v8047 = vmax.f32 %v7823, 0.0
    %v8048 = vmax.f32 %v7824, 0.0
    %v8049 = vmax.f32 %v7825, 0.0
    %v8050 = vmax.f32 %v7826, 0.0
    %v8051 = vmax.f32 %v7827, 0.0
    %v8052 = vmax.f32 %v7828, 0.0
    %v8053 = vmax.f32 %v7829, 0.0
    %v8054 = vmax.f32 %v7830, 0.0
    %v8055 = vmax.f32 %v7831, 0.0
    %v8056 = vmax.f32 %v7832, 0.0
    %v8057 = vmax.f32 %v7833, 0.0
    %v8058 = vmax.f32 %v7834, 0.0
    %v8059 = vmax.f32 %v7835, 0.0
    %v8060 = vmax.f32 %v7836, 0.0
    %v8061 = vmax.f32 %v7837, 0.0
    %v8062 = vpack.c.bf16 %v7842, %v7838
    %v8063 = vpack.c.bf16 %v7843, %v7839
    %v8064 = vpack.c.bf16 %v7844, %v7840
    %v8065 = vpack.c.bf16 %v7845, %v7841
    %v8066 = vpack.c.bf16 %v7850, %v7846
    %v8067 = vpack.c.bf16 %v7851, %v7847
    %v8068 = vpack.c.bf16 %v7852, %v7848
    %v8069 = vpack.c.bf16 %v7853, %v7849
    %v8070 = vpack.c.bf16 %v7858, %v7854
    %v8071 = vpack.c.bf16 %v7859, %v7855
    %v8072 = vpack.c.bf16 %v7860, %v7856
    %v8073 = vpack.c.bf16 %v7861, %v7857
    %v8074 = vpack.c.bf16 %v7866, %v7862
    %v8075 = vpack.c.bf16 %v7867, %v7863
    %v8076 = vpack.c.bf16 %v7868, %v7864
    %v8077 = vpack.c.bf16 %v7869, %v7865
    %v8078 = vpack.c.bf16 %v7874, %v7870
    %v8079 = vpack.c.bf16 %v7875, %v7871
    %v8080 = vpack.c.bf16 %v7876, %v7872
    %v8081 = vpack.c.bf16 %v7877, %v7873
    %v8082 = vpack.c.bf16 %v7882, %v7878
    %v8083 = vpack.c.bf16 %v7883, %v7879
    %v8084 = vpack.c.bf16 %v7884, %v7880
    %v8085 = vpack.c.bf16 %v7885, %v7881
    %v8086 = vpack.c.bf16 %v7890, %v7886
    %v8087 = vpack.c.bf16 %v7891, %v7887
    %v8088 = vpack.c.bf16 %v7892, %v7888
    %v8089 = vpack.c.bf16 %v7893, %v7889
    %v8090 = vpack.c.bf16 %v7898, %v7894
    %v8091 = vpack.c.bf16 %v7899, %v7895
    %v8092 = vpack.c.bf16 %v7900, %v7896
    %v8093 = vpack.c.bf16 %v7901, %v7897
    %v8094 = vpack.c.bf16 %v7906, %v7902
    %v8095 = vpack.c.bf16 %v7907, %v7903
    %v8096 = vpack.c.bf16 %v7908, %v7904
    %v8097 = vpack.c.bf16 %v7909, %v7905
    %v8098 = vpack.c.bf16 %v7914, %v7910
    %v8099 = vpack.c.bf16 %v7915, %v7911
    %v8100 = vpack.c.bf16 %v7916, %v7912
    %v8101 = vpack.c.bf16 %v7917, %v7913
    %v8102 = vpack.c.bf16 %v7922, %v7918
    %v8103 = vpack.c.bf16 %v7923, %v7919
    %v8104 = vpack.c.bf16 %v7924, %v7920
    %v8105 = vpack.c.bf16 %v7925, %v7921
    %v8106 = vpack.c.bf16 %v7930, %v7926
    %v8107 = vpack.c.bf16 %v7931, %v7927
    %v8108 = vpack.c.bf16 %v7932, %v7928
    %v8109 = vpack.c.bf16 %v7933, %v7929
    %v8110 = vpack.c.bf16 %v7938, %v7934
    %v8111 = vpack.c.bf16 %v7939, %v7935
    %v8112 = vpack.c.bf16 %v7940, %v7936
    %v8113 = vpack.c.bf16 %v7941, %v7937
    %v8114 = vpack.c.bf16 %v7946, %v7942
    %v8115 = vpack.c.bf16 %v7947, %v7943
    %v8116 = vpack.c.bf16 %v7948, %v7944
    %v8117 = vpack.c.bf16 %v7949, %v7945
    %v8118 = vpack.c.bf16 %v7954, %v7950
    %v8119 = vpack.c.bf16 %v7955, %v7951
    %v8120 = vpack.c.bf16 %v7956, %v7952
    %v8121 = vpack.c.bf16 %v7957, %v7953
    %v8122 = vpack.c.bf16 %v7962, %v7958
    %v8123 = vpack.c.bf16 %v7963, %v7959
    %v8124 = vpack.c.bf16 %v7964, %v7960
    %v8125 = vpack.c.bf16 %v7965, %v7961
    %v8126 = vpack.c.bf16 %v7970, %v7966
    %v8127 = vpack.c.bf16 %v7971, %v7967
    %v8128 = vpack.c.bf16 %v7972, %v7968
    %v8129 = vpack.c.bf16 %v7973, %v7969
    %v8130 = vpack.c.bf16 %v7978, %v7974
    %v8131 = vpack.c.bf16 %v7979, %v7975
    %v8132 = vpack.c.bf16 %v7980, %v7976
    %v8133 = vpack.c.bf16 %v7981, %v7977
    %v8134 = vpack.c.bf16 %v7986, %v7982
    %v8135 = vpack.c.bf16 %v7987, %v7983
    %v8136 = vpack.c.bf16 %v7988, %v7984
    %v8137 = vpack.c.bf16 %v7989, %v7985
    %v8138 = vpack.c.bf16 %v7994, %v7990
    %v8139 = vpack.c.bf16 %v7995, %v7991
    %v8140 = vpack.c.bf16 %v7996, %v7992
    %v8141 = vpack.c.bf16 %v7997, %v7993
    %v8142 = vpack.c.bf16 %v8002, %v7998
    %v8143 = vpack.c.bf16 %v8003, %v7999
    %v8144 = vpack.c.bf16 %v8004, %v8000
    %v8145 = vpack.c.bf16 %v8005, %v8001
    %v8146 = vpack.c.bf16 %v8010, %v8006
    %v8147 = vpack.c.bf16 %v8011, %v8007
    %v8148 = vpack.c.bf16 %v8012, %v8008
    %v8149 = vpack.c.bf16 %v8013, %v8009
    %v8150 = vpack.c.bf16 %v8018, %v8014
    %v8151 = vpack.c.bf16 %v8019, %v8015
    %v8152 = vpack.c.bf16 %v8020, %v8016
    %v8153 = vpack.c.bf16 %v8021, %v8017
    %v8154 = vpack.c.bf16 %v8026, %v8022
    %v8155 = vpack.c.bf16 %v8027, %v8023
    %v8156 = vpack.c.bf16 %v8028, %v8024
    %v8157 = vpack.c.bf16 %v8029, %v8025
    %v8158 = vpack.c.bf16 %v8034, %v8030
    %v8159 = vpack.c.bf16 %v8035, %v8031
    %v8160 = vpack.c.bf16 %v8036, %v8032
    %v8161 = vpack.c.bf16 %v8037, %v8033
    %v8162 = vpack.c.bf16 %v8042, %v8038
    %v8163 = vpack.c.bf16 %v8043, %v8039
    %v8164 = vpack.c.bf16 %v8044, %v8040
    %v8165 = vpack.c.bf16 %v8045, %v8041
    %v8166 = vpack.c.bf16 %v8050, %v8046
    %v8167 = vpack.c.bf16 %v8051, %v8047
    %v8168 = vpack.c.bf16 %v8052, %v8048
    %v8169 = vpack.c.bf16 %v8053, %v8049
    %v8170 = vpack.c.bf16 %v8058, %v8054
    %v8171 = vpack.c.bf16 %v8059, %v8055
    %v8172 = vpack.c.bf16 %v8060, %v8056
    %v8173 = vpack.c.bf16 %v8061, %v8057
    %v8174 = vmax.bf16 %v8062, %v8064
    %v8175 = vmax.bf16 %v8063, %v8065
    %v8176 = vmax.bf16 %v8066, %v8068
    %v8177 = vmax.bf16 %v8067, %v8069
    %v8178 = vmax.bf16 %v8070, %v8072
    %v8179 = vmax.bf16 %v8071, %v8073
    %v8180 = vmax.bf16 %v8074, %v8076
    %v8181 = vmax.bf16 %v8075, %v8077
    %v8182 = vmax.bf16 %v8078, %v8080
    %v8183 = vmax.bf16 %v8079, %v8081
    %v8184 = vmax.bf16 %v8082, %v8084
    %v8185 = vmax.bf16 %v8083, %v8085
    %v8186 = vmax.bf16 %v8086, %v8088
    %v8187 = vmax.bf16 %v8087, %v8089
    %v8188 = vmax.bf16 %v8090, %v8092
    %v8189 = vmax.bf16 %v8091, %v8093
    %v8190 = vmax.bf16 %v8094, %v8096
    %v8191 = vmax.bf16 %v8095, %v8097
    %v8192 = vmax.bf16 %v8098, %v8100
    %v8193 = vmax.bf16 %v8099, %v8101
    %v8194 = vmax.bf16 %v8102, %v8104
    %v8195 = vmax.bf16 %v8103, %v8105
    %v8196 = vmax.bf16 %v8106, %v8108
    %v8197 = vmax.bf16 %v8107, %v8109
    %v8198 = vmax.bf16 %v8110, %v8112
    %v8199 = vmax.bf16 %v8111, %v8113
    %v8200 = vmax.bf16 %v8114, %v8116
    %v8201 = vmax.bf16 %v8115, %v8117
    %v8202 = vmax.bf16 %v8118, %v8120
    %v8203 = vmax.bf16 %v8119, %v8121
    %v8204 = vmax.bf16 %v8122, %v8124
    %v8205 = vmax.bf16 %v8123, %v8125
    %v8206 = vmax.bf16 %v8126, %v8128
    %v8207 = vmax.bf16 %v8127, %v8129
    %v8208 = vmax.bf16 %v8130, %v8132
    %v8209 = vmax.bf16 %v8131, %v8133
    %v8210 = vmax.bf16 %v8134, %v8136
    %v8211 = vmax.bf16 %v8135, %v8137
    %v8212 = vmax.bf16 %v8138, %v8140
    %v8213 = vmax.bf16 %v8139, %v8141
    %v8214 = vmax.bf16 %v8142, %v8144
    %v8215 = vmax.bf16 %v8143, %v8145
    %v8216 = vmax.bf16 %v8146, %v8148
    %v8217 = vmax.bf16 %v8147, %v8149
    %v8218 = vmax.bf16 %v8150, %v8152
    %v8219 = vmax.bf16 %v8151, %v8153
    %v8220 = vmax.bf16 %v8154, %v8156
    %v8221 = vmax.bf16 %v8155, %v8157
    %v8222 = vmax.bf16 %v8158, %v8160
    %v8223 = vmax.bf16 %v8159, %v8161
    %v8224 = vmax.bf16 %v8162, %v8164
    %v8225 = vmax.bf16 %v8163, %v8165
    %v8226 = vmax.bf16 %v8166, %v8168
    %v8227 = vmax.bf16 %v8167, %v8169
    %v8228 = vmax.bf16 %v8170, %v8172
    %v8229 = vmax.bf16 %v8171, %v8173
    %v8230 = vmax.bf16 %v8174, %v8178
    %v8231 = vmax.bf16 %v8175, %v8179
    %v8232 = vmax.bf16 %v8176, %v8180
    %v8233 = vmax.bf16 %v8177, %v8181
    %v8234 = vmax.bf16 %v8182, %v8186
    %v8235 = vmax.bf16 %v8183, %v8187
    %v8236 = vmax.bf16 %v8184, %v8188
    %v8237 = vmax.bf16 %v8185, %v8189
    %v8238 = vmax.bf16 %v8190, %v8194
    %v8239 = vmax.bf16 %v8191, %v8195
    %v8240 = vmax.bf16 %v8192, %v8196
    %v8241 = vmax.bf16 %v8193, %v8197
    %v8242 = vmax.bf16 %v8198, %v8202
    %v8243 = vmax.bf16 %v8199, %v8203
    %v8244 = vmax.bf16 %v8200, %v8204
    %v8245 = vmax.bf16 %v8201, %v8205
    %v8246 = vmax.bf16 %v8206, %v8210
    %v8247 = vmax.bf16 %v8207, %v8211
    %v8248 = vmax.bf16 %v8208, %v8212
    %v8249 = vmax.bf16 %v8209, %v8213
    %v8250 = vmax.bf16 %v8214, %v8218
    %v8251 = vmax.bf16 %v8215, %v8219
    %v8252 = vmax.bf16 %v8216, %v8220
    %v8253 = vmax.bf16 %v8217, %v8221
    %v8254 = vmax.bf16 %v8222, %v8226
    %v8255 = vmax.bf16 %v8223, %v8227
    %v8256 = vmax.bf16 %v8224, %v8228
    %v8257 = vmax.bf16 %v8225, %v8229
    %v8258 = vld [vmem:[#allocation6] sm:$0xff]
    %v8259 = vld [vmem:[#allocation6 + $0x8] sm:$0xff]
    %v8260 = vld [vmem:[#allocation6 + $0x10] sm:$0xff]
    %v8261 = vld [vmem:[#allocation6 + $0x18] sm:$0xff]
    %v8262 = vld [vmem:[#allocation6 + $0x20] sm:$0xff]
    %v8263 = vld [vmem:[#allocation6 + $0x28] sm:$0xff]
    %v8264 = vld [vmem:[#allocation6 + $0x30] sm:$0xff]
    %v8265 = vld [vmem:[#allocation6 + $0x38] sm:$0xff]
    %v8266 = vld [vmem:[#allocation6 + $0x40] sm:$0xff]
    %v8267 = vld [vmem:[#allocation6 + $0x48] sm:$0xff]
    %v8268 = vld [vmem:[#allocation6 + $0x50] sm:$0xff]
    %v8269 = vld [vmem:[#allocation6 + $0x58] sm:$0xff]
    %v8270 = vld [vmem:[#allocation6 + $0x60] sm:$0xff]
    %v8271 = vld [vmem:[#allocation6 + $0x68] sm:$0xff]
    %v8272 = vld [vmem:[#allocation6 + $0x70] sm:$0xff]
    %v8273 = vld [vmem:[#allocation6 + $0x78] sm:$0xff]
    %v8274 = vld [vmem:[#allocation6 + $0x80] sm:$0xff]
    %v8275 = vld [vmem:[#allocation6 + $0x88] sm:$0xff]
    %v8276 = vld [vmem:[#allocation6 + $0x90] sm:$0xff]
    %v8277 = vld [vmem:[#allocation6 + $0x98] sm:$0xff]
    %v8278 = vld [vmem:[#allocation6 + $0xa0] sm:$0xff]
    %v8279 = vld [vmem:[#allocation6 + $0xa8] sm:$0xff]
    %v8280 = vld [vmem:[#allocation6 + $0xb0] sm:$0xff]
    %v8281 = vld [vmem:[#allocation6 + $0xb8] sm:$0xff]
    %v8282 = vld [vmem:[#allocation6 + $0xc0] sm:$0xff]
    %v8283 = vld [vmem:[#allocation6 + $0xc8] sm:$0xff]
    %v8284 = vld [vmem:[#allocation6 + $0xd0] sm:$0xff]
    %v8285 = vld [vmem:[#allocation6 + $0xd8] sm:$0xff]
    %v8286 = vld [vmem:[#allocation6 + $0xe0] sm:$0xff]
    %v8287 = vld [vmem:[#allocation6 + $0xe8] sm:$0xff]
    %v8288 = vld [vmem:[#allocation6 + $0xf0] sm:$0xff]
    %v8289 = vld [vmem:[#allocation6 + $0xf8] sm:$0xff]
    %v8290 = vld [vmem:[#allocation6 + $0x100] sm:$0xff]
    %v8291 = vld [vmem:[#allocation6 + $0x108] sm:$0xff]
    %v8292 = vld [vmem:[#allocation6 + $0x110] sm:$0xff]
    %v8293 = vld [vmem:[#allocation6 + $0x118] sm:$0xff]
    %v8294 = vld [vmem:[#allocation6 + $0x120] sm:$0xff]
    %v8295 = vld [vmem:[#allocation6 + $0x128] sm:$0xff]
    %v8296 = vld [vmem:[#allocation6 + $0x130] sm:$0xff]
    %v8297 = vld [vmem:[#allocation6 + $0x138] sm:$0xff]
    %v8298 = vld [vmem:[#allocation6 + $0x140] sm:$0xff]
    %v8299 = vld [vmem:[#allocation6 + $0x148] sm:$0xff]
    %v8300 = vld [vmem:[#allocation6 + $0x150] sm:$0xff]
    %v8301 = vld [vmem:[#allocation6 + $0x158] sm:$0xff]
    %v8302 = vld [vmem:[#allocation6 + $0x160] sm:$0xff]
    %v8303 = vld [vmem:[#allocation6 + $0x168] sm:$0xff]
    %v8304 = vld [vmem:[#allocation6 + $0x170] sm:$0xff]
    %v8305 = vld [vmem:[#allocation6 + $0x178] sm:$0xff]
    %v8306 = vld [vmem:[#allocation6 + $0x180] sm:$0xff]
    %v8307 = vld [vmem:[#allocation6 + $0x188] sm:$0xff]
    %v8308 = vld [vmem:[#allocation6 + $0x190] sm:$0xff]
    %v8309 = vld [vmem:[#allocation6 + $0x198] sm:$0xff]
    %v8310 = vld [vmem:[#allocation6 + $0x1a0] sm:$0xff]
    %v8311 = vld [vmem:[#allocation6 + $0x1a8] sm:$0xff]
    %v8312 = vld [vmem:[#allocation6 + $0x1b0] sm:$0xff]
    %v8313 = vld [vmem:[#allocation6 + $0x1b8] sm:$0xff]
    %v8314 = vld [vmem:[#allocation6 + $0x1c0] sm:$0xff]
    %v8315 = vld [vmem:[#allocation6 + $0x1c8] sm:$0xff]
    %v8316 = vld [vmem:[#allocation6 + $0x1d0] sm:$0xff]
    %v8317 = vld [vmem:[#allocation6 + $0x1d8] sm:$0xff]
    %v8318 = vld [vmem:[#allocation6 + $0x1e0] sm:$0xff]
    %v8319 = vld [vmem:[#allocation6 + $0x1e8] sm:$0xff]
    %v8320 = vld [vmem:[#allocation6 + $0x1f0] sm:$0xff]
    %v8321 = vld [vmem:[#allocation6 + $0x1f8] sm:$0xff]
    %v8322 = vld [vmem:[#allocation6 + $0x200] sm:$0xff]
    %v8323 = vld [vmem:[#allocation6 + $0x208] sm:$0xff]
    %v8324 = vld [vmem:[#allocation6 + $0x210] sm:$0xff]
    %v8325 = vld [vmem:[#allocation6 + $0x218] sm:$0xff]
    %v8326 = vld [vmem:[#allocation6 + $0x220] sm:$0xff]
    %v8327 = vld [vmem:[#allocation6 + $0x228] sm:$0xff]
    %v8328 = vld [vmem:[#allocation6 + $0x230] sm:$0xff]
    %v8329 = vld [vmem:[#allocation6 + $0x238] sm:$0xff]
    %v8330 = vld [vmem:[#allocation6 + $0x240] sm:$0xff]
    %v8331 = vld [vmem:[#allocation6 + $0x248] sm:$0xff]
    %v8332 = vld [vmem:[#allocation6 + $0x250] sm:$0xff]
    %v8333 = vld [vmem:[#allocation6 + $0x258] sm:$0xff]
    %v8334 = vld [vmem:[#allocation6 + $0x260] sm:$0xff]
    %v8335 = vld [vmem:[#allocation6 + $0x268] sm:$0xff]
    %v8336 = vld [vmem:[#allocation6 + $0x270] sm:$0xff]
    %v8337 = vld [vmem:[#allocation6 + $0x278] sm:$0xff]
    %v8338 = vld [vmem:[#allocation6 + $0x280] sm:$0xff]
    %v8339 = vld [vmem:[#allocation6 + $0x288] sm:$0xff]
    %v8340 = vld [vmem:[#allocation6 + $0x290] sm:$0xff]
    %v8341 = vld [vmem:[#allocation6 + $0x298] sm:$0xff]
    %v8342 = vld [vmem:[#allocation6 + $0x2a0] sm:$0xff]
    %v8343 = vld [vmem:[#allocation6 + $0x2a8] sm:$0xff]
    %v8344 = vld [vmem:[#allocation6 + $0x2b0] sm:$0xff]
    %v8345 = vld [vmem:[#allocation6 + $0x2b8] sm:$0xff]
    %v8346 = vld [vmem:[#allocation6 + $0x2c0] sm:$0xff]
    %v8347 = vld [vmem:[#allocation6 + $0x2c8] sm:$0xff]
    %v8348 = vld [vmem:[#allocation6 + $0x2d0] sm:$0xff]
    %v8349 = vld [vmem:[#allocation6 + $0x2d8] sm:$0xff]
    %v8350 = vld [vmem:[#allocation6 + $0x2e0] sm:$0xff]
    %v8351 = vld [vmem:[#allocation6 + $0x2e8] sm:$0xff]
    %v8352 = vld [vmem:[#allocation6 + $0x2f0] sm:$0xff]
    %v8353 = vld [vmem:[#allocation6 + $0x2f8] sm:$0xff]
    %v8354 = vld [vmem:[#allocation6 + $0x300] sm:$0xff]
    %v8355 = vld [vmem:[#allocation6 + $0x308] sm:$0xff]
    %v8356 = vld [vmem:[#allocation6 + $0x310] sm:$0xff]
    %v8357 = vld [vmem:[#allocation6 + $0x318] sm:$0xff]
    %v8358 = vld [vmem:[#allocation6 + $0x320] sm:$0xff]
    %v8359 = vld [vmem:[#allocation6 + $0x328] sm:$0xff]
    %v8360 = vld [vmem:[#allocation6 + $0x330] sm:$0xff]
    %v8361 = vld [vmem:[#allocation6 + $0x338] sm:$0xff]
    %v8362 = vld [vmem:[#allocation6 + $0x340] sm:$0xff]
    %v8363 = vld [vmem:[#allocation6 + $0x348] sm:$0xff]
    %v8364 = vld [vmem:[#allocation6 + $0x350] sm:$0xff]
    %v8365 = vld [vmem:[#allocation6 + $0x358] sm:$0xff]
    %v8366 = vld [vmem:[#allocation6 + $0x360] sm:$0xff]
    %v8367 = vld [vmem:[#allocation6 + $0x368] sm:$0xff]
    %v8368 = vld [vmem:[#allocation6 + $0x370] sm:$0xff]
    %v8369 = vld [vmem:[#allocation6 + $0x378] sm:$0xff]
    %v8370 = vld [vmem:[#allocation6 + $0x380] sm:$0xff]
    %v8371 = vld [vmem:[#allocation6 + $0x388] sm:$0xff]
    %v8372 = vld [vmem:[#allocation6 + $0x390] sm:$0xff]
    %v8373 = vld [vmem:[#allocation6 + $0x398] sm:$0xff]
    %v8374 = vld [vmem:[#allocation6 + $0x3a0] sm:$0xff]
    %v8375 = vld [vmem:[#allocation6 + $0x3a8] sm:$0xff]
    %v8376 = vld [vmem:[#allocation6 + $0x3b0] sm:$0xff]
    %v8377 = vld [vmem:[#allocation6 + $0x3b8] sm:$0xff]
    %v8378 = vld [vmem:[#allocation6 + $0x3c0] sm:$0xff]
    %v8379 = vld [vmem:[#allocation6 + $0x3c8] sm:$0xff]
    %v8380 = vld [vmem:[#allocation6 + $0x3d0] sm:$0xff]
    %v8381 = vld [vmem:[#allocation6 + $0x3d8] sm:$0xff]
    %v8382 = vld [vmem:[#allocation6 + $0x3e0] sm:$0xff]
    %v8383 = vld [vmem:[#allocation6 + $0x3e8] sm:$0xff]
    %v8384 = vld [vmem:[#allocation6 + $0x3f0] sm:$0xff]
    %v8385 = vld [vmem:[#allocation6 + $0x3f8] sm:$0xff]
    %v8386 = vld [vmem:[#allocation6 + $0x400] sm:$0xff]
    %v8387 = vld [vmem:[#allocation6 + $0x408] sm:$0xff]
    %v8388 = vld [vmem:[#allocation6 + $0x410] sm:$0xff]
    %v8389 = vld [vmem:[#allocation6 + $0x418] sm:$0xff]
    %v8390 = vld [vmem:[#allocation6 + $0x420] sm:$0xff]
    %v8391 = vld [vmem:[#allocation6 + $0x428] sm:$0xff]
    %v8392 = vld [vmem:[#allocation6 + $0x430] sm:$0xff]
    %v8393 = vld [vmem:[#allocation6 + $0x438] sm:$0xff]
    %v8394 = vld [vmem:[#allocation6 + $0x440] sm:$0xff]
    %v8395 = vld [vmem:[#allocation6 + $0x448] sm:$0xff]
    %v8396 = vld [vmem:[#allocation6 + $0x450] sm:$0xff]
    %v8397 = vld [vmem:[#allocation6 + $0x458] sm:$0xff]
    %v8398 = vld [vmem:[#allocation6 + $0x460] sm:$0xff]
    %v8399 = vld [vmem:[#allocation6 + $0x468] sm:$0xff]
    %v8400 = vld [vmem:[#allocation6 + $0x470] sm:$0xff]
    %v8401 = vld [vmem:[#allocation6 + $0x478] sm:$0xff]
    %v8402 = vld [vmem:[#allocation6 + $0x480] sm:$0xff]
    %v8403 = vld [vmem:[#allocation6 + $0x488] sm:$0xff]
    %v8404 = vld [vmem:[#allocation6 + $0x490] sm:$0xff]
    %v8405 = vld [vmem:[#allocation6 + $0x498] sm:$0xff]
    %v8406 = vld [vmem:[#allocation6 + $0x4a0] sm:$0xff]
    %v8407 = vld [vmem:[#allocation6 + $0x4a8] sm:$0xff]
    %v8408 = vld [vmem:[#allocation6 + $0x4b0] sm:$0xff]
    %v8409 = vld [vmem:[#allocation6 + $0x4b8] sm:$0xff]
    %v8410 = vld [vmem:[#allocation6 + $0x4c0] sm:$0xff]
    %v8411 = vld [vmem:[#allocation6 + $0x4c8] sm:$0xff]
    %v8412 = vld [vmem:[#allocation6 + $0x4d0] sm:$0xff]
    %v8413 = vld [vmem:[#allocation6 + $0x4d8] sm:$0xff]
    %v8414 = vld [vmem:[#allocation6 + $0x4e0] sm:$0xff]
    %v8415 = vld [vmem:[#allocation6 + $0x4e8] sm:$0xff]
    %v8416 = vld [vmem:[#allocation6 + $0x4f0] sm:$0xff]
    %v8417 = vld [vmem:[#allocation6 + $0x4f8] sm:$0xff]
    %v8418 = vld [vmem:[#allocation6 + $0x500] sm:$0xff]
    %v8419 = vld [vmem:[#allocation6 + $0x508] sm:$0xff]
    %v8420 = vld [vmem:[#allocation6 + $0x510] sm:$0xff]
    %v8421 = vld [vmem:[#allocation6 + $0x518] sm:$0xff]
    %v8422 = vld [vmem:[#allocation6 + $0x520] sm:$0xff]
    %v8423 = vld [vmem:[#allocation6 + $0x528] sm:$0xff]
    %v8424 = vld [vmem:[#allocation6 + $0x530] sm:$0xff]
    %v8425 = vld [vmem:[#allocation6 + $0x538] sm:$0xff]
    %v8426 = vld [vmem:[#allocation6 + $0x540] sm:$0xff]
    %v8427 = vld [vmem:[#allocation6 + $0x548] sm:$0xff]
    %v8428 = vld [vmem:[#allocation6 + $0x550] sm:$0xff]
    %v8429 = vld [vmem:[#allocation6 + $0x558] sm:$0xff]
    %v8430 = vld [vmem:[#allocation6 + $0x560] sm:$0xff]
    %v8431 = vld [vmem:[#allocation6 + $0x568] sm:$0xff]
    %v8432 = vld [vmem:[#allocation6 + $0x570] sm:$0xff]
    %v8433 = vld [vmem:[#allocation6 + $0x578] sm:$0xff]
    %v8434 = vld [vmem:[#allocation6 + $0x580] sm:$0xff]
    %v8435 = vld [vmem:[#allocation6 + $0x588] sm:$0xff]
    %v8436 = vld [vmem:[#allocation6 + $0x590] sm:$0xff]
    %v8437 = vld [vmem:[#allocation6 + $0x598] sm:$0xff]
    %v8438 = vld [vmem:[#allocation6 + $0x5a0] sm:$0xff]
    %v8439 = vld [vmem:[#allocation6 + $0x5a8] sm:$0xff]
    %v8440 = vld [vmem:[#allocation6 + $0x5b0] sm:$0xff]
    %v8441 = vld [vmem:[#allocation6 + $0x5b8] sm:$0xff]
    %v8442 = vld [vmem:[#allocation6 + $0x5c0] sm:$0xff]
    %v8443 = vld [vmem:[#allocation6 + $0x5c8] sm:$0xff]
    %v8444 = vld [vmem:[#allocation6 + $0x5d0] sm:$0xff]
    %v8445 = vld [vmem:[#allocation6 + $0x5d8] sm:$0xff]
    %v8446 = vld [vmem:[#allocation6 + $0x5e0] sm:$0xff]
    %v8447 = vld [vmem:[#allocation6 + $0x5e8] sm:$0xff]
    %v8448 = vld [vmem:[#allocation6 + $0x5f0] sm:$0xff]
    %v8449 = vld [vmem:[#allocation6 + $0x5f8] sm:$0xff]
    %v8450 = vld [vmem:[#allocation6 + $0x600] sm:$0xff]
    %v8451 = vld [vmem:[#allocation6 + $0x608] sm:$0xff]
    %v8452 = vld [vmem:[#allocation6 + $0x610] sm:$0xff]
    %v8453 = vld [vmem:[#allocation6 + $0x618] sm:$0xff]
    %v8454 = vld [vmem:[#allocation6 + $0x620] sm:$0xff]
    %v8455 = vld [vmem:[#allocation6 + $0x628] sm:$0xff]
    %v8456 = vld [vmem:[#allocation6 + $0x630] sm:$0xff]
    %v8457 = vld [vmem:[#allocation6 + $0x638] sm:$0xff]
    %v8458 = vld [vmem:[#allocation6 + $0x640] sm:$0xff]
    %v8459 = vld [vmem:[#allocation6 + $0x648] sm:$0xff]
    %v8460 = vld [vmem:[#allocation6 + $0x650] sm:$0xff]
    %v8461 = vld [vmem:[#allocation6 + $0x658] sm:$0xff]
    %v8462 = vld [vmem:[#allocation6 + $0x660] sm:$0xff]
    %v8463 = vld [vmem:[#allocation6 + $0x668] sm:$0xff]
    %v8464 = vld [vmem:[#allocation6 + $0x670] sm:$0xff]
    %v8465 = vld [vmem:[#allocation6 + $0x678] sm:$0xff]
    %v8466 = vld [vmem:[#allocation6 + $0x680] sm:$0xff]
    %v8467 = vld [vmem:[#allocation6 + $0x688] sm:$0xff]
    %v8468 = vld [vmem:[#allocation6 + $0x690] sm:$0xff]
    %v8469 = vld [vmem:[#allocation6 + $0x698] sm:$0xff]
    %v8470 = vld [vmem:[#allocation6 + $0x6a0] sm:$0xff]
    %v8471 = vld [vmem:[#allocation6 + $0x6a8] sm:$0xff]
    %v8472 = vld [vmem:[#allocation6 + $0x6b0] sm:$0xff]
    %v8473 = vld [vmem:[#allocation6 + $0x6b8] sm:$0xff]
    %v8474 = vld [vmem:[#allocation6 + $0x6c0] sm:$0xff]
    %v8475 = vld [vmem:[#allocation6 + $0x6c8] sm:$0xff]
    %v8476 = vld [vmem:[#allocation6 + $0x6d0] sm:$0xff]
    %v8477 = vld [vmem:[#allocation6 + $0x6d8] sm:$0xff]
    %v8478 = vld [vmem:[#allocation6 + $0x6e0] sm:$0xff]
    %v8479 = vld [vmem:[#allocation6 + $0x6e8] sm:$0xff]
    %v8480 = vld [vmem:[#allocation6 + $0x6f0] sm:$0xff]
    %v8481 = vld [vmem:[#allocation6 + $0x6f8] sm:$0xff]
    %v8482 = vld [vmem:[#allocation6 + $0x700] sm:$0xff]
    %v8483 = vld [vmem:[#allocation6 + $0x708] sm:$0xff]
    %v8484 = vld [vmem:[#allocation6 + $0x710] sm:$0xff]
    %v8485 = vld [vmem:[#allocation6 + $0x718] sm:$0xff]
    %v8486 = vld [vmem:[#allocation6 + $0x720] sm:$0xff]
    %v8487 = vld [vmem:[#allocation6 + $0x728] sm:$0xff]
    %v8488 = vld [vmem:[#allocation6 + $0x730] sm:$0xff]
    %v8489 = vld [vmem:[#allocation6 + $0x738] sm:$0xff]
    %v8490 = vld [vmem:[#allocation6 + $0x740] sm:$0xff]
    %v8491 = vld [vmem:[#allocation6 + $0x748] sm:$0xff]
    %v8492 = vld [vmem:[#allocation6 + $0x750] sm:$0xff]
    %v8493 = vld [vmem:[#allocation6 + $0x758] sm:$0xff]
    %v8494 = vld [vmem:[#allocation6 + $0x760] sm:$0xff]
    %v8495 = vld [vmem:[#allocation6 + $0x768] sm:$0xff]
    %v8496 = vld [vmem:[#allocation6 + $0x770] sm:$0xff]
    %v8497 = vld [vmem:[#allocation6 + $0x778] sm:$0xff]
    %v8498 = vld [vmem:[#allocation6 + $0x780] sm:$0xff]
    %v8499 = vld [vmem:[#allocation6 + $0x788] sm:$0xff]
    %v8500 = vld [vmem:[#allocation6 + $0x790] sm:$0xff]
    %v8501 = vld [vmem:[#allocation6 + $0x798] sm:$0xff]
    %v8502 = vld [vmem:[#allocation6 + $0x7a0] sm:$0xff]
    %v8503 = vld [vmem:[#allocation6 + $0x7a8] sm:$0xff]
    %v8504 = vld [vmem:[#allocation6 + $0x7b0] sm:$0xff]
    %v8505 = vld [vmem:[#allocation6 + $0x7b8] sm:$0xff]
    %v8506 = vld [vmem:[#allocation6 + $0x7c0] sm:$0xff]
    %v8507 = vld [vmem:[#allocation6 + $0x7c8] sm:$0xff]
    %v8508 = vld [vmem:[#allocation6 + $0x7d0] sm:$0xff]
    %v8509 = vld [vmem:[#allocation6 + $0x7d8] sm:$0xff]
    %v8510 = vld [vmem:[#allocation6 + $0x7e0] sm:$0xff]
    %v8511 = vld [vmem:[#allocation6 + $0x7e8] sm:$0xff]
    %v8512 = vld [vmem:[#allocation6 + $0x7f0] sm:$0xff]
    %v8513 = vld [vmem:[#allocation6 + $0x7f8] sm:$0xff]
    %v8514 = vld [vmem:[#allocation6 + $0x800] sm:$0xff]
    %v8515 = vld [vmem:[#allocation6 + $0x808] sm:$0xff]
    %v8516 = vld [vmem:[#allocation6 + $0x810] sm:$0xff]
    %v8517 = vld [vmem:[#allocation6 + $0x818] sm:$0xff]
    %v8518 = vld [vmem:[#allocation6 + $0x820] sm:$0xff]
    %v8519 = vld [vmem:[#allocation6 + $0x828] sm:$0xff]
    %v8520 = vld [vmem:[#allocation6 + $0x830] sm:$0xff]
    %v8521 = vld [vmem:[#allocation6 + $0x838] sm:$0xff]
    %v8522 = vld [vmem:[#allocation6 + $0x840] sm:$0xff]
    %v8523 = vld [vmem:[#allocation6 + $0x848] sm:$0xff]
    %v8524 = vld [vmem:[#allocation6 + $0x850] sm:$0xff]
    %v8525 = vld [vmem:[#allocation6 + $0x858] sm:$0xff]
    %v8526 = vld [vmem:[#allocation6 + $0x860] sm:$0xff]
    %v8527 = vld [vmem:[#allocation6 + $0x868] sm:$0xff]
    %v8528 = vld [vmem:[#allocation6 + $0x870] sm:$0xff]
    %v8529 = vld [vmem:[#allocation6 + $0x878] sm:$0xff]
    %v8530 = vld [vmem:[#allocation6 + $0x880] sm:$0xff]
    %v8531 = vld [vmem:[#allocation6 + $0x888] sm:$0xff]
    %v8532 = vld [vmem:[#allocation6 + $0x890] sm:$0xff]
    %v8533 = vld [vmem:[#allocation6 + $0x898] sm:$0xff]
    %v8534 = vld [vmem:[#allocation6 + $0x8a0] sm:$0xff]
    %v8535 = vld [vmem:[#allocation6 + $0x8a8] sm:$0xff]
    %v8536 = vld [vmem:[#allocation6 + $0x8b0] sm:$0xff]
    %v8537 = vld [vmem:[#allocation6 + $0x8b8] sm:$0xff]
    %v8538 = vld [vmem:[#allocation6 + $0x8c0] sm:$0xff]
    %v8539 = vld [vmem:[#allocation6 + $0x8c8] sm:$0xff]
    %v8540 = vld [vmem:[#allocation6 + $0x8d0] sm:$0xff]
    %v8541 = vld [vmem:[#allocation6 + $0x8d8] sm:$0xff]
    %v8542 = vld [vmem:[#allocation6 + $0x8e0] sm:$0xff]
    %v8543 = vld [vmem:[#allocation6 + $0x8e8] sm:$0xff]
    %v8544 = vld [vmem:[#allocation6 + $0x8f0] sm:$0xff]
    %v8545 = vld [vmem:[#allocation6 + $0x8f8] sm:$0xff]
    %v8546 = vld [vmem:[#allocation6 + $0x900] sm:$0xff]
    %v8547 = vld [vmem:[#allocation6 + $0x908] sm:$0xff]
    %v8548 = vld [vmem:[#allocation6 + $0x910] sm:$0xff]
    %v8549 = vld [vmem:[#allocation6 + $0x918] sm:$0xff]
    %v8550 = vld [vmem:[#allocation6 + $0x920] sm:$0xff]
    %v8551 = vld [vmem:[#allocation6 + $0x928] sm:$0xff]
    %v8552 = vld [vmem:[#allocation6 + $0x930] sm:$0xff]
    %v8553 = vld [vmem:[#allocation6 + $0x938] sm:$0xff]
    %v8554 = vld [vmem:[#allocation6 + $0x940] sm:$0xff]
    %v8555 = vld [vmem:[#allocation6 + $0x948] sm:$0xff]
    %v8556 = vld [vmem:[#allocation6 + $0x950] sm:$0xff]
    %v8557 = vld [vmem:[#allocation6 + $0x958] sm:$0xff]
    %v8558 = vld [vmem:[#allocation6 + $0x960] sm:$0xff]
    %v8559 = vld [vmem:[#allocation6 + $0x968] sm:$0xff]
    %v8560 = vld [vmem:[#allocation6 + $0x970] sm:$0xff]
    %v8561 = vld [vmem:[#allocation6 + $0x978] sm:$0xff]
    %v8562 = vld [vmem:[#allocation6 + $0x980] sm:$0xff]
    %v8563 = vld [vmem:[#allocation6 + $0x988] sm:$0xff]
    %v8564 = vld [vmem:[#allocation6 + $0x990] sm:$0xff]
    %v8565 = vld [vmem:[#allocation6 + $0x998] sm:$0xff]
    %v8566 = vld [vmem:[#allocation6 + $0x9a0] sm:$0xff]
    %v8567 = vld [vmem:[#allocation6 + $0x9a8] sm:$0xff]
    %v8568 = vld [vmem:[#allocation6 + $0x9b0] sm:$0xff]
    %v8569 = vld [vmem:[#allocation6 + $0x9b8] sm:$0xff]
    %v8570 = vld [vmem:[#allocation6 + $0x9c0] sm:$0xff]
    %v8571 = vld [vmem:[#allocation6 + $0x9c8] sm:$0xff]
    %v8572 = vld [vmem:[#allocation6 + $0x9d0] sm:$0xff]
    %v8573 = vld [vmem:[#allocation6 + $0x9d8] sm:$0xff]
    %v8574 = vld [vmem:[#allocation6 + $0x9e0] sm:$0xff]
    %v8575 = vld [vmem:[#allocation6 + $0x9e8] sm:$0xff]
    %v8576 = vld [vmem:[#allocation6 + $0x9f0] sm:$0xff]
    %v8577 = vld [vmem:[#allocation6 + $0x9f8] sm:$0xff]
    %v8578 = vld [vmem:[#allocation6 + $0xa00] sm:$0xff]
    %v8579 = vld [vmem:[#allocation6 + $0xa08] sm:$0xff]
    %v8580 = vld [vmem:[#allocation6 + $0xa10] sm:$0xff]
    %v8581 = vld [vmem:[#allocation6 + $0xa18] sm:$0xff]
    %v8582 = vld [vmem:[#allocation6 + $0xa20] sm:$0xff]
    %v8583 = vld [vmem:[#allocation6 + $0xa28] sm:$0xff]
    %v8584 = vld [vmem:[#allocation6 + $0xa30] sm:$0xff]
    %v8585 = vld [vmem:[#allocation6 + $0xa38] sm:$0xff]
    %v8586 = vld [vmem:[#allocation6 + $0xa40] sm:$0xff]
    %v8587 = vld [vmem:[#allocation6 + $0xa48] sm:$0xff]
    %v8588 = vld [vmem:[#allocation6 + $0xa50] sm:$0xff]
    %v8589 = vld [vmem:[#allocation6 + $0xa58] sm:$0xff]
    %v8590 = vld [vmem:[#allocation6 + $0xa60] sm:$0xff]
    %v8591 = vld [vmem:[#allocation6 + $0xa68] sm:$0xff]
    %v8592 = vld [vmem:[#allocation6 + $0xa70] sm:$0xff]
    %v8593 = vld [vmem:[#allocation6 + $0xa78] sm:$0xff]
    %v8594 = vld [vmem:[#allocation6 + $0xa80] sm:$0xff]
    %v8595 = vld [vmem:[#allocation6 + $0xa88] sm:$0xff]
    %v8596 = vld [vmem:[#allocation6 + $0xa90] sm:$0xff]
    %v8597 = vld [vmem:[#allocation6 + $0xa98] sm:$0xff]
    %v8598 = vld [vmem:[#allocation6 + $0xaa0] sm:$0xff]
    %v8599 = vld [vmem:[#allocation6 + $0xaa8] sm:$0xff]
    %v8600 = vld [vmem:[#allocation6 + $0xab0] sm:$0xff]
    %v8601 = vld [vmem:[#allocation6 + $0xab8] sm:$0xff]
    %v8602 = vld [vmem:[#allocation6 + $0xac0] sm:$0xff]
    %v8603 = vld [vmem:[#allocation6 + $0xac8] sm:$0xff]
    %v8604 = vld [vmem:[#allocation6 + $0xad0] sm:$0xff]
    %v8605 = vld [vmem:[#allocation6 + $0xad8] sm:$0xff]
    %v8606 = vld [vmem:[#allocation6 + $0xae0] sm:$0xff]
    %v8607 = vld [vmem:[#allocation6 + $0xae8] sm:$0xff]
    %v8608 = vld [vmem:[#allocation6 + $0xaf0] sm:$0xff]
    %v8609 = vld [vmem:[#allocation6 + $0xaf8] sm:$0xff]
    %v8610 = vld [vmem:[#allocation6 + $0xb00] sm:$0xff]
    %v8611 = vld [vmem:[#allocation6 + $0xb08] sm:$0xff]
    %v8612 = vld [vmem:[#allocation6 + $0xb10] sm:$0xff]
    %v8613 = vld [vmem:[#allocation6 + $0xb18] sm:$0xff]
    %v8614 = vld [vmem:[#allocation6 + $0xb20] sm:$0xff]
    %v8615 = vld [vmem:[#allocation6 + $0xb28] sm:$0xff]
    %v8616 = vld [vmem:[#allocation6 + $0xb30] sm:$0xff]
    %v8617 = vld [vmem:[#allocation6 + $0xb38] sm:$0xff]
    %v8618 = vld [vmem:[#allocation6 + $0xb40] sm:$0xff]
    %v8619 = vld [vmem:[#allocation6 + $0xb48] sm:$0xff]
    %v8620 = vld [vmem:[#allocation6 + $0xb50] sm:$0xff]
    %v8621 = vld [vmem:[#allocation6 + $0xb58] sm:$0xff]
    %v8622 = vld [vmem:[#allocation6 + $0xb60] sm:$0xff]
    %v8623 = vld [vmem:[#allocation6 + $0xb68] sm:$0xff]
    %v8624 = vld [vmem:[#allocation6 + $0xb70] sm:$0xff]
    %v8625 = vld [vmem:[#allocation6 + $0xb78] sm:$0xff]
    %v8626 = vld [vmem:[#allocation6 + $0xb80] sm:$0xff]
    %v8627 = vld [vmem:[#allocation6 + $0xb88] sm:$0xff]
    %v8628 = vld [vmem:[#allocation6 + $0xb90] sm:$0xff]
    %v8629 = vld [vmem:[#allocation6 + $0xb98] sm:$0xff]
    %v8630 = vld [vmem:[#allocation6 + $0xba0] sm:$0xff]
    %v8631 = vld [vmem:[#allocation6 + $0xba8] sm:$0xff]
    %v8632 = vld [vmem:[#allocation6 + $0xbb0] sm:$0xff]
    %v8633 = vld [vmem:[#allocation6 + $0xbb8] sm:$0xff]
    %v8634 = vld [vmem:[#allocation6 + $0xbc0] sm:$0xff]
    %v8635 = vld [vmem:[#allocation6 + $0xbc8] sm:$0xff]
    %v8636 = vld [vmem:[#allocation6 + $0xbd0] sm:$0xff]
    %v8637 = vld [vmem:[#allocation6 + $0xbd8] sm:$0xff]
    %v8638 = vld [vmem:[#allocation6 + $0xbe0] sm:$0xff]
    %v8639 = vld [vmem:[#allocation6 + $0xbe8] sm:$0xff]
    %v8640 = vld [vmem:[#allocation6 + $0xbf0] sm:$0xff]
    %v8641 = vld [vmem:[#allocation6 + $0xbf8] sm:$0xff]
    %v8642 = vld [vmem:[#allocation6 + $0xc00] sm:$0xff]
    %v8643 = vld [vmem:[#allocation6 + $0xc08] sm:$0xff]
    %v8644 = vld [vmem:[#allocation6 + $0xc10] sm:$0xff]
    %v8645 = vld [vmem:[#allocation6 + $0xc18] sm:$0xff]
    %v8646 = vld [vmem:[#allocation6 + $0xc20] sm:$0xff]
    %v8647 = vld [vmem:[#allocation6 + $0xc28] sm:$0xff]
    %v8648 = vld [vmem:[#allocation6 + $0xc30] sm:$0xff]
    %v8649 = vld [vmem:[#allocation6 + $0xc38] sm:$0xff]
    %v8650 = vld [vmem:[#allocation6 + $0xc40] sm:$0xff]
    %v8651 = vld [vmem:[#allocation6 + $0xc48] sm:$0xff]
    %v8652 = vld [vmem:[#allocation6 + $0xc50] sm:$0xff]
    %v8653 = vld [vmem:[#allocation6 + $0xc58] sm:$0xff]
    %v8654 = vld [vmem:[#allocation6 + $0xc60] sm:$0xff]
    %v8655 = vld [vmem:[#allocation6 + $0xc68] sm:$0xff]
    %v8656 = vld [vmem:[#allocation6 + $0xc70] sm:$0xff]
    %v8657 = vld [vmem:[#allocation6 + $0xc78] sm:$0xff]
    %v8658 = vld [vmem:[#allocation6 + $0xc80] sm:$0xff]
    %v8659 = vld [vmem:[#allocation6 + $0xc88] sm:$0xff]
    %v8660 = vld [vmem:[#allocation6 + $0xc90] sm:$0xff]
    %v8661 = vld [vmem:[#allocation6 + $0xc98] sm:$0xff]
    %v8662 = vld [vmem:[#allocation6 + $0xca0] sm:$0xff]
    %v8663 = vld [vmem:[#allocation6 + $0xca8] sm:$0xff]
    %v8664 = vld [vmem:[#allocation6 + $0xcb0] sm:$0xff]
    %v8665 = vld [vmem:[#allocation6 + $0xcb8] sm:$0xff]
    %v8666 = vld [vmem:[#allocation6 + $0xcc0] sm:$0xff]
    %v8667 = vld [vmem:[#allocation6 + $0xcc8] sm:$0xff]
    %v8668 = vld [vmem:[#allocation6 + $0xcd0] sm:$0xff]
    %v8669 = vld [vmem:[#allocation6 + $0xcd8] sm:$0xff]
    %v8670 = vld [vmem:[#allocation6 + $0xce0] sm:$0xff]
    %v8671 = vld [vmem:[#allocation6 + $0xce8] sm:$0xff]
    %v8672 = vld [vmem:[#allocation6 + $0xcf0] sm:$0xff]
    %v8673 = vld [vmem:[#allocation6 + $0xcf8] sm:$0xff]
    %v8674 = vld [vmem:[#allocation6 + $0xd00] sm:$0xff]
    %v8675 = vld [vmem:[#allocation6 + $0xd08] sm:$0xff]
    %v8676 = vld [vmem:[#allocation6 + $0xd10] sm:$0xff]
    %v8677 = vld [vmem:[#allocation6 + $0xd18] sm:$0xff]
    %v8678 = vld [vmem:[#allocation6 + $0xd20] sm:$0xff]
    %v8679 = vld [vmem:[#allocation6 + $0xd28] sm:$0xff]
    %v8680 = vld [vmem:[#allocation6 + $0xd30] sm:$0xff]
    %v8681 = vld [vmem:[#allocation6 + $0xd38] sm:$0xff]
    %v8682 = vld [vmem:[#allocation6 + $0xd40] sm:$0xff]
    %v8683 = vld [vmem:[#allocation6 + $0xd48] sm:$0xff]
    %v8684 = vld [vmem:[#allocation6 + $0xd50] sm:$0xff]
    %v8685 = vld [vmem:[#allocation6 + $0xd58] sm:$0xff]
    %v8686 = vld [vmem:[#allocation6 + $0xd60] sm:$0xff]
    %v8687 = vld [vmem:[#allocation6 + $0xd68] sm:$0xff]
    %v8688 = vld [vmem:[#allocation6 + $0xd70] sm:$0xff]
    %v8689 = vld [vmem:[#allocation6 + $0xd78] sm:$0xff]
    %v8690 = vld [vmem:[#allocation6 + $0xd80] sm:$0xff]
    %v8691 = vld [vmem:[#allocation6 + $0xd88] sm:$0xff]
    %v8692 = vld [vmem:[#allocation6 + $0xd90] sm:$0xff]
    %v8693 = vld [vmem:[#allocation6 + $0xd98] sm:$0xff]
    %v8694 = vld [vmem:[#allocation6 + $0xda0] sm:$0xff]
    %v8695 = vld [vmem:[#allocation6 + $0xda8] sm:$0xff]
    %v8696 = vld [vmem:[#allocation6 + $0xdb0] sm:$0xff]
    %v8697 = vld [vmem:[#allocation6 + $0xdb8] sm:$0xff]
    %v8698 = vld [vmem:[#allocation6 + $0xdc0] sm:$0xff]
    %v8699 = vld [vmem:[#allocation6 + $0xdc8] sm:$0xff]
    %v8700 = vld [vmem:[#allocation6 + $0xdd0] sm:$0xff]
    %v8701 = vld [vmem:[#allocation6 + $0xdd8] sm:$0xff]
    %v8702 = vld [vmem:[#allocation6 + $0xde0] sm:$0xff]
    %v8703 = vld [vmem:[#allocation6 + $0xde8] sm:$0xff]
    %v8704 = vld [vmem:[#allocation6 + $0xdf0] sm:$0xff]
    %v8705 = vld [vmem:[#allocation6 + $0xdf8] sm:$0xff]
    %v9154 = vunpack.c.l.b16 %v8258
    %v9155 = vunpack.c.h.b16 %v8258
    %v9156 = vunpack.c.l.b16 %v8259
    %v9157 = vunpack.c.h.b16 %v8259
    %v9158 = vunpack.c.l.b16 %v8260
    %v9159 = vunpack.c.h.b16 %v8260
    %v9160 = vunpack.c.l.b16 %v8261
    %v9161 = vunpack.c.h.b16 %v8261
    %v9162 = vunpack.c.l.b16 %v8262
    %v9163 = vunpack.c.h.b16 %v8262
    %v9164 = vunpack.c.l.b16 %v8263
    %v9165 = vunpack.c.h.b16 %v8263
    %v9166 = vunpack.c.l.b16 %v8264
    %v9167 = vunpack.c.h.b16 %v8264
    %v9168 = vunpack.c.l.b16 %v8265
    %v9169 = vunpack.c.h.b16 %v8265
    %v9170 = vunpack.c.l.b16 %v8266
    %v9171 = vunpack.c.h.b16 %v8266
    %v9172 = vunpack.c.l.b16 %v8267
    %v9173 = vunpack.c.h.b16 %v8267
    %v9174 = vunpack.c.l.b16 %v8268
    %v9175 = vunpack.c.h.b16 %v8268
    %v9176 = vunpack.c.l.b16 %v8269
    %v9177 = vunpack.c.h.b16 %v8269
    %v9178 = vunpack.c.l.b16 %v8270
    %v9179 = vunpack.c.h.b16 %v8270
    %v9180 = vunpack.c.l.b16 %v8271
    %v9181 = vunpack.c.h.b16 %v8271
    %v9182 = vunpack.c.l.b16 %v8272
    %v9183 = vunpack.c.h.b16 %v8272
    %v9184 = vunpack.c.l.b16 %v8273
    %v9185 = vunpack.c.h.b16 %v8273
    %v9186 = vunpack.c.l.b16 %v8274
    %v9187 = vunpack.c.h.b16 %v8274
    %v9188 = vunpack.c.l.b16 %v8275
    %v9189 = vunpack.c.h.b16 %v8275
    %v9190 = vunpack.c.l.b16 %v8276
    %v9191 = vunpack.c.h.b16 %v8276
    %v9192 = vunpack.c.l.b16 %v8277
    %v9193 = vunpack.c.h.b16 %v8277
    %v9194 = vunpack.c.l.b16 %v8278
    %v9195 = vunpack.c.h.b16 %v8278
    %v9196 = vunpack.c.l.b16 %v8279
    %v9197 = vunpack.c.h.b16 %v8279
    %v9198 = vunpack.c.l.b16 %v8280
    %v9199 = vunpack.c.h.b16 %v8280
    %v9200 = vunpack.c.l.b16 %v8281
    %v9201 = vunpack.c.h.b16 %v8281
    %v9202 = vunpack.c.l.b16 %v8282
    %v9203 = vunpack.c.h.b16 %v8282
    %v9204 = vunpack.c.l.b16 %v8283
    %v9205 = vunpack.c.h.b16 %v8283
    %v9206 = vunpack.c.l.b16 %v8284
    %v9207 = vunpack.c.h.b16 %v8284
    %v9208 = vunpack.c.l.b16 %v8285
    %v9209 = vunpack.c.h.b16 %v8285
    %v9210 = vunpack.c.l.b16 %v8286
    %v9211 = vunpack.c.h.b16 %v8286
    %v9212 = vunpack.c.l.b16 %v8287
    %v9213 = vunpack.c.h.b16 %v8287
    %v9214 = vunpack.c.l.b16 %v8288
    %v9215 = vunpack.c.h.b16 %v8288
    %v9216 = vunpack.c.l.b16 %v8289
    %v9217 = vunpack.c.h.b16 %v8289
    %v9218 = vunpack.c.l.b16 %v8290
    %v9219 = vunpack.c.h.b16 %v8290
    %v9220 = vunpack.c.l.b16 %v8291
    %v9221 = vunpack.c.h.b16 %v8291
    %v9222 = vunpack.c.l.b16 %v8292
    %v9223 = vunpack.c.h.b16 %v8292
    %v9224 = vunpack.c.l.b16 %v8293
    %v9225 = vunpack.c.h.b16 %v8293
    %v9226 = vunpack.c.l.b16 %v8294
    %v9227 = vunpack.c.h.b16 %v8294
    %v9228 = vunpack.c.l.b16 %v8295
    %v9229 = vunpack.c.h.b16 %v8295
    %v9230 = vunpack.c.l.b16 %v8296
    %v9231 = vunpack.c.h.b16 %v8296
    %v9232 = vunpack.c.l.b16 %v8297
    %v9233 = vunpack.c.h.b16 %v8297
    %v9234 = vunpack.c.l.b16 %v8298
    %v9235 = vunpack.c.h.b16 %v8298
    %v9236 = vunpack.c.l.b16 %v8299
    %v9237 = vunpack.c.h.b16 %v8299
    %v9238 = vunpack.c.l.b16 %v8300
    %v9239 = vunpack.c.h.b16 %v8300
    %v9240 = vunpack.c.l.b16 %v8301
    %v9241 = vunpack.c.h.b16 %v8301
    %v9242 = vunpack.c.l.b16 %v8302
    %v9243 = vunpack.c.h.b16 %v8302
    %v9244 = vunpack.c.l.b16 %v8303
    %v9245 = vunpack.c.h.b16 %v8303
    %v9246 = vunpack.c.l.b16 %v8304
    %v9247 = vunpack.c.h.b16 %v8304
    %v9248 = vunpack.c.l.b16 %v8305
    %v9249 = vunpack.c.h.b16 %v8305
    %v9250 = vunpack.c.l.b16 %v8306
    %v9251 = vunpack.c.h.b16 %v8306
    %v9252 = vunpack.c.l.b16 %v8307
    %v9253 = vunpack.c.h.b16 %v8307
    %v9254 = vunpack.c.l.b16 %v8308
    %v9255 = vunpack.c.h.b16 %v8308
    %v9256 = vunpack.c.l.b16 %v8309
    %v9257 = vunpack.c.h.b16 %v8309
    %v9258 = vunpack.c.l.b16 %v8310
    %v9259 = vunpack.c.h.b16 %v8310
    %v9260 = vunpack.c.l.b16 %v8311
    %v9261 = vunpack.c.h.b16 %v8311
    %v9262 = vunpack.c.l.b16 %v8312
    %v9263 = vunpack.c.h.b16 %v8312
    %v9264 = vunpack.c.l.b16 %v8313
    %v9265 = vunpack.c.h.b16 %v8313
    %v9266 = vunpack.c.l.b16 %v8314
    %v9267 = vunpack.c.h.b16 %v8314
    %v9268 = vunpack.c.l.b16 %v8315
    %v9269 = vunpack.c.h.b16 %v8315
    %v9270 = vunpack.c.l.b16 %v8316
    %v9271 = vunpack.c.h.b16 %v8316
    %v9272 = vunpack.c.l.b16 %v8317
    %v9273 = vunpack.c.h.b16 %v8317
    %v9274 = vunpack.c.l.b16 %v8318
    %v9275 = vunpack.c.h.b16 %v8318
    %v9276 = vunpack.c.l.b16 %v8319
    %v9277 = vunpack.c.h.b16 %v8319
    %v9278 = vunpack.c.l.b16 %v8320
    %v9279 = vunpack.c.h.b16 %v8320
    %v9280 = vunpack.c.l.b16 %v8321
    %v9281 = vunpack.c.h.b16 %v8321
    %v9282 = vunpack.c.l.b16 %v8322
    %v9283 = vunpack.c.h.b16 %v8322
    %v9284 = vunpack.c.l.b16 %v8323
    %v9285 = vunpack.c.h.b16 %v8323
    %v9286 = vunpack.c.l.b16 %v8324
    %v9287 = vunpack.c.h.b16 %v8324
    %v9288 = vunpack.c.l.b16 %v8325
    %v9289 = vunpack.c.h.b16 %v8325
    %v9290 = vunpack.c.l.b16 %v8326
    %v9291 = vunpack.c.h.b16 %v8326
    %v9292 = vunpack.c.l.b16 %v8327
    %v9293 = vunpack.c.h.b16 %v8327
    %v9294 = vunpack.c.l.b16 %v8328
    %v9295 = vunpack.c.h.b16 %v8328
    %v9296 = vunpack.c.l.b16 %v8329
    %v9297 = vunpack.c.h.b16 %v8329
    %v9298 = vunpack.c.l.b16 %v8330
    %v9299 = vunpack.c.h.b16 %v8330
    %v9300 = vunpack.c.l.b16 %v8331
    %v9301 = vunpack.c.h.b16 %v8331
    %v9302 = vunpack.c.l.b16 %v8332
    %v9303 = vunpack.c.h.b16 %v8332
    %v9304 = vunpack.c.l.b16 %v8333
    %v9305 = vunpack.c.h.b16 %v8333
    %v9306 = vunpack.c.l.b16 %v8334
    %v9307 = vunpack.c.h.b16 %v8334
    %v9308 = vunpack.c.l.b16 %v8335
    %v9309 = vunpack.c.h.b16 %v8335
    %v9310 = vunpack.c.l.b16 %v8336
    %v9311 = vunpack.c.h.b16 %v8336
    %v9312 = vunpack.c.l.b16 %v8337
    %v9313 = vunpack.c.h.b16 %v8337
    %v9314 = vunpack.c.l.b16 %v8338
    %v9315 = vunpack.c.h.b16 %v8338
    %v9316 = vunpack.c.l.b16 %v8339
    %v9317 = vunpack.c.h.b16 %v8339
    %v9318 = vunpack.c.l.b16 %v8340
    %v9319 = vunpack.c.h.b16 %v8340
    %v9320 = vunpack.c.l.b16 %v8341
    %v9321 = vunpack.c.h.b16 %v8341
    %v9322 = vunpack.c.l.b16 %v8342
    %v9323 = vunpack.c.h.b16 %v8342
    %v9324 = vunpack.c.l.b16 %v8343
    %v9325 = vunpack.c.h.b16 %v8343
    %v9326 = vunpack.c.l.b16 %v8344
    %v9327 = vunpack.c.h.b16 %v8344
    %v9328 = vunpack.c.l.b16 %v8345
    %v9329 = vunpack.c.h.b16 %v8345
    %v9330 = vunpack.c.l.b16 %v8346
    %v9331 = vunpack.c.h.b16 %v8346
    %v9332 = vunpack.c.l.b16 %v8347
    %v9333 = vunpack.c.h.b16 %v8347
    %v9334 = vunpack.c.l.b16 %v8348
    %v9335 = vunpack.c.h.b16 %v8348
    %v9336 = vunpack.c.l.b16 %v8349
    %v9337 = vunpack.c.h.b16 %v8349
    %v9338 = vunpack.c.l.b16 %v8350
    %v9339 = vunpack.c.h.b16 %v8350
    %v9340 = vunpack.c.l.b16 %v8351
    %v9341 = vunpack.c.h.b16 %v8351
    %v9342 = vunpack.c.l.b16 %v8352
    %v9343 = vunpack.c.h.b16 %v8352
    %v9344 = vunpack.c.l.b16 %v8353
    %v9345 = vunpack.c.h.b16 %v8353
    %v9346 = vunpack.c.l.b16 %v8354
    %v9347 = vunpack.c.h.b16 %v8354
    %v9348 = vunpack.c.l.b16 %v8355
    %v9349 = vunpack.c.h.b16 %v8355
    %v9350 = vunpack.c.l.b16 %v8356
    %v9351 = vunpack.c.h.b16 %v8356
    %v9352 = vunpack.c.l.b16 %v8357
    %v9353 = vunpack.c.h.b16 %v8357
    %v9354 = vunpack.c.l.b16 %v8358
    %v9355 = vunpack.c.h.b16 %v8358
    %v9356 = vunpack.c.l.b16 %v8359
    %v9357 = vunpack.c.h.b16 %v8359
    %v9358 = vunpack.c.l.b16 %v8360
    %v9359 = vunpack.c.h.b16 %v8360
    %v9360 = vunpack.c.l.b16 %v8361
    %v9361 = vunpack.c.h.b16 %v8361
    %v9362 = vunpack.c.l.b16 %v8362
    %v9363 = vunpack.c.h.b16 %v8362
    %v9364 = vunpack.c.l.b16 %v8363
    %v9365 = vunpack.c.h.b16 %v8363
    %v9366 = vunpack.c.l.b16 %v8364
    %v9367 = vunpack.c.h.b16 %v8364
    %v9368 = vunpack.c.l.b16 %v8365
    %v9369 = vunpack.c.h.b16 %v8365
    %v9370 = vunpack.c.l.b16 %v8366
    %v9371 = vunpack.c.h.b16 %v8366
    %v9372 = vunpack.c.l.b16 %v8367
    %v9373 = vunpack.c.h.b16 %v8367
    %v9374 = vunpack.c.l.b16 %v8368
    %v9375 = vunpack.c.h.b16 %v8368
    %v9376 = vunpack.c.l.b16 %v8369
    %v9377 = vunpack.c.h.b16 %v8369
    %v9378 = vunpack.c.l.b16 %v8370
    %v9379 = vunpack.c.h.b16 %v8370
    %v9380 = vunpack.c.l.b16 %v8371
    %v9381 = vunpack.c.h.b16 %v8371
    %v9382 = vunpack.c.l.b16 %v8372
    %v9383 = vunpack.c.h.b16 %v8372
    %v9384 = vunpack.c.l.b16 %v8373
    %v9385 = vunpack.c.h.b16 %v8373
    %v9386 = vunpack.c.l.b16 %v8374
    %v9387 = vunpack.c.h.b16 %v8374
    %v9388 = vunpack.c.l.b16 %v8375
    %v9389 = vunpack.c.h.b16 %v8375
    %v9390 = vunpack.c.l.b16 %v8376
    %v9391 = vunpack.c.h.b16 %v8376
    %v9392 = vunpack.c.l.b16 %v8377
    %v9393 = vunpack.c.h.b16 %v8377
    %v9394 = vunpack.c.l.b16 %v8378
    %v9395 = vunpack.c.h.b16 %v8378
    %v9396 = vunpack.c.l.b16 %v8379
    %v9397 = vunpack.c.h.b16 %v8379
    %v9398 = vunpack.c.l.b16 %v8380
    %v9399 = vunpack.c.h.b16 %v8380
    %v9400 = vunpack.c.l.b16 %v8381
    %v9401 = vunpack.c.h.b16 %v8381
    %v9402 = vunpack.c.l.b16 %v8382
    %v9403 = vunpack.c.h.b16 %v8382
    %v9404 = vunpack.c.l.b16 %v8383
    %v9405 = vunpack.c.h.b16 %v8383
    %v9406 = vunpack.c.l.b16 %v8384
    %v9407 = vunpack.c.h.b16 %v8384
    %v9408 = vunpack.c.l.b16 %v8385
    %v9409 = vunpack.c.h.b16 %v8385
    %v9410 = vunpack.c.l.b16 %v8386
    %v9411 = vunpack.c.h.b16 %v8386
    %v9412 = vunpack.c.l.b16 %v8387
    %v9413 = vunpack.c.h.b16 %v8387
    %v9414 = vunpack.c.l.b16 %v8388
    %v9415 = vunpack.c.h.b16 %v8388
    %v9416 = vunpack.c.l.b16 %v8389
    %v9417 = vunpack.c.h.b16 %v8389
    %v9418 = vunpack.c.l.b16 %v8390
    %v9419 = vunpack.c.h.b16 %v8390
    %v9420 = vunpack.c.l.b16 %v8391
    %v9421 = vunpack.c.h.b16 %v8391
    %v9422 = vunpack.c.l.b16 %v8392
    %v9423 = vunpack.c.h.b16 %v8392
    %v9424 = vunpack.c.l.b16 %v8393
    %v9425 = vunpack.c.h.b16 %v8393
    %v9426 = vunpack.c.l.b16 %v8394
    %v9427 = vunpack.c.h.b16 %v8394
    %v9428 = vunpack.c.l.b16 %v8395
    %v9429 = vunpack.c.h.b16 %v8395
    %v9430 = vunpack.c.l.b16 %v8396
    %v9431 = vunpack.c.h.b16 %v8396
    %v9432 = vunpack.c.l.b16 %v8397
    %v9433 = vunpack.c.h.b16 %v8397
    %v9434 = vunpack.c.l.b16 %v8398
    %v9435 = vunpack.c.h.b16 %v8398
    %v9436 = vunpack.c.l.b16 %v8399
    %v9437 = vunpack.c.h.b16 %v8399
    %v9438 = vunpack.c.l.b16 %v8400
    %v9439 = vunpack.c.h.b16 %v8400
    %v9440 = vunpack.c.l.b16 %v8401
    %v9441 = vunpack.c.h.b16 %v8401
    %v9442 = vunpack.c.l.b16 %v8402
    %v9443 = vunpack.c.h.b16 %v8402
    %v9444 = vunpack.c.l.b16 %v8403
    %v9445 = vunpack.c.h.b16 %v8403
    %v9446 = vunpack.c.l.b16 %v8404
    %v9447 = vunpack.c.h.b16 %v8404
    %v9448 = vunpack.c.l.b16 %v8405
    %v9449 = vunpack.c.h.b16 %v8405
    %v9450 = vunpack.c.l.b16 %v8406
    %v9451 = vunpack.c.h.b16 %v8406
    %v9452 = vunpack.c.l.b16 %v8407
    %v9453 = vunpack.c.h.b16 %v8407
    %v9454 = vunpack.c.l.b16 %v8408
    %v9455 = vunpack.c.h.b16 %v8408
    %v9456 = vunpack.c.l.b16 %v8409
    %v9457 = vunpack.c.h.b16 %v8409
    %v9458 = vunpack.c.l.b16 %v8410
    %v9459 = vunpack.c.h.b16 %v8410
    %v9460 = vunpack.c.l.b16 %v8411
    %v9461 = vunpack.c.h.b16 %v8411
    %v9462 = vunpack.c.l.b16 %v8412
    %v9463 = vunpack.c.h.b16 %v8412
    %v9464 = vunpack.c.l.b16 %v8413
    %v9465 = vunpack.c.h.b16 %v8413
    %v9466 = vunpack.c.l.b16 %v8414
    %v9467 = vunpack.c.h.b16 %v8414
    %v9468 = vunpack.c.l.b16 %v8415
    %v9469 = vunpack.c.h.b16 %v8415
    %v9470 = vunpack.c.l.b16 %v8416
    %v9471 = vunpack.c.h.b16 %v8416
    %v9472 = vunpack.c.l.b16 %v8417
    %v9473 = vunpack.c.h.b16 %v8417
    %v9474 = vunpack.c.l.b16 %v8418
    %v9475 = vunpack.c.h.b16 %v8418
    %v9476 = vunpack.c.l.b16 %v8419
    %v9477 = vunpack.c.h.b16 %v8419
    %v9478 = vunpack.c.l.b16 %v8420
    %v9479 = vunpack.c.h.b16 %v8420
    %v9480 = vunpack.c.l.b16 %v8421
    %v9481 = vunpack.c.h.b16 %v8421
    %v9482 = vunpack.c.l.b16 %v8422
    %v9483 = vunpack.c.h.b16 %v8422
    %v9484 = vunpack.c.l.b16 %v8423
    %v9485 = vunpack.c.h.b16 %v8423
    %v9486 = vunpack.c.l.b16 %v8424
    %v9487 = vunpack.c.h.b16 %v8424
    %v9488 = vunpack.c.l.b16 %v8425
    %v9489 = vunpack.c.h.b16 %v8425
    %v9490 = vunpack.c.l.b16 %v8426
    %v9491 = vunpack.c.h.b16 %v8426
    %v9492 = vunpack.c.l.b16 %v8427
    %v9493 = vunpack.c.h.b16 %v8427
    %v9494 = vunpack.c.l.b16 %v8428
    %v9495 = vunpack.c.h.b16 %v8428
    %v9496 = vunpack.c.l.b16 %v8429
    %v9497 = vunpack.c.h.b16 %v8429
    %v9498 = vunpack.c.l.b16 %v8430
    %v9499 = vunpack.c.h.b16 %v8430
    %v9500 = vunpack.c.l.b16 %v8431
    %v9501 = vunpack.c.h.b16 %v8431
    %v9502 = vunpack.c.l.b16 %v8432
    %v9503 = vunpack.c.h.b16 %v8432
    %v9504 = vunpack.c.l.b16 %v8433
    %v9505 = vunpack.c.h.b16 %v8433
    %v9506 = vunpack.c.l.b16 %v8434
    %v9507 = vunpack.c.h.b16 %v8434
    %v9508 = vunpack.c.l.b16 %v8435
    %v9509 = vunpack.c.h.b16 %v8435
    %v9510 = vunpack.c.l.b16 %v8436
    %v9511 = vunpack.c.h.b16 %v8436
    %v9512 = vunpack.c.l.b16 %v8437
    %v9513 = vunpack.c.h.b16 %v8437
    %v9514 = vunpack.c.l.b16 %v8438
    %v9515 = vunpack.c.h.b16 %v8438
    %v9516 = vunpack.c.l.b16 %v8439
    %v9517 = vunpack.c.h.b16 %v8439
    %v9518 = vunpack.c.l.b16 %v8440
    %v9519 = vunpack.c.h.b16 %v8440
    %v9520 = vunpack.c.l.b16 %v8441
    %v9521 = vunpack.c.h.b16 %v8441
    %v9522 = vunpack.c.l.b16 %v8442
    %v9523 = vunpack.c.h.b16 %v8442
    %v9524 = vunpack.c.l.b16 %v8443
    %v9525 = vunpack.c.h.b16 %v8443
    %v9526 = vunpack.c.l.b16 %v8444
    %v9527 = vunpack.c.h.b16 %v8444
    %v9528 = vunpack.c.l.b16 %v8445
    %v9529 = vunpack.c.h.b16 %v8445
    %v9530 = vunpack.c.l.b16 %v8446
    %v9531 = vunpack.c.h.b16 %v8446
    %v9532 = vunpack.c.l.b16 %v8447
    %v9533 = vunpack.c.h.b16 %v8447
    %v9534 = vunpack.c.l.b16 %v8448
    %v9535 = vunpack.c.h.b16 %v8448
    %v9536 = vunpack.c.l.b16 %v8449
    %v9537 = vunpack.c.h.b16 %v8449
    %v9538 = vunpack.c.l.b16 %v8450
    %v9539 = vunpack.c.h.b16 %v8450
    %v9540 = vunpack.c.l.b16 %v8451
    %v9541 = vunpack.c.h.b16 %v8451
    %v9542 = vunpack.c.l.b16 %v8452
    %v9543 = vunpack.c.h.b16 %v8452
    %v9544 = vunpack.c.l.b16 %v8453
    %v9545 = vunpack.c.h.b16 %v8453
    %v9546 = vunpack.c.l.b16 %v8454
    %v9547 = vunpack.c.h.b16 %v8454
    %v9548 = vunpack.c.l.b16 %v8455
    %v9549 = vunpack.c.h.b16 %v8455
    %v9550 = vunpack.c.l.b16 %v8456
    %v9551 = vunpack.c.h.b16 %v8456
    %v9552 = vunpack.c.l.b16 %v8457
    %v9553 = vunpack.c.h.b16 %v8457
    %v9554 = vunpack.c.l.b16 %v8458
    %v9555 = vunpack.c.h.b16 %v8458
    %v9556 = vunpack.c.l.b16 %v8459
    %v9557 = vunpack.c.h.b16 %v8459
    %v9558 = vunpack.c.l.b16 %v8460
    %v9559 = vunpack.c.h.b16 %v8460
    %v9560 = vunpack.c.l.b16 %v8461
    %v9561 = vunpack.c.h.b16 %v8461
    %v9562 = vunpack.c.l.b16 %v8462
    %v9563 = vunpack.c.h.b16 %v8462
    %v9564 = vunpack.c.l.b16 %v8463
    %v9565 = vunpack.c.h.b16 %v8463
    %v9566 = vunpack.c.l.b16 %v8464
    %v9567 = vunpack.c.h.b16 %v8464
    %v9568 = vunpack.c.l.b16 %v8465
    %v9569 = vunpack.c.h.b16 %v8465
    %v9570 = vunpack.c.l.b16 %v8466
    %v9571 = vunpack.c.h.b16 %v8466
    %v9572 = vunpack.c.l.b16 %v8467
    %v9573 = vunpack.c.h.b16 %v8467
    %v9574 = vunpack.c.l.b16 %v8468
    %v9575 = vunpack.c.h.b16 %v8468
    %v9576 = vunpack.c.l.b16 %v8469
    %v9577 = vunpack.c.h.b16 %v8469
    %v9578 = vunpack.c.l.b16 %v8470
    %v9579 = vunpack.c.h.b16 %v8470
    %v9580 = vunpack.c.l.b16 %v8471
    %v9581 = vunpack.c.h.b16 %v8471
    %v9582 = vunpack.c.l.b16 %v8472
    %v9583 = vunpack.c.h.b16 %v8472
    %v9584 = vunpack.c.l.b16 %v8473
    %v9585 = vunpack.c.h.b16 %v8473
    %v9586 = vunpack.c.l.b16 %v8474
    %v9587 = vunpack.c.h.b16 %v8474
    %v9588 = vunpack.c.l.b16 %v8475
    %v9589 = vunpack.c.h.b16 %v8475
    %v9590 = vunpack.c.l.b16 %v8476
    %v9591 = vunpack.c.h.b16 %v8476
    %v9592 = vunpack.c.l.b16 %v8477
    %v9593 = vunpack.c.h.b16 %v8477
    %v9594 = vunpack.c.l.b16 %v8478
    %v9595 = vunpack.c.h.b16 %v8478
    %v9596 = vunpack.c.l.b16 %v8479
    %v9597 = vunpack.c.h.b16 %v8479
    %v9598 = vunpack.c.l.b16 %v8480
    %v9599 = vunpack.c.h.b16 %v8480
    %v9600 = vunpack.c.l.b16 %v8481
    %v9601 = vunpack.c.h.b16 %v8481
    %v9602 = vunpack.c.l.b16 %v8482
    %v9603 = vunpack.c.h.b16 %v8482
    %v9604 = vunpack.c.l.b16 %v8483
    %v9605 = vunpack.c.h.b16 %v8483
    %v9606 = vunpack.c.l.b16 %v8484
    %v9607 = vunpack.c.h.b16 %v8484
    %v9608 = vunpack.c.l.b16 %v8485
    %v9609 = vunpack.c.h.b16 %v8485
    %v9610 = vunpack.c.l.b16 %v8486
    %v9611 = vunpack.c.h.b16 %v8486
    %v9612 = vunpack.c.l.b16 %v8487
    %v9613 = vunpack.c.h.b16 %v8487
    %v9614 = vunpack.c.l.b16 %v8488
    %v9615 = vunpack.c.h.b16 %v8488
    %v9616 = vunpack.c.l.b16 %v8489
    %v9617 = vunpack.c.h.b16 %v8489
    %v9618 = vunpack.c.l.b16 %v8490
    %v9619 = vunpack.c.h.b16 %v8490
    %v9620 = vunpack.c.l.b16 %v8491
    %v9621 = vunpack.c.h.b16 %v8491
    %v9622 = vunpack.c.l.b16 %v8492
    %v9623 = vunpack.c.h.b16 %v8492
    %v9624 = vunpack.c.l.b16 %v8493
    %v9625 = vunpack.c.h.b16 %v8493
    %v9626 = vunpack.c.l.b16 %v8494
    %v9627 = vunpack.c.h.b16 %v8494
    %v9628 = vunpack.c.l.b16 %v8495
    %v9629 = vunpack.c.h.b16 %v8495
    %v9630 = vunpack.c.l.b16 %v8496
    %v9631 = vunpack.c.h.b16 %v8496
    %v9632 = vunpack.c.l.b16 %v8497
    %v9633 = vunpack.c.h.b16 %v8497
    %v9634 = vunpack.c.l.b16 %v8498
    %v9635 = vunpack.c.h.b16 %v8498
    %v9636 = vunpack.c.l.b16 %v8499
    %v9637 = vunpack.c.h.b16 %v8499
    %v9638 = vunpack.c.l.b16 %v8500
    %v9639 = vunpack.c.h.b16 %v8500
    %v9640 = vunpack.c.l.b16 %v8501
    %v9641 = vunpack.c.h.b16 %v8501
    %v9642 = vunpack.c.l.b16 %v8502
    %v9643 = vunpack.c.h.b16 %v8502
    %v9644 = vunpack.c.l.b16 %v8503
    %v9645 = vunpack.c.h.b16 %v8503
    %v9646 = vunpack.c.l.b16 %v8504
    %v9647 = vunpack.c.h.b16 %v8504
    %v9648 = vunpack.c.l.b16 %v8505
    %v9649 = vunpack.c.h.b16 %v8505
    %v9650 = vunpack.c.l.b16 %v8506
    %v9651 = vunpack.c.h.b16 %v8506
    %v9652 = vunpack.c.l.b16 %v8507
    %v9653 = vunpack.c.h.b16 %v8507
    %v9654 = vunpack.c.l.b16 %v8508
    %v9655 = vunpack.c.h.b16 %v8508
    %v9656 = vunpack.c.l.b16 %v8509
    %v9657 = vunpack.c.h.b16 %v8509
    %v9658 = vunpack.c.l.b16 %v8510
    %v9659 = vunpack.c.h.b16 %v8510
    %v9660 = vunpack.c.l.b16 %v8511
    %v9661 = vunpack.c.h.b16 %v8511
    %v9662 = vunpack.c.l.b16 %v8512
    %v9663 = vunpack.c.h.b16 %v8512
    %v9664 = vunpack.c.l.b16 %v8513
    %v9665 = vunpack.c.h.b16 %v8513
    %v9666 = vunpack.c.l.b16 %v8514
    %v9667 = vunpack.c.h.b16 %v8514
    %v9668 = vunpack.c.l.b16 %v8515
    %v9669 = vunpack.c.h.b16 %v8515
    %v9670 = vunpack.c.l.b16 %v8516
    %v9671 = vunpack.c.h.b16 %v8516
    %v9672 = vunpack.c.l.b16 %v8517
    %v9673 = vunpack.c.h.b16 %v8517
    %v9674 = vunpack.c.l.b16 %v8518
    %v9675 = vunpack.c.h.b16 %v8518
    %v9676 = vunpack.c.l.b16 %v8519
    %v9677 = vunpack.c.h.b16 %v8519
    %v9678 = vunpack.c.l.b16 %v8520
    %v9679 = vunpack.c.h.b16 %v8520
    %v9680 = vunpack.c.l.b16 %v8521
    %v9681 = vunpack.c.h.b16 %v8521
    %v9682 = vunpack.c.l.b16 %v8522
    %v9683 = vunpack.c.h.b16 %v8522
    %v9684 = vunpack.c.l.b16 %v8523
    %v9685 = vunpack.c.h.b16 %v8523
    %v9686 = vunpack.c.l.b16 %v8524
    %v9687 = vunpack.c.h.b16 %v8524
    %v9688 = vunpack.c.l.b16 %v8525
    %v9689 = vunpack.c.h.b16 %v8525
    %v9690 = vunpack.c.l.b16 %v8526
    %v9691 = vunpack.c.h.b16 %v8526
    %v9692 = vunpack.c.l.b16 %v8527
    %v9693 = vunpack.c.h.b16 %v8527
    %v9694 = vunpack.c.l.b16 %v8528
    %v9695 = vunpack.c.h.b16 %v8528
    %v9696 = vunpack.c.l.b16 %v8529
    %v9697 = vunpack.c.h.b16 %v8529
    %v9698 = vunpack.c.l.b16 %v8530
    %v9699 = vunpack.c.h.b16 %v8530
    %v9700 = vunpack.c.l.b16 %v8531
    %v9701 = vunpack.c.h.b16 %v8531
    %v9702 = vunpack.c.l.b16 %v8532
    %v9703 = vunpack.c.h.b16 %v8532
    %v9704 = vunpack.c.l.b16 %v8533
    %v9705 = vunpack.c.h.b16 %v8533
    %v9706 = vunpack.c.l.b16 %v8534
    %v9707 = vunpack.c.h.b16 %v8534
    %v9708 = vunpack.c.l.b16 %v8535
    %v9709 = vunpack.c.h.b16 %v8535
    %v9710 = vunpack.c.l.b16 %v8536
    %v9711 = vunpack.c.h.b16 %v8536
    %v9712 = vunpack.c.l.b16 %v8537
    %v9713 = vunpack.c.h.b16 %v8537
    %v9714 = vunpack.c.l.b16 %v8538
    %v9715 = vunpack.c.h.b16 %v8538
    %v9716 = vunpack.c.l.b16 %v8539
    %v9717 = vunpack.c.h.b16 %v8539
    %v9718 = vunpack.c.l.b16 %v8540
    %v9719 = vunpack.c.h.b16 %v8540
    %v9720 = vunpack.c.l.b16 %v8541
    %v9721 = vunpack.c.h.b16 %v8541
    %v9722 = vunpack.c.l.b16 %v8542
    %v9723 = vunpack.c.h.b16 %v8542
    %v9724 = vunpack.c.l.b16 %v8543
    %v9725 = vunpack.c.h.b16 %v8543
    %v9726 = vunpack.c.l.b16 %v8544
    %v9727 = vunpack.c.h.b16 %v8544
    %v9728 = vunpack.c.l.b16 %v8545
    %v9729 = vunpack.c.h.b16 %v8545
    %v9730 = vunpack.c.l.b16 %v8546
    %v9731 = vunpack.c.h.b16 %v8546
    %v9732 = vunpack.c.l.b16 %v8547
    %v9733 = vunpack.c.h.b16 %v8547
    %v9734 = vunpack.c.l.b16 %v8548
    %v9735 = vunpack.c.h.b16 %v8548
    %v9736 = vunpack.c.l.b16 %v8549
    %v9737 = vunpack.c.h.b16 %v8549
    %v9738 = vunpack.c.l.b16 %v8550
    %v9739 = vunpack.c.h.b16 %v8550
    %v9740 = vunpack.c.l.b16 %v8551
    %v9741 = vunpack.c.h.b16 %v8551
    %v9742 = vunpack.c.l.b16 %v8552
    %v9743 = vunpack.c.h.b16 %v8552
    %v9744 = vunpack.c.l.b16 %v8553
    %v9745 = vunpack.c.h.b16 %v8553
    %v9746 = vunpack.c.l.b16 %v8554
    %v9747 = vunpack.c.h.b16 %v8554
    %v9748 = vunpack.c.l.b16 %v8555
    %v9749 = vunpack.c.h.b16 %v8555
    %v9750 = vunpack.c.l.b16 %v8556
    %v9751 = vunpack.c.h.b16 %v8556
    %v9752 = vunpack.c.l.b16 %v8557
    %v9753 = vunpack.c.h.b16 %v8557
    %v9754 = vunpack.c.l.b16 %v8558
    %v9755 = vunpack.c.h.b16 %v8558
    %v9756 = vunpack.c.l.b16 %v8559
    %v9757 = vunpack.c.h.b16 %v8559
    %v9758 = vunpack.c.l.b16 %v8560
    %v9759 = vunpack.c.h.b16 %v8560
    %v9760 = vunpack.c.l.b16 %v8561
    %v9761 = vunpack.c.h.b16 %v8561
    %v9762 = vunpack.c.l.b16 %v8562
    %v9763 = vunpack.c.h.b16 %v8562
    %v9764 = vunpack.c.l.b16 %v8563
    %v9765 = vunpack.c.h.b16 %v8563
    %v9766 = vunpack.c.l.b16 %v8564
    %v9767 = vunpack.c.h.b16 %v8564
    %v9768 = vunpack.c.l.b16 %v8565
    %v9769 = vunpack.c.h.b16 %v8565
    %v9770 = vunpack.c.l.b16 %v8566
    %v9771 = vunpack.c.h.b16 %v8566
    %v9772 = vunpack.c.l.b16 %v8567
    %v9773 = vunpack.c.h.b16 %v8567
    %v9774 = vunpack.c.l.b16 %v8568
    %v9775 = vunpack.c.h.b16 %v8568
    %v9776 = vunpack.c.l.b16 %v8569
    %v9777 = vunpack.c.h.b16 %v8569
    %v9778 = vunpack.c.l.b16 %v8570
    %v9779 = vunpack.c.h.b16 %v8570
    %v9780 = vunpack.c.l.b16 %v8571
    %v9781 = vunpack.c.h.b16 %v8571
    %v9782 = vunpack.c.l.b16 %v8572
    %v9783 = vunpack.c.h.b16 %v8572
    %v9784 = vunpack.c.l.b16 %v8573
    %v9785 = vunpack.c.h.b16 %v8573
    %v9786 = vunpack.c.l.b16 %v8574
    %v9787 = vunpack.c.h.b16 %v8574
    %v9788 = vunpack.c.l.b16 %v8575
    %v9789 = vunpack.c.h.b16 %v8575
    %v9790 = vunpack.c.l.b16 %v8576
    %v9791 = vunpack.c.h.b16 %v8576
    %v9792 = vunpack.c.l.b16 %v8577
    %v9793 = vunpack.c.h.b16 %v8577
    %v9794 = vunpack.c.l.b16 %v8578
    %v9795 = vunpack.c.h.b16 %v8578
    %v9796 = vunpack.c.l.b16 %v8579
    %v9797 = vunpack.c.h.b16 %v8579
    %v9798 = vunpack.c.l.b16 %v8580
    %v9799 = vunpack.c.h.b16 %v8580
    %v9800 = vunpack.c.l.b16 %v8581
    %v9801 = vunpack.c.h.b16 %v8581
    %v9802 = vunpack.c.l.b16 %v8582
    %v9803 = vunpack.c.h.b16 %v8582
    %v9804 = vunpack.c.l.b16 %v8583
    %v9805 = vunpack.c.h.b16 %v8583
    %v9806 = vunpack.c.l.b16 %v8584
    %v9807 = vunpack.c.h.b16 %v8584
    %v9808 = vunpack.c.l.b16 %v8585
    %v9809 = vunpack.c.h.b16 %v8585
    %v9810 = vunpack.c.l.b16 %v8586
    %v9811 = vunpack.c.h.b16 %v8586
    %v9812 = vunpack.c.l.b16 %v8587
    %v9813 = vunpack.c.h.b16 %v8587
    %v9814 = vunpack.c.l.b16 %v8588
    %v9815 = vunpack.c.h.b16 %v8588
    %v9816 = vunpack.c.l.b16 %v8589
    %v9817 = vunpack.c.h.b16 %v8589
    %v9818 = vunpack.c.l.b16 %v8590
    %v9819 = vunpack.c.h.b16 %v8590
    %v9820 = vunpack.c.l.b16 %v8591
    %v9821 = vunpack.c.h.b16 %v8591
    %v9822 = vunpack.c.l.b16 %v8592
    %v9823 = vunpack.c.h.b16 %v8592
    %v9824 = vunpack.c.l.b16 %v8593
    %v9825 = vunpack.c.h.b16 %v8593
    %v9826 = vunpack.c.l.b16 %v8594
    %v9827 = vunpack.c.h.b16 %v8594
    %v9828 = vunpack.c.l.b16 %v8595
    %v9829 = vunpack.c.h.b16 %v8595
    %v9830 = vunpack.c.l.b16 %v8596
    %v9831 = vunpack.c.h.b16 %v8596
    %v9832 = vunpack.c.l.b16 %v8597
    %v9833 = vunpack.c.h.b16 %v8597
    %v9834 = vunpack.c.l.b16 %v8598
    %v9835 = vunpack.c.h.b16 %v8598
    %v9836 = vunpack.c.l.b16 %v8599
    %v9837 = vunpack.c.h.b16 %v8599
    %v9838 = vunpack.c.l.b16 %v8600
    %v9839 = vunpack.c.h.b16 %v8600
    %v9840 = vunpack.c.l.b16 %v8601
    %v9841 = vunpack.c.h.b16 %v8601
    %v9842 = vunpack.c.l.b16 %v8602
    %v9843 = vunpack.c.h.b16 %v8602
    %v9844 = vunpack.c.l.b16 %v8603
    %v9845 = vunpack.c.h.b16 %v8603
    %v9846 = vunpack.c.l.b16 %v8604
    %v9847 = vunpack.c.h.b16 %v8604
    %v9848 = vunpack.c.l.b16 %v8605
    %v9849 = vunpack.c.h.b16 %v8605
    %v9850 = vunpack.c.l.b16 %v8606
    %v9851 = vunpack.c.h.b16 %v8606
    %v9852 = vunpack.c.l.b16 %v8607
    %v9853 = vunpack.c.h.b16 %v8607
    %v9854 = vunpack.c.l.b16 %v8608
    %v9855 = vunpack.c.h.b16 %v8608
    %v9856 = vunpack.c.l.b16 %v8609
    %v9857 = vunpack.c.h.b16 %v8609
    %v9858 = vunpack.c.l.b16 %v8610
    %v9859 = vunpack.c.h.b16 %v8610
    %v9860 = vunpack.c.l.b16 %v8611
    %v9861 = vunpack.c.h.b16 %v8611
    %v9862 = vunpack.c.l.b16 %v8612
    %v9863 = vunpack.c.h.b16 %v8612
    %v9864 = vunpack.c.l.b16 %v8613
    %v9865 = vunpack.c.h.b16 %v8613
    %v9866 = vunpack.c.l.b16 %v8614
    %v9867 = vunpack.c.h.b16 %v8614
    %v9868 = vunpack.c.l.b16 %v8615
    %v9869 = vunpack.c.h.b16 %v8615
    %v9870 = vunpack.c.l.b16 %v8616
    %v9871 = vunpack.c.h.b16 %v8616
    %v9872 = vunpack.c.l.b16 %v8617
    %v9873 = vunpack.c.h.b16 %v8617
    %v9874 = vunpack.c.l.b16 %v8618
    %v9875 = vunpack.c.h.b16 %v8618
    %v9876 = vunpack.c.l.b16 %v8619
    %v9877 = vunpack.c.h.b16 %v8619
    %v9878 = vunpack.c.l.b16 %v8620
    %v9879 = vunpack.c.h.b16 %v8620
    %v9880 = vunpack.c.l.b16 %v8621
    %v9881 = vunpack.c.h.b16 %v8621
    %v9882 = vunpack.c.l.b16 %v8622
    %v9883 = vunpack.c.h.b16 %v8622
    %v9884 = vunpack.c.l.b16 %v8623
    %v9885 = vunpack.c.h.b16 %v8623
    %v9886 = vunpack.c.l.b16 %v8624
    %v9887 = vunpack.c.h.b16 %v8624
    %v9888 = vunpack.c.l.b16 %v8625
    %v9889 = vunpack.c.h.b16 %v8625
    %v9890 = vunpack.c.l.b16 %v8626
    %v9891 = vunpack.c.h.b16 %v8626
    %v9892 = vunpack.c.l.b16 %v8627
    %v9893 = vunpack.c.h.b16 %v8627
    %v9894 = vunpack.c.l.b16 %v8628
    %v9895 = vunpack.c.h.b16 %v8628
    %v9896 = vunpack.c.l.b16 %v8629
    %v9897 = vunpack.c.h.b16 %v8629
    %v9898 = vunpack.c.l.b16 %v8630
    %v9899 = vunpack.c.h.b16 %v8630
    %v9900 = vunpack.c.l.b16 %v8631
    %v9901 = vunpack.c.h.b16 %v8631
    %v9902 = vunpack.c.l.b16 %v8632
    %v9903 = vunpack.c.h.b16 %v8632
    %v9904 = vunpack.c.l.b16 %v8633
    %v9905 = vunpack.c.h.b16 %v8633
    %v9906 = vunpack.c.l.b16 %v8634
    %v9907 = vunpack.c.h.b16 %v8634
    %v9908 = vunpack.c.l.b16 %v8635
    %v9909 = vunpack.c.h.b16 %v8635
    %v9910 = vunpack.c.l.b16 %v8636
    %v9911 = vunpack.c.h.b16 %v8636
    %v9912 = vunpack.c.l.b16 %v8637
    %v9913 = vunpack.c.h.b16 %v8637
    %v9914 = vunpack.c.l.b16 %v8638
    %v9915 = vunpack.c.h.b16 %v8638
    %v9916 = vunpack.c.l.b16 %v8639
    %v9917 = vunpack.c.h.b16 %v8639
    %v9918 = vunpack.c.l.b16 %v8640
    %v9919 = vunpack.c.h.b16 %v8640
    %v9920 = vunpack.c.l.b16 %v8641
    %v9921 = vunpack.c.h.b16 %v8641
    %v9922 = vunpack.c.l.b16 %v8642
    %v9923 = vunpack.c.h.b16 %v8642
    %v9924 = vunpack.c.l.b16 %v8643
    %v9925 = vunpack.c.h.b16 %v8643
    %v9926 = vunpack.c.l.b16 %v8644
    %v9927 = vunpack.c.h.b16 %v8644
    %v9928 = vunpack.c.l.b16 %v8645
    %v9929 = vunpack.c.h.b16 %v8645
    %v9930 = vunpack.c.l.b16 %v8646
    %v9931 = vunpack.c.h.b16 %v8646
    %v9932 = vunpack.c.l.b16 %v8647
    %v9933 = vunpack.c.h.b16 %v8647
    %v9934 = vunpack.c.l.b16 %v8648
    %v9935 = vunpack.c.h.b16 %v8648
    %v9936 = vunpack.c.l.b16 %v8649
    %v9937 = vunpack.c.h.b16 %v8649
    %v9938 = vunpack.c.l.b16 %v8650
    %v9939 = vunpack.c.h.b16 %v8650
    %v9940 = vunpack.c.l.b16 %v8651
    %v9941 = vunpack.c.h.b16 %v8651
    %v9942 = vunpack.c.l.b16 %v8652
    %v9943 = vunpack.c.h.b16 %v8652
    %v9944 = vunpack.c.l.b16 %v8653
    %v9945 = vunpack.c.h.b16 %v8653
    %v9946 = vunpack.c.l.b16 %v8654
    %v9947 = vunpack.c.h.b16 %v8654
    %v9948 = vunpack.c.l.b16 %v8655
    %v9949 = vunpack.c.h.b16 %v8655
    %v9950 = vunpack.c.l.b16 %v8656
    %v9951 = vunpack.c.h.b16 %v8656
    %v9952 = vunpack.c.l.b16 %v8657
    %v9953 = vunpack.c.h.b16 %v8657
    %v9954 = vunpack.c.l.b16 %v8658
    %v9955 = vunpack.c.h.b16 %v8658
    %v9956 = vunpack.c.l.b16 %v8659
    %v9957 = vunpack.c.h.b16 %v8659
    %v9958 = vunpack.c.l.b16 %v8660
    %v9959 = vunpack.c.h.b16 %v8660
    %v9960 = vunpack.c.l.b16 %v8661
    %v9961 = vunpack.c.h.b16 %v8661
    %v9962 = vunpack.c.l.b16 %v8662
    %v9963 = vunpack.c.h.b16 %v8662
    %v9964 = vunpack.c.l.b16 %v8663
    %v9965 = vunpack.c.h.b16 %v8663
    %v9966 = vunpack.c.l.b16 %v8664
    %v9967 = vunpack.c.h.b16 %v8664
    %v9968 = vunpack.c.l.b16 %v8665
    %v9969 = vunpack.c.h.b16 %v8665
    %v9970 = vunpack.c.l.b16 %v8666
    %v9971 = vunpack.c.h.b16 %v8666
    %v9972 = vunpack.c.l.b16 %v8667
    %v9973 = vunpack.c.h.b16 %v8667
    %v9974 = vunpack.c.l.b16 %v8668
    %v9975 = vunpack.c.h.b16 %v8668
    %v9976 = vunpack.c.l.b16 %v8669
    %v9977 = vunpack.c.h.b16 %v8669
    %v9978 = vunpack.c.l.b16 %v8670
    %v9979 = vunpack.c.h.b16 %v8670
    %v9980 = vunpack.c.l.b16 %v8671
    %v9981 = vunpack.c.h.b16 %v8671
    %v9982 = vunpack.c.l.b16 %v8672
    %v9983 = vunpack.c.h.b16 %v8672
    %v9984 = vunpack.c.l.b16 %v8673
    %v9985 = vunpack.c.h.b16 %v8673
    %v9986 = vunpack.c.l.b16 %v8674
    %v9987 = vunpack.c.h.b16 %v8674
    %v9988 = vunpack.c.l.b16 %v8675
    %v9989 = vunpack.c.h.b16 %v8675
    %v9990 = vunpack.c.l.b16 %v8676
    %v9991 = vunpack.c.h.b16 %v8676
    %v9992 = vunpack.c.l.b16 %v8677
    %v9993 = vunpack.c.h.b16 %v8677
    %v9994 = vunpack.c.l.b16 %v8678
    %v9995 = vunpack.c.h.b16 %v8678
    %v9996 = vunpack.c.l.b16 %v8679
    %v9997 = vunpack.c.h.b16 %v8679
    %v9998 = vunpack.c.l.b16 %v8680
    %v9999 = vunpack.c.h.b16 %v8680
    %v10000 = vunpack.c.l.b16 %v8681
    %v10001 = vunpack.c.h.b16 %v8681
    %v10002 = vunpack.c.l.b16 %v8682
    %v10003 = vunpack.c.h.b16 %v8682
    %v10004 = vunpack.c.l.b16 %v8683
    %v10005 = vunpack.c.h.b16 %v8683
    %v10006 = vunpack.c.l.b16 %v8684
    %v10007 = vunpack.c.h.b16 %v8684
    %v10008 = vunpack.c.l.b16 %v8685
    %v10009 = vunpack.c.h.b16 %v8685
    %v10010 = vunpack.c.l.b16 %v8686
    %v10011 = vunpack.c.h.b16 %v8686
    %v10012 = vunpack.c.l.b16 %v8687
    %v10013 = vunpack.c.h.b16 %v8687
    %v10014 = vunpack.c.l.b16 %v8688
    %v10015 = vunpack.c.h.b16 %v8688
    %v10016 = vunpack.c.l.b16 %v8689
    %v10017 = vunpack.c.h.b16 %v8689
    %v10018 = vunpack.c.l.b16 %v8690
    %v10019 = vunpack.c.h.b16 %v8690
    %v10020 = vunpack.c.l.b16 %v8691
    %v10021 = vunpack.c.h.b16 %v8691
    %v10022 = vunpack.c.l.b16 %v8692
    %v10023 = vunpack.c.h.b16 %v8692
    %v10024 = vunpack.c.l.b16 %v8693
    %v10025 = vunpack.c.h.b16 %v8693
    %v10026 = vunpack.c.l.b16 %v8694
    %v10027 = vunpack.c.h.b16 %v8694
    %v10028 = vunpack.c.l.b16 %v8695
    %v10029 = vunpack.c.h.b16 %v8695
    %v10030 = vunpack.c.l.b16 %v8696
    %v10031 = vunpack.c.h.b16 %v8696
    %v10032 = vunpack.c.l.b16 %v8697
    %v10033 = vunpack.c.h.b16 %v8697
    %v10034 = vunpack.c.l.b16 %v8698
    %v10035 = vunpack.c.h.b16 %v8698
    %v10036 = vunpack.c.l.b16 %v8699
    %v10037 = vunpack.c.h.b16 %v8699
    %v10038 = vunpack.c.l.b16 %v8700
    %v10039 = vunpack.c.h.b16 %v8700
    %v10040 = vunpack.c.l.b16 %v8701
    %v10041 = vunpack.c.h.b16 %v8701
    %v10042 = vunpack.c.l.b16 %v8702
    %v10043 = vunpack.c.h.b16 %v8702
    %v10044 = vunpack.c.l.b16 %v8703
    %v10045 = vunpack.c.h.b16 %v8703
    %v10046 = vunpack.c.l.b16 %v8704
    %v10047 = vunpack.c.h.b16 %v8704
    %v10048 = vunpack.c.l.b16 %v8705
    %v10049 = vunpack.c.h.b16 %v8705
    %v10050 = vpack.c.b16 %v9158, %v9154
    %v10051 = vpack.c.b16 %v9159, %v9155
    %v10052 = vpack.c.b16 %v9160, %v9156
    %v10053 = vpack.c.b16 %v9161, %v9157
    %v10054 = vpack.c.b16 %v9166, %v9162
    %v10055 = vpack.c.b16 %v9167, %v9163
    %v10056 = vpack.c.b16 %v9168, %v9164
    %v10057 = vpack.c.b16 %v9169, %v9165
    %v10058 = vpack.c.b16 %v9174, %v9170
    %v10059 = vpack.c.b16 %v9175, %v9171
    %v10060 = vpack.c.b16 %v9176, %v9172
    %v10061 = vpack.c.b16 %v9177, %v9173
    %v10062 = vpack.c.b16 %v9182, %v9178
    %v10063 = vpack.c.b16 %v9183, %v9179
    %v10064 = vpack.c.b16 %v9184, %v9180
    %v10065 = vpack.c.b16 %v9185, %v9181
    %v10066 = vpack.c.b16 %v9190, %v9186
    %v10067 = vpack.c.b16 %v9191, %v9187
    %v10068 = vpack.c.b16 %v9192, %v9188
    %v10069 = vpack.c.b16 %v9193, %v9189
    %v10070 = vpack.c.b16 %v9198, %v9194
    %v10071 = vpack.c.b16 %v9199, %v9195
    %v10072 = vpack.c.b16 %v9200, %v9196
    %v10073 = vpack.c.b16 %v9201, %v9197
    %v10074 = vpack.c.b16 %v9206, %v9202
    %v10075 = vpack.c.b16 %v9207, %v9203
    %v10076 = vpack.c.b16 %v9208, %v9204
    %v10077 = vpack.c.b16 %v9209, %v9205
    %v10078 = vpack.c.b16 %v9214, %v9210
    %v10079 = vpack.c.b16 %v9215, %v9211
    %v10080 = vpack.c.b16 %v9216, %v9212
    %v10081 = vpack.c.b16 %v9217, %v9213
    %v10082 = vpack.c.b16 %v9222, %v9218
    %v10083 = vpack.c.b16 %v9223, %v9219
    %v10084 = vpack.c.b16 %v9224, %v9220
    %v10085 = vpack.c.b16 %v9225, %v9221
    %v10086 = vpack.c.b16 %v9230, %v9226
    %v10087 = vpack.c.b16 %v9231, %v9227
    %v10088 = vpack.c.b16 %v9232, %v9228
    %v10089 = vpack.c.b16 %v9233, %v9229
    %v10090 = vpack.c.b16 %v9238, %v9234
    %v10091 = vpack.c.b16 %v9239, %v9235
    %v10092 = vpack.c.b16 %v9240, %v9236
    %v10093 = vpack.c.b16 %v9241, %v9237
    %v10094 = vpack.c.b16 %v9246, %v9242
    %v10095 = vpack.c.b16 %v9247, %v9243
    %v10096 = vpack.c.b16 %v9248, %v9244
    %v10097 = vpack.c.b16 %v9249, %v9245
    %v10098 = vpack.c.b16 %v9254, %v9250
    %v10099 = vpack.c.b16 %v9255, %v9251
    %v10100 = vpack.c.b16 %v9256, %v9252
    %v10101 = vpack.c.b16 %v9257, %v9253
    %v10102 = vpack.c.b16 %v9262, %v9258
    %v10103 = vpack.c.b16 %v9263, %v9259
    %v10104 = vpack.c.b16 %v9264, %v9260
    %v10105 = vpack.c.b16 %v9265, %v9261
    %v10106 = vpack.c.b16 %v9270, %v9266
    %v10107 = vpack.c.b16 %v9271, %v9267
    %v10108 = vpack.c.b16 %v9272, %v9268
    %v10109 = vpack.c.b16 %v9273, %v9269
    %v10110 = vpack.c.b16 %v9278, %v9274
    %v10111 = vpack.c.b16 %v9279, %v9275
    %v10112 = vpack.c.b16 %v9280, %v9276
    %v10113 = vpack.c.b16 %v9281, %v9277
    %v10114 = vpack.c.b16 %v9286, %v9282
    %v10115 = vpack.c.b16 %v9287, %v9283
    %v10116 = vpack.c.b16 %v9288, %v9284
    %v10117 = vpack.c.b16 %v9289, %v9285
    %v10118 = vpack.c.b16 %v9294, %v9290
    %v10119 = vpack.c.b16 %v9295, %v9291
    %v10120 = vpack.c.b16 %v9296, %v9292
    %v10121 = vpack.c.b16 %v9297, %v9293
    %v10122 = vpack.c.b16 %v9302, %v9298
    %v10123 = vpack.c.b16 %v9303, %v9299
    %v10124 = vpack.c.b16 %v9304, %v9300
    %v10125 = vpack.c.b16 %v9305, %v9301
    %v10126 = vpack.c.b16 %v9310, %v9306
    %v10127 = vpack.c.b16 %v9311, %v9307
    %v10128 = vpack.c.b16 %v9312, %v9308
    %v10129 = vpack.c.b16 %v9313, %v9309
    %v10130 = vpack.c.b16 %v9318, %v9314
    %v10131 = vpack.c.b16 %v9319, %v9315
    %v10132 = vpack.c.b16 %v9320, %v9316
    %v10133 = vpack.c.b16 %v9321, %v9317
    %v10134 = vpack.c.b16 %v9326, %v9322
    %v10135 = vpack.c.b16 %v9327, %v9323
    %v10136 = vpack.c.b16 %v9328, %v9324
    %v10137 = vpack.c.b16 %v9329, %v9325
    %v10138 = vpack.c.b16 %v9334, %v9330
    %v10139 = vpack.c.b16 %v9335, %v9331
    %v10140 = vpack.c.b16 %v9336, %v9332
    %v10141 = vpack.c.b16 %v9337, %v9333
    %v10142 = vpack.c.b16 %v9342, %v9338
    %v10143 = vpack.c.b16 %v9343, %v9339
    %v10144 = vpack.c.b16 %v9344, %v9340
    %v10145 = vpack.c.b16 %v9345, %v9341
    %v10146 = vpack.c.b16 %v9350, %v9346
    %v10147 = vpack.c.b16 %v9351, %v9347
    %v10148 = vpack.c.b16 %v9352, %v9348
    %v10149 = vpack.c.b16 %v9353, %v9349
    %v10150 = vpack.c.b16 %v9358, %v9354
    %v10151 = vpack.c.b16 %v9359, %v9355
    %v10152 = vpack.c.b16 %v9360, %v9356
    %v10153 = vpack.c.b16 %v9361, %v9357
    %v10154 = vpack.c.b16 %v9366, %v9362
    %v10155 = vpack.c.b16 %v9367, %v9363
    %v10156 = vpack.c.b16 %v9368, %v9364
    %v10157 = vpack.c.b16 %v9369, %v9365
    %v10158 = vpack.c.b16 %v9374, %v9370
    %v10159 = vpack.c.b16 %v9375, %v9371
    %v10160 = vpack.c.b16 %v9376, %v9372
    %v10161 = vpack.c.b16 %v9377, %v9373
    %v10162 = vpack.c.b16 %v9382, %v9378
    %v10163 = vpack.c.b16 %v9383, %v9379
    %v10164 = vpack.c.b16 %v9384, %v9380
    %v10165 = vpack.c.b16 %v9385, %v9381
    %v10166 = vpack.c.b16 %v9390, %v9386
    %v10167 = vpack.c.b16 %v9391, %v9387
    %v10168 = vpack.c.b16 %v9392, %v9388
    %v10169 = vpack.c.b16 %v9393, %v9389
    %v10170 = vpack.c.b16 %v9398, %v9394
    %v10171 = vpack.c.b16 %v9399, %v9395
    %v10172 = vpack.c.b16 %v9400, %v9396
    %v10173 = vpack.c.b16 %v9401, %v9397
    %v10174 = vpack.c.b16 %v9406, %v9402
    %v10175 = vpack.c.b16 %v9407, %v9403
    %v10176 = vpack.c.b16 %v9408, %v9404
    %v10177 = vpack.c.b16 %v9409, %v9405
    %v10178 = vpack.c.b16 %v9414, %v9410
    %v10179 = vpack.c.b16 %v9415, %v9411
    %v10180 = vpack.c.b16 %v9416, %v9412
    %v10181 = vpack.c.b16 %v9417, %v9413
    %v10182 = vpack.c.b16 %v9422, %v9418
    %v10183 = vpack.c.b16 %v9423, %v9419
    %v10184 = vpack.c.b16 %v9424, %v9420
    %v10185 = vpack.c.b16 %v9425, %v9421
    %v10186 = vpack.c.b16 %v9430, %v9426
    %v10187 = vpack.c.b16 %v9431, %v9427
    %v10188 = vpack.c.b16 %v9432, %v9428
    %v10189 = vpack.c.b16 %v9433, %v9429
    %v10190 = vpack.c.b16 %v9438, %v9434
    %v10191 = vpack.c.b16 %v9439, %v9435
    %v10192 = vpack.c.b16 %v9440, %v9436
    %v10193 = vpack.c.b16 %v9441, %v9437
    %v10194 = vpack.c.b16 %v9446, %v9442
    %v10195 = vpack.c.b16 %v9447, %v9443
    %v10196 = vpack.c.b16 %v9448, %v9444
    %v10197 = vpack.c.b16 %v9449, %v9445
    %v10198 = vpack.c.b16 %v9454, %v9450
    %v10199 = vpack.c.b16 %v9455, %v9451
    %v10200 = vpack.c.b16 %v9456, %v9452
    %v10201 = vpack.c.b16 %v9457, %v9453
    %v10202 = vpack.c.b16 %v9462, %v9458
    %v10203 = vpack.c.b16 %v9463, %v9459
    %v10204 = vpack.c.b16 %v9464, %v9460
    %v10205 = vpack.c.b16 %v9465, %v9461
    %v10206 = vpack.c.b16 %v9470, %v9466
    %v10207 = vpack.c.b16 %v9471, %v9467
    %v10208 = vpack.c.b16 %v9472, %v9468
    %v10209 = vpack.c.b16 %v9473, %v9469
    %v10210 = vpack.c.b16 %v9478, %v9474
    %v10211 = vpack.c.b16 %v9479, %v9475
    %v10212 = vpack.c.b16 %v9480, %v9476
    %v10213 = vpack.c.b16 %v9481, %v9477
    %v10214 = vpack.c.b16 %v9486, %v9482
    %v10215 = vpack.c.b16 %v9487, %v9483
    %v10216 = vpack.c.b16 %v9488, %v9484
    %v10217 = vpack.c.b16 %v9489, %v9485
    %v10218 = vpack.c.b16 %v9494, %v9490
    %v10219 = vpack.c.b16 %v9495, %v9491
    %v10220 = vpack.c.b16 %v9496, %v9492
    %v10221 = vpack.c.b16 %v9497, %v9493
    %v10222 = vpack.c.b16 %v9502, %v9498
    %v10223 = vpack.c.b16 %v9503, %v9499
    %v10224 = vpack.c.b16 %v9504, %v9500
    %v10225 = vpack.c.b16 %v9505, %v9501
    %v10226 = vpack.c.b16 %v9510, %v9506
    %v10227 = vpack.c.b16 %v9511, %v9507
    %v10228 = vpack.c.b16 %v9512, %v9508
    %v10229 = vpack.c.b16 %v9513, %v9509
    %v10230 = vpack.c.b16 %v9518, %v9514
    %v10231 = vpack.c.b16 %v9519, %v9515
    %v10232 = vpack.c.b16 %v9520, %v9516
    %v10233 = vpack.c.b16 %v9521, %v9517
    %v10234 = vpack.c.b16 %v9526, %v9522
    %v10235 = vpack.c.b16 %v9527, %v9523
    %v10236 = vpack.c.b16 %v9528, %v9524
    %v10237 = vpack.c.b16 %v9529, %v9525
    %v10238 = vpack.c.b16 %v9534, %v9530
    %v10239 = vpack.c.b16 %v9535, %v9531
    %v10240 = vpack.c.b16 %v9536, %v9532
    %v10241 = vpack.c.b16 %v9537, %v9533
    %v10242 = vpack.c.b16 %v9542, %v9538
    %v10243 = vpack.c.b16 %v9543, %v9539
    %v10244 = vpack.c.b16 %v9544, %v9540
    %v10245 = vpack.c.b16 %v9545, %v9541
    %v10246 = vpack.c.b16 %v9550, %v9546
    %v10247 = vpack.c.b16 %v9551, %v9547
    %v10248 = vpack.c.b16 %v9552, %v9548
    %v10249 = vpack.c.b16 %v9553, %v9549
    %v10250 = vpack.c.b16 %v9558, %v9554
    %v10251 = vpack.c.b16 %v9559, %v9555
    %v10252 = vpack.c.b16 %v9560, %v9556
    %v10253 = vpack.c.b16 %v9561, %v9557
    %v10254 = vpack.c.b16 %v9566, %v9562
    %v10255 = vpack.c.b16 %v9567, %v9563
    %v10256 = vpack.c.b16 %v9568, %v9564
    %v10257 = vpack.c.b16 %v9569, %v9565
    %v10258 = vpack.c.b16 %v9574, %v9570
    %v10259 = vpack.c.b16 %v9575, %v9571
    %v10260 = vpack.c.b16 %v9576, %v9572
    %v10261 = vpack.c.b16 %v9577, %v9573
    %v10262 = vpack.c.b16 %v9582, %v9578
    %v10263 = vpack.c.b16 %v9583, %v9579
    %v10264 = vpack.c.b16 %v9584, %v9580
    %v10265 = vpack.c.b16 %v9585, %v9581
    %v10266 = vpack.c.b16 %v9590, %v9586
    %v10267 = vpack.c.b16 %v9591, %v9587
    %v10268 = vpack.c.b16 %v9592, %v9588
    %v10269 = vpack.c.b16 %v9593, %v9589
    %v10270 = vpack.c.b16 %v9598, %v9594
    %v10271 = vpack.c.b16 %v9599, %v9595
    %v10272 = vpack.c.b16 %v9600, %v9596
    %v10273 = vpack.c.b16 %v9601, %v9597
    %v10274 = vpack.c.b16 %v9606, %v9602
    %v10275 = vpack.c.b16 %v9607, %v9603
    %v10276 = vpack.c.b16 %v9608, %v9604
    %v10277 = vpack.c.b16 %v9609, %v9605
    %v10278 = vpack.c.b16 %v9614, %v9610
    %v10279 = vpack.c.b16 %v9615, %v9611
    %v10280 = vpack.c.b16 %v9616, %v9612
    %v10281 = vpack.c.b16 %v9617, %v9613
    %v10282 = vpack.c.b16 %v9622, %v9618
    %v10283 = vpack.c.b16 %v9623, %v9619
    %v10284 = vpack.c.b16 %v9624, %v9620
    %v10285 = vpack.c.b16 %v9625, %v9621
    %v10286 = vpack.c.b16 %v9630, %v9626
    %v10287 = vpack.c.b16 %v9631, %v9627
    %v10288 = vpack.c.b16 %v9632, %v9628
    %v10289 = vpack.c.b16 %v9633, %v9629
    %v10290 = vpack.c.b16 %v9638, %v9634
    %v10291 = vpack.c.b16 %v9639, %v9635
    %v10292 = vpack.c.b16 %v9640, %v9636
    %v10293 = vpack.c.b16 %v9641, %v9637
    %v10294 = vpack.c.b16 %v9646, %v9642
    %v10295 = vpack.c.b16 %v9647, %v9643
    %v10296 = vpack.c.b16 %v9648, %v9644
    %v10297 = vpack.c.b16 %v9649, %v9645
    %v10298 = vpack.c.b16 %v9654, %v9650
    %v10299 = vpack.c.b16 %v9655, %v9651
    %v10300 = vpack.c.b16 %v9656, %v9652
    %v10301 = vpack.c.b16 %v9657, %v9653
    %v10302 = vpack.c.b16 %v9662, %v9658
    %v10303 = vpack.c.b16 %v9663, %v9659
    %v10304 = vpack.c.b16 %v9664, %v9660
    %v10305 = vpack.c.b16 %v9665, %v9661
    %v10306 = vpack.c.b16 %v9670, %v9666
    %v10307 = vpack.c.b16 %v9671, %v9667
    %v10308 = vpack.c.b16 %v9672, %v9668
    %v10309 = vpack.c.b16 %v9673, %v9669
    %v10310 = vpack.c.b16 %v9678, %v9674
    %v10311 = vpack.c.b16 %v9679, %v9675
    %v10312 = vpack.c.b16 %v9680, %v9676
    %v10313 = vpack.c.b16 %v9681, %v9677
    %v10314 = vpack.c.b16 %v9686, %v9682
    %v10315 = vpack.c.b16 %v9687, %v9683
    %v10316 = vpack.c.b16 %v9688, %v9684
    %v10317 = vpack.c.b16 %v9689, %v9685
    %v10318 = vpack.c.b16 %v9694, %v9690
    %v10319 = vpack.c.b16 %v9695, %v9691
    %v10320 = vpack.c.b16 %v9696, %v9692
    %v10321 = vpack.c.b16 %v9697, %v9693
    %v10322 = vpack.c.b16 %v9702, %v9698
    %v10323 = vpack.c.b16 %v9703, %v9699
    %v10324 = vpack.c.b16 %v9704, %v9700
    %v10325 = vpack.c.b16 %v9705, %v9701
    %v10326 = vpack.c.b16 %v9710, %v9706
    %v10327 = vpack.c.b16 %v9711, %v9707
    %v10328 = vpack.c.b16 %v9712, %v9708
    %v10329 = vpack.c.b16 %v9713, %v9709
    %v10330 = vpack.c.b16 %v9718, %v9714
    %v10331 = vpack.c.b16 %v9719, %v9715
    %v10332 = vpack.c.b16 %v9720, %v9716
    %v10333 = vpack.c.b16 %v9721, %v9717
    %v10334 = vpack.c.b16 %v9726, %v9722
    %v10335 = vpack.c.b16 %v9727, %v9723
    %v10336 = vpack.c.b16 %v9728, %v9724
    %v10337 = vpack.c.b16 %v9729, %v9725
    %v10338 = vpack.c.b16 %v9734, %v9730
    %v10339 = vpack.c.b16 %v9735, %v9731
    %v10340 = vpack.c.b16 %v9736, %v9732
    %v10341 = vpack.c.b16 %v9737, %v9733
    %v10342 = vpack.c.b16 %v9742, %v9738
    %v10343 = vpack.c.b16 %v9743, %v9739
    %v10344 = vpack.c.b16 %v9744, %v9740
    %v10345 = vpack.c.b16 %v9745, %v9741
    %v10346 = vpack.c.b16 %v9750, %v9746
    %v10347 = vpack.c.b16 %v9751, %v9747
    %v10348 = vpack.c.b16 %v9752, %v9748
    %v10349 = vpack.c.b16 %v9753, %v9749
    %v10350 = vpack.c.b16 %v9758, %v9754
    %v10351 = vpack.c.b16 %v9759, %v9755
    %v10352 = vpack.c.b16 %v9760, %v9756
    %v10353 = vpack.c.b16 %v9761, %v9757
    %v10354 = vpack.c.b16 %v9766, %v9762
    %v10355 = vpack.c.b16 %v9767, %v9763
    %v10356 = vpack.c.b16 %v9768, %v9764
    %v10357 = vpack.c.b16 %v9769, %v9765
    %v10358 = vpack.c.b16 %v9774, %v9770
    %v10359 = vpack.c.b16 %v9775, %v9771
    %v10360 = vpack.c.b16 %v9776, %v9772
    %v10361 = vpack.c.b16 %v9777, %v9773
    %v10362 = vpack.c.b16 %v9782, %v9778
    %v10363 = vpack.c.b16 %v9783, %v9779
    %v10364 = vpack.c.b16 %v9784, %v9780
    %v10365 = vpack.c.b16 %v9785, %v9781
    %v10366 = vpack.c.b16 %v9790, %v9786
    %v10367 = vpack.c.b16 %v9791, %v9787
    %v10368 = vpack.c.b16 %v9792, %v9788
    %v10369 = vpack.c.b16 %v9793, %v9789
    %v10370 = vpack.c.b16 %v9798, %v9794
    %v10371 = vpack.c.b16 %v9799, %v9795
    %v10372 = vpack.c.b16 %v9800, %v9796
    %v10373 = vpack.c.b16 %v9801, %v9797
    %v10374 = vpack.c.b16 %v9806, %v9802
    %v10375 = vpack.c.b16 %v9807, %v9803
    %v10376 = vpack.c.b16 %v9808, %v9804
    %v10377 = vpack.c.b16 %v9809, %v9805
    %v10378 = vpack.c.b16 %v9814, %v9810
    %v10379 = vpack.c.b16 %v9815, %v9811
    %v10380 = vpack.c.b16 %v9816, %v9812
    %v10381 = vpack.c.b16 %v9817, %v9813
    %v10382 = vpack.c.b16 %v9822, %v9818
    %v10383 = vpack.c.b16 %v9823, %v9819
    %v10384 = vpack.c.b16 %v9824, %v9820
    %v10385 = vpack.c.b16 %v9825, %v9821
    %v10386 = vpack.c.b16 %v9830, %v9826
    %v10387 = vpack.c.b16 %v9831, %v9827
    %v10388 = vpack.c.b16 %v9832, %v9828
    %v10389 = vpack.c.b16 %v9833, %v9829
    %v10390 = vpack.c.b16 %v9838, %v9834
    %v10391 = vpack.c.b16 %v9839, %v9835
    %v10392 = vpack.c.b16 %v9840, %v9836
    %v10393 = vpack.c.b16 %v9841, %v9837
    %v10394 = vpack.c.b16 %v9846, %v9842
    %v10395 = vpack.c.b16 %v9847, %v9843
    %v10396 = vpack.c.b16 %v9848, %v9844
    %v10397 = vpack.c.b16 %v9849, %v9845
    %v10398 = vpack.c.b16 %v9854, %v9850
    %v10399 = vpack.c.b16 %v9855, %v9851
    %v10400 = vpack.c.b16 %v9856, %v9852
    %v10401 = vpack.c.b16 %v9857, %v9853
    %v10402 = vpack.c.b16 %v9862, %v9858
    %v10403 = vpack.c.b16 %v9863, %v9859
    %v10404 = vpack.c.b16 %v9864, %v9860
    %v10405 = vpack.c.b16 %v9865, %v9861
    %v10406 = vpack.c.b16 %v9870, %v9866
    %v10407 = vpack.c.b16 %v9871, %v9867
    %v10408 = vpack.c.b16 %v9872, %v9868
    %v10409 = vpack.c.b16 %v9873, %v9869
    %v10410 = vpack.c.b16 %v9878, %v9874
    %v10411 = vpack.c.b16 %v9879, %v9875
    %v10412 = vpack.c.b16 %v9880, %v9876
    %v10413 = vpack.c.b16 %v9881, %v9877
    %v10414 = vpack.c.b16 %v9886, %v9882
    %v10415 = vpack.c.b16 %v9887, %v9883
    %v10416 = vpack.c.b16 %v9888, %v9884
    %v10417 = vpack.c.b16 %v9889, %v9885
    %v10418 = vpack.c.b16 %v9894, %v9890
    %v10419 = vpack.c.b16 %v9895, %v9891
    %v10420 = vpack.c.b16 %v9896, %v9892
    %v10421 = vpack.c.b16 %v9897, %v9893
    %v10422 = vpack.c.b16 %v9902, %v9898
    %v10423 = vpack.c.b16 %v9903, %v9899
    %v10424 = vpack.c.b16 %v9904, %v9900
    %v10425 = vpack.c.b16 %v9905, %v9901
    %v10426 = vpack.c.b16 %v9910, %v9906
    %v10427 = vpack.c.b16 %v9911, %v9907
    %v10428 = vpack.c.b16 %v9912, %v9908
    %v10429 = vpack.c.b16 %v9913, %v9909
    %v10430 = vpack.c.b16 %v9918, %v9914
    %v10431 = vpack.c.b16 %v9919, %v9915
    %v10432 = vpack.c.b16 %v9920, %v9916
    %v10433 = vpack.c.b16 %v9921, %v9917
    %v10434 = vpack.c.b16 %v9926, %v9922
    %v10435 = vpack.c.b16 %v9927, %v9923
    %v10436 = vpack.c.b16 %v9928, %v9924
    %v10437 = vpack.c.b16 %v9929, %v9925
    %v10438 = vpack.c.b16 %v9934, %v9930
    %v10439 = vpack.c.b16 %v9935, %v9931
    %v10440 = vpack.c.b16 %v9936, %v9932
    %v10441 = vpack.c.b16 %v9937, %v9933
    %v10442 = vpack.c.b16 %v9942, %v9938
    %v10443 = vpack.c.b16 %v9943, %v9939
    %v10444 = vpack.c.b16 %v9944, %v9940
    %v10445 = vpack.c.b16 %v9945, %v9941
    %v10446 = vpack.c.b16 %v9950, %v9946
    %v10447 = vpack.c.b16 %v9951, %v9947
    %v10448 = vpack.c.b16 %v9952, %v9948
    %v10449 = vpack.c.b16 %v9953, %v9949
    %v10450 = vpack.c.b16 %v9958, %v9954
    %v10451 = vpack.c.b16 %v9959, %v9955
    %v10452 = vpack.c.b16 %v9960, %v9956
    %v10453 = vpack.c.b16 %v9961, %v9957
    %v10454 = vpack.c.b16 %v9966, %v9962
    %v10455 = vpack.c.b16 %v9967, %v9963
    %v10456 = vpack.c.b16 %v9968, %v9964
    %v10457 = vpack.c.b16 %v9969, %v9965
    %v10458 = vpack.c.b16 %v9974, %v9970
    %v10459 = vpack.c.b16 %v9975, %v9971
    %v10460 = vpack.c.b16 %v9976, %v9972
    %v10461 = vpack.c.b16 %v9977, %v9973
    %v10462 = vpack.c.b16 %v9982, %v9978
    %v10463 = vpack.c.b16 %v9983, %v9979
    %v10464 = vpack.c.b16 %v9984, %v9980
    %v10465 = vpack.c.b16 %v9985, %v9981
    %v10466 = vpack.c.b16 %v9990, %v9986
    %v10467 = vpack.c.b16 %v9991, %v9987
    %v10468 = vpack.c.b16 %v9992, %v9988
    %v10469 = vpack.c.b16 %v9993, %v9989
    %v10470 = vpack.c.b16 %v9998, %v9994
    %v10471 = vpack.c.b16 %v9999, %v9995
    %v10472 = vpack.c.b16 %v10000, %v9996
    %v10473 = vpack.c.b16 %v10001, %v9997
    %v10474 = vpack.c.b16 %v10006, %v10002
    %v10475 = vpack.c.b16 %v10007, %v10003
    %v10476 = vpack.c.b16 %v10008, %v10004
    %v10477 = vpack.c.b16 %v10009, %v10005
    %v10478 = vpack.c.b16 %v10014, %v10010
    %v10479 = vpack.c.b16 %v10015, %v10011
    %v10480 = vpack.c.b16 %v10016, %v10012
    %v10481 = vpack.c.b16 %v10017, %v10013
    %v10482 = vpack.c.b16 %v10022, %v10018
    %v10483 = vpack.c.b16 %v10023, %v10019
    %v10484 = vpack.c.b16 %v10024, %v10020
    %v10485 = vpack.c.b16 %v10025, %v10021
    %v10486 = vpack.c.b16 %v10030, %v10026
    %v10487 = vpack.c.b16 %v10031, %v10027
    %v10488 = vpack.c.b16 %v10032, %v10028
    %v10489 = vpack.c.b16 %v10033, %v10029
    %v10490 = vpack.c.b16 %v10038, %v10034
    %v10491 = vpack.c.b16 %v10039, %v10035
    %v10492 = vpack.c.b16 %v10040, %v10036
    %v10493 = vpack.c.b16 %v10041, %v10037
    %v10494 = vpack.c.b16 %v10046, %v10042
    %v10495 = vpack.c.b16 %v10047, %v10043
    %v10496 = vpack.c.b16 %v10048, %v10044
    %v10497 = vpack.c.b16 %v10049, %v10045
    %10946 = vmatprep.subr.bf16.mxu0 %v10051
    %10947 = vmatpush1.bf16.msra.mxu0 %v10050
    %10948 = vmatprep.subr.bf16.mxu0 %v10055
    %10949 = vmatpush1.bf16.msra.mxu0 %v10054
    %10950 = vmatprep.subr.bf16.mxu0 %v10059
    %10951 = vmatpush1.bf16.msra.mxu0 %v10058
    %10952 = vmatprep.subr.bf16.mxu0 %v10063
    %10953 = vmatpush1.bf16.msra.mxu0 %v10062
    %10954 = vmatprep.subr.bf16.mxu0 %v10067
    %10955 = vmatpush1.bf16.msra.mxu0 %v10066
    %10956 = vmatprep.subr.bf16.mxu0 %v10071
    %10957 = vmatpush1.bf16.msra.mxu0 %v10070
    %10958 = vmatprep.subr.bf16.mxu0 %v10075
    %10959 = vmatpush1.bf16.msra.mxu0 %v10074
    %10960 = vmatprep.subr.bf16.mxu0 %v10079
    %10961 = vmatpush1.bf16.msra.mxu0 %v10078
    %10962 = vmatprep.subr.bf16.mxu0 %v10083
    %10963 = vmatpush1.bf16.msra.mxu0 %v10082
    %10964 = vmatprep.subr.bf16.mxu0 %v10087
    %10965 = vmatpush1.bf16.msra.mxu0 %v10086
    %10966 = vmatprep.subr.bf16.mxu0 %v10091
    %10967 = vmatpush1.bf16.msra.mxu0 %v10090
    %10968 = vmatprep.subr.bf16.mxu0 %v10095
    %10969 = vmatpush1.bf16.msra.mxu0 %v10094
    %10970 = vmatprep.subr.bf16.mxu0 %v10099
    %10971 = vmatpush1.bf16.msra.mxu0 %v10098
    %10972 = vmatprep.subr.bf16.mxu0 %v10103
    %10973 = vmatpush1.bf16.msra.mxu0 %v10102
    %10974 = vmatprep.subr.bf16.mxu0 %v10107
    %10975 = vmatpush1.bf16.msra.mxu0 %v10106
    %10976 = vmatprep.subr.bf16.mxu0 %v10111
    %10977 = vmatpush1.bf16.msra.mxu0 %v10110
    %10978 = vmatprep.mubr.bf16.mxu0 %v8231
    %10979 = vmatmul.mubr.bf16.gmra.mrb[0].mxu0 %v8230
    %v10980 = vpop.f32.mrb[0].mxu0
    %v10981 = vadd.f32 0.0, %v10980
    %v10982 = vpop.f32.mrb[0].mxu0
    %v10983 = vadd.f32 0.0, %v10982
    %v10984 = vpop.f32.mrb[0].mxu0
    %v10985 = vadd.f32 0.0, %v10984
    %v10986 = vpop.f32.mrb[0].mxu0
    %v10987 = vadd.f32 0.0, %v10986
    %10988 = vmatprep.mubr.bf16.mxu0 %v8233
    %10989 = vmatmul.mubr.bf16.gmra.mrb[0].mxu0 %v8232
    %v10990 = vpop.f32.mrb[0].mxu0
    %v10991 = vadd.f32 0.0, %v10990
    %v10992 = vpop.f32.mrb[0].mxu0
    %v10993 = vadd.f32 0.0, %v10992
    %v10994 = vpop.f32.mrb[0].mxu0
    %v10995 = vadd.f32 0.0, %v10994
    %v10996 = vpop.f32.mrb[0].mxu0
    %v10997 = vadd.f32 0.0, %v10996
    %10998 = vdwg.mxu0
    %10999 = vmatprep.subr.bf16.mxu0 %v10115
    %11000 = vmatpush1.bf16.msra.mxu0 %v10114
    %11001 = vmatprep.subr.bf16.mxu0 %v10119
    %11002 = vmatpush1.bf16.msra.mxu0 %v10118
    %11003 = vmatprep.subr.bf16.mxu0 %v10123
    %11004 = vmatpush1.bf16.msra.mxu0 %v10122
    %11005 = vmatprep.subr.bf16.mxu0 %v10127
    %11006 = vmatpush1.bf16.msra.mxu0 %v10126
    %11007 = vmatprep.subr.bf16.mxu0 %v10131
    %11008 = vmatpush1.bf16.msra.mxu0 %v10130
    %11009 = vmatprep.subr.bf16.mxu0 %v10135
    %11010 = vmatpush1.bf16.msra.mxu0 %v10134
    %11011 = vmatprep.subr.bf16.mxu0 %v10139
    %11012 = vmatpush1.bf16.msra.mxu0 %v10138
    %11013 = vmatprep.subr.bf16.mxu0 %v10143
    %11014 = vmatpush1.bf16.msra.mxu0 %v10142
    %11015 = vmatprep.subr.bf16.mxu0 %v10147
    %11016 = vmatpush1.bf16.msra.mxu0 %v10146
    %11017 = vmatprep.subr.bf16.mxu0 %v10151
    %11018 = vmatpush1.bf16.msra.mxu0 %v10150
    %11019 = vmatprep.subr.bf16.mxu0 %v10155
    %11020 = vmatpush1.bf16.msra.mxu0 %v10154
    %11021 = vmatprep.subr.bf16.mxu0 %v10159
    %11022 = vmatpush1.bf16.msra.mxu0 %v10158
    %11023 = vmatprep.subr.bf16.mxu0 %v10163
    %11024 = vmatpush1.bf16.msra.mxu0 %v10162
    %11025 = vmatprep.subr.bf16.mxu0 %v10167
    %11026 = vmatpush1.bf16.msra.mxu0 %v10166
    %11027 = vmatprep.subr.bf16.mxu0 %v10171
    %11028 = vmatpush1.bf16.msra.mxu0 %v10170
    %11029 = vmatprep.subr.bf16.mxu0 %v10175
    %11030 = vmatpush1.bf16.msra.mxu0 %v10174
    %11031 = vmatprep.mubr.bf16.mxu0 %v8235
    %11032 = vmatmul.mubr.bf16.gmra.mrb[0].mxu0 %v8234
    %v11033 = vpop.f32.mrb[0].mxu0
    %v11034 = vadd.f32 %v10981, %v11033
    %v11035 = vpop.f32.mrb[0].mxu0
    %v11036 = vadd.f32 %v10983, %v11035
    %v11037 = vpop.f32.mrb[0].mxu0
    %v11038 = vadd.f32 %v10985, %v11037
    %v11039 = vpop.f32.mrb[0].mxu0
    %v11040 = vadd.f32 %v10987, %v11039
    %11041 = vmatprep.mubr.bf16.mxu0 %v8237
    %11042 = vmatmul.mubr.bf16.gmra.mrb[0].mxu0 %v8236
    %v11043 = vpop.f32.mrb[0].mxu0
    %v11044 = vadd.f32 %v10991, %v11043
    %v11045 = vpop.f32.mrb[0].mxu0
    %v11046 = vadd.f32 %v10993, %v11045
    %v11047 = vpop.f32.mrb[0].mxu0
    %v11048 = vadd.f32 %v10995, %v11047
    %v11049 = vpop.f32.mrb[0].mxu0
    %v11050 = vadd.f32 %v10997, %v11049
    %11051 = vdwg.mxu0
    %11052 = vmatprep.subr.bf16.mxu0 %v10179
    %11053 = vmatpush1.bf16.msra.mxu0 %v10178
    %11054 = vmatprep.subr.bf16.mxu0 %v10183
    %11055 = vmatpush1.bf16.msra.mxu0 %v10182
    %11056 = vmatprep.subr.bf16.mxu0 %v10187
    %11057 = vmatpush1.bf16.msra.mxu0 %v10186
    %11058 = vmatprep.subr.bf16.mxu0 %v10191
    %11059 = vmatpush1.bf16.msra.mxu0 %v10190
    %11060 = vmatprep.subr.bf16.mxu0 %v10195
    %11061 = vmatpush1.bf16.msra.mxu0 %v10194
    %11062 = vmatprep.subr.bf16.mxu0 %v10199
    %11063 = vmatpush1.bf16.msra.mxu0 %v10198
    %11064 = vmatprep.subr.bf16.mxu0 %v10203
    %11065 = vmatpush1.bf16.msra.mxu0 %v10202
    %11066 = vmatprep.subr.bf16.mxu0 %v10207
    %11067 = vmatpush1.bf16.msra.mxu0 %v10206
    %11068 = vmatprep.subr.bf16.mxu0 %v10211
    %11069 = vmatpush1.bf16.msra.mxu0 %v10210
    %11070 = vmatprep.subr.bf16.mxu0 %v10215
    %11071 = vmatpush1.bf16.msra.mxu0 %v10214
    %11072 = vmatprep.subr.bf16.mxu0 %v10219
    %11073 = vmatpush1.bf16.msra.mxu0 %v10218
    %11074 = vmatprep.subr.bf16.mxu0 %v10223
    %11075 = vmatpush1.bf16.msra.mxu0 %v10222
    %11076 = vmatprep.subr.bf16.mxu0 %v10227
    %11077 = vmatpush1.bf16.msra.mxu0 %v10226
    %11078 = vmatprep.subr.bf16.mxu0 %v10231
    %11079 = vmatpush1.bf16.msra.mxu0 %v10230
    %11080 = vmatprep.subr.bf16.mxu0 %v10235
    %11081 = vmatpush1.bf16.msra.mxu0 %v10234
    %11082 = vmatprep.subr.bf16.mxu0 %v10239
    %11083 = vmatpush1.bf16.msra.mxu0 %v10238
    %11084 = vmatprep.mubr.bf16.mxu0 %v8239
    %11085 = vmatmul.mubr.bf16.gmra.mrb[0].mxu0 %v8238
    %v11086 = vpop.f32.mrb[0].mxu0
    %v11087 = vadd.f32 %v11034, %v11086
    %v11088 = vpop.f32.mrb[0].mxu0
    %v11089 = vadd.f32 %v11036, %v11088
    %v11090 = vpop.f32.mrb[0].mxu0
    %v11091 = vadd.f32 %v11038, %v11090
    %v11092 = vpop.f32.mrb[0].mxu0
    %v11093 = vadd.f32 %v11040, %v11092
    %11094 = vmatprep.mubr.bf16.mxu0 %v8241
    %11095 = vmatmul.mubr.bf16.gmra.mrb[0].mxu0 %v8240
    %v11096 = vpop.f32.mrb[0].mxu0
    %v11097 = vadd.f32 %v11044, %v11096
    %v11098 = vpop.f32.mrb[0].mxu0
    %v11099 = vadd.f32 %v11046, %v11098
    %v11100 = vpop.f32.mrb[0].mxu0
    %v11101 = vadd.f32 %v11048, %v11100
    %v11102 = vpop.f32.mrb[0].mxu0
    %v11103 = vadd.f32 %v11050, %v11102
    %11104 = vdwg.mxu0
    %11105 = vmatprep.subr.bf16.mxu0 %v10243
    %11106 = vmatpush1.bf16.msra.mxu0 %v10242
    %11107 = vmatprep.subr.bf16.mxu0 %v10247
    %11108 = vmatpush1.bf16.msra.mxu0 %v10246
    %11109 = vmatprep.subr.bf16.mxu0 %v10251
    %11110 = vmatpush1.bf16.msra.mxu0 %v10250
    %11111 = vmatprep.subr.bf16.mxu0 %v10255
    %11112 = vmatpush1.bf16.msra.mxu0 %v10254
    %11113 = vmatprep.subr.bf16.mxu0 %v10259
    %11114 = vmatpush1.bf16.msra.mxu0 %v10258
    %11115 = vmatprep.subr.bf16.mxu0 %v10263
    %11116 = vmatpush1.bf16.msra.mxu0 %v10262
    %11117 = vmatprep.subr.bf16.mxu0 %v10267
    %11118 = vmatpush1.bf16.msra.mxu0 %v10266
    %11119 = vmatprep.subr.bf16.mxu0 %v10271
    %11120 = vmatpush1.bf16.msra.mxu0 %v10270
    %11121 = vmatprep.subr.bf16.mxu0 %v10275
    %11122 = vmatpush1.bf16.msra.mxu0 %v10274
    %11123 = vmatprep.subr.bf16.mxu0 %v10279
    %11124 = vmatpush1.bf16.msra.mxu0 %v10278
    %11125 = vmatprep.subr.bf16.mxu0 %v10283
    %11126 = vmatpush1.bf16.msra.mxu0 %v10282
    %11127 = vmatprep.subr.bf16.mxu0 %v10287
    %11128 = vmatpush1.bf16.msra.mxu0 %v10286
    %11129 = vmatprep.subr.bf16.mxu0 %v10291
    %11130 = vmatpush1.bf16.msra.mxu0 %v10290
    %11131 = vmatprep.subr.bf16.mxu0 %v10295
    %11132 = vmatpush1.bf16.msra.mxu0 %v10294
    %11133 = vmatprep.subr.bf16.mxu0 %v10299
    %11134 = vmatpush1.bf16.msra.mxu0 %v10298
    %11135 = vmatprep.subr.bf16.mxu0 %v10303
    %11136 = vmatpush1.bf16.msra.mxu0 %v10302
    %11137 = vmatprep.mubr.bf16.mxu0 %v8243
    %11138 = vmatmul.mubr.bf16.gmra.mrb[0].mxu0 %v8242
    %v11139 = vpop.f32.mrb[0].mxu0
    %v11140 = vadd.f32 %v11087, %v11139
    %v11141 = vpop.f32.mrb[0].mxu0
    %v11142 = vadd.f32 %v11089, %v11141
    %v11143 = vpop.f32.mrb[0].mxu0
    %v11144 = vadd.f32 %v11091, %v11143
    %v11145 = vpop.f32.mrb[0].mxu0
    %v11146 = vadd.f32 %v11093, %v11145
    %11147 = vmatprep.mubr.bf16.mxu0 %v8245
    %11148 = vmatmul.mubr.bf16.gmra.mrb[0].mxu0 %v8244
    %v11149 = vpop.f32.mrb[0].mxu0
    %v11150 = vadd.f32 %v11097, %v11149
    %v11151 = vpop.f32.mrb[0].mxu0
    %v11152 = vadd.f32 %v11099, %v11151
    %v11153 = vpop.f32.mrb[0].mxu0
    %v11154 = vadd.f32 %v11101, %v11153
    %v11155 = vpop.f32.mrb[0].mxu0
    %v11156 = vadd.f32 %v11103, %v11155
    %11157 = vdwg.mxu0
    %11158 = vmatprep.subr.bf16.mxu0 %v10307
    %11159 = vmatpush1.bf16.msra.mxu0 %v10306
    %11160 = vmatprep.subr.bf16.mxu0 %v10311
    %11161 = vmatpush1.bf16.msra.mxu0 %v10310
    %11162 = vmatprep.subr.bf16.mxu0 %v10315
    %11163 = vmatpush1.bf16.msra.mxu0 %v10314
    %11164 = vmatprep.subr.bf16.mxu0 %v10319
    %11165 = vmatpush1.bf16.msra.mxu0 %v10318
    %11166 = vmatprep.subr.bf16.mxu0 %v10323
    %11167 = vmatpush1.bf16.msra.mxu0 %v10322
    %11168 = vmatprep.subr.bf16.mxu0 %v10327
    %11169 = vmatpush1.bf16.msra.mxu0 %v10326
    %11170 = vmatprep.subr.bf16.mxu0 %v10331
    %11171 = vmatpush1.bf16.msra.mxu0 %v10330
    %11172 = vmatprep.subr.bf16.mxu0 %v10335
    %11173 = vmatpush1.bf16.msra.mxu0 %v10334
    %11174 = vmatprep.subr.bf16.mxu0 %v10339
    %11175 = vmatpush1.bf16.msra.mxu0 %v10338
    %11176 = vmatprep.subr.bf16.mxu0 %v10343
    %11177 = vmatpush1.bf16.msra.mxu0 %v10342
    %11178 = vmatprep.subr.bf16.mxu0 %v10347
    %11179 = vmatpush1.bf16.msra.mxu0 %v10346
    %11180 = vmatprep.subr.bf16.mxu0 %v10351
    %11181 = vmatpush1.bf16.msra.mxu0 %v10350
    %11182 = vmatprep.subr.bf16.mxu0 %v10355
    %11183 = vmatpush1.bf16.msra.mxu0 %v10354
    %11184 = vmatprep.subr.bf16.mxu0 %v10359
    %11185 = vmatpush1.bf16.msra.mxu0 %v10358
    %11186 = vmatprep.subr.bf16.mxu0 %v10363
    %11187 = vmatpush1.bf16.msra.mxu0 %v10362
    %11188 = vmatprep.subr.bf16.mxu0 %v10367
    %11189 = vmatpush1.bf16.msra.mxu0 %v10366
    %11190 = vmatprep.mubr.bf16.mxu0 %v8247
    %11191 = vmatmul.mubr.bf16.gmra.mrb[0].mxu0 %v8246
    %v11192 = vpop.f32.mrb[0].mxu0
    %v11193 = vadd.f32 %v11140, %v11192
    %v11194 = vpop.f32.mrb[0].mxu0
    %v11195 = vadd.f32 %v11142, %v11194
    %v11196 = vpop.f32.mrb[0].mxu0
    %v11197 = vadd.f32 %v11144, %v11196
    %v11198 = vpop.f32.mrb[0].mxu0
    %v11199 = vadd.f32 %v11146, %v11198
    %11200 = vmatprep.mubr.bf16.mxu0 %v8249
    %11201 = vmatmul.mubr.bf16.gmra.mrb[0].mxu0 %v8248
    %v11202 = vpop.f32.mrb[0].mxu0
    %v11203 = vadd.f32 %v11150, %v11202
    %v11204 = vpop.f32.mrb[0].mxu0
    %v11205 = vadd.f32 %v11152, %v11204
    %v11206 = vpop.f32.mrb[0].mxu0
    %v11207 = vadd.f32 %v11154, %v11206
    %v11208 = vpop.f32.mrb[0].mxu0
    %v11209 = vadd.f32 %v11156, %v11208
    %11210 = vdwg.mxu0
    %11211 = vmatprep.subr.bf16.mxu0 %v10371
    %11212 = vmatpush1.bf16.msra.mxu0 %v10370
    %11213 = vmatprep.subr.bf16.mxu0 %v10375
    %11214 = vmatpush1.bf16.msra.mxu0 %v10374
    %11215 = vmatprep.subr.bf16.mxu0 %v10379
    %11216 = vmatpush1.bf16.msra.mxu0 %v10378
    %11217 = vmatprep.subr.bf16.mxu0 %v10383
    %11218 = vmatpush1.bf16.msra.mxu0 %v10382
    %11219 = vmatprep.subr.bf16.mxu0 %v10387
    %11220 = vmatpush1.bf16.msra.mxu0 %v10386
    %11221 = vmatprep.subr.bf16.mxu0 %v10391
    %11222 = vmatpush1.bf16.msra.mxu0 %v10390
    %11223 = vmatprep.subr.bf16.mxu0 %v10395
    %11224 = vmatpush1.bf16.msra.mxu0 %v10394
    %11225 = vmatprep.subr.bf16.mxu0 %v10399
    %11226 = vmatpush1.bf16.msra.mxu0 %v10398
    %11227 = vmatprep.subr.bf16.mxu0 %v10403
    %11228 = vmatpush1.bf16.msra.mxu0 %v10402
    %11229 = vmatprep.subr.bf16.mxu0 %v10407
    %11230 = vmatpush1.bf16.msra.mxu0 %v10406
    %11231 = vmatprep.subr.bf16.mxu0 %v10411
    %11232 = vmatpush1.bf16.msra.mxu0 %v10410
    %11233 = vmatprep.subr.bf16.mxu0 %v10415
    %11234 = vmatpush1.bf16.msra.mxu0 %v10414
    %11235 = vmatprep.subr.bf16.mxu0 %v10419
    %11236 = vmatpush1.bf16.msra.mxu0 %v10418
    %11237 = vmatprep.subr.bf16.mxu0 %v10423
    %11238 = vmatpush1.bf16.msra.mxu0 %v10422
    %11239 = vmatprep.subr.bf16.mxu0 %v10427
    %11240 = vmatpush1.bf16.msra.mxu0 %v10426
    %11241 = vmatprep.subr.bf16.mxu0 %v10431
    %11242 = vmatpush1.bf16.msra.mxu0 %v10430
    %11243 = vmatprep.mubr.bf16.mxu0 %v8251
    %11244 = vmatmul.mubr.bf16.gmra.mrb[0].mxu0 %v8250
    %v11245 = vpop.f32.mrb[0].mxu0
    %v11246 = vadd.f32 %v11193, %v11245
    %v11247 = vpop.f32.mrb[0].mxu0
    %v11248 = vadd.f32 %v11195, %v11247
    %v11249 = vpop.f32.mrb[0].mxu0
    %v11250 = vadd.f32 %v11197, %v11249
    %v11251 = vpop.f32.mrb[0].mxu0
    %v11252 = vadd.f32 %v11199, %v11251
    %11253 = vmatprep.mubr.bf16.mxu0 %v8253
    %11254 = vmatmul.mubr.bf16.gmra.mrb[0].mxu0 %v8252
    %v11255 = vpop.f32.mrb[0].mxu0
    %v11256 = vadd.f32 %v11203, %v11255
    %v11257 = vpop.f32.mrb[0].mxu0
    %v11258 = vadd.f32 %v11205, %v11257
    %v11259 = vpop.f32.mrb[0].mxu0
    %v11260 = vadd.f32 %v11207, %v11259
    %v11261 = vpop.f32.mrb[0].mxu0
    %v11262 = vadd.f32 %v11209, %v11261
    %11263 = vdwg.mxu0
    %11264 = vmatprep.subr.bf16.mxu0 %v10435
    %11265 = vmatpush1.bf16.msra.mxu0 %v10434
    %11266 = vmatprep.subr.bf16.mxu0 %v10439
    %11267 = vmatpush1.bf16.msra.mxu0 %v10438
    %11268 = vmatprep.subr.bf16.mxu0 %v10443
    %11269 = vmatpush1.bf16.msra.mxu0 %v10442
    %11270 = vmatprep.subr.bf16.mxu0 %v10447
    %11271 = vmatpush1.bf16.msra.mxu0 %v10446
    %11272 = vmatprep.subr.bf16.mxu0 %v10451
    %11273 = vmatpush1.bf16.msra.mxu0 %v10450
    %11274 = vmatprep.subr.bf16.mxu0 %v10455
    %11275 = vmatpush1.bf16.msra.mxu0 %v10454
    %11276 = vmatprep.subr.bf16.mxu0 %v10459
    %11277 = vmatpush1.bf16.msra.mxu0 %v10458
    %11278 = vmatprep.subr.bf16.mxu0 %v10463
    %11279 = vmatpush1.bf16.msra.mxu0 %v10462
    %11280 = vmatprep.subr.bf16.mxu0 %v10467
    %11281 = vmatpush1.bf16.msra.mxu0 %v10466
    %11282 = vmatprep.subr.bf16.mxu0 %v10471
    %11283 = vmatpush1.bf16.msra.mxu0 %v10470
    %11284 = vmatprep.subr.bf16.mxu0 %v10475
    %11285 = vmatpush1.bf16.msra.mxu0 %v10474
    %11286 = vmatprep.subr.bf16.mxu0 %v10479
    %11287 = vmatpush1.bf16.msra.mxu0 %v10478
    %11288 = vmatprep.subr.bf16.mxu0 %v10483
    %11289 = vmatpush1.bf16.msra.mxu0 %v10482
    %11290 = vmatprep.subr.bf16.mxu0 %v10487
    %11291 = vmatpush1.bf16.msra.mxu0 %v10486
    %11292 = vmatprep.subr.bf16.mxu0 %v10491
    %11293 = vmatpush1.bf16.msra.mxu0 %v10490
    %11294 = vmatprep.subr.bf16.mxu0 %v10495
    %11295 = vmatpush1.bf16.msra.mxu0 %v10494
    %11296 = vmatprep.mubr.bf16.mxu0 %v8255
    %11297 = vmatmul.mubr.bf16.gmra.mrb[0].mxu0 %v8254
    %v11298 = vpop.f32.mrb[0].mxu0
    %v11299 = vadd.f32 %v11246, %v11298
    %v11300 = vpop.f32.mrb[0].mxu0
    %v11301 = vadd.f32 %v11248, %v11300
    %v11302 = vpop.f32.mrb[0].mxu0
    %v11303 = vadd.f32 %v11250, %v11302
    %v11304 = vpop.f32.mrb[0].mxu0
    %v11305 = vadd.f32 %v11252, %v11304
    %11306 = vmatprep.mubr.bf16.mxu0 %v8257
    %11307 = vmatmul.mubr.bf16.gmra.mrb[0].mxu0 %v8256
    %v11308 = vpop.f32.mrb[0].mxu0
    %v11309 = vadd.f32 %v11256, %v11308
    %v11310 = vpop.f32.mrb[0].mxu0
    %v11311 = vadd.f32 %v11258, %v11310
    %v11312 = vpop.f32.mrb[0].mxu0
    %v11313 = vadd.f32 %v11260, %v11312
    %v11314 = vpop.f32.mrb[0].mxu0
    %v11315 = vadd.f32 %v11262, %v11314
    %11316 = vdwg.mxu0
    %11317 = vmatprep.subr.bf16.mxu0 %v10053
    %11318 = vmatpush1.bf16.msra.mxu0 %v10052
    %11319 = vmatprep.subr.bf16.mxu0 %v10057
    %11320 = vmatpush1.bf16.msra.mxu0 %v10056
    %11321 = vmatprep.subr.bf16.mxu0 %v10061
    %11322 = vmatpush1.bf16.msra.mxu0 %v10060
    %11323 = vmatprep.subr.bf16.mxu0 %v10065
    %11324 = vmatpush1.bf16.msra.mxu0 %v10064
    %11325 = vmatprep.subr.bf16.mxu0 %v10069
    %11326 = vmatpush1.bf16.msra.mxu0 %v10068
    %11327 = vmatprep.subr.bf16.mxu0 %v10073
    %11328 = vmatpush1.bf16.msra.mxu0 %v10072
    %11329 = vmatprep.subr.bf16.mxu0 %v10077
    %11330 = vmatpush1.bf16.msra.mxu0 %v10076
    %11331 = vmatprep.subr.bf16.mxu0 %v10081
    %11332 = vmatpush1.bf16.msra.mxu0 %v10080
    %11333 = vmatprep.subr.bf16.mxu0 %v10085
    %11334 = vmatpush1.bf16.msra.mxu0 %v10084
    %11335 = vmatprep.subr.bf16.mxu0 %v10089
    %11336 = vmatpush1.bf16.msra.mxu0 %v10088
    %11337 = vmatprep.subr.bf16.mxu0 %v10093
    %11338 = vmatpush1.bf16.msra.mxu0 %v10092
    %11339 = vmatprep.subr.bf16.mxu0 %v10097
    %11340 = vmatpush1.bf16.msra.mxu0 %v10096
    %11341 = vmatprep.subr.bf16.mxu0 %v10101
    %11342 = vmatpush1.bf16.msra.mxu0 %v10100
    %11343 = vmatprep.subr.bf16.mxu0 %v10105
    %11344 = vmatpush1.bf16.msra.mxu0 %v10104
    %11345 = vmatprep.subr.bf16.mxu0 %v10109
    %11346 = vmatpush1.bf16.msra.mxu0 %v10108
    %11347 = vmatprep.subr.bf16.mxu0 %v10113
    %11348 = vmatpush1.bf16.msra.mxu0 %v10112
    %11349 = vmatprep.mubr.bf16.mxu0 %v8231
    %11350 = vmatmul.mubr.bf16.gmra.mrb[0].mxu0 %v8230
    %v11351 = vpop.f32.mrb[0].mxu0
    %v11352 = vadd.f32 0.0, %v11351
    %v11353 = vpop.f32.mrb[0].mxu0
    %v11354 = vadd.f32 0.0, %v11353
    %v11355 = vpop.f32.mrb[0].mxu0
    %v11356 = vadd.f32 0.0, %v11355
    %v11357 = vpop.f32.mrb[0].mxu0
    %v11358 = vadd.f32 0.0, %v11357
    %11359 = vmatprep.mubr.bf16.mxu0 %v8233
    %11360 = vmatmul.mubr.bf16.gmra.mrb[0].mxu0 %v8232
    %v11361 = vpop.f32.mrb[0].mxu0
    %v11362 = vadd.f32 0.0, %v11361
    %v11363 = vpop.f32.mrb[0].mxu0
    %v11364 = vadd.f32 0.0, %v11363
    %v11365 = vpop.f32.mrb[0].mxu0
    %v11366 = vadd.f32 0.0, %v11365
    %v11367 = vpop.f32.mrb[0].mxu0
    %v11368 = vadd.f32 0.0, %v11367
    %11369 = vdwg.mxu0
    %11370 = vmatprep.subr.bf16.mxu0 %v10117
    %11371 = vmatpush1.bf16.msra.mxu0 %v10116
    %11372 = vmatprep.subr.bf16.mxu0 %v10121
    %11373 = vmatpush1.bf16.msra.mxu0 %v10120
    %11374 = vmatprep.subr.bf16.mxu0 %v10125
    %11375 = vmatpush1.bf16.msra.mxu0 %v10124
    %11376 = vmatprep.subr.bf16.mxu0 %v10129
    %11377 = vmatpush1.bf16.msra.mxu0 %v10128
    %11378 = vmatprep.subr.bf16.mxu0 %v10133
    %11379 = vmatpush1.bf16.msra.mxu0 %v10132
    %11380 = vmatprep.subr.bf16.mxu0 %v10137
    %11381 = vmatpush1.bf16.msra.mxu0 %v10136
    %11382 = vmatprep.subr.bf16.mxu0 %v10141
    %11383 = vmatpush1.bf16.msra.mxu0 %v10140
    %11384 = vmatprep.subr.bf16.mxu0 %v10145
    %11385 = vmatpush1.bf16.msra.mxu0 %v10144
    %11386 = vmatprep.subr.bf16.mxu0 %v10149
    %11387 = vmatpush1.bf16.msra.mxu0 %v10148
    %11388 = vmatprep.subr.bf16.mxu0 %v10153
    %11389 = vmatpush1.bf16.msra.mxu0 %v10152
    %11390 = vmatprep.subr.bf16.mxu0 %v10157
    %11391 = vmatpush1.bf16.msra.mxu0 %v10156
    %11392 = vmatprep.subr.bf16.mxu0 %v10161
    %11393 = vmatpush1.bf16.msra.mxu0 %v10160
    %11394 = vmatprep.subr.bf16.mxu0 %v10165
    %11395 = vmatpush1.bf16.msra.mxu0 %v10164
    %11396 = vmatprep.subr.bf16.mxu0 %v10169
    %11397 = vmatpush1.bf16.msra.mxu0 %v10168
    %11398 = vmatprep.subr.bf16.mxu0 %v10173
    %11399 = vmatpush1.bf16.msra.mxu0 %v10172
    %11400 = vmatprep.subr.bf16.mxu0 %v10177
    %11401 = vmatpush1.bf16.msra.mxu0 %v10176
    %11402 = vmatprep.mubr.bf16.mxu0 %v8235
    %11403 = vmatmul.mubr.bf16.gmra.mrb[0].mxu0 %v8234
    %v11404 = vpop.f32.mrb[0].mxu0
    %v11405 = vadd.f32 %v11352, %v11404
    %v11406 = vpop.f32.mrb[0].mxu0
    %v11407 = vadd.f32 %v11354, %v11406
    %v11408 = vpop.f32.mrb[0].mxu0
    %v11409 = vadd.f32 %v11356, %v11408
    %v11410 = vpop.f32.mrb[0].mxu0
    %v11411 = vadd.f32 %v11358, %v11410
    %11412 = vmatprep.mubr.bf16.mxu0 %v8237
    %11413 = vmatmul.mubr.bf16.gmra.mrb[0].mxu0 %v8236
    %v11414 = vpop.f32.mrb[0].mxu0
    %v11415 = vadd.f32 %v11362, %v11414
    %v11416 = vpop.f32.mrb[0].mxu0
    %v11417 = vadd.f32 %v11364, %v11416
    %v11418 = vpop.f32.mrb[0].mxu0
    %v11419 = vadd.f32 %v11366, %v11418
    %v11420 = vpop.f32.mrb[0].mxu0
    %v11421 = vadd.f32 %v11368, %v11420
    %11422 = vdwg.mxu0
    %11423 = vmatprep.subr.bf16.mxu0 %v10181
    %11424 = vmatpush1.bf16.msra.mxu0 %v10180
    %11425 = vmatprep.subr.bf16.mxu0 %v10185
    %11426 = vmatpush1.bf16.msra.mxu0 %v10184
    %11427 = vmatprep.subr.bf16.mxu0 %v10189
    %11428 = vmatpush1.bf16.msra.mxu0 %v10188
    %11429 = vmatprep.subr.bf16.mxu0 %v10193
    %11430 = vmatpush1.bf16.msra.mxu0 %v10192
    %11431 = vmatprep.subr.bf16.mxu0 %v10197
    %11432 = vmatpush1.bf16.msra.mxu0 %v10196
    %11433 = vmatprep.subr.bf16.mxu0 %v10201
    %11434 = vmatpush1.bf16.msra.mxu0 %v10200
    %11435 = vmatprep.subr.bf16.mxu0 %v10205
    %11436 = vmatpush1.bf16.msra.mxu0 %v10204
    %11437 = vmatprep.subr.bf16.mxu0 %v10209
    %11438 = vmatpush1.bf16.msra.mxu0 %v10208
    %11439 = vmatprep.subr.bf16.mxu0 %v10213
    %11440 = vmatpush1.bf16.msra.mxu0 %v10212
    %11441 = vmatprep.subr.bf16.mxu0 %v10217
    %11442 = vmatpush1.bf16.msra.mxu0 %v10216
    %11443 = vmatprep.subr.bf16.mxu0 %v10221
    %11444 = vmatpush1.bf16.msra.mxu0 %v10220
    %11445 = vmatprep.subr.bf16.mxu0 %v10225
    %11446 = vmatpush1.bf16.msra.mxu0 %v10224
    %11447 = vmatprep.subr.bf16.mxu0 %v10229
    %11448 = vmatpush1.bf16.msra.mxu0 %v10228
    %11449 = vmatprep.subr.bf16.mxu0 %v10233
    %11450 = vmatpush1.bf16.msra.mxu0 %v10232
    %11451 = vmatprep.subr.bf16.mxu0 %v10237
    %11452 = vmatpush1.bf16.msra.mxu0 %v10236
    %11453 = vmatprep.subr.bf16.mxu0 %v10241
    %11454 = vmatpush1.bf16.msra.mxu0 %v10240
    %11455 = vmatprep.mubr.bf16.mxu0 %v8239
    %11456 = vmatmul.mubr.bf16.gmra.mrb[0].mxu0 %v8238
    %v11457 = vpop.f32.mrb[0].mxu0
    %v11458 = vadd.f32 %v11405, %v11457
    %v11459 = vpop.f32.mrb[0].mxu0
    %v11460 = vadd.f32 %v11407, %v11459
    %v11461 = vpop.f32.mrb[0].mxu0
    %v11462 = vadd.f32 %v11409, %v11461
    %v11463 = vpop.f32.mrb[0].mxu0
    %v11464 = vadd.f32 %v11411, %v11463
    %11465 = vmatprep.mubr.bf16.mxu0 %v8241
    %11466 = vmatmul.mubr.bf16.gmra.mrb[0].mxu0 %v8240
    %v11467 = vpop.f32.mrb[0].mxu0
    %v11468 = vadd.f32 %v11415, %v11467
    %v11469 = vpop.f32.mrb[0].mxu0
    %v11470 = vadd.f32 %v11417, %v11469
    %v11471 = vpop.f32.mrb[0].mxu0
    %v11472 = vadd.f32 %v11419, %v11471
    %v11473 = vpop.f32.mrb[0].mxu0
    %v11474 = vadd.f32 %v11421, %v11473
    %11475 = vdwg.mxu0
    %11476 = vmatprep.subr.bf16.mxu0 %v10245
    %11477 = vmatpush1.bf16.msra.mxu0 %v10244
    %11478 = vmatprep.subr.bf16.mxu0 %v10249
    %11479 = vmatpush1.bf16.msra.mxu0 %v10248
    %11480 = vmatprep.subr.bf16.mxu0 %v10253
    %11481 = vmatpush1.bf16.msra.mxu0 %v10252
    %11482 = vmatprep.subr.bf16.mxu0 %v10257
    %11483 = vmatpush1.bf16.msra.mxu0 %v10256
    %11484 = vmatprep.subr.bf16.mxu0 %v10261
    %11485 = vmatpush1.bf16.msra.mxu0 %v10260
    %11486 = vmatprep.subr.bf16.mxu0 %v10265
    %11487 = vmatpush1.bf16.msra.mxu0 %v10264
    %11488 = vmatprep.subr.bf16.mxu0 %v10269
    %11489 = vmatpush1.bf16.msra.mxu0 %v10268
    %11490 = vmatprep.subr.bf16.mxu0 %v10273
    %11491 = vmatpush1.bf16.msra.mxu0 %v10272
    %11492 = vmatprep.subr.bf16.mxu0 %v10277
    %11493 = vmatpush1.bf16.msra.mxu0 %v10276
    %11494 = vmatprep.subr.bf16.mxu0 %v10281
    %11495 = vmatpush1.bf16.msra.mxu0 %v10280
    %11496 = vmatprep.subr.bf16.mxu0 %v10285
    %11497 = vmatpush1.bf16.msra.mxu0 %v10284
    %11498 = vmatprep.subr.bf16.mxu0 %v10289
    %11499 = vmatpush1.bf16.msra.mxu0 %v10288
    %11500 = vmatprep.subr.bf16.mxu0 %v10293
    %11501 = vmatpush1.bf16.msra.mxu0 %v10292
    %11502 = vmatprep.subr.bf16.mxu0 %v10297
    %11503 = vmatpush1.bf16.msra.mxu0 %v10296
    %11504 = vmatprep.subr.bf16.mxu0 %v10301
    %11505 = vmatpush1.bf16.msra.mxu0 %v10300
    %11506 = vmatprep.subr.bf16.mxu0 %v10305
    %11507 = vmatpush1.bf16.msra.mxu0 %v10304
    %11508 = vmatprep.mubr.bf16.mxu0 %v8243
    %11509 = vmatmul.mubr.bf16.gmra.mrb[0].mxu0 %v8242
    %v11510 = vpop.f32.mrb[0].mxu0
    %v11511 = vadd.f32 %v11458, %v11510
    %v11512 = vpop.f32.mrb[0].mxu0
    %v11513 = vadd.f32 %v11460, %v11512
    %v11514 = vpop.f32.mrb[0].mxu0
    %v11515 = vadd.f32 %v11462, %v11514
    %v11516 = vpop.f32.mrb[0].mxu0
    %v11517 = vadd.f32 %v11464, %v11516
    %11518 = vmatprep.mubr.bf16.mxu0 %v8245
    %11519 = vmatmul.mubr.bf16.gmra.mrb[0].mxu0 %v8244
    %v11520 = vpop.f32.mrb[0].mxu0
    %v11521 = vadd.f32 %v11468, %v11520
    %v11522 = vpop.f32.mrb[0].mxu0
    %v11523 = vadd.f32 %v11470, %v11522
    %v11524 = vpop.f32.mrb[0].mxu0
    %v11525 = vadd.f32 %v11472, %v11524
    %v11526 = vpop.f32.mrb[0].mxu0
    %v11527 = vadd.f32 %v11474, %v11526
    %11528 = vdwg.mxu0
    %11529 = vmatprep.subr.bf16.mxu0 %v10309
    %11530 = vmatpush1.bf16.msra.mxu0 %v10308
    %11531 = vmatprep.subr.bf16.mxu0 %v10313
    %11532 = vmatpush1.bf16.msra.mxu0 %v10312
    %11533 = vmatprep.subr.bf16.mxu0 %v10317
    %11534 = vmatpush1.bf16.msra.mxu0 %v10316
    %11535 = vmatprep.subr.bf16.mxu0 %v10321
    %11536 = vmatpush1.bf16.msra.mxu0 %v10320
    %11537 = vmatprep.subr.bf16.mxu0 %v10325
    %11538 = vmatpush1.bf16.msra.mxu0 %v10324
    %11539 = vmatprep.subr.bf16.mxu0 %v10329
    %11540 = vmatpush1.bf16.msra.mxu0 %v10328
    %11541 = vmatprep.subr.bf16.mxu0 %v10333
    %11542 = vmatpush1.bf16.msra.mxu0 %v10332
    %11543 = vmatprep.subr.bf16.mxu0 %v10337
    %11544 = vmatpush1.bf16.msra.mxu0 %v10336
    %11545 = vmatprep.subr.bf16.mxu0 %v10341
    %11546 = vmatpush1.bf16.msra.mxu0 %v10340
    %11547 = vmatprep.subr.bf16.mxu0 %v10345
    %11548 = vmatpush1.bf16.msra.mxu0 %v10344
    %11549 = vmatprep.subr.bf16.mxu0 %v10349
    %11550 = vmatpush1.bf16.msra.mxu0 %v10348
    %11551 = vmatprep.subr.bf16.mxu0 %v10353
    %11552 = vmatpush1.bf16.msra.mxu0 %v10352
    %11553 = vmatprep.subr.bf16.mxu0 %v10357
    %11554 = vmatpush1.bf16.msra.mxu0 %v10356
    %11555 = vmatprep.subr.bf16.mxu0 %v10361
    %11556 = vmatpush1.bf16.msra.mxu0 %v10360
    %11557 = vmatprep.subr.bf16.mxu0 %v10365
    %11558 = vmatpush1.bf16.msra.mxu0 %v10364
    %11559 = vmatprep.subr.bf16.mxu0 %v10369
    %11560 = vmatpush1.bf16.msra.mxu0 %v10368
    %11561 = vmatprep.mubr.bf16.mxu0 %v8247
    %11562 = vmatmul.mubr.bf16.gmra.mrb[0].mxu0 %v8246
    %v11563 = vpop.f32.mrb[0].mxu0
    %v11564 = vadd.f32 %v11511, %v11563
    %v11565 = vpop.f32.mrb[0].mxu0
    %v11566 = vadd.f32 %v11513, %v11565
    %v11567 = vpop.f32.mrb[0].mxu0
    %v11568 = vadd.f32 %v11515, %v11567
    %v11569 = vpop.f32.mrb[0].mxu0
    %v11570 = vadd.f32 %v11517, %v11569
    %11571 = vmatprep.mubr.bf16.mxu0 %v8249
    %11572 = vmatmul.mubr.bf16.gmra.mrb[0].mxu0 %v8248
    %v11573 = vpop.f32.mrb[0].mxu0
    %v11574 = vadd.f32 %v11521, %v11573
    %v11575 = vpop.f32.mrb[0].mxu0
    %v11576 = vadd.f32 %v11523, %v11575
    %v11577 = vpop.f32.mrb[0].mxu0
    %v11578 = vadd.f32 %v11525, %v11577
    %v11579 = vpop.f32.mrb[0].mxu0
    %v11580 = vadd.f32 %v11527, %v11579
    %11581 = vdwg.mxu0
    %11582 = vmatprep.subr.bf16.mxu0 %v10373
    %11583 = vmatpush1.bf16.msra.mxu0 %v10372
    %11584 = vmatprep.subr.bf16.mxu0 %v10377
    %11585 = vmatpush1.bf16.msra.mxu0 %v10376
    %11586 = vmatprep.subr.bf16.mxu0 %v10381
    %11587 = vmatpush1.bf16.msra.mxu0 %v10380
    %11588 = vmatprep.subr.bf16.mxu0 %v10385
    %11589 = vmatpush1.bf16.msra.mxu0 %v10384
    %11590 = vmatprep.subr.bf16.mxu0 %v10389
    %11591 = vmatpush1.bf16.msra.mxu0 %v10388
    %11592 = vmatprep.subr.bf16.mxu0 %v10393
    %11593 = vmatpush1.bf16.msra.mxu0 %v10392
    %11594 = vmatprep.subr.bf16.mxu0 %v10397
    %11595 = vmatpush1.bf16.msra.mxu0 %v10396
    %11596 = vmatprep.subr.bf16.mxu0 %v10401
    %11597 = vmatpush1.bf16.msra.mxu0 %v10400
    %11598 = vmatprep.subr.bf16.mxu0 %v10405
    %11599 = vmatpush1.bf16.msra.mxu0 %v10404
    %11600 = vmatprep.subr.bf16.mxu0 %v10409
    %11601 = vmatpush1.bf16.msra.mxu0 %v10408
    %11602 = vmatprep.subr.bf16.mxu0 %v10413
    %11603 = vmatpush1.bf16.msra.mxu0 %v10412
    %11604 = vmatprep.subr.bf16.mxu0 %v10417
    %11605 = vmatpush1.bf16.msra.mxu0 %v10416
    %11606 = vmatprep.subr.bf16.mxu0 %v10421
    %11607 = vmatpush1.bf16.msra.mxu0 %v10420
    %11608 = vmatprep.subr.bf16.mxu0 %v10425
    %11609 = vmatpush1.bf16.msra.mxu0 %v10424
    %11610 = vmatprep.subr.bf16.mxu0 %v10429
    %11611 = vmatpush1.bf16.msra.mxu0 %v10428
    %11612 = vmatprep.subr.bf16.mxu0 %v10433
    %11613 = vmatpush1.bf16.msra.mxu0 %v10432
    %11614 = vmatprep.mubr.bf16.mxu0 %v8251
    %11615 = vmatmul.mubr.bf16.gmra.mrb[0].mxu0 %v8250
    %v11616 = vpop.f32.mrb[0].mxu0
    %v11617 = vadd.f32 %v11564, %v11616
    %v11618 = vpop.f32.mrb[0].mxu0
    %v11619 = vadd.f32 %v11566, %v11618
    %v11620 = vpop.f32.mrb[0].mxu0
    %v11621 = vadd.f32 %v11568, %v11620
    %v11622 = vpop.f32.mrb[0].mxu0
    %v11623 = vadd.f32 %v11570, %v11622
    %11624 = vmatprep.mubr.bf16.mxu0 %v8253
    %11625 = vmatmul.mubr.bf16.gmra.mrb[0].mxu0 %v8252
    %v11626 = vpop.f32.mrb[0].mxu0
    %v11627 = vadd.f32 %v11574, %v11626
    %v11628 = vpop.f32.mrb[0].mxu0
    %v11629 = vadd.f32 %v11576, %v11628
    %v11630 = vpop.f32.mrb[0].mxu0
    %v11631 = vadd.f32 %v11578, %v11630
    %v11632 = vpop.f32.mrb[0].mxu0
    %v11633 = vadd.f32 %v11580, %v11632
    %11634 = vdwg.mxu0
    %11635 = vmatprep.subr.bf16.mxu0 %v10437
    %11636 = vmatpush1.bf16.msra.mxu0 %v10436
    %11637 = vmatprep.subr.bf16.mxu0 %v10441
    %11638 = vmatpush1.bf16.msra.mxu0 %v10440
    %11639 = vmatprep.subr.bf16.mxu0 %v10445
    %11640 = vmatpush1.bf16.msra.mxu0 %v10444
    %11641 = vmatprep.subr.bf16.mxu0 %v10449
    %11642 = vmatpush1.bf16.msra.mxu0 %v10448
    %11643 = vmatprep.subr.bf16.mxu0 %v10453
    %11644 = vmatpush1.bf16.msra.mxu0 %v10452
    %11645 = vmatprep.subr.bf16.mxu0 %v10457
    %11646 = vmatpush1.bf16.msra.mxu0 %v10456
    %11647 = vmatprep.subr.bf16.mxu0 %v10461
    %11648 = vmatpush1.bf16.msra.mxu0 %v10460
    %11649 = vmatprep.subr.bf16.mxu0 %v10465
    %11650 = vmatpush1.bf16.msra.mxu0 %v10464
    %11651 = vmatprep.subr.bf16.mxu0 %v10469
    %11652 = vmatpush1.bf16.msra.mxu0 %v10468
    %11653 = vmatprep.subr.bf16.mxu0 %v10473
    %11654 = vmatpush1.bf16.msra.mxu0 %v10472
    %11655 = vmatprep.subr.bf16.mxu0 %v10477
    %11656 = vmatpush1.bf16.msra.mxu0 %v10476
    %11657 = vmatprep.subr.bf16.mxu0 %v10481
    %11658 = vmatpush1.bf16.msra.mxu0 %v10480
    %11659 = vmatprep.subr.bf16.mxu0 %v10485
    %11660 = vmatpush1.bf16.msra.mxu0 %v10484
    %11661 = vmatprep.subr.bf16.mxu0 %v10489
    %11662 = vmatpush1.bf16.msra.mxu0 %v10488
    %11663 = vmatprep.subr.bf16.mxu0 %v10493
    %11664 = vmatpush1.bf16.msra.mxu0 %v10492
    %11665 = vmatprep.subr.bf16.mxu0 %v10497
    %11666 = vmatpush1.bf16.msra.mxu0 %v10496
    %11667 = vmatprep.mubr.bf16.mxu0 %v8255
    %11668 = vmatmul.mubr.bf16.gmra.mrb[0].mxu0 %v8254
    %v11669 = vpop.f32.mrb[0].mxu0
    %v11670 = vadd.f32 %v11617, %v11669
    %v11671 = vpop.f32.mrb[0].mxu0
    %v11672 = vadd.f32 %v11619, %v11671
    %v11673 = vpop.f32.mrb[0].mxu0
    %v11674 = vadd.f32 %v11621, %v11673
    %v11675 = vpop.f32.mrb[0].mxu0
    %v11676 = vadd.f32 %v11623, %v11675
    %11677 = vmatprep.mubr.bf16.mxu0 %v8257
    %11678 = vmatmul.mubr.bf16.gmra.mrb[0].mxu0 %v8256
    %v11679 = vpop.f32.mrb[0].mxu0
    %v11680 = vadd.f32 %v11627, %v11679
    %v11681 = vpop.f32.mrb[0].mxu0
    %v11682 = vadd.f32 %v11629, %v11681
    %v11683 = vpop.f32.mrb[0].mxu0
    %v11684 = vadd.f32 %v11631, %v11683
    %v11685 = vpop.f32.mrb[0].mxu0
    %v11686 = vadd.f32 %v11633, %v11685
    %11687 = vdwg.mxu0
    %v11688 = vld [vmem:[#allocation13] ss:$2 sm:$0xf]
    %v11690 = vlaneseq
    %v11691 = vshrl.u32 %v11690, 7
    %v11692 = vsub.s32 0, %v11691
    %v11693 = vrot.slane %v11688, %v11692
    %v11694 = vlaneseq
    %v11695 = vshrl.u32 %v11694, 7
    %v11696 = vsub.s32 1, %v11695
    %v11697 = vrot.slane %v11688, %v11696
    %v11698 = vlaneseq
    %v11699 = vshrl.u32 %v11698, 7
    %v11700 = vsub.s32 2, %v11699
    %v11701 = vrot.slane %v11688, %v11700
    %v11702 = vlaneseq
    %v11703 = vshrl.u32 %v11702, 7
    %v11704 = vsub.s32 3, %v11703
    %v11705 = vrot.slane %v11688, %v11704
    %v11710 = vmul.f32 %v11299, %v11693
    %v11711 = vmul.f32 %v11301, %v11697
    %v11712 = vmul.f32 %v11670, %v11701
    %v11713 = vmul.f32 %v11672, %v11705
    %v11714 = vmul.f32 %v11303, %v11693
    %v11715 = vmul.f32 %v11305, %v11697
    %v11716 = vmul.f32 %v11674, %v11701
    %v11717 = vmul.f32 %v11676, %v11705
    %v11718 = vmul.f32 %v11309, %v11693
    %v11719 = vmul.f32 %v11311, %v11697
    %v11720 = vmul.f32 %v11680, %v11701
    %v11721 = vmul.f32 %v11682, %v11705
    %v11722 = vmul.f32 %v11313, %v11693
    %v11723 = vmul.f32 %v11315, %v11697
    %v11724 = vmul.f32 %v11684, %v11701
    %v11725 = vmul.f32 %v11686, %v11705
    %s11726 = scalar_lea.vmem [#allocation13], 1
    %v11727 = vld [vmem:[%s11726] ss:$2 sm:$0xf]
    %v11729 = vlaneseq
    %v11730 = vshrl.u32 %v11729, 7
    %v11731 = vsub.s32 0, %v11730
    %v11732 = vrot.slane %v11727, %v11731
    %v11733 = vlaneseq
    %v11734 = vshrl.u32 %v11733, 7
    %v11735 = vsub.s32 1, %v11734
    %v11736 = vrot.slane %v11727, %v11735
    %v11737 = vlaneseq
    %v11738 = vshrl.u32 %v11737, 7
    %v11739 = vsub.s32 2, %v11738
    %v11740 = vrot.slane %v11727, %v11739
    %v11741 = vlaneseq
    %v11742 = vshrl.u32 %v11741, 7
    %v11743 = vsub.s32 3, %v11742
    %v11744 = vrot.slane %v11727, %v11743
    %v11749 = vadd.f32 %v11710, %v11732
    %v11750 = vadd.f32 %v11711, %v11736
    %v11751 = vadd.f32 %v11712, %v11740
    %v11752 = vadd.f32 %v11713, %v11744
    %v11753 = vadd.f32 %v11714, %v11732
    %v11754 = vadd.f32 %v11715, %v11736
    %v11755 = vadd.f32 %v11716, %v11740
    %v11756 = vadd.f32 %v11717, %v11744
    %v11757 = vadd.f32 %v11718, %v11732
    %v11758 = vadd.f32 %v11719, %v11736
    %v11759 = vadd.f32 %v11720, %v11740
    %v11760 = vadd.f32 %v11721, %v11744
    %v11761 = vadd.f32 %v11722, %v11732
    %v11762 = vadd.f32 %v11723, %v11736
    %v11763 = vadd.f32 %v11724, %v11740
    %v11764 = vadd.f32 %v11725, %v11744
    %v11765 = vmax.f32 %v11749, 0.0
    %v11766 = vmax.f32 %v11750, 0.0
    %v11767 = vmax.f32 %v11751, 0.0
    %v11768 = vmax.f32 %v11752, 0.0
    %v11769 = vmax.f32 %v11753, 0.0
    %v11770 = vmax.f32 %v11754, 0.0
    %v11771 = vmax.f32 %v11755, 0.0
    %v11772 = vmax.f32 %v11756, 0.0
    %v11773 = vmax.f32 %v11757, 0.0
    %v11774 = vmax.f32 %v11758, 0.0
    %v11775 = vmax.f32 %v11759, 0.0
    %v11776 = vmax.f32 %v11760, 0.0
    %v11777 = vmax.f32 %v11761, 0.0
    %v11778 = vmax.f32 %v11762, 0.0
    %v11779 = vmax.f32 %v11763, 0.0
    %v11780 = vmax.f32 %v11764, 0.0
    %v11781 = vpack.c.bf16 %v11769, %v11765
    %v11782 = vpack.c.bf16 %v11770, %v11766
    %v11783 = vpack.c.bf16 %v11771, %v11767
    %v11784 = vpack.c.bf16 %v11772, %v11768
    %v11785 = vpack.c.bf16 %v11777, %v11773
    %v11786 = vpack.c.bf16 %v11778, %v11774
    %v11787 = vpack.c.bf16 %v11779, %v11775
    %v11788 = vpack.c.bf16 %v11780, %v11776
    %v11789 = vld [vmem:[#allocation7] sm:$0xf]
    %v11790 = vld [vmem:[#allocation7 + $0x4] sm:$0xf]
    %v11791 = vld [vmem:[#allocation7 + $0x8] sm:$0xf]
    %v11792 = vld [vmem:[#allocation7 + $0xc] sm:$0xf]
    %v11793 = vld [vmem:[#allocation7 + $0x10] sm:$0xf]
    %v11794 = vld [vmem:[#allocation7 + $0x14] sm:$0xf]
    %v11795 = vld [vmem:[#allocation7 + $0x18] sm:$0xf]
    %v11796 = vld [vmem:[#allocation7 + $0x1c] sm:$0xf]
    %v11797 = vld [vmem:[#allocation7 + $0x20] sm:$0xf]
    %v11798 = vld [vmem:[#allocation7 + $0x24] sm:$0xf]
    %v11799 = vld [vmem:[#allocation7 + $0x28] sm:$0xf]
    %v11800 = vld [vmem:[#allocation7 + $0x2c] sm:$0xf]
    %v11801 = vld [vmem:[#allocation7 + $0x30] sm:$0xf]
    %v11802 = vld [vmem:[#allocation7 + $0x34] sm:$0xf]
    %v11803 = vld [vmem:[#allocation7 + $0x38] sm:$0xf]
    %v11804 = vld [vmem:[#allocation7 + $0x3c] sm:$0xf]
    %v11805 = vld [vmem:[#allocation7 + $0x40] sm:$0xf]
    %v11806 = vld [vmem:[#allocation7 + $0x44] sm:$0xf]
    %v11807 = vld [vmem:[#allocation7 + $0x48] sm:$0xf]
    %v11808 = vld [vmem:[#allocation7 + $0x4c] sm:$0xf]
    %v11809 = vld [vmem:[#allocation7 + $0x50] sm:$0xf]
    %v11810 = vld [vmem:[#allocation7 + $0x54] sm:$0xf]
    %v11811 = vld [vmem:[#allocation7 + $0x58] sm:$0xf]
    %v11812 = vld [vmem:[#allocation7 + $0x5c] sm:$0xf]
    %v11813 = vld [vmem:[#allocation7 + $0x60] sm:$0xf]
    %v11814 = vld [vmem:[#allocation7 + $0x64] sm:$0xf]
    %v11815 = vld [vmem:[#allocation7 + $0x68] sm:$0xf]
    %v11816 = vld [vmem:[#allocation7 + $0x6c] sm:$0xf]
    %v11817 = vld [vmem:[#allocation7 + $0x70] sm:$0xf]
    %v11818 = vld [vmem:[#allocation7 + $0x74] sm:$0xf]
    %v11819 = vld [vmem:[#allocation7 + $0x78] sm:$0xf]
    %v11820 = vld [vmem:[#allocation7 + $0x7c] sm:$0xf]
    %v11821 = vld [vmem:[#allocation7 + $0x80] sm:$0xf]
    %v11822 = vld [vmem:[#allocation7 + $0x84] sm:$0xf]
    %v11823 = vld [vmem:[#allocation7 + $0x88] sm:$0xf]
    %v11824 = vld [vmem:[#allocation7 + $0x8c] sm:$0xf]
    %v11825 = vld [vmem:[#allocation7 + $0x90] sm:$0xf]
    %v11826 = vld [vmem:[#allocation7 + $0x94] sm:$0xf]
    %v11827 = vld [vmem:[#allocation7 + $0x98] sm:$0xf]
    %v11828 = vld [vmem:[#allocation7 + $0x9c] sm:$0xf]
    %v11829 = vld [vmem:[#allocation7 + $0xa0] sm:$0xf]
    %v11830 = vld [vmem:[#allocation7 + $0xa4] sm:$0xf]
    %v11831 = vld [vmem:[#allocation7 + $0xa8] sm:$0xf]
    %v11832 = vld [vmem:[#allocation7 + $0xac] sm:$0xf]
    %v11833 = vld [vmem:[#allocation7 + $0xb0] sm:$0xf]
    %v11834 = vld [vmem:[#allocation7 + $0xb4] sm:$0xf]
    %v11835 = vld [vmem:[#allocation7 + $0xb8] sm:$0xf]
    %v11836 = vld [vmem:[#allocation7 + $0xbc] sm:$0xf]
    %v11837 = vld [vmem:[#allocation7 + $0xc0] sm:$0xf]
    %v11838 = vld [vmem:[#allocation7 + $0xc4] sm:$0xf]
    %v11839 = vld [vmem:[#allocation7 + $0xc8] sm:$0xf]
    %v11840 = vld [vmem:[#allocation7 + $0xcc] sm:$0xf]
    %v11841 = vld [vmem:[#allocation7 + $0xd0] sm:$0xf]
    %v11842 = vld [vmem:[#allocation7 + $0xd4] sm:$0xf]
    %v11843 = vld [vmem:[#allocation7 + $0xd8] sm:$0xf]
    %v11844 = vld [vmem:[#allocation7 + $0xdc] sm:$0xf]
    %v11845 = vld [vmem:[#allocation7 + $0xe0] sm:$0xf]
    %v11846 = vld [vmem:[#allocation7 + $0xe4] sm:$0xf]
    %v11847 = vld [vmem:[#allocation7 + $0xe8] sm:$0xf]
    %v11848 = vld [vmem:[#allocation7 + $0xec] sm:$0xf]
    %v11849 = vld [vmem:[#allocation7 + $0xf0] sm:$0xf]
    %v11850 = vld [vmem:[#allocation7 + $0xf4] sm:$0xf]
    %v11851 = vld [vmem:[#allocation7 + $0xf8] sm:$0xf]
    %v11852 = vld [vmem:[#allocation7 + $0xfc] sm:$0xf]
    %v11917 = vunpack.c.l.b16 %v11789
    %v11918 = vunpack.c.l.b16 %v11790
    %v11919 = vunpack.c.l.b16 %v11791
    %v11920 = vunpack.c.l.b16 %v11792
    %v11921 = vunpack.c.l.b16 %v11793
    %v11922 = vunpack.c.l.b16 %v11794
    %v11923 = vunpack.c.l.b16 %v11795
    %v11924 = vunpack.c.l.b16 %v11796
    %v11925 = vunpack.c.l.b16 %v11797
    %v11926 = vunpack.c.l.b16 %v11798
    %v11927 = vunpack.c.l.b16 %v11799
    %v11928 = vunpack.c.l.b16 %v11800
    %v11929 = vunpack.c.l.b16 %v11801
    %v11930 = vunpack.c.l.b16 %v11802
    %v11931 = vunpack.c.l.b16 %v11803
    %v11932 = vunpack.c.l.b16 %v11804
    %v11933 = vunpack.c.l.b16 %v11805
    %v11934 = vunpack.c.l.b16 %v11806
    %v11935 = vunpack.c.l.b16 %v11807
    %v11936 = vunpack.c.l.b16 %v11808
    %v11937 = vunpack.c.l.b16 %v11809
    %v11938 = vunpack.c.l.b16 %v11810
    %v11939 = vunpack.c.l.b16 %v11811
    %v11940 = vunpack.c.l.b16 %v11812
    %v11941 = vunpack.c.l.b16 %v11813
    %v11942 = vunpack.c.l.b16 %v11814
    %v11943 = vunpack.c.l.b16 %v11815
    %v11944 = vunpack.c.l.b16 %v11816
    %v11945 = vunpack.c.l.b16 %v11817
    %v11946 = vunpack.c.l.b16 %v11818
    %v11947 = vunpack.c.l.b16 %v11819
    %v11948 = vunpack.c.l.b16 %v11820
    %v11949 = vunpack.c.l.b16 %v11821
    %v11950 = vunpack.c.l.b16 %v11822
    %v11951 = vunpack.c.l.b16 %v11823
    %v11952 = vunpack.c.l.b16 %v11824
    %v11953 = vunpack.c.l.b16 %v11825
    %v11954 = vunpack.c.l.b16 %v11826
    %v11955 = vunpack.c.l.b16 %v11827
    %v11956 = vunpack.c.l.b16 %v11828
    %v11957 = vunpack.c.l.b16 %v11829
    %v11958 = vunpack.c.l.b16 %v11830
    %v11959 = vunpack.c.l.b16 %v11831
    %v11960 = vunpack.c.l.b16 %v11832
    %v11961 = vunpack.c.l.b16 %v11833
    %v11962 = vunpack.c.l.b16 %v11834
    %v11963 = vunpack.c.l.b16 %v11835
    %v11964 = vunpack.c.l.b16 %v11836
    %v11965 = vunpack.c.l.b16 %v11837
    %v11966 = vunpack.c.l.b16 %v11838
    %v11967 = vunpack.c.l.b16 %v11839
    %v11968 = vunpack.c.l.b16 %v11840
    %v11969 = vunpack.c.l.b16 %v11841
    %v11970 = vunpack.c.l.b16 %v11842
    %v11971 = vunpack.c.l.b16 %v11843
    %v11972 = vunpack.c.l.b16 %v11844
    %v11973 = vunpack.c.l.b16 %v11845
    %v11974 = vunpack.c.l.b16 %v11846
    %v11975 = vunpack.c.l.b16 %v11847
    %v11976 = vunpack.c.l.b16 %v11848
    %v11977 = vunpack.c.l.b16 %v11849
    %v11978 = vunpack.c.l.b16 %v11850
    %v11979 = vunpack.c.l.b16 %v11851
    %v11980 = vunpack.c.l.b16 %v11852
    %v11981 = vpack.c.b16 %v11918, %v11917
    %v11982 = vpack.c.b16 %v11920, %v11919
    %v11983 = vpack.c.b16 %v11922, %v11921
    %v11984 = vpack.c.b16 %v11924, %v11923
    %v11985 = vpack.c.b16 %v11926, %v11925
    %v11986 = vpack.c.b16 %v11928, %v11927
    %v11987 = vpack.c.b16 %v11930, %v11929
    %v11988 = vpack.c.b16 %v11932, %v11931
    %v11989 = vpack.c.b16 %v11934, %v11933
    %v11990 = vpack.c.b16 %v11936, %v11935
    %v11991 = vpack.c.b16 %v11938, %v11937
    %v11992 = vpack.c.b16 %v11940, %v11939
    %v11993 = vpack.c.b16 %v11942, %v11941
    %v11994 = vpack.c.b16 %v11944, %v11943
    %v11995 = vpack.c.b16 %v11946, %v11945
    %v11996 = vpack.c.b16 %v11948, %v11947
    %v11997 = vpack.c.b16 %v11950, %v11949
    %v11998 = vpack.c.b16 %v11952, %v11951
    %v11999 = vpack.c.b16 %v11954, %v11953
    %v12000 = vpack.c.b16 %v11956, %v11955
    %v12001 = vpack.c.b16 %v11958, %v11957
    %v12002 = vpack.c.b16 %v11960, %v11959
    %v12003 = vpack.c.b16 %v11962, %v11961
    %v12004 = vpack.c.b16 %v11964, %v11963
    %v12005 = vpack.c.b16 %v11966, %v11965
    %v12006 = vpack.c.b16 %v11968, %v11967
    %v12007 = vpack.c.b16 %v11970, %v11969
    %v12008 = vpack.c.b16 %v11972, %v11971
    %v12009 = vpack.c.b16 %v11974, %v11973
    %v12010 = vpack.c.b16 %v11976, %v11975
    %v12011 = vpack.c.b16 %v11978, %v11977
    %v12012 = vpack.c.b16 %v11980, %v11979
    %12045 = vmatprep.subr.bf16.mxu0 0
    %12046 = vmatpush1.bf16.msra.mxu0 %v11981
    %12047 = vmatprep.subr.bf16.mxu0 0
    %12048 = vmatpush1.bf16.msra.mxu0 %v11982
    %12049 = vmatprep.subr.bf16.mxu0 0
    %12050 = vmatpush1.bf16.msra.mxu0 %v11983
    %12051 = vmatprep.subr.bf16.mxu0 0
    %12052 = vmatpush1.bf16.msra.mxu0 %v11984
    %12053 = vmatprep.subr.bf16.mxu0 0
    %12054 = vmatpush1.bf16.msra.mxu0 %v11985
    %12055 = vmatprep.subr.bf16.mxu0 0
    %12056 = vmatpush1.bf16.msra.mxu0 %v11986
    %12057 = vmatprep.subr.bf16.mxu0 0
    %12058 = vmatpush1.bf16.msra.mxu0 %v11987
    %12059 = vmatprep.subr.bf16.mxu0 0
    %12060 = vmatpush1.bf16.msra.mxu0 %v11988
    %12061 = vmatprep.subr.bf16.mxu0 0
    %12062 = vmatpush1.bf16.msra.mxu0 %v11989
    %12063 = vmatprep.subr.bf16.mxu0 0
    %12064 = vmatpush1.bf16.msra.mxu0 %v11990
    %12065 = vmatprep.subr.bf16.mxu0 0
    %12066 = vmatpush1.bf16.msra.mxu0 %v11991
    %12067 = vmatprep.subr.bf16.mxu0 0
    %12068 = vmatpush1.bf16.msra.mxu0 %v11992
    %12069 = vmatprep.subr.bf16.mxu0 0
    %12070 = vmatpush1.bf16.msra.mxu0 %v11993
    %12071 = vmatprep.subr.bf16.mxu0 0
    %12072 = vmatpush1.bf16.msra.mxu0 %v11994
    %12073 = vmatprep.subr.bf16.mxu0 0
    %12074 = vmatpush1.bf16.msra.mxu0 %v11995
    %12075 = vmatprep.subr.bf16.mxu0 0
    %12076 = vmatpush1.bf16.msra.mxu0 %v11996
    %12077 = vmatprep.mubr.bf16.mxu0 %v11782
    %12078 = vmatmul.mubr.bf16.gmra.mrb[0].mxu0 %v11781
    %v12079 = vpop.f32.mrb[0].mxu0
    %v12080 = vadd.f32 0.0, %v12079
    %v12081 = vpop.f32.mrb[0].mxu0
    %v12082 = vpop.f32.mrb[0].mxu0
    %v12083 = vadd.f32 0.0, %v12082
    %v12084 = vpop.f32.mrb[0].mxu0
    %12085 = vmatprep.mubr.bf16.mxu0 %v11786
    %12086 = vmatmul.mubr.bf16.gmra.mrb[0].mxu0 %v11785
    %v12087 = vpop.f32.mrb[0].mxu0
    %v12088 = vadd.f32 0.0, %v12087
    %v12089 = vpop.f32.mrb[0].mxu0
    %v12090 = vpop.f32.mrb[0].mxu0
    %v12091 = vadd.f32 0.0, %v12090
    %v12092 = vpop.f32.mrb[0].mxu0
    %12093 = vdwg.mxu0
    %12094 = vmatprep.subr.bf16.mxu0 0
    %12095 = vmatpush1.bf16.msra.mxu0 %v11997
    %12096 = vmatprep.subr.bf16.mxu0 0
    %12097 = vmatpush1.bf16.msra.mxu0 %v11998
    %12098 = vmatprep.subr.bf16.mxu0 0
    %12099 = vmatpush1.bf16.msra.mxu0 %v11999
    %12100 = vmatprep.subr.bf16.mxu0 0
    %12101 = vmatpush1.bf16.msra.mxu0 %v12000
    %12102 = vmatprep.subr.bf16.mxu0 0
    %12103 = vmatpush1.bf16.msra.mxu0 %v12001
    %12104 = vmatprep.subr.bf16.mxu0 0
    %12105 = vmatpush1.bf16.msra.mxu0 %v12002
    %12106 = vmatprep.subr.bf16.mxu0 0
    %12107 = vmatpush1.bf16.msra.mxu0 %v12003
    %12108 = vmatprep.subr.bf16.mxu0 0
    %12109 = vmatpush1.bf16.msra.mxu0 %v12004
    %12110 = vmatprep.subr.bf16.mxu0 0
    %12111 = vmatpush1.bf16.msra.mxu0 %v12005
    %12112 = vmatprep.subr.bf16.mxu0 0
    %12113 = vmatpush1.bf16.msra.mxu0 %v12006
    %12114 = vmatprep.subr.bf16.mxu0 0
    %12115 = vmatpush1.bf16.msra.mxu0 %v12007
    %12116 = vmatprep.subr.bf16.mxu0 0
    %12117 = vmatpush1.bf16.msra.mxu0 %v12008
    %12118 = vmatprep.subr.bf16.mxu0 0
    %12119 = vmatpush1.bf16.msra.mxu0 %v12009
    %12120 = vmatprep.subr.bf16.mxu0 0
    %12121 = vmatpush1.bf16.msra.mxu0 %v12010
    %12122 = vmatprep.subr.bf16.mxu0 0
    %12123 = vmatpush1.bf16.msra.mxu0 %v12011
    %12124 = vmatprep.subr.bf16.mxu0 0
    %12125 = vmatpush1.bf16.msra.mxu0 %v12012
    %12126 = vmatprep.mubr.bf16.mxu0 %v11784
    %12127 = vmatmul.mubr.bf16.gmra.mrb[0].mxu0 %v11783
    %v12128 = vpop.f32.mrb[0].mxu0
    %v12129 = vadd.f32 %v12080, %v12128
    %v12130 = vpop.f32.mrb[0].mxu0
    %v12131 = vpop.f32.mrb[0].mxu0
    %v12132 = vadd.f32 %v12083, %v12131
    %v12133 = vpop.f32.mrb[0].mxu0
    %12134 = vmatprep.mubr.bf16.mxu0 %v11788
    %12135 = vmatmul.mubr.bf16.gmra.mrb[0].mxu0 %v11787
    %v12136 = vpop.f32.mrb[0].mxu0
    %v12137 = vadd.f32 %v12088, %v12136
    %v12138 = vpop.f32.mrb[0].mxu0
    %v12139 = vpop.f32.mrb[0].mxu0
    %v12140 = vadd.f32 %v12091, %v12139
    %v12141 = vpop.f32.mrb[0].mxu0
    %12142 = vdwg.mxu0
    %v12143 = vld [vmem:[#allocation15] sm:$0x1]
    %v12144 = vlaneseq
    %v12145 = vshrl.u32 %v12144, 7
    %v12146 = vsub.s32 0, %v12145
    %v12147 = vrot.slane %v12143, %v12146
    %v12148 = vmul.f32 %v12129, %v12147
    %v12149 = vmul.f32 %v12132, %v12147
    %v12150 = vmul.f32 %v12137, %v12147
    %v12151 = vmul.f32 %v12140, %v12147
    %v12152 = vld [vmem:[#allocation15 + $0x1] sm:$0x1]
    %v12153 = vlaneseq
    %v12154 = vshrl.u32 %v12153, 7
    %v12155 = vsub.s32 0, %v12154
    %v12156 = vrot.slane %v12152, %v12155
    %v12157 = vadd.f32 %v12148, %v12156
    %v12158 = vadd.f32 %v12149, %v12156
    %v12159 = vadd.f32 %v12150, %v12156
    %v12160 = vadd.f32 %v12151, %v12156
    %v12161 = vmax.f32 %v12157, 0.0
    %v12162 = vmax.f32 %v12158, 0.0
    %v12163 = vmax.f32 %v12159, 0.0
    %v12164 = vmax.f32 %v12160, 0.0
    %v12165 = vpack.c.bf16 %v12162, %v12161
    %v12166 = vpack.c.bf16 %v12164, %v12163
    %v12167 = vld [vmem:[#allocation9] sm:$0xf]
    %v12168 = vld [vmem:[#allocation9 + $0x4] sm:$0xf]
    %v12169 = vld [vmem:[#allocation9 + $0x8] sm:$0xf]
    %v12170 = vld [vmem:[#allocation9 + $0xc] sm:$0xf]
    %v12171 = vld [vmem:[#allocation9 + $0x10] sm:$0xf]
    %v12172 = vld [vmem:[#allocation9 + $0x14] sm:$0xf]
    %v12173 = vld [vmem:[#allocation9 + $0x18] sm:$0xf]
    %v12174 = vld [vmem:[#allocation9 + $0x1c] sm:$0xf]
    %v12175 = vld [vmem:[#allocation9 + $0x20] sm:$0xf]
    %v12176 = vld [vmem:[#allocation9 + $0x24] sm:$0xf]
    %v12177 = vld [vmem:[#allocation9 + $0x28] sm:$0xf]
    %v12178 = vld [vmem:[#allocation9 + $0x2c] sm:$0xf]
    %v12179 = vld [vmem:[#allocation9 + $0x30] sm:$0xf]
    %v12180 = vld [vmem:[#allocation9 + $0x34] sm:$0xf]
    %v12181 = vld [vmem:[#allocation9 + $0x38] sm:$0xf]
    %v12182 = vld [vmem:[#allocation9 + $0x3c] sm:$0xf]
    %v12183 = vld [vmem:[#allocation16] sm:$0x1]
    %v12185 = vlaneseq
    %v12186 = vshrl.u32 %v12185, 7
    %v12187 = vsub.s32 0, %v12186
    %v12188 = vrot.slane %v12183, %v12187
    %v12206 = vunpack.c.l.b16 %v12167
    %v12207 = vunpack.c.l.b16 %v12168
    %v12208 = vunpack.c.l.b16 %v12169
    %v12209 = vunpack.c.l.b16 %v12170
    %v12210 = vunpack.c.l.b16 %v12171
    %v12211 = vunpack.c.l.b16 %v12172
    %v12212 = vunpack.c.l.b16 %v12173
    %v12213 = vunpack.c.l.b16 %v12174
    %v12214 = vunpack.c.l.b16 %v12175
    %v12215 = vunpack.c.l.b16 %v12176
    %v12216 = vunpack.c.l.b16 %v12177
    %v12217 = vunpack.c.l.b16 %v12178
    %v12218 = vunpack.c.l.b16 %v12179
    %v12219 = vunpack.c.l.b16 %v12180
    %v12220 = vunpack.c.l.b16 %v12181
    %v12221 = vunpack.c.l.b16 %v12182
    %v12222 = vpack.c.b16 %v12207, %v12206
    %v12223 = vpack.c.b16 %v12209, %v12208
    %v12224 = vpack.c.b16 %v12211, %v12210
    %v12225 = vpack.c.b16 %v12213, %v12212
    %v12226 = vpack.c.b16 %v12215, %v12214
    %v12227 = vpack.c.b16 %v12217, %v12216
    %v12228 = vpack.c.b16 %v12219, %v12218
    %v12229 = vpack.c.b16 %v12221, %v12220
    %12238 = vmatprep.subr.bf16.mxu0 0
    %12239 = vmatpush1.bf16.msra.mxu0 %v12222
    %12240 = vmatprep.subr.bf16.mxu0 0
    %12241 = vmatpush1.bf16.msra.mxu0 %v12223
    %12242 = vmatprep.subr.bf16.mxu0 0
    %12243 = vmatpush1.bf16.msra.mxu0 %v12224
    %12244 = vmatprep.subr.bf16.mxu0 0
    %12245 = vmatpush1.bf16.msra.mxu0 %v12225
    %12246 = vmatprep.subr.bf16.mxu0 0
    %12247 = vmatpush1.bf16.msra.mxu0 %v12226
    %12248 = vmatprep.subr.bf16.mxu0 0
    %12249 = vmatpush1.bf16.msra.mxu0 %v12227
    %12250 = vmatprep.subr.bf16.mxu0 0
    %12251 = vmatpush1.bf16.msra.mxu0 %v12228
    %12252 = vmatprep.subr.bf16.mxu0 0
    %12253 = vmatpush1.bf16.msra.mxu0 %v12229
    %12254 = vmatprep.subr.bf16.mxu0 0
    %12255 = vmatpush1.bf16.msra.mxu0 0
    %12256 = vmatprep.subr.bf16.mxu0 0
    %12257 = vmatpush1.bf16.msra.mxu0 0
    %12258 = vmatprep.subr.bf16.mxu0 0
    %12259 = vmatpush1.bf16.msra.mxu0 0
    %12260 = vmatprep.subr.bf16.mxu0 0
    %12261 = vmatpush1.bf16.msra.mxu0 0
    %12262 = vmatprep.subr.bf16.mxu0 0
    %12263 = vmatpush1.bf16.msra.mxu0 0
    %12264 = vmatprep.subr.bf16.mxu0 0
    %12265 = vmatpush1.bf16.msra.mxu0 0
    %12266 = vmatprep.subr.bf16.mxu0 0
    %12267 = vmatpush1.bf16.msra.mxu0 0
    %12268 = vmatprep.subr.bf16.mxu0 0
    %12269 = vmatpush1.bf16.msra.mxu0 0
    %12270 = vmatprep.mubr.bf16.mxu0 0
    %12271 = vmatmul.mubr.bf16.gmra.mrb[0].mxu0 %v12165
    %v12272 = vpop.f32.mrb[0].mxu0
    %v12273 = vadd.f32 %v12188, %v12272
    %v12274 = vpop.f32.mrb[0].mxu0
    %v12275 = vpop.f32.mrb[0].mxu0
    %v12276 = vadd.f32 %v12188, %v12275
    %v12277 = vpop.f32.mrb[0].mxu0
    %12278 = vmatprep.mubr.bf16.mxu0 0
    %12279 = vmatmul.mubr.bf16.gmra.mrb[0].mxu0 %v12166
    %v12280 = vpop.f32.mrb[0].mxu0
    %v12281 = vadd.f32 %v12188, %v12280
    %v12282 = vpop.f32.mrb[0].mxu0
    %v12283 = vpop.f32.mrb[0].mxu0
    %v12284 = vadd.f32 %v12188, %v12283
    %v12285 = vpop.f32.mrb[0].mxu0
    %12286 = vdwg.mxu0
    %12287 = vst [vmem:[%s11] sm:$0xff] %v12273
    %12288 = vst [vmem:[%s11 + $0x8] sm:$0xff] %v12276
    %12289 = vst [vmem:[%s11 + $0x10] sm:$0xff] %v12281
    %12290 = vst [vmem:[%s11 + $0x18] sm:$0xff] %v12284
    // Predicated region
    $region86: #{conv_neural_network_forward.1} parent=1 // pred_check
      _
    $region87: #{conv_neural_network_forward.1} parent=1 // pred_check_branch
      %12292 = sbr.rel (0) target = $region89
    $region88: #{conv_neural_network_forward.1} parent=1 // pred_region
      _
    $region89: #{conv_neural_network_forward.1} parent=1 // pred_fallthru
      _
    // Predicated region
    $region90: #{conv_neural_network_forward.1} parent=1 // pred_check
      _
    $region91: #{conv_neural_network_forward.1} parent=1 // pred_check_branch
      %12294 = sbr.rel (0) target = $region93
    $region92: #{conv_neural_network_forward.1} parent=1 // pred_region
      _
    $region93: #{conv_neural_network_forward.1} parent=1 // pred_fallthru
      _
    %12295 = vsyncpa [#allocation3], 1
    %12296 = vsyncpa [#allocation5], 1
    %12297 = vsyncpa [#allocation8], 1
    %12298 = vsyncpa [#allocation11], 1
    %12299 = vsyncpa [#allocation14], 1
    %12300 = vsyncpa [#allocation17], 1

</llo_original>
